<compile_context>
chip_gen: v5e
topology: v5e:2x2
jax: 0.10.0
libtpu: 0.0.40
codegen_flags: <defaults>
</compile_context>

<pallas_src>
import numpy as np
import jax
import jax.numpy as jnp
from jax.experimental import pallas as pl
from jax.experimental.pallas import tpu as pltpu

NEG_SLOPE = 0.02   # TODO(synk): confirm vs original (PyTorch LeakyReLU default is 0.01)

EMB = 32           # decoder_input_embbeding_size
HID = 64           # decoder hidden width (true)
HIDP = 128         # hidden width zero-padded to a full lane tile
W3_ROWS = 16       # padded row count for the 1-wide output projection (bf16 tile)
COORD_ROWS = 8     # coords (3) zero-padded to a full f32 sublane tile
VOX = 8            # encoder voxel resolution
MAX_TILE_N = 4096  # decoder point tile upper bound (fits easily in v7x VMEM)


# ----------------------------------------------------------------------------
# Parameters (PyTorch layout) + one-time host-side preparation
# ----------------------------------------------------------------------------
def init_params(key):
    def nrm(k, shape, scale=0.05):
        return scale * jax.random.normal(k, shape, dtype=jnp.float32)

    ks = jax.random.split(key, 12)
    return {
        # CNN3D encoder: 1 -> 8 -> 16 -> EMB, stride-2 convs
        "c1_w": nrm(ks[0], (8, 1, 4, 4, 4)),    "c1_b": nrm(ks[1], (8,)),
        "c2_w": nrm(ks[2], (16, 8, 4, 4, 4)),   "c2_b": nrm(ks[3], (16,)),
        "c3_w": nrm(ks[4], (EMB, 16, 2, 2, 2)), "c3_b": nrm(ks[5], (EMB,)),
        # implicit decoder MLP: (3 + EMB) -> HID -> HID -> 1
        "w1": nrm(ks[6], (3 + EMB, HID)), "b1": nrm(ks[7], (1, HID)),
        "w2": nrm(ks[8], (HID, HID)),     "b2": nrm(ks[9], (1, HID)),
        "w3": nrm(ks[10], (HID, 1)),      "b3": nrm(ks[11], (1, 1)),
    }


def _conv_as_dense(w, b, in_size, stride, pad):
    """Expand a Conv3d (PyTorch OIDHW weights, NCDHW data) into a dense matrix
    so that  flatten(x, (ci,z,y,x)) @ W + bias == flatten(y, (co,od,oh,ow)).
    Exact (out-of-bounds taps == zero padding)."""
    w = np.asarray(w, np.float32)
    b = np.asarray(b, np.float32)
    Cout, Cin, k = w.shape[0], w.shape[1], w.shape[2]
    S = in_size
    oS = (S + 2 * pad - k) // stride + 1
    W = np.zeros((Cin * S ** 3, Cout * oS ** 3), np.float32)
    ci_off = np.arange(Cin) * S ** 3
    co_off = np.arange(Cout) * oS ** 3
    for od in range(oS):
        for oh in range(oS):
            for ow in range(oS):
                col0 = (od * oS + oh) * oS + ow
                for dz in range(k):
                    z = od * stride + dz - pad
                    if z < 0 or z >= S:
                        continue
                    for dy in range(k):
                        y = oh * stride + dy - pad
                        if y < 0 or y >= S:
                            continue
                        for dx in range(k):
                            x = ow * stride + dx - pad
                            if x < 0 or x >= S:
                                continue
                            row0 = (z * S + y) * S + x
                            W[row0 + ci_off[:, None],
                              col0 + co_off[None, :]] = w[:, :, dz, dy, dx].T
    bias = np.repeat(b, oS ** 3)[None, :]
    return W, bias, oS


def prepare_params(p):
    """One-time, host-side preprocessing: fused dense encoder matrices (bf16)
    and padded / transposed / bf16 decoder weights."""
    e_w1, e_b1, s1 = _conv_as_dense(p["c1_w"], p["c1_b"], VOX, 2, 1)
    e_w2, e_b2, s2 = _conv_as_dense(p["c2_w"], p["c2_b"], s1, 2, 1)
    e_w3, e_b3, _ = _conv_as_dense(p["c3_w"], p["c3_b"], s2, 2, 0)

    def pad_to(a, shape):
        out = np.zeros(shape, np.float32)
        a = np.asarray(a, np.float32)
        out[:a.shape[0], :a.shape[1]] = a
        return out

    w1 = np.asarray(p["w1"], np.float32)              # [3+EMB, HID]
    w1c_t = pad_to(w1[:3].T, (HIDP, COORD_ROWS))      # [HIDP, 8]
    w1e_t = pad_to(w1[3:].T, (HIDP, EMB))             # [HIDP, EMB] (VPU, f32)
    b1_t = pad_to(np.asarray(p["b1"]).T, (HIDP, 1))
    w2_t = pad_to(np.asarray(p["w2"]).T, (HIDP, HIDP))
    b2_t = pad_to(np.asarray(p["b2"]).T, (HIDP, 1))
    w3_t = pad_to(np.asarray(p["w3"]).T, (W3_ROWS, HIDP))
    # Fold b3 into the weights: make padded hidden unit (HIDP-1) a constant 1
    # (bias 1, zero incoming weights) and give it weight b3 in the last layer.
    b2_t[HIDP - 1, 0] = 1.0
    w3_t[0, HIDP - 1] = float(np.asarray(p["b3"]).reshape(()))

    bf16 = jnp.bfloat16
    return {
        # encoder (bf16 MXU operands, f32 biases)
        "enc_w1": jnp.asarray(e_w1, dtype=bf16), "enc_b1": jnp.asarray(e_b1),
        "enc_w2": jnp.asarray(e_w2, dtype=bf16), "enc_b2": jnp.asarray(e_b2),
        "enc_w3": jnp.asarray(e_w3, dtype=bf16), "enc_b3": jnp.asarray(e_b3),
        # decoder
        "dec_w1c": jnp.asarray(w1c_t, dtype=bf16),   # bf16 MXU operand
        "dec_w1e": jnp.asarray(w1e_t),               # f32 (VPU, once/batch)
        "dec_b1": jnp.asarray(b1_t),                 # f32
        "dec_w2": jnp.asarray(w2_t, dtype=bf16),     # bf16 MXU operand
        "dec_b2": jnp.asarray(b2_t),                 # f32
        "dec_w3": jnp.asarray(w3_t, dtype=bf16),     # bf16 MXU operand
    }


# ----------------------------------------------------------------------------
# Fused encoder + decoder kernel
#   grid = (B, n_point_tiles), dimension_semantics = ("parallel", "arbitrary")
# ----------------------------------------------------------------------------
def autoencoder_kernel(vox_ref, ew1_ref, eb1_ref, ew2_ref, eb2_ref,
                       ew3_ref, eb3_ref, w1e_ref, b1_ref,
                       x_ref, w1c_ref, w2_ref, b2_ref, w3_ref,
                       o_ref, cond_sc):
    # vox_ref: [1, 512] f32          enc weights: bf16, biases f32
    # w1e_ref: [HIDP, EMB] f32       b1_ref: [HIDP, 1] f32
    # x_ref:   [COORD_ROWS, T] f32   (rows 3.. are zero)
    # w1c_ref: [HIDP, COORD_ROWS] bf16
    # w2_ref:  [HIDP, HIDP] bf16     b2_ref: [HIDP, 1] f32
    # w3_ref:  [W3_ROWS, HIDP] bf16  (row 0 live, b3 folded in)
    # o_ref:   [1, T] f32            cond_sc: [HIDP, 1] f32 scratch

    # --- Encoder + conditioning: once per batch item (first point tile) ----
    @pl.when(pl.program_id(1) == 0)
    def _():
        v = vox_ref[...].astype(jnp.bfloat16)                      # [1, 512]
        h = jnp.dot(v, ew1_ref[...], preferred_element_type=jnp.float32)
        h = h + eb1_ref[...]
        h = jnp.where(h > 0, h, NEG_SLOPE * h)
        h = jnp.dot(h.astype(jnp.bfloat16), ew2_ref[...],
                    preferred_element_type=jnp.float32) + eb2_ref[...]
        h = jnp.where(h > 0, h, NEG_SLOPE * h)
        h = jnp.dot(h.astype(jnp.bfloat16), ew3_ref[...],
                    preferred_element_type=jnp.float32) + eb3_ref[...]
        emb = jax.nn.sigmoid(h)                                    # [1, EMB]
        cond_sc[...] = (jnp.sum(w1e_ref[...] * emb, axis=1, keepdims=True)
                        + b1_ref[...])                             # [HIDP, 1]

    # --- Implicit decoder MLP on a feature-major [*, T] slab ---------------
    h = jnp.dot(w1c_ref[...], x_ref[...].astype(jnp.bfloat16),
                preferred_element_type=jnp.float32)                # [HIDP, T]
    h = h + cond_sc[...]
    h = jnp.where(h > 0, h, NEG_SLOPE * h)
    h = jnp.dot(w2_ref[...], h.astype(jnp.bfloat16),
                preferred_element_type=jnp.float32) + b2_ref[...]
    h = jnp.where(h > 0, h, NEG_SLOPE * h)
    out = jnp.dot(w3_ref[...], h.astype(jnp.bfloat16),
                  preferred_element_type=jnp.float32)              # [16, T]
    o_ref[...] = out[0:1, :]                                       # lane-dense


def _round_up(x, m):
    return ((x + m - 1) // m) * m


def _autoencoder_forward_impl(pp, voxels, coordinates):
    """voxels: [B, 1, VOX, VOX, VOX], coordinates: [B, N, 3] -> [B, N, 1]."""
    B = voxels.shape[0]
    N = coordinates.shape[1]

    # Pad the point axis UP to a multiple of the chosen tile (no divisibility
    # cliff); N=3000 -> one 3072-wide tile per batch item.
    tile = min(MAX_TILE_N, _round_up(N, 512))
    n_pad = _round_up(N, tile)
    n_tiles = n_pad // tile

    vox_flat = voxels.astype(jnp.float32).reshape(B, 1, VOX ** 3)
    coords_t = jnp.transpose(coordinates.astype(jnp.float32), (0, 2, 1))
    coords_t = jnp.pad(coords_t,
                       ((0, 0), (0, COORD_ROWS - 3), (0, n_pad - N)))

    ew1, ew2, ew3 = pp["enc_w1"], pp["enc_w2"], pp["enc_w3"]

    flops = (2 * B * (ew1.shape[0] * ew1.shape[1]
                      + ew2.shape[0] * ew2.shape[1]
                      + ew3.shape[0] * ew3.shape[1])
             + 2 * B * n_pad * (COORD_ROWS * HIDP + HIDP * HIDP
                                + W3_ROWS * HIDP))
    bytes_accessed = (coords_t.size * 4 + B * n_pad * 4 + vox_flat.size * 4
                      + (ew1.size + ew2.size + ew3.size) * 2
                      + (HIDP * HIDP + W3_ROWS * HIDP
                         + HIDP * COORD_ROWS) * 2
                      + HIDP * (EMB + 2) * 4)
    cost = pl.CostEstimate(flops=flops, transcendentals=B * EMB,
                           bytes_accessed=bytes_accessed)

    const2 = lambda b, t: (0, 0)

    out = pl.pallas_call(
        autoencoder_kernel,
        out_shape=jax.ShapeDtypeStruct((B, 1, n_pad), jnp.float32),
        grid=(B, n_tiles),
        in_specs=[
            pl.BlockSpec((None, 1, VOX ** 3), lambda b, t: (b, 0, 0)),   # voxels
            pl.BlockSpec(ew1.shape, const2),                             # enc_w1
            pl.BlockSpec(pp["enc_b1"].shape, const2),                    # enc_b1
            pl.BlockSpec(ew2.shape, const2),                             # enc_w2
            pl.BlockSpec(pp["enc_b2"].shape, const2),                    # enc_b2
            pl.BlockSpec(ew3.shape, const2),                             # enc_w3
            pl.BlockSpec(pp["enc_b3"].shape, const2),                    # enc_b3
            pl.BlockSpec((HIDP, EMB), const2),                           # dec_w1e
            pl.BlockSpec((HIDP, 1), const2),                             # dec_b1
            pl.BlockSpec((None, COORD_ROWS, tile), lambda b, t: (b, 0, t)),
            pl.BlockSpec((HIDP, COORD_ROWS), const2),                    # dec_w1c
            pl.BlockSpec((HIDP, HIDP), const2),                          # dec_w2
            pl.BlockSpec((HIDP, 1), const2),                             # dec_b2
            pl.BlockSpec((W3_ROWS, HIDP), const2),                       # dec_w3
        ],
        out_specs=pl.BlockSpec((None, 1, tile), lambda b, t: (b, 0, t)),
        scratch_shapes=[pltpu.VMEM((HIDP, 1), jnp.float32)],
        compiler_params=pltpu.CompilerParams(
            dimension_semantics=("parallel", "arbitrary")),
        cost_estimate=cost,
    )(vox_flat, pp["enc_w1"], pp["enc_b1"], pp["enc_w2"], pp["enc_b2"],
      pp["enc_w3"], pp["enc_b3"], pp["dec_w1e"], pp["dec_b1"],
      coords_t, pp["dec_w1c"], pp["dec_w2"], pp["dec_b2"], pp["dec_w3"])

    return out[:, 0, :N].reshape(B, N, 1)


@jax.jit
def autoencoder_forward(prepped_params, inputs, coordinates_inputs):
    return _autoencoder_forward_impl(prepped_params, inputs,
                                     coordinates_inputs)


# ----------------------------------------------------------------------------
# Pure-JAX reference (uses the raw PyTorch-layout parameters, f32 end-to-end)
# ----------------------------------------------------------------------------
def _ref_conv(x, w, b, stride, pad, act):
    y = jax.lax.conv_general_dilated(
        x, w, window_strides=(stride,) * 3, padding=[(pad, pad)] * 3,
        dimension_numbers=("NCDHW", "OIDHW", "NCDHW"))
    y = y + b.reshape(1, -1, 1, 1, 1)
    if act == "leaky":
        return jnp.where(y > 0, y, NEG_SLOPE * y)
    return jax.nn.sigmoid(y)


def reference_forward(params, voxels, coords):
    h = _ref_conv(voxels, params["c1_w"], params["c1_b"], 2, 1, "leaky")
    h = _ref_conv(h, params["c2_w"], params["c2_b"], 2, 1, "leaky")
    h = _ref_conv(h, params["c3_w"], params["c3_b"], 2, 0, "sigmoid")
    emb = h.reshape(h.shape[0], EMB)
    B, N, _ = coords.shape
    x = jnp.concatenate(
        [coords, jnp.broadcast_to(emb[:, None, :], (B, N, EMB))], axis=-1)
    h = x @ params["w1"] + params["b1"]
    h = jnp.where(h > 0, h, NEG_SLOPE * h)
    h = h @ params["w2"] + params["b2"]
    h = jnp.where(h > 0, h, NEG_SLOPE * h)
    h = h @ params["w3"] + params["b3"]
    return h


# ----------------------------------------------------------------------------
if __name__ == "__main__":
    key = jax.random.PRNGKey(0)
    k_par, k_vox, k_pts = jax.random.split(key, 3)

    B, N = 2, 3000
    params = init_params(k_par)
    prepped = prepare_params(params)

    voxels = jax.random.uniform(k_vox, (B, 1, VOX, VOX, VOX), dtype=jnp.float32)
    coords = jax.random.uniform(k_pts, (B, N, 3), dtype=jnp.float32,
                                minval=-1.0, maxval=1.0)

    out = autoencoder_forward(prepped, voxels, coords)
    out = jax.block_until_ready(out)

    ref = reference_forward(params, voxels, coords)
    assert out.shape == (B, N, 1), out.shape
    assert jnp.allclose(out, ref, rtol=2e-2, atol=2e-2), \
        float(jnp.max(jnp.abs(out - ref)))

    print("KERNEL_OK")
</pallas_src>

<mosaic_0001>
module attributes {stable_mosaic.version = 11 : i64} {
  func.func @autoencoder_kernel(%arg0: i32, %arg1: i32, %arg2: memref<1x1x512xf32, #tpu.memory_space<vmem>>, %arg3: memref<512x512xbf16, #tpu.memory_space<vmem>>, %arg4: memref<1x512xf32, #tpu.memory_space<vmem>>, %arg5: memref<512x128xbf16, #tpu.memory_space<vmem>>, %arg6: memref<1x128xf32, #tpu.memory_space<vmem>>, %arg7: memref<128x32xbf16, #tpu.memory_space<vmem>>, %arg8: memref<1x32xf32, #tpu.memory_space<vmem>>, %arg9: memref<128x32xf32, #tpu.memory_space<vmem>>, %arg10: memref<128x1xf32, #tpu.memory_space<vmem>>, %arg11: memref<1x8x3072xf32, #tpu.memory_space<vmem>>, %arg12: memref<128x8xbf16, #tpu.memory_space<vmem>>, %arg13: memref<128x128xbf16, #tpu.memory_space<vmem>>, %arg14: memref<128x1xf32, #tpu.memory_space<vmem>>, %arg15: memref<16x128xbf16, #tpu.memory_space<vmem>>, %arg16: memref<1x1x3072xf32, #tpu.memory_space<vmem>>, %arg17: memref<128x1xf32, #tpu.memory_space<vmem>>) attributes {dimension_semantics = [#tpu.dimension_semantics<parallel>, #tpu.dimension_semantics<arbitrary>], iteration_bounds = array<i64: 2, 1>, scalar_prefetch = 0 : i64, scratch_operands = 1 : i64, tpu.core_type = #tpu.core_type<tc>, window_params = [{transform_indices = @transform_0, window_bounds = array<i64: 1, 1, 512>}, {pipeline_mode = #tpu.pipeline_mode<synchronous>, transform_indices = @transform_1, window_bounds = array<i64: 512, 512>}, {pipeline_mode = #tpu.pipeline_mode<synchronous>, transform_indices = @transform_2, window_bounds = array<i64: 1, 512>}, {pipeline_mode = #tpu.pipeline_mode<synchronous>, transform_indices = @transform_3, window_bounds = array<i64: 512, 128>}, {pipeline_mode = #tpu.pipeline_mode<synchronous>, transform_indices = @transform_4, window_bounds = array<i64: 1, 128>}, {pipeline_mode = #tpu.pipeline_mode<synchronous>, transform_indices = @transform_5, window_bounds = array<i64: 128, 32>}, {pipeline_mode = #tpu.pipeline_mode<synchronous>, transform_indices = @transform_6, window_bounds = array<i64: 1, 32>}, {pipeline_mode = #tpu.pipeline_mode<synchronous>, transform_indices = @transform_7, window_bounds = array<i64: 128, 32>}, {pipeline_mode = #tpu.pipeline_mode<synchronous>, transform_indices = @transform_8, window_bounds = array<i64: 128, 1>}, {transform_indices = @transform_9, window_bounds = array<i64: 1, 8, 3072>}, {pipeline_mode = #tpu.pipeline_mode<synchronous>, transform_indices = @transform_10, window_bounds = array<i64: 128, 8>}, {pipeline_mode = #tpu.pipeline_mode<synchronous>, transform_indices = @transform_11, window_bounds = array<i64: 128, 128>}, {pipeline_mode = #tpu.pipeline_mode<synchronous>, transform_indices = @transform_12, window_bounds = array<i64: 128, 1>}, {pipeline_mode = #tpu.pipeline_mode<synchronous>, transform_indices = @transform_13, window_bounds = array<i64: 16, 128>}, {transform_indices = @transform_14, window_bounds = array<i64: 1, 1, 3072>}]} {
    %c0_i32 = arith.constant 0 : i32
    %0 = arith.cmpi eq, %arg1, %c0_i32 : i32
    %1 = arith.extui %0 : i1 to i32
    %c0_i32_0 = arith.constant 0 : i32
    %2 = arith.cmpi ne, %1, %c0_i32_0 : i32
    scf.if %2 {
      %c0_22 = arith.constant 0 : index
      %c0_23 = arith.constant 0 : index
      %c0_24 = arith.constant 0 : index
      %34 = vector.load %arg2[%c0_22, %c0_23, %c0_24] : memref<1x1x512xf32, #tpu.memory_space<vmem>>, vector<1x1x512xf32>
      %35 = vector.shape_cast %34 : vector<1x1x512xf32> to vector<1x512xf32>
      %36 = arith.truncf %35 : vector<1x512xf32> to vector<1x512xbf16>
      %c0_25 = arith.constant 0 : index
      %c0_26 = arith.constant 0 : index
      %37 = vector.load %arg3[%c0_25, %c0_26] : memref<512x512xbf16, #tpu.memory_space<vmem>>, vector<512x512xbf16>
      %cst_27 = arith.constant dense<0.000000e+00> : vector<1x512xf32>
      %38 = tpu.matmul %36, %37, %cst_27 {dimension_numbers = #tpu.dot_dimension_numbers<[1], [0], [0], [1], [0, 0, 1, 1], [], []>} : vector<1x512xbf16>, vector<512x512xbf16>, vector<1x512xf32> -> vector<1x512xf32>
      %c0_28 = arith.constant 0 : index
      %c0_29 = arith.constant 0 : index
      %39 = vector.load %arg4[%c0_28, %c0_29] : memref<1x512xf32, #tpu.memory_space<vmem>>, vector<1x512xf32>
      %40 = arith.addf %38, %39 : vector<1x512xf32>
      %cst_30 = arith.constant 0.000000e+00 : f32
      %41 = vector.broadcast %cst_30 : f32 to vector<1x512xf32>
      %42 = arith.cmpf ogt, %40, %41 : vector<1x512xf32>
      %cst_31 = arith.constant 2.000000e-02 : f32
      %43 = vector.broadcast %cst_31 : f32 to vector<1x512xf32>
      %44 = arith.mulf %43, %40 : vector<1x512xf32>
      %45 = arith.select %42, %40, %44 : vector<1x512xi1>, vector<1x512xf32>
      %46 = arith.truncf %45 : vector<1x512xf32> to vector<1x512xbf16>
      %c0_32 = arith.constant 0 : index
      %c0_33 = arith.constant 0 : index
      %47 = vector.load %arg5[%c0_32, %c0_33] : memref<512x128xbf16, #tpu.memory_space<vmem>>, vector<512x128xbf16>
      %cst_34 = arith.constant dense<0.000000e+00> : vector<1x128xf32>
      %48 = tpu.matmul %46, %47, %cst_34 {dimension_numbers = #tpu.dot_dimension_numbers<[1], [0], [0], [1], [0, 0, 1, 1], [], []>} : vector<1x512xbf16>, vector<512x128xbf16>, vector<1x128xf32> -> vector<1x128xf32>
      %c0_35 = arith.constant 0 : index
      %c0_36 = arith.constant 0 : index
      %49 = vector.load %arg6[%c0_35, %c0_36] : memref<1x128xf32, #tpu.memory_space<vmem>>, vector<1x128xf32>
      %50 = arith.addf %48, %49 : vector<1x128xf32>
      %cst_37 = arith.constant 0.000000e+00 : f32
      %51 = vector.broadcast %cst_37 : f32 to vector<1x128xf32>
      %52 = arith.cmpf ogt, %50, %51 : vector<1x128xf32>
      %cst_38 = arith.constant 2.000000e-02 : f32
      %53 = vector.broadcast %cst_38 : f32 to vector<1x128xf32>
      %54 = arith.mulf %53, %50 : vector<1x128xf32>
      %55 = arith.select %52, %50, %54 : vector<1x128xi1>, vector<1x128xf32>
      %56 = arith.truncf %55 : vector<1x128xf32> to vector<1x128xbf16>
      %c0_39 = arith.constant 0 : index
      %c0_40 = arith.constant 0 : index
      %57 = vector.load %arg7[%c0_39, %c0_40] : memref<128x32xbf16, #tpu.memory_space<vmem>>, vector<128x32xbf16>
      %cst_41 = arith.constant dense<0.000000e+00> : vector<1x32xf32>
      %58 = tpu.matmul %56, %57, %cst_41 {dimension_numbers = #tpu.dot_dimension_numbers<[1], [0], [0], [1], [0, 0, 1, 1], [], []>} : vector<1x128xbf16>, vector<128x32xbf16>, vector<1x32xf32> -> vector<1x32xf32>
      %c0_42 = arith.constant 0 : index
      %c0_43 = arith.constant 0 : index
      %59 = vector.load %arg8[%c0_42, %c0_43] : memref<1x32xf32, #tpu.memory_space<vmem>>, vector<1x32xf32>
      %60 = arith.addf %58, %59 : vector<1x32xf32>
      %61 = arith.negf %60 : vector<1x32xf32>
      %62 = math.exp %61 : vector<1x32xf32>
      %cst_44 = arith.constant 1.000000e+00 : f32
      %63 = vector.broadcast %cst_44 : f32 to vector<1x32xf32>
      %64 = arith.addf %63, %62 : vector<1x32xf32>
      %65 = arith.divf %63, %64 : vector<1x32xf32>
      %c0_45 = arith.constant 0 : index
      %c0_46 = arith.constant 0 : index
      %66 = vector.load %arg9[%c0_45, %c0_46] : memref<128x32xf32, #tpu.memory_space<vmem>>, vector<128x32xf32>
      %67 = vector.broadcast %65 : vector<1x32xf32> to vector<128x32xf32>
      %68 = arith.mulf %66, %67 : vector<128x32xf32>
      %cst_47 = arith.constant dense<0.000000e+00> : vector<128xf32>
      %69 = vector.multi_reduction <add>, %68, %cst_47 [1] : vector<128x32xf32> to vector<128xf32>
      %70 = vector.shape_cast %69 : vector<128xf32> to vector<128x1xf32>
      %c0_48 = arith.constant 0 : index
      %c0_49 = arith.constant 0 : index
      %71 = vector.load %arg10[%c0_48, %c0_49] : memref<128x1xf32, #tpu.memory_space<vmem>>, vector<128x1xf32>
      %72 = arith.addf %70, %71 : vector<128x1xf32>
      %c0_50 = arith.constant 0 : index
      %c0_51 = arith.constant 0 : index
      %73 = vector.load %arg17[%c0_50, %c0_51] : memref<128x1xf32, #tpu.memory_space<vmem>>, vector<128x1xf32>
      tpu.vector_store %arg17[%c0_50, %c0_51], %72 {strides = array<i32>} : memref<128x1xf32, #tpu.memory_space<vmem>>, vector<128x1xf32>,
    } else {
    }
    %c0 = arith.constant 0 : index
    %c0_1 = arith.constant 0 : index
    %3 = vector.load %arg12[%c0, %c0_1] : memref<128x8xbf16, #tpu.memory_space<vmem>>, vector<128x8xbf16>
    %c0_2 = arith.constant 0 : index
    %c0_3 = arith.constant 0 : index
    %c0_4 = arith.constant 0 : index
    %4 = vector.load %arg11[%c0_2, %c0_3, %c0_4] : memref<1x8x3072xf32, #tpu.memory_space<vmem>>, vector<1x8x3072xf32>
    %5 = vector.shape_cast %4 : vector<1x8x3072xf32> to vector<8x3072xf32>
    %6 = arith.truncf %5 : vector<8x3072xf32> to vector<8x3072xbf16>
    %cst = arith.constant dense<0.000000e+00> : vector<128x3072xf32>
    %7 = tpu.matmul %3, %6, %cst {dimension_numbers = #tpu.dot_dimension_numbers<[1], [0], [0], [1], [0, 0, 1, 1], [], []>} : vector<128x8xbf16>, vector<8x3072xbf16>, vector<128x3072xf32> -> vector<128x3072xf32>
    %c0_5 = arith.constant 0 : index
    %c0_6 = arith.constant 0 : index
    %8 = vector.load %arg17[%c0_5, %c0_6] : memref<128x1xf32, #tpu.memory_space<vmem>>, vector<128x1xf32>
    %9 = vector.broadcast %8 : vector<128x1xf32> to vector<128x3072xf32>
    %10 = arith.addf %7, %9 : vector<128x3072xf32>
    %cst_7 = arith.constant 0.000000e+00 : f32
    %11 = vector.broadcast %cst_7 : f32 to vector<128x3072xf32>
    %12 = arith.cmpf ogt, %10, %11 : vector<128x3072xf32>
    %cst_8 = arith.constant 2.000000e-02 : f32
    %13 = vector.broadcast %cst_8 : f32 to vector<128x3072xf32>
    %14 = arith.mulf %13, %10 : vector<128x3072xf32>
    %15 = arith.select %12, %10, %14 : vector<128x3072xi1>, vector<128x3072xf32>
    %c0_9 = arith.constant 0 : index
    %c0_10 = arith.constant 0 : index
    %16 = vector.load %arg13[%c0_9, %c0_10] : memref<128x128xbf16, #tpu.memory_space<vmem>>, vector<128x128xbf16>
    %17 = arith.truncf %15 : vector<128x3072xf32> to vector<128x3072xbf16>
    %cst_11 = arith.constant dense<0.000000e+00> : vector<128x3072xf32>
    %18 = tpu.matmul %16, %17, %cst_11 {dimension_numbers = #tpu.dot_dimension_numbers<[1], [0], [0], [1], [0, 0, 1, 1], [], []>} : vector<128x128xbf16>, vector<128x3072xbf16>, vector<128x3072xf32> -> vector<128x3072xf32>
    %c0_12 = arith.constant 0 : index
    %c0_13 = arith.constant 0 : index
    %19 = vector.load %arg14[%c0_12, %c0_13] : memref<128x1xf32, #tpu.memory_space<vmem>>, vector<128x1xf32>
    %20 = vector.broadcast %19 : vector<128x1xf32> to vector<128x3072xf32>
    %21 = arith.addf %18, %20 : vector<128x3072xf32>
    %cst_14 = arith.constant 0.000000e+00 : f32
    %22 = vector.broadcast %cst_14 : f32 to vector<128x3072xf32>
    %23 = arith.cmpf ogt, %21, %22 : vector<128x3072xf32>
    %cst_15 = arith.constant 2.000000e-02 : f32
    %24 = vector.broadcast %cst_15 : f32 to vector<128x3072xf32>
    %25 = arith.mulf %24, %21 : vector<128x3072xf32>
    %26 = arith.select %23, %21, %25 : vector<128x3072xi1>, vector<128x3072xf32>
    %c0_16 = arith.constant 0 : index
    %c0_17 = arith.constant 0 : index
    %27 = vector.load %arg15[%c0_16, %c0_17] : memref<16x128xbf16, #tpu.memory_space<vmem>>, vector<16x128xbf16>
    %28 = arith.truncf %26 : vector<128x3072xf32> to vector<128x3072xbf16>
    %cst_18 = arith.constant dense<0.000000e+00> : vector<16x3072xf32>
    %29 = tpu.matmul %27, %28, %cst_18 {dimension_numbers = #tpu.dot_dimension_numbers<[1], [0], [0], [1], [0, 0, 1, 1], [], []>} : vector<16x128xbf16>, vector<128x3072xbf16>, vector<16x3072xf32> -> vector<16x3072xf32>
    %30 = vector.extract_strided_slice %29 {offsets = [0, 0], sizes = [1, 3072], strides = [1, 1]} : vector<16x3072xf32> to vector<1x3072xf32>
    %c0_19 = arith.constant 0 : index
    %c0_20 = arith.constant 0 : index
    %c0_21 = arith.constant 0 : index
    %31 = vector.load %arg16[%c0_19, %c0_20, %c0_21] : memref<1x1x3072xf32, #tpu.memory_space<vmem>>, vector<1x1x3072xf32>
    %32 = vector.shape_cast %31 : vector<1x1x3072xf32> to vector<1x3072xf32>
    %33 = vector.shape_cast %30 : vector<1x3072xf32> to vector<1x1x3072xf32>
    tpu.vector_store %arg16[%c0_19, %c0_20, %c0_21], %33 {strides = array<i32>} : memref<1x1x3072xf32, #tpu.memory_space<vmem>>, vector<1x1x3072xf32>,
    return
  }
  func.func @transform_0(%arg0: i32, %arg1: i32) -> (i32, i32, i32) {
    %c0_i32 = arith.constant 0 : i32
    %c0_i32_0 = arith.constant 0 : i32
    %c0_i32_1 = arith.constant 0 : i32
    return %arg0, %c0_i32, %c0_i32_0 : i32, i32, i32
  }
  func.func @transform_1(%arg0: i32, %arg1: i32) -> (i32, i32) {
    %c0_i32 = arith.constant 0 : i32
    %c0_i32_0 = arith.constant 0 : i32
    %c0_i32_1 = arith.constant 0 : i32
    return %c0_i32, %c0_i32_0 : i32, i32
  }
  func.func @transform_2(%arg0: i32, %arg1: i32) -> (i32, i32) {
    %c0_i32 = arith.constant 0 : i32
    %c0_i32_0 = arith.constant 0 : i32
    %c0_i32_1 = arith.constant 0 : i32
    return %c0_i32, %c0_i32_0 : i32, i32
  }
  func.func @transform_3(%arg0: i32, %arg1: i32) -> (i32, i32) {
    %c0_i32 = arith.constant 0 : i32
    %c0_i32_0 = arith.constant 0 : i32
    %c0_i32_1 = arith.constant 0 : i32
    return %c0_i32, %c0_i32_0 : i32, i32
  }
  func.func @transform_4(%arg0: i32, %arg1: i32) -> (i32, i32) {
    %c0_i32 = arith.constant 0 : i32
    %c0_i32_0 = arith.constant 0 : i32
    %c0_i32_1 = arith.constant 0 : i32
    return %c0_i32, %c0_i32_0 : i32, i32
  }
  func.func @transform_5(%arg0: i32, %arg1: i32) -> (i32, i32) {
    %c0_i32 = arith.constant 0 : i32
    %c0_i32_0 = arith.constant 0 : i32
    %c0_i32_1 = arith.constant 0 : i32
    return %c0_i32, %c0_i32_0 : i32, i32
  }
  func.func @transform_6(%arg0: i32, %arg1: i32) -> (i32, i32) {
    %c0_i32 = arith.constant 0 : i32
    %c0_i32_0 = arith.constant 0 : i32
    %c0_i32_1 = arith.constant 0 : i32
    return %c0_i32, %c0_i32_0 : i32, i32
  }
  func.func @transform_7(%arg0: i32, %arg1: i32) -> (i32, i32) {
    %c0_i32 = arith.constant 0 : i32
    %c0_i32_0 = arith.constant 0 : i32
    %c0_i32_1 = arith.constant 0 : i32
    return %c0_i32, %c0_i32_0 : i32, i32
  }
  func.func @transform_8(%arg0: i32, %arg1: i32) -> (i32, i32) {
    %c0_i32 = arith.constant 0 : i32
    %c0_i32_0 = arith.constant 0 : i32
    %c0_i32_1 = arith.constant 0 : i32
    return %c0_i32, %c0_i32_0 : i32, i32
  }
  func.func @transform_9(%arg0: i32, %arg1: i32) -> (i32, i32, i32) {
    %c0_i32 = arith.constant 0 : i32
    %c0_i32_0 = arith.constant 0 : i32
    return %arg0, %c0_i32, %arg1 : i32, i32, i32
  }
  func.func @transform_10(%arg0: i32, %arg1: i32) -> (i32, i32) {
    %c0_i32 = arith.constant 0 : i32
    %c0_i32_0 = arith.constant 0 : i32
    %c0_i32_1 = arith.constant 0 : i32
    return %c0_i32, %c0_i32_0 : i32, i32
  }
  func.func @transform_11(%arg0: i32, %arg1: i32) -> (i32, i32) {
    %c0_i32 = arith.constant 0 : i32
    %c0_i32_0 = arith.constant 0 : i32
    %c0_i32_1 = arith.constant 0 : i32
    return %c0_i32, %c0_i32_0 : i32, i32
  }
  func.func @transform_12(%arg0: i32, %arg1: i32) -> (i32, i32) {
    %c0_i32 = arith.constant 0 : i32
    %c0_i32_0 = arith.constant 0 : i32
    %c0_i32_1 = arith.constant 0 : i32
    return %c0_i32, %c0_i32_0 : i32, i32
  }
  func.func @transform_13(%arg0: i32, %arg1: i32) -> (i32, i32) {
    %c0_i32 = arith.constant 0 : i32
    %c0_i32_0 = arith.constant 0 : i32
    %c0_i32_1 = arith.constant 0 : i32
    return %c0_i32, %c0_i32_0 : i32, i32
  }
  func.func @transform_14(%arg0: i32, %arg1: i32) -> (i32, i32, i32) {
    %c0_i32 = arith.constant 0 : i32
    %c0_i32_0 = arith.constant 0 : i32
    return %arg0, %c0_i32, %arg1 : i32, i32, i32
  }
}

</mosaic_0001>

<llo_original>
// kernel: autoencoder_forward.1
$region0: #{autoencoder_forward.1}
  #allocation0 [shape = 'u32[]', space=smem, size = 0x4, offset = 0x4, fixed_abs, tag = 'smem constant byte address 0x4 - core index']
  #allocation1 [shape = 'u32[72,128]{1,0:T(1,128)}', space=vmem, size = 0x9000, scoped, tag = 'internal scratch']
  #allocation2 [shape = 'f32[128,1]{1,0:T(8,128)}', space=vmem, size = 0x10000, scoped, tag = 'scratch operand']
  %s0 = inlined_call_operand.vmem [shape: f32[2,1,512], index: 0, kind: input, shape index: {}]
  %s1 = inlined_call_operand.vmem [shape: bf16[512,512], index: 1, kind: input, shape index: {}]
  %s2 = inlined_call_operand.vmem [shape: f32[1,512], index: 2, kind: input, shape index: {}]
  %s3 = inlined_call_operand.vmem [shape: bf16[512,128], index: 3, kind: input, shape index: {}]
  %s4 = inlined_call_operand.vmem [shape: f32[1,128], index: 4, kind: input, shape index: {}]
  %s5 = inlined_call_operand.vmem [shape: bf16[128,32], index: 5, kind: input, shape index: {}]
  %s6 = inlined_call_operand.vmem [shape: f32[1,32], index: 6, kind: input, shape index: {}]
  %s7 = inlined_call_operand.vmem [shape: f32[128,32], index: 7, kind: input, shape index: {}]
  %s8 = inlined_call_operand.vmem [shape: f32[128,1], index: 8, kind: input, shape index: {}]
  %s9 = inlined_call_operand.vmem [shape: f32[2,8,3072], index: 9, kind: input, shape index: {}]
  %s10 = inlined_call_operand.vmem [shape: bf16[128,8], index: 10, kind: input, shape index: {}]
  %s11 = inlined_call_operand.vmem [shape: bf16[128,128], index: 11, kind: input, shape index: {}]
  %s12 = inlined_call_operand.vmem [shape: f32[128,1], index: 12, kind: input, shape index: {}]
  %s13 = inlined_call_operand.vmem [shape: bf16[16,128], index: 13, kind: input, shape index: {}]
  %s14 = inlined_call_operand.vmem [shape: f32[2,1,3072], index: 14, kind: output, shape index: {}]
  %s15 = sld [smem:[#allocation0]]
  $region93: #{autoencoder_forward.1} parent=0
    _
  %s17 = ssub.s32 1, %s15
  %s18 = scalar_select 0, %s17, %s15
  loop: start=0, step=1, limit=4
  $region2: #{autoencoder_forward.1} parent=0 // loop_pre_header
    _
  $region3: #{autoencoder_forward.1} parent=0 // loop_header
    %s20 = sphi 0, %s24
    %p21 = scmp.ge.s32.totalorder %s20, 4
    %s27 = sphi 0, %s39
    %s28 = sphi 0, %s35
    %s29 = sphi 0, %s27
    %s30 = sphi 0, %s28
    %s31 = sphi 0, %s29
    %s32 = sphi 0, %s30
    %s42 = sphi 0, %s44
    %s45 = sphi 0, %s42
    %s46 = sphi 0, %s45
    %s62 = sphi 0, %s46
    %s66 = sphi 0, %s66
    %s68 = sphi 0, %s66
    %s69 = sphi 0, %s68
    %s83 = sphi 0, %s69
    %s87 = sphi 0, %s87
    %s89 = sphi 0, %s87
    %s90 = sphi 0, %s89
    %s104 = sphi 0, %s90
    %s108 = sphi 0, %s108
    %s110 = sphi 0, %s108
    %s111 = sphi 0, %s110
    %s125 = sphi 0, %s111
    %s129 = sphi 0, %s129
    %s131 = sphi 0, %s129
    %s132 = sphi 0, %s131
    %s146 = sphi 0, %s132
    %s150 = sphi 0, %s150
    %s152 = sphi 0, %s150
    %s153 = sphi 0, %s152
    %s167 = sphi 0, %s153
    %s171 = sphi 0, %s171
    %s173 = sphi 0, %s171
    %s174 = sphi 0, %s173
    %s188 = sphi 0, %s174
    %s192 = sphi 0, %s192
    %s194 = sphi 0, %s192
    %s195 = sphi 0, %s194
    %s209 = sphi 0, %s195
    %s213 = sphi 0, %s213
    %s215 = sphi 0, %s213
    %s216 = sphi 0, %s215
    %s230 = sphi 0, %s216
    %s238 = sphi 0, %s240
    %s241 = sphi 0, %s238
    %s242 = sphi 0, %s241
    %s258 = sphi 0, %s242
    %s262 = sphi 0, %s262
    %s264 = sphi 0, %s262
    %s265 = sphi 0, %s264
    %s279 = sphi 0, %s265
    %s283 = sphi 0, %s283
    %s285 = sphi 0, %s283
    %s286 = sphi 0, %s285
    %s300 = sphi 0, %s286
    %s304 = sphi 0, %s304
    %s306 = sphi 0, %s304
    %s307 = sphi 0, %s306
    %s321 = sphi 0, %s307
    %s325 = sphi 0, %s325
    %s327 = sphi 0, %s325
    %s328 = sphi 0, %s327
    %s342 = sphi 0, %s328
    %s350 = sphi 0, %s352
    %s353 = sphi 0, %s350
    %s354 = sphi 0, %s353
    %s370 = sphi 0, %s354
  $region4: #{autoencoder_forward.1} parent=0 // loop_header_branch
    %23 = sbr.rel (%p21) target = $region8
  $region5: #{autoencoder_forward.1} parent=0 // loop_body
    %s25 = ssub.s32 %s20, 1
    %s26 = ssub.s32 %s20, 2
    %s33 = sadd.s32 1, %s28
    %p34 = scmp.ge.s32.totalorder %s33, 1
    %s35 = scalar_select %p34, 0, %s33
    %s36 = sadd.s32 1, %s27
    %s37 = scalar_select %p34, %s36, %s27
    %p38 = scmp.ge.s32.totalorder %s37, 2
    %s39 = scalar_select %p38, 0, %s37
    %s40 = ssub.s32 %s27, %s39
    %p41 = scmp.eq.s32.totalorder %s40, 0
    %s43 = sadd.s32 %s42, 1
    %s44 = scalar_select %p41, %s42, %s43
    %p47 = pneg %p41
    %p48 = scmp.eq.s32.totalorder %s20, 1
    %p49 = por %p47, %p48
    %p50 = scmp.ne.s32.totalorder %s42, %s45
    %p51 = scmp.eq.s32.totalorder %s20, 0
    %p52 = por %p50, %p51
    %p53 = scmp.ne.s32.totalorder %s42, %s45
    %p54 = scmp.eq.s32.totalorder %s25, 1
    %p55 = por %p53, %p54
    %p56 = scmp.ne.s32.totalorder %s45, %s46
    %p57 = scmp.eq.s32.totalorder %s25, 0
    %p58 = por %p56, %p57
    %p59 = scmp.ne.s32.totalorder %s45, %s46
    %p60 = scmp.eq.s32.totalorder %s26, 1
    %p61 = por %p59, %p60
    %p63 = scmp.ne.s32.totalorder %s46, %s62
    %p64 = scmp.eq.s32.totalorder %s26, 0
    %p65 = por %p63, %p64
    %s67 = sadd.s32 %s66, 1
    %p70 = scmp.eq.s32.totalorder %s20, 1
    %p71 = scmp.ne.s32.totalorder %s66, %s68
    %p72 = scmp.eq.s32.totalorder %s20, 0
    %p73 = por %p71, %p72
    %p74 = scmp.ne.s32.totalorder %s66, %s68
    %p75 = scmp.eq.s32.totalorder %s25, 1
    %p76 = por %p74, %p75
    %p77 = scmp.ne.s32.totalorder %s68, %s69
    %p78 = scmp.eq.s32.totalorder %s25, 0
    %p79 = por %p77, %p78
    %p80 = scmp.ne.s32.totalorder %s68, %s69
    %p81 = scmp.eq.s32.totalorder %s26, 1
    %p82 = por %p80, %p81
    %p84 = scmp.ne.s32.totalorder %s69, %s83
    %p85 = scmp.eq.s32.totalorder %s26, 0
    %p86 = por %p84, %p85
    %s88 = sadd.s32 %s87, 1
    %p91 = scmp.eq.s32.totalorder %s20, 1
    %p92 = scmp.ne.s32.totalorder %s87, %s89
    %p93 = scmp.eq.s32.totalorder %s20, 0
    %p94 = por %p92, %p93
    %p95 = scmp.ne.s32.totalorder %s87, %s89
    %p96 = scmp.eq.s32.totalorder %s25, 1
    %p97 = por %p95, %p96
    %p98 = scmp.ne.s32.totalorder %s89, %s90
    %p99 = scmp.eq.s32.totalorder %s25, 0
    %p100 = por %p98, %p99
    %p101 = scmp.ne.s32.totalorder %s89, %s90
    %p102 = scmp.eq.s32.totalorder %s26, 1
    %p103 = por %p101, %p102
    %p105 = scmp.ne.s32.totalorder %s90, %s104
    %p106 = scmp.eq.s32.totalorder %s26, 0
    %p107 = por %p105, %p106
    %s109 = sadd.s32 %s108, 1
    %p112 = scmp.eq.s32.totalorder %s20, 1
    %p113 = scmp.ne.s32.totalorder %s108, %s110
    %p114 = scmp.eq.s32.totalorder %s20, 0
    %p115 = por %p113, %p114
    %p116 = scmp.ne.s32.totalorder %s108, %s110
    %p117 = scmp.eq.s32.totalorder %s25, 1
    %p118 = por %p116, %p117
    %p119 = scmp.ne.s32.totalorder %s110, %s111
    %p120 = scmp.eq.s32.totalorder %s25, 0
    %p121 = por %p119, %p120
    %p122 = scmp.ne.s32.totalorder %s110, %s111
    %p123 = scmp.eq.s32.totalorder %s26, 1
    %p124 = por %p122, %p123
    %p126 = scmp.ne.s32.totalorder %s111, %s125
    %p127 = scmp.eq.s32.totalorder %s26, 0
    %p128 = por %p126, %p127
    %s130 = sadd.s32 %s129, 1
    %p133 = scmp.eq.s32.totalorder %s20, 1
    %p134 = scmp.ne.s32.totalorder %s129, %s131
    %p135 = scmp.eq.s32.totalorder %s20, 0
    %p136 = por %p134, %p135
    %p137 = scmp.ne.s32.totalorder %s129, %s131
    %p138 = scmp.eq.s32.totalorder %s25, 1
    %p139 = por %p137, %p138
    %p140 = scmp.ne.s32.totalorder %s131, %s132
    %p141 = scmp.eq.s32.totalorder %s25, 0
    %p142 = por %p140, %p141
    %p143 = scmp.ne.s32.totalorder %s131, %s132
    %p144 = scmp.eq.s32.totalorder %s26, 1
    %p145 = por %p143, %p144
    %p147 = scmp.ne.s32.totalorder %s132, %s146
    %p148 = scmp.eq.s32.totalorder %s26, 0
    %p149 = por %p147, %p148
    %s151 = sadd.s32 %s150, 1
    %p154 = scmp.eq.s32.totalorder %s20, 1
    %p155 = scmp.ne.s32.totalorder %s150, %s152
    %p156 = scmp.eq.s32.totalorder %s20, 0
    %p157 = por %p155, %p156
    %p158 = scmp.ne.s32.totalorder %s150, %s152
    %p159 = scmp.eq.s32.totalorder %s25, 1
    %p160 = por %p158, %p159
    %p161 = scmp.ne.s32.totalorder %s152, %s153
    %p162 = scmp.eq.s32.totalorder %s25, 0
    %p163 = por %p161, %p162
    %p164 = scmp.ne.s32.totalorder %s152, %s153
    %p165 = scmp.eq.s32.totalorder %s26, 1
    %p166 = por %p164, %p165
    %p168 = scmp.ne.s32.totalorder %s153, %s167
    %p169 = scmp.eq.s32.totalorder %s26, 0
    %p170 = por %p168, %p169
    %s172 = sadd.s32 %s171, 1
    %p175 = scmp.eq.s32.totalorder %s20, 1
    %p176 = scmp.ne.s32.totalorder %s171, %s173
    %p177 = scmp.eq.s32.totalorder %s20, 0
    %p178 = por %p176, %p177
    %p179 = scmp.ne.s32.totalorder %s171, %s173
    %p180 = scmp.eq.s32.totalorder %s25, 1
    %p181 = por %p179, %p180
    %p182 = scmp.ne.s32.totalorder %s173, %s174
    %p183 = scmp.eq.s32.totalorder %s25, 0
    %p184 = por %p182, %p183
    %p185 = scmp.ne.s32.totalorder %s173, %s174
    %p186 = scmp.eq.s32.totalorder %s26, 1
    %p187 = por %p185, %p186
    %p189 = scmp.ne.s32.totalorder %s174, %s188
    %p190 = scmp.eq.s32.totalorder %s26, 0
    %p191 = por %p189, %p190
    %s193 = sadd.s32 %s192, 1
    %p196 = scmp.eq.s32.totalorder %s20, 1
    %p197 = scmp.ne.s32.totalorder %s192, %s194
    %p198 = scmp.eq.s32.totalorder %s20, 0
    %p199 = por %p197, %p198
    %p200 = scmp.ne.s32.totalorder %s192, %s194
    %p201 = scmp.eq.s32.totalorder %s25, 1
    %p202 = por %p200, %p201
    %p203 = scmp.ne.s32.totalorder %s194, %s195
    %p204 = scmp.eq.s32.totalorder %s25, 0
    %p205 = por %p203, %p204
    %p206 = scmp.ne.s32.totalorder %s194, %s195
    %p207 = scmp.eq.s32.totalorder %s26, 1
    %p208 = por %p206, %p207
    %p210 = scmp.ne.s32.totalorder %s195, %s209
    %p211 = scmp.eq.s32.totalorder %s26, 0
    %p212 = por %p210, %p211
    %s214 = sadd.s32 %s213, 1
    %p217 = scmp.eq.s32.totalorder %s20, 1
    %p218 = scmp.ne.s32.totalorder %s213, %s215
    %p219 = scmp.eq.s32.totalorder %s20, 0
    %p220 = por %p218, %p219
    %p221 = scmp.ne.s32.totalorder %s213, %s215
    %p222 = scmp.eq.s32.totalorder %s25, 1
    %p223 = por %p221, %p222
    %p224 = scmp.ne.s32.totalorder %s215, %s216
    %p225 = scmp.eq.s32.totalorder %s25, 0
    %p226 = por %p224, %p225
    %p227 = scmp.ne.s32.totalorder %s215, %s216
    %p228 = scmp.eq.s32.totalorder %s26, 1
    %p229 = por %p227, %p228
    %p231 = scmp.ne.s32.totalorder %s216, %s230
    %p232 = scmp.eq.s32.totalorder %s26, 0
    %p233 = por %p231, %p232
    %s234 = ssub.s32 %s27, %s39
    %s235 = ssub.s32 %s28, %s35
    %s236 = sor.u32 %s234, %s235
    %p237 = scmp.eq.s32.totalorder %s236, 0
    %s239 = sadd.s32 %s238, 1
    %s240 = scalar_select %p237, %s238, %s239
    %p243 = pneg %p237
    %p244 = scmp.eq.s32.totalorder %s20, 1
    %p245 = por %p243, %p244
    %p246 = scmp.ne.s32.totalorder %s238, %s241
    %p247 = scmp.eq.s32.totalorder %s20, 0
    %p248 = por %p246, %p247
    %p249 = scmp.ne.s32.totalorder %s238, %s241
    %p250 = scmp.eq.s32.totalorder %s25, 1
    %p251 = por %p249, %p250
    %p252 = scmp.ne.s32.totalorder %s241, %s242
    %p253 = scmp.eq.s32.totalorder %s25, 0
    %p254 = por %p252, %p253
    %p255 = scmp.ne.s32.totalorder %s241, %s242
    %p256 = scmp.eq.s32.totalorder %s26, 1
    %p257 = por %p255, %p256
    %p259 = scmp.ne.s32.totalorder %s242, %s258
    %p260 = scmp.eq.s32.totalorder %s26, 0
    %p261 = por %p259, %p260
    %s263 = sadd.s32 %s262, 1
    %p266 = scmp.eq.s32.totalorder %s20, 1
    %p267 = scmp.ne.s32.totalorder %s262, %s264
    %p268 = scmp.eq.s32.totalorder %s20, 0
    %p269 = por %p267, %p268
    %p270 = scmp.ne.s32.totalorder %s262, %s264
    %p271 = scmp.eq.s32.totalorder %s25, 1
    %p272 = por %p270, %p271
    %p273 = scmp.ne.s32.totalorder %s264, %s265
    %p274 = scmp.eq.s32.totalorder %s25, 0
    %p275 = por %p273, %p274
    %p276 = scmp.ne.s32.totalorder %s264, %s265
    %p277 = scmp.eq.s32.totalorder %s26, 1
    %p278 = por %p276, %p277
    %p280 = scmp.ne.s32.totalorder %s265, %s279
    %p281 = scmp.eq.s32.totalorder %s26, 0
    %p282 = por %p280, %p281
    %s284 = sadd.s32 %s283, 1
    %p287 = scmp.eq.s32.totalorder %s20, 1
    %p288 = scmp.ne.s32.totalorder %s283, %s285
    %p289 = scmp.eq.s32.totalorder %s20, 0
    %p290 = por %p288, %p289
    %p291 = scmp.ne.s32.totalorder %s283, %s285
    %p292 = scmp.eq.s32.totalorder %s25, 1
    %p293 = por %p291, %p292
    %p294 = scmp.ne.s32.totalorder %s285, %s286
    %p295 = scmp.eq.s32.totalorder %s25, 0
    %p296 = por %p294, %p295
    %p297 = scmp.ne.s32.totalorder %s285, %s286
    %p298 = scmp.eq.s32.totalorder %s26, 1
    %p299 = por %p297, %p298
    %p301 = scmp.ne.s32.totalorder %s286, %s300
    %p302 = scmp.eq.s32.totalorder %s26, 0
    %p303 = por %p301, %p302
    %s305 = sadd.s32 %s304, 1
    %p308 = scmp.eq.s32.totalorder %s20, 1
    %p309 = scmp.ne.s32.totalorder %s304, %s306
    %p310 = scmp.eq.s32.totalorder %s20, 0
    %p311 = por %p309, %p310
    %p312 = scmp.ne.s32.totalorder %s304, %s306
    %p313 = scmp.eq.s32.totalorder %s25, 1
    %p314 = por %p312, %p313
    %p315 = scmp.ne.s32.totalorder %s306, %s307
    %p316 = scmp.eq.s32.totalorder %s25, 0
    %p317 = por %p315, %p316
    %p318 = scmp.ne.s32.totalorder %s306, %s307
    %p319 = scmp.eq.s32.totalorder %s26, 1
    %p320 = por %p318, %p319
    %p322 = scmp.ne.s32.totalorder %s307, %s321
    %p323 = scmp.eq.s32.totalorder %s26, 0
    %p324 = por %p322, %p323
    %s326 = sadd.s32 %s325, 1
    %p329 = scmp.eq.s32.totalorder %s20, 1
    %p330 = scmp.ne.s32.totalorder %s325, %s327
    %p331 = scmp.eq.s32.totalorder %s20, 0
    %p332 = por %p330, %p331
    %p333 = scmp.ne.s32.totalorder %s325, %s327
    %p334 = scmp.eq.s32.totalorder %s25, 1
    %p335 = por %p333, %p334
    %p336 = scmp.ne.s32.totalorder %s327, %s328
    %p337 = scmp.eq.s32.totalorder %s25, 0
    %p338 = por %p336, %p337
    %p339 = scmp.ne.s32.totalorder %s327, %s328
    %p340 = scmp.eq.s32.totalorder %s26, 1
    %p341 = por %p339, %p340
    %p343 = scmp.ne.s32.totalorder %s328, %s342
    %p344 = scmp.eq.s32.totalorder %s26, 0
    %p345 = por %p343, %p344
    %s346 = ssub.s32 %s27, %s39
    %s347 = ssub.s32 %s28, %s35
    %s348 = sor.u32 %s346, %s347
    %p349 = scmp.eq.s32.totalorder %s348, 0
    %s351 = sadd.s32 %s350, 1
    %s352 = scalar_select %p349, %s350, %s351
    %p355 = pneg %p349
    %p356 = scmp.eq.s32.totalorder %s20, 1
    %p357 = por %p355, %p356
    %p358 = scmp.ne.s32.totalorder %s350, %s353
    %p359 = scmp.eq.s32.totalorder %s20, 0
    %p360 = por %p358, %p359
    %p361 = scmp.ne.s32.totalorder %s350, %s353
    %p362 = scmp.eq.s32.totalorder %s25, 1
    %p363 = por %p361, %p362
    %p364 = scmp.ne.s32.totalorder %s353, %s354
    %p365 = scmp.eq.s32.totalorder %s25, 0
    %p366 = por %p364, %p365
    %p367 = scmp.ne.s32.totalorder %s353, %s354
    %p368 = scmp.eq.s32.totalorder %s26, 1
    %p369 = por %p367, %p368
    %p371 = scmp.ne.s32.totalorder %s354, %s370
    %p372 = scmp.eq.s32.totalorder %s26, 0
    %p373 = por %p371, %p372
    %p374 = scmp.le.s32.totalorder 1, %s20
    %p375 = scmp.lt.s32.totalorder %s20, 3
    %p376 = pnand %p374, %p375
    %p377 = pneg %p376
    // Predicated region
    $region9: #{autoencoder_forward.1} parent=5 // pred_check
      _
    $region10: #{autoencoder_forward.1} parent=5 // pred_check_branch
      %379 = sbr.rel (%p376) target = $region12
    $region11: #{autoencoder_forward.1} parent=5 // pred_region
      %s380 = ssub.s32 %s20, 1
      // Predicated region
      $region13: #{autoencoder_forward.1} parent=11 // pred_check
        %p381 = pneg %p79
      $region14: #{autoencoder_forward.1} parent=11 // pred_check_branch
        %383 = sbr.rel (%p381) target = $region16
      $region15: #{autoencoder_forward.1} parent=11 // pred_region
        _
      $region16: #{autoencoder_forward.1} parent=11 // pred_fallthru
        _
      // Predicated region
      $region17: #{autoencoder_forward.1} parent=11 // pred_check
        %p384 = pneg %p100
      $region18: #{autoencoder_forward.1} parent=11 // pred_check_branch
        %386 = sbr.rel (%p384) target = $region20
      $region19: #{autoencoder_forward.1} parent=11 // pred_region
        _
      $region20: #{autoencoder_forward.1} parent=11 // pred_fallthru
        _
      // Predicated region
      $region21: #{autoencoder_forward.1} parent=11 // pred_check
        %p387 = pneg %p121
      $region22: #{autoencoder_forward.1} parent=11 // pred_check_branch
        %389 = sbr.rel (%p387) target = $region24
      $region23: #{autoencoder_forward.1} parent=11 // pred_region
        _
      $region24: #{autoencoder_forward.1} parent=11 // pred_fallthru
        _
      // Predicated region
      $region25: #{autoencoder_forward.1} parent=11 // pred_check
        %p390 = pneg %p142
      $region26: #{autoencoder_forward.1} parent=11 // pred_check_branch
        %392 = sbr.rel (%p390) target = $region28
      $region27: #{autoencoder_forward.1} parent=11 // pred_region
        _
      $region28: #{autoencoder_forward.1} parent=11 // pred_fallthru
        _
      // Predicated region
      $region29: #{autoencoder_forward.1} parent=11 // pred_check
        %p393 = pneg %p163
      $region30: #{autoencoder_forward.1} parent=11 // pred_check_branch
        %395 = sbr.rel (%p393) target = $region32
      $region31: #{autoencoder_forward.1} parent=11 // pred_region
        _
      $region32: #{autoencoder_forward.1} parent=11 // pred_fallthru
        _
      // Predicated region
      $region33: #{autoencoder_forward.1} parent=11 // pred_check
        %p396 = pneg %p184
      $region34: #{autoencoder_forward.1} parent=11 // pred_check_branch
        %398 = sbr.rel (%p396) target = $region36
      $region35: #{autoencoder_forward.1} parent=11 // pred_region
        _
      $region36: #{autoencoder_forward.1} parent=11 // pred_fallthru
        _
      // Predicated region
      $region37: #{autoencoder_forward.1} parent=11 // pred_check
        %p399 = pneg %p205
      $region38: #{autoencoder_forward.1} parent=11 // pred_check_branch
        %401 = sbr.rel (%p399) target = $region40
      $region39: #{autoencoder_forward.1} parent=11 // pred_region
        _
      $region40: #{autoencoder_forward.1} parent=11 // pred_fallthru
        _
      // Predicated region
      $region41: #{autoencoder_forward.1} parent=11 // pred_check
        %p402 = pneg %p226
      $region42: #{autoencoder_forward.1} parent=11 // pred_check_branch
        %404 = sbr.rel (%p402) target = $region44
      $region43: #{autoencoder_forward.1} parent=11 // pred_region
        _
      $region44: #{autoencoder_forward.1} parent=11 // pred_fallthru
        _
      // Predicated region
      $region45: #{autoencoder_forward.1} parent=11 // pred_check
        %p405 = pneg %p275
      $region46: #{autoencoder_forward.1} parent=11 // pred_check_branch
        %407 = sbr.rel (%p405) target = $region48
      $region47: #{autoencoder_forward.1} parent=11 // pred_region
        _
      $region48: #{autoencoder_forward.1} parent=11 // pred_fallthru
        _
      // Predicated region
      $region49: #{autoencoder_forward.1} parent=11 // pred_check
        %p408 = pneg %p296
      $region50: #{autoencoder_forward.1} parent=11 // pred_check_branch
        %410 = sbr.rel (%p408) target = $region52
      $region51: #{autoencoder_forward.1} parent=11 // pred_region
        _
      $region52: #{autoencoder_forward.1} parent=11 // pred_fallthru
        _
      // Predicated region
      $region53: #{autoencoder_forward.1} parent=11 // pred_check
        %p411 = pneg %p317
      $region54: #{autoencoder_forward.1} parent=11 // pred_check_branch
        %413 = sbr.rel (%p411) target = $region56
      $region55: #{autoencoder_forward.1} parent=11 // pred_region
        _
      $region56: #{autoencoder_forward.1} parent=11 // pred_fallthru
        _
      // Predicated region
      $region57: #{autoencoder_forward.1} parent=11 // pred_check
        %p414 = pneg %p338
      $region58: #{autoencoder_forward.1} parent=11 // pred_check_branch
        %416 = sbr.rel (%p414) target = $region60
      $region59: #{autoencoder_forward.1} parent=11 // pred_region
        _
      $region60: #{autoencoder_forward.1} parent=11 // pred_fallthru
        _
    $region12: #{autoencoder_forward.1} parent=5 // pred_fallthru
      _
    %p417 = scmp.lt.s32.totalorder %s20, 2
    // Predicated region
    $region61: #{autoencoder_forward.1} parent=5 // pred_check
      %p418 = pneg %p417
    $region62: #{autoencoder_forward.1} parent=5 // pred_check_branch
      %420 = sbr.rel (%p418) target = $region64
    $region63: #{autoencoder_forward.1} parent=5 // pred_region
      // Predicated region
      $region65: #{autoencoder_forward.1} parent=63 // pred_check
        %p421 = pneg %p52
      $region66: #{autoencoder_forward.1} parent=63 // pred_check_branch
        %423 = sbr.rel (%p421) target = $region68
      $region67: #{autoencoder_forward.1} parent=63 // pred_region
        %p424 = scmp.lt.s32.totalorder %s27, 1
        %s425 = scalar_select %p424, %s27, 1
        %s426 = smul.addr %s425, 4
        %s427 = scalar_lea.vmem %s0, %s426
      $region68: #{autoencoder_forward.1} parent=63 // pred_fallthru
        _
      // Predicated region
      $region69: #{autoencoder_forward.1} parent=63 // pred_check
        %p428 = pneg %p248
      $region70: #{autoencoder_forward.1} parent=63 // pred_check_branch
        %430 = sbr.rel (%p428) target = $region72
      $region71: #{autoencoder_forward.1} parent=63 // pred_region
        %s431 = smul.u32 24, %s28
        %p432 = scmp.lt.s32.totalorder %s27, 1
        %s433 = scalar_select %p432, %s27, 1
        %p434 = scmp.lt.s32.totalorder %s431, 23
        %s435 = scalar_select %p434, %s431, 23
        %s436 = smul.addr %s433, 24
        %s437 = sadd.s32 %s435, %s436
        %s438 = smul.addr %s437, 8
        %s439 = scalar_lea.vmem %s9, %s438
        %s440 = smul.u32 24, %s28
      $region72: #{autoencoder_forward.1} parent=63 // pred_fallthru
        _
    $region64: #{autoencoder_forward.1} parent=5 // pred_fallthru
      _
    %p441 = scmp.le.s32.totalorder 1, %s20
    %p442 = scmp.lt.s32.totalorder %s20, 3
    %p443 = pnand %p441, %p442
    %p444 = pneg %p443
    // Predicated region
    $region73: #{autoencoder_forward.1} parent=5 // pred_check
      _
    $region74: #{autoencoder_forward.1} parent=5 // pred_check_branch
      %446 = sbr.rel (%p443) target = $region76
    $region75: #{autoencoder_forward.1} parent=5 // pred_region
      %s447 = ssub.s32 %s20, 1
      %p448 = scmp.lt.s32.totalorder %s29, 1
      %s449 = scalar_select %p448, %s29, 1
      %s450 = smul.addr %s449, 4
      %s451 = scalar_lea.vmem %s0, %s450
      %p452 = pneg %p58
      %p453 = pneg %p55
      %p454 = pneg %p79
      %p455 = pneg %p76
      %p456 = pneg %p100
      %p457 = pneg %p97
      %p458 = pneg %p121
      %p459 = pneg %p118
      %p460 = pneg %p142
      %p461 = pneg %p139
      %p462 = pneg %p163
      %p463 = pneg %p160
      %p464 = pneg %p184
      %p465 = pneg %p181
      %p466 = pneg %p205
      %p467 = pneg %p202
      %p468 = pneg %p226
      %p469 = pneg %p223
      %s470 = smul.u32 24, %s30
      %p471 = scmp.lt.s32.totalorder %s29, 1
      %s472 = scalar_select %p471, %s29, 1
      %p473 = scmp.lt.s32.totalorder %s470, 23
      %s474 = scalar_select %p473, %s470, 23
      %s475 = smul.addr %s472, 24
      %s476 = sadd.s32 %s474, %s475
      %s477 = smul.addr %s476, 8
      %s478 = scalar_lea.vmem %s9, %s477
      %p479 = pneg %p254
      %p480 = pneg %p251
      %p481 = pneg %p275
      %p482 = pneg %p272
      %p483 = pneg %p296
      %p484 = pneg %p293
      %p485 = pneg %p317
      %p486 = pneg %p314
      %p487 = pneg %p338
      %p488 = pneg %p335
      %p489 = pneg %p366
      %p490 = pneg %p363
      %s491 = smul.u32 24, %s30
      %p492 = scmp.lt.s32.totalorder %s29, 1
      %s493 = scalar_select %p492, %s29, 1
      %p494 = scmp.lt.s32.totalorder %s491, 23
      %s495 = scalar_select %p494, %s491, 23
      %s496 = smul.addr %s493, 24
      %s497 = sadd.s32 %s495, %s496
      %s498 = scalar_lea.vmem %s14, %s497
      %p499 = scmp.lt.s32.totalorder %s29, 1
      %s500 = scalar_select %p499, %s29, 1
      %s501 = smul.addr %s500, 4
      %s502 = scalar_lea.vmem %s0, %s501
      %s503 = smul.u32 24, %s30
      %p504 = scmp.lt.s32.totalorder %s29, 1
      %s505 = scalar_select %p504, %s29, 1
      %p506 = scmp.lt.s32.totalorder %s503, 23
      %s507 = scalar_select %p506, %s503, 23
      %s508 = smul.addr %s505, 24
      %s509 = sadd.s32 %s507, %s508
      %s510 = smul.addr %s509, 8
      %s511 = scalar_lea.vmem %s9, %s510
      %s512 = smul.u32 24, %s30
      %s513 = smul.u32 24, %s30
      %p514 = scmp.lt.s32.totalorder %s29, 1
      %s515 = scalar_select %p514, %s29, 1
      %p516 = scmp.lt.s32.totalorder %s513, 23
      %s517 = scalar_select %p516, %s513, 23
      %s518 = smul.addr %s515, 24
      %s519 = sadd.s32 %s517, %s518
      %s520 = scalar_lea.vmem %s14, %s519
      %s521 = smul.u32 24, %s30
      %p523 = scmp.eq.s32.totalorder %s30, 0
      // Predicated region
      $region77: #{autoencoder_forward.1} parent=75 // pred_check
        %p524 = pneg %p523
      $region78: #{autoencoder_forward.1} parent=75 // pred_check_branch
        %526 = sbr.rel (%p524) target = $region80
      $region79: #{autoencoder_forward.1} parent=75 // pred_region
        %v527 = vld [vmem:[%s502] sm:$0xf]
        %v529 = vperm.slane %v527, 0
        %v530 = vperm.slane %v527, 1
        %v531 = vperm.slane %v527, 2
        %v532 = vperm.slane %v527, 3
        %v537 = vpack.c.bf16 %v529, %v529
        %v538 = vpack.c.bf16 %v530, %v530
        %v539 = vpack.c.bf16 %v531, %v531
        %v540 = vpack.c.bf16 %v532, %v532
        %v541 = vld [vmem:[%s1] sm:$0xff]
        %v542 = vld [vmem:[%s1 + $0x8] sm:$0xff]
        %v543 = vld [vmem:[%s1 + $0x10] sm:$0xff]
        %v544 = vld [vmem:[%s1 + $0x18] sm:$0xff]
        %v545 = vld [vmem:[%s1 + $0x20] sm:$0xff]
        %v546 = vld [vmem:[%s1 + $0x28] sm:$0xff]
        %v547 = vld [vmem:[%s1 + $0x30] sm:$0xff]
        %v548 = vld [vmem:[%s1 + $0x38] sm:$0xff]
        %v549 = vld [vmem:[%s1 + $0x40] sm:$0xff]
        %v550 = vld [vmem:[%s1 + $0x48] sm:$0xff]
        %v551 = vld [vmem:[%s1 + $0x50] sm:$0xff]
        %v552 = vld [vmem:[%s1 + $0x58] sm:$0xff]
        %v553 = vld [vmem:[%s1 + $0x60] sm:$0xff]
        %v554 = vld [vmem:[%s1 + $0x68] sm:$0xff]
        %v555 = vld [vmem:[%s1 + $0x70] sm:$0xff]
        %v556 = vld [vmem:[%s1 + $0x78] sm:$0xff]
        %v557 = vld [vmem:[%s1 + $0x80] sm:$0xff]
        %v558 = vld [vmem:[%s1 + $0x88] sm:$0xff]
        %v559 = vld [vmem:[%s1 + $0x90] sm:$0xff]
        %v560 = vld [vmem:[%s1 + $0x98] sm:$0xff]
        %v561 = vld [vmem:[%s1 + $0xa0] sm:$0xff]
        %v562 = vld [vmem:[%s1 + $0xa8] sm:$0xff]
        %v563 = vld [vmem:[%s1 + $0xb0] sm:$0xff]
        %v564 = vld [vmem:[%s1 + $0xb8] sm:$0xff]
        %v565 = vld [vmem:[%s1 + $0xc0] sm:$0xff]
        %v566 = vld [vmem:[%s1 + $0xc8] sm:$0xff]
        %v567 = vld [vmem:[%s1 + $0xd0] sm:$0xff]
        %v568 = vld [vmem:[%s1 + $0xd8] sm:$0xff]
        %v569 = vld [vmem:[%s1 + $0xe0] sm:$0xff]
        %v570 = vld [vmem:[%s1 + $0xe8] sm:$0xff]
        %v571 = vld [vmem:[%s1 + $0xf0] sm:$0xff]
        %v572 = vld [vmem:[%s1 + $0xf8] sm:$0xff]
        %v573 = vld [vmem:[%s1 + $0x100] sm:$0xff]
        %v574 = vld [vmem:[%s1 + $0x108] sm:$0xff]
        %v575 = vld [vmem:[%s1 + $0x110] sm:$0xff]
        %v576 = vld [vmem:[%s1 + $0x118] sm:$0xff]
        %v577 = vld [vmem:[%s1 + $0x120] sm:$0xff]
        %v578 = vld [vmem:[%s1 + $0x128] sm:$0xff]
        %v579 = vld [vmem:[%s1 + $0x130] sm:$0xff]
        %v580 = vld [vmem:[%s1 + $0x138] sm:$0xff]
        %v581 = vld [vmem:[%s1 + $0x140] sm:$0xff]
        %v582 = vld [vmem:[%s1 + $0x148] sm:$0xff]
        %v583 = vld [vmem:[%s1 + $0x150] sm:$0xff]
        %v584 = vld [vmem:[%s1 + $0x158] sm:$0xff]
        %v585 = vld [vmem:[%s1 + $0x160] sm:$0xff]
        %v586 = vld [vmem:[%s1 + $0x168] sm:$0xff]
        %v587 = vld [vmem:[%s1 + $0x170] sm:$0xff]
        %v588 = vld [vmem:[%s1 + $0x178] sm:$0xff]
        %v589 = vld [vmem:[%s1 + $0x180] sm:$0xff]
        %v590 = vld [vmem:[%s1 + $0x188] sm:$0xff]
        %v591 = vld [vmem:[%s1 + $0x190] sm:$0xff]
        %v592 = vld [vmem:[%s1 + $0x198] sm:$0xff]
        %v593 = vld [vmem:[%s1 + $0x1a0] sm:$0xff]
        %v594 = vld [vmem:[%s1 + $0x1a8] sm:$0xff]
        %v595 = vld [vmem:[%s1 + $0x1b0] sm:$0xff]
        %v596 = vld [vmem:[%s1 + $0x1b8] sm:$0xff]
        %v597 = vld [vmem:[%s1 + $0x1c0] sm:$0xff]
        %v598 = vld [vmem:[%s1 + $0x1c8] sm:$0xff]
        %v599 = vld [vmem:[%s1 + $0x1d0] sm:$0xff]
        %v600 = vld [vmem:[%s1 + $0x1d8] sm:$0xff]
        %v601 = vld [vmem:[%s1 + $0x1e0] sm:$0xff]
        %v602 = vld [vmem:[%s1 + $0x1e8] sm:$0xff]
        %v603 = vld [vmem:[%s1 + $0x1f0] sm:$0xff]
        %v604 = vld [vmem:[%s1 + $0x1f8] sm:$0xff]
        %v605 = vld [vmem:[%s1 + $0x200] sm:$0xff]
        %v606 = vld [vmem:[%s1 + $0x208] sm:$0xff]
        %v607 = vld [vmem:[%s1 + $0x210] sm:$0xff]
        %v608 = vld [vmem:[%s1 + $0x218] sm:$0xff]
        %v609 = vld [vmem:[%s1 + $0x220] sm:$0xff]
        %v610 = vld [vmem:[%s1 + $0x228] sm:$0xff]
        %v611 = vld [vmem:[%s1 + $0x230] sm:$0xff]
        %v612 = vld [vmem:[%s1 + $0x238] sm:$0xff]
        %v613 = vld [vmem:[%s1 + $0x240] sm:$0xff]
        %v614 = vld [vmem:[%s1 + $0x248] sm:$0xff]
        %v615 = vld [vmem:[%s1 + $0x250] sm:$0xff]
        %v616 = vld [vmem:[%s1 + $0x258] sm:$0xff]
        %v617 = vld [vmem:[%s1 + $0x260] sm:$0xff]
        %v618 = vld [vmem:[%s1 + $0x268] sm:$0xff]
        %v619 = vld [vmem:[%s1 + $0x270] sm:$0xff]
        %v620 = vld [vmem:[%s1 + $0x278] sm:$0xff]
        %v621 = vld [vmem:[%s1 + $0x280] sm:$0xff]
        %v622 = vld [vmem:[%s1 + $0x288] sm:$0xff]
        %v623 = vld [vmem:[%s1 + $0x290] sm:$0xff]
        %v624 = vld [vmem:[%s1 + $0x298] sm:$0xff]
        %v625 = vld [vmem:[%s1 + $0x2a0] sm:$0xff]
        %v626 = vld [vmem:[%s1 + $0x2a8] sm:$0xff]
        %v627 = vld [vmem:[%s1 + $0x2b0] sm:$0xff]
        %v628 = vld [vmem:[%s1 + $0x2b8] sm:$0xff]
        %v629 = vld [vmem:[%s1 + $0x2c0] sm:$0xff]
        %v630 = vld [vmem:[%s1 + $0x2c8] sm:$0xff]
        %v631 = vld [vmem:[%s1 + $0x2d0] sm:$0xff]
        %v632 = vld [vmem:[%s1 + $0x2d8] sm:$0xff]
        %v633 = vld [vmem:[%s1 + $0x2e0] sm:$0xff]
        %v634 = vld [vmem:[%s1 + $0x2e8] sm:$0xff]
        %v635 = vld [vmem:[%s1 + $0x2f0] sm:$0xff]
        %v636 = vld [vmem:[%s1 + $0x2f8] sm:$0xff]
        %v637 = vld [vmem:[%s1 + $0x300] sm:$0xff]
        %v638 = vld [vmem:[%s1 + $0x308] sm:$0xff]
        %v639 = vld [vmem:[%s1 + $0x310] sm:$0xff]
        %v640 = vld [vmem:[%s1 + $0x318] sm:$0xff]
        %v641 = vld [vmem:[%s1 + $0x320] sm:$0xff]
        %v642 = vld [vmem:[%s1 + $0x328] sm:$0xff]
        %v643 = vld [vmem:[%s1 + $0x330] sm:$0xff]
        %v644 = vld [vmem:[%s1 + $0x338] sm:$0xff]
        %v645 = vld [vmem:[%s1 + $0x340] sm:$0xff]
        %v646 = vld [vmem:[%s1 + $0x348] sm:$0xff]
        %v647 = vld [vmem:[%s1 + $0x350] sm:$0xff]
        %v648 = vld [vmem:[%s1 + $0x358] sm:$0xff]
        %v649 = vld [vmem:[%s1 + $0x360] sm:$0xff]
        %v650 = vld [vmem:[%s1 + $0x368] sm:$0xff]
        %v651 = vld [vmem:[%s1 + $0x370] sm:$0xff]
        %v652 = vld [vmem:[%s1 + $0x378] sm:$0xff]
        %v653 = vld [vmem:[%s1 + $0x380] sm:$0xff]
        %v654 = vld [vmem:[%s1 + $0x388] sm:$0xff]
        %v655 = vld [vmem:[%s1 + $0x390] sm:$0xff]
        %v656 = vld [vmem:[%s1 + $0x398] sm:$0xff]
        %v657 = vld [vmem:[%s1 + $0x3a0] sm:$0xff]
        %v658 = vld [vmem:[%s1 + $0x3a8] sm:$0xff]
        %v659 = vld [vmem:[%s1 + $0x3b0] sm:$0xff]
        %v660 = vld [vmem:[%s1 + $0x3b8] sm:$0xff]
        %v661 = vld [vmem:[%s1 + $0x3c0] sm:$0xff]
        %v662 = vld [vmem:[%s1 + $0x3c8] sm:$0xff]
        %v663 = vld [vmem:[%s1 + $0x3d0] sm:$0xff]
        %v664 = vld [vmem:[%s1 + $0x3d8] sm:$0xff]
        %v665 = vld [vmem:[%s1 + $0x3e0] sm:$0xff]
        %v666 = vld [vmem:[%s1 + $0x3e8] sm:$0xff]
        %v667 = vld [vmem:[%s1 + $0x3f0] sm:$0xff]
        %v668 = vld [vmem:[%s1 + $0x3f8] sm:$0xff]
        %v669 = vld [vmem:[%s2] sm:$0xf]
        %v798 = vunpack.c.l.b16 %v541
        %v799 = vunpack.c.h.b16 %v541
        %v800 = vunpack.c.l.b16 %v542
        %v801 = vunpack.c.h.b16 %v542
        %v802 = vunpack.c.l.b16 %v543
        %v803 = vunpack.c.h.b16 %v543
        %v804 = vunpack.c.l.b16 %v544
        %v805 = vunpack.c.h.b16 %v544
        %v806 = vunpack.c.l.b16 %v545
        %v807 = vunpack.c.h.b16 %v545
        %v808 = vunpack.c.l.b16 %v546
        %v809 = vunpack.c.h.b16 %v546
        %v810 = vunpack.c.l.b16 %v547
        %v811 = vunpack.c.h.b16 %v547
        %v812 = vunpack.c.l.b16 %v548
        %v813 = vunpack.c.h.b16 %v548
        %v814 = vunpack.c.l.b16 %v549
        %v815 = vunpack.c.h.b16 %v549
        %v816 = vunpack.c.l.b16 %v550
        %v817 = vunpack.c.h.b16 %v550
        %v818 = vunpack.c.l.b16 %v551
        %v819 = vunpack.c.h.b16 %v551
        %v820 = vunpack.c.l.b16 %v552
        %v821 = vunpack.c.h.b16 %v552
        %v822 = vunpack.c.l.b16 %v553
        %v823 = vunpack.c.h.b16 %v553
        %v824 = vunpack.c.l.b16 %v554
        %v825 = vunpack.c.h.b16 %v554
        %v826 = vunpack.c.l.b16 %v555
        %v827 = vunpack.c.h.b16 %v555
        %v828 = vunpack.c.l.b16 %v556
        %v829 = vunpack.c.h.b16 %v556
        %v830 = vunpack.c.l.b16 %v557
        %v831 = vunpack.c.h.b16 %v557
        %v832 = vunpack.c.l.b16 %v558
        %v833 = vunpack.c.h.b16 %v558
        %v834 = vunpack.c.l.b16 %v559
        %v835 = vunpack.c.h.b16 %v559
        %v836 = vunpack.c.l.b16 %v560
        %v837 = vunpack.c.h.b16 %v560
        %v838 = vunpack.c.l.b16 %v561
        %v839 = vunpack.c.h.b16 %v561
        %v840 = vunpack.c.l.b16 %v562
        %v841 = vunpack.c.h.b16 %v562
        %v842 = vunpack.c.l.b16 %v563
        %v843 = vunpack.c.h.b16 %v563
        %v844 = vunpack.c.l.b16 %v564
        %v845 = vunpack.c.h.b16 %v564
        %v846 = vunpack.c.l.b16 %v565
        %v847 = vunpack.c.h.b16 %v565
        %v848 = vunpack.c.l.b16 %v566
        %v849 = vunpack.c.h.b16 %v566
        %v850 = vunpack.c.l.b16 %v567
        %v851 = vunpack.c.h.b16 %v567
        %v852 = vunpack.c.l.b16 %v568
        %v853 = vunpack.c.h.b16 %v568
        %v854 = vunpack.c.l.b16 %v569
        %v855 = vunpack.c.h.b16 %v569
        %v856 = vunpack.c.l.b16 %v570
        %v857 = vunpack.c.h.b16 %v570
        %v858 = vunpack.c.l.b16 %v571
        %v859 = vunpack.c.h.b16 %v571
        %v860 = vunpack.c.l.b16 %v572
        %v861 = vunpack.c.h.b16 %v572
        %v862 = vunpack.c.l.b16 %v573
        %v863 = vunpack.c.h.b16 %v573
        %v864 = vunpack.c.l.b16 %v574
        %v865 = vunpack.c.h.b16 %v574
        %v866 = vunpack.c.l.b16 %v575
        %v867 = vunpack.c.h.b16 %v575
        %v868 = vunpack.c.l.b16 %v576
        %v869 = vunpack.c.h.b16 %v576
        %v870 = vunpack.c.l.b16 %v577
        %v871 = vunpack.c.h.b16 %v577
        %v872 = vunpack.c.l.b16 %v578
        %v873 = vunpack.c.h.b16 %v578
        %v874 = vunpack.c.l.b16 %v579
        %v875 = vunpack.c.h.b16 %v579
        %v876 = vunpack.c.l.b16 %v580
        %v877 = vunpack.c.h.b16 %v580
        %v878 = vunpack.c.l.b16 %v581
        %v879 = vunpack.c.h.b16 %v581
        %v880 = vunpack.c.l.b16 %v582
        %v881 = vunpack.c.h.b16 %v582
        %v882 = vunpack.c.l.b16 %v583
        %v883 = vunpack.c.h.b16 %v583
        %v884 = vunpack.c.l.b16 %v584
        %v885 = vunpack.c.h.b16 %v584
        %v886 = vunpack.c.l.b16 %v585
        %v887 = vunpack.c.h.b16 %v585
        %v888 = vunpack.c.l.b16 %v586
        %v889 = vunpack.c.h.b16 %v586
        %v890 = vunpack.c.l.b16 %v587
        %v891 = vunpack.c.h.b16 %v587
        %v892 = vunpack.c.l.b16 %v588
        %v893 = vunpack.c.h.b16 %v588
        %v894 = vunpack.c.l.b16 %v589
        %v895 = vunpack.c.h.b16 %v589
        %v896 = vunpack.c.l.b16 %v590
        %v897 = vunpack.c.h.b16 %v590
        %v898 = vunpack.c.l.b16 %v591
        %v899 = vunpack.c.h.b16 %v591
        %v900 = vunpack.c.l.b16 %v592
        %v901 = vunpack.c.h.b16 %v592
        %v902 = vunpack.c.l.b16 %v593
        %v903 = vunpack.c.h.b16 %v593
        %v904 = vunpack.c.l.b16 %v594
        %v905 = vunpack.c.h.b16 %v594
        %v906 = vunpack.c.l.b16 %v595
        %v907 = vunpack.c.h.b16 %v595
        %v908 = vunpack.c.l.b16 %v596
        %v909 = vunpack.c.h.b16 %v596
        %v910 = vunpack.c.l.b16 %v597
        %v911 = vunpack.c.h.b16 %v597
        %v912 = vunpack.c.l.b16 %v598
        %v913 = vunpack.c.h.b16 %v598
        %v914 = vunpack.c.l.b16 %v599
        %v915 = vunpack.c.h.b16 %v599
        %v916 = vunpack.c.l.b16 %v600
        %v917 = vunpack.c.h.b16 %v600
        %v918 = vunpack.c.l.b16 %v601
        %v919 = vunpack.c.h.b16 %v601
        %v920 = vunpack.c.l.b16 %v602
        %v921 = vunpack.c.h.b16 %v602
        %v922 = vunpack.c.l.b16 %v603
        %v923 = vunpack.c.h.b16 %v603
        %v924 = vunpack.c.l.b16 %v604
        %v925 = vunpack.c.h.b16 %v604
        %v926 = vunpack.c.l.b16 %v605
        %v927 = vunpack.c.h.b16 %v605
        %v928 = vunpack.c.l.b16 %v606
        %v929 = vunpack.c.h.b16 %v606
        %v930 = vunpack.c.l.b16 %v607
        %v931 = vunpack.c.h.b16 %v607
        %v932 = vunpack.c.l.b16 %v608
        %v933 = vunpack.c.h.b16 %v608
        %v934 = vunpack.c.l.b16 %v609
        %v935 = vunpack.c.h.b16 %v609
        %v936 = vunpack.c.l.b16 %v610
        %v937 = vunpack.c.h.b16 %v610
        %v938 = vunpack.c.l.b16 %v611
        %v939 = vunpack.c.h.b16 %v611
        %v940 = vunpack.c.l.b16 %v612
        %v941 = vunpack.c.h.b16 %v612
        %v942 = vunpack.c.l.b16 %v613
        %v943 = vunpack.c.h.b16 %v613
        %v944 = vunpack.c.l.b16 %v614
        %v945 = vunpack.c.h.b16 %v614
        %v946 = vunpack.c.l.b16 %v615
        %v947 = vunpack.c.h.b16 %v615
        %v948 = vunpack.c.l.b16 %v616
        %v949 = vunpack.c.h.b16 %v616
        %v950 = vunpack.c.l.b16 %v617
        %v951 = vunpack.c.h.b16 %v617
        %v952 = vunpack.c.l.b16 %v618
        %v953 = vunpack.c.h.b16 %v618
        %v954 = vunpack.c.l.b16 %v619
        %v955 = vunpack.c.h.b16 %v619
        %v956 = vunpack.c.l.b16 %v620
        %v957 = vunpack.c.h.b16 %v620
        %v958 = vunpack.c.l.b16 %v621
        %v959 = vunpack.c.h.b16 %v621
        %v960 = vunpack.c.l.b16 %v622
        %v961 = vunpack.c.h.b16 %v622
        %v962 = vunpack.c.l.b16 %v623
        %v963 = vunpack.c.h.b16 %v623
        %v964 = vunpack.c.l.b16 %v624
        %v965 = vunpack.c.h.b16 %v624
        %v966 = vunpack.c.l.b16 %v625
        %v967 = vunpack.c.h.b16 %v625
        %v968 = vunpack.c.l.b16 %v626
        %v969 = vunpack.c.h.b16 %v626
        %v970 = vunpack.c.l.b16 %v627
        %v971 = vunpack.c.h.b16 %v627
        %v972 = vunpack.c.l.b16 %v628
        %v973 = vunpack.c.h.b16 %v628
        %v974 = vunpack.c.l.b16 %v629
        %v975 = vunpack.c.h.b16 %v629
        %v976 = vunpack.c.l.b16 %v630
        %v977 = vunpack.c.h.b16 %v630
        %v978 = vunpack.c.l.b16 %v631
        %v979 = vunpack.c.h.b16 %v631
        %v980 = vunpack.c.l.b16 %v632
        %v981 = vunpack.c.h.b16 %v632
        %v982 = vunpack.c.l.b16 %v633
        %v983 = vunpack.c.h.b16 %v633
        %v984 = vunpack.c.l.b16 %v634
        %v985 = vunpack.c.h.b16 %v634
        %v986 = vunpack.c.l.b16 %v635
        %v987 = vunpack.c.h.b16 %v635
        %v988 = vunpack.c.l.b16 %v636
        %v989 = vunpack.c.h.b16 %v636
        %v990 = vunpack.c.l.b16 %v637
        %v991 = vunpack.c.h.b16 %v637
        %v992 = vunpack.c.l.b16 %v638
        %v993 = vunpack.c.h.b16 %v638
        %v994 = vunpack.c.l.b16 %v639
        %v995 = vunpack.c.h.b16 %v639
        %v996 = vunpack.c.l.b16 %v640
        %v997 = vunpack.c.h.b16 %v640
        %v998 = vunpack.c.l.b16 %v641
        %v999 = vunpack.c.h.b16 %v641
        %v1000 = vunpack.c.l.b16 %v642
        %v1001 = vunpack.c.h.b16 %v642
        %v1002 = vunpack.c.l.b16 %v643
        %v1003 = vunpack.c.h.b16 %v643
        %v1004 = vunpack.c.l.b16 %v644
        %v1005 = vunpack.c.h.b16 %v644
        %v1006 = vunpack.c.l.b16 %v645
        %v1007 = vunpack.c.h.b16 %v645
        %v1008 = vunpack.c.l.b16 %v646
        %v1009 = vunpack.c.h.b16 %v646
        %v1010 = vunpack.c.l.b16 %v647
        %v1011 = vunpack.c.h.b16 %v647
        %v1012 = vunpack.c.l.b16 %v648
        %v1013 = vunpack.c.h.b16 %v648
        %v1014 = vunpack.c.l.b16 %v649
        %v1015 = vunpack.c.h.b16 %v649
        %v1016 = vunpack.c.l.b16 %v650
        %v1017 = vunpack.c.h.b16 %v650
        %v1018 = vunpack.c.l.b16 %v651
        %v1019 = vunpack.c.h.b16 %v651
        %v1020 = vunpack.c.l.b16 %v652
        %v1021 = vunpack.c.h.b16 %v652
        %v1022 = vunpack.c.l.b16 %v653
        %v1023 = vunpack.c.h.b16 %v653
        %v1024 = vunpack.c.l.b16 %v654
        %v1025 = vunpack.c.h.b16 %v654
        %v1026 = vunpack.c.l.b16 %v655
        %v1027 = vunpack.c.h.b16 %v655
        %v1028 = vunpack.c.l.b16 %v656
        %v1029 = vunpack.c.h.b16 %v656
        %v1030 = vunpack.c.l.b16 %v657
        %v1031 = vunpack.c.h.b16 %v657
        %v1032 = vunpack.c.l.b16 %v658
        %v1033 = vunpack.c.h.b16 %v658
        %v1034 = vunpack.c.l.b16 %v659
        %v1035 = vunpack.c.h.b16 %v659
        %v1036 = vunpack.c.l.b16 %v660
        %v1037 = vunpack.c.h.b16 %v660
        %v1038 = vunpack.c.l.b16 %v661
        %v1039 = vunpack.c.h.b16 %v661
        %v1040 = vunpack.c.l.b16 %v662
        %v1041 = vunpack.c.h.b16 %v662
        %v1042 = vunpack.c.l.b16 %v663
        %v1043 = vunpack.c.h.b16 %v663
        %v1044 = vunpack.c.l.b16 %v664
        %v1045 = vunpack.c.h.b16 %v664
        %v1046 = vunpack.c.l.b16 %v665
        %v1047 = vunpack.c.h.b16 %v665
        %v1048 = vunpack.c.l.b16 %v666
        %v1049 = vunpack.c.h.b16 %v666
        %v1050 = vunpack.c.l.b16 %v667
        %v1051 = vunpack.c.h.b16 %v667
        %v1052 = vunpack.c.l.b16 %v668
        %v1053 = vunpack.c.h.b16 %v668
        %v1054 = vpack.c.b16 %v802, %v798
        %v1055 = vpack.c.b16 %v803, %v799
        %v1056 = vpack.c.b16 %v804, %v800
        %v1057 = vpack.c.b16 %v805, %v801
        %v1058 = vpack.c.b16 %v810, %v806
        %v1059 = vpack.c.b16 %v811, %v807
        %v1060 = vpack.c.b16 %v812, %v808
        %v1061 = vpack.c.b16 %v813, %v809
        %v1062 = vpack.c.b16 %v818, %v814
        %v1063 = vpack.c.b16 %v819, %v815
        %v1064 = vpack.c.b16 %v820, %v816
        %v1065 = vpack.c.b16 %v821, %v817
        %v1066 = vpack.c.b16 %v826, %v822
        %v1067 = vpack.c.b16 %v827, %v823
        %v1068 = vpack.c.b16 %v828, %v824
        %v1069 = vpack.c.b16 %v829, %v825
        %v1070 = vpack.c.b16 %v834, %v830
        %v1071 = vpack.c.b16 %v835, %v831
        %v1072 = vpack.c.b16 %v836, %v832
        %v1073 = vpack.c.b16 %v837, %v833
        %v1074 = vpack.c.b16 %v842, %v838
        %v1075 = vpack.c.b16 %v843, %v839
        %v1076 = vpack.c.b16 %v844, %v840
        %v1077 = vpack.c.b16 %v845, %v841
        %v1078 = vpack.c.b16 %v850, %v846
        %v1079 = vpack.c.b16 %v851, %v847
        %v1080 = vpack.c.b16 %v852, %v848
        %v1081 = vpack.c.b16 %v853, %v849
        %v1082 = vpack.c.b16 %v858, %v854
        %v1083 = vpack.c.b16 %v859, %v855
        %v1084 = vpack.c.b16 %v860, %v856
        %v1085 = vpack.c.b16 %v861, %v857
        %v1086 = vpack.c.b16 %v866, %v862
        %v1087 = vpack.c.b16 %v867, %v863
        %v1088 = vpack.c.b16 %v868, %v864
        %v1089 = vpack.c.b16 %v869, %v865
        %v1090 = vpack.c.b16 %v874, %v870
        %v1091 = vpack.c.b16 %v875, %v871
        %v1092 = vpack.c.b16 %v876, %v872
        %v1093 = vpack.c.b16 %v877, %v873
        %v1094 = vpack.c.b16 %v882, %v878
        %v1095 = vpack.c.b16 %v883, %v879
        %v1096 = vpack.c.b16 %v884, %v880
        %v1097 = vpack.c.b16 %v885, %v881
        %v1098 = vpack.c.b16 %v890, %v886
        %v1099 = vpack.c.b16 %v891, %v887
        %v1100 = vpack.c.b16 %v892, %v888
        %v1101 = vpack.c.b16 %v893, %v889
        %v1102 = vpack.c.b16 %v898, %v894
        %v1103 = vpack.c.b16 %v899, %v895
        %v1104 = vpack.c.b16 %v900, %v896
        %v1105 = vpack.c.b16 %v901, %v897
        %v1106 = vpack.c.b16 %v906, %v902
        %v1107 = vpack.c.b16 %v907, %v903
        %v1108 = vpack.c.b16 %v908, %v904
        %v1109 = vpack.c.b16 %v909, %v905
        %v1110 = vpack.c.b16 %v914, %v910
        %v1111 = vpack.c.b16 %v915, %v911
        %v1112 = vpack.c.b16 %v916, %v912
        %v1113 = vpack.c.b16 %v917, %v913
        %v1114 = vpack.c.b16 %v922, %v918
        %v1115 = vpack.c.b16 %v923, %v919
        %v1116 = vpack.c.b16 %v924, %v920
        %v1117 = vpack.c.b16 %v925, %v921
        %v1118 = vpack.c.b16 %v930, %v926
        %v1119 = vpack.c.b16 %v931, %v927
        %v1120 = vpack.c.b16 %v932, %v928
        %v1121 = vpack.c.b16 %v933, %v929
        %v1122 = vpack.c.b16 %v938, %v934
        %v1123 = vpack.c.b16 %v939, %v935
        %v1124 = vpack.c.b16 %v940, %v936
        %v1125 = vpack.c.b16 %v941, %v937
        %v1126 = vpack.c.b16 %v946, %v942
        %v1127 = vpack.c.b16 %v947, %v943
        %v1128 = vpack.c.b16 %v948, %v944
        %v1129 = vpack.c.b16 %v949, %v945
        %v1130 = vpack.c.b16 %v954, %v950
        %v1131 = vpack.c.b16 %v955, %v951
        %v1132 = vpack.c.b16 %v956, %v952
        %v1133 = vpack.c.b16 %v957, %v953
        %v1134 = vpack.c.b16 %v962, %v958
        %v1135 = vpack.c.b16 %v963, %v959
        %v1136 = vpack.c.b16 %v964, %v960
        %v1137 = vpack.c.b16 %v965, %v961
        %v1138 = vpack.c.b16 %v970, %v966
        %v1139 = vpack.c.b16 %v971, %v967
        %v1140 = vpack.c.b16 %v972, %v968
        %v1141 = vpack.c.b16 %v973, %v969
        %v1142 = vpack.c.b16 %v978, %v974
        %v1143 = vpack.c.b16 %v979, %v975
        %v1144 = vpack.c.b16 %v980, %v976
        %v1145 = vpack.c.b16 %v981, %v977
        %v1146 = vpack.c.b16 %v986, %v982
        %v1147 = vpack.c.b16 %v987, %v983
        %v1148 = vpack.c.b16 %v988, %v984
        %v1149 = vpack.c.b16 %v989, %v985
        %v1150 = vpack.c.b16 %v994, %v990
        %v1151 = vpack.c.b16 %v995, %v991
        %v1152 = vpack.c.b16 %v996, %v992
        %v1153 = vpack.c.b16 %v997, %v993
        %v1154 = vpack.c.b16 %v1002, %v998
        %v1155 = vpack.c.b16 %v1003, %v999
        %v1156 = vpack.c.b16 %v1004, %v1000
        %v1157 = vpack.c.b16 %v1005, %v1001
        %v1158 = vpack.c.b16 %v1010, %v1006
        %v1159 = vpack.c.b16 %v1011, %v1007
        %v1160 = vpack.c.b16 %v1012, %v1008
        %v1161 = vpack.c.b16 %v1013, %v1009
        %v1162 = vpack.c.b16 %v1018, %v1014
        %v1163 = vpack.c.b16 %v1019, %v1015
        %v1164 = vpack.c.b16 %v1020, %v1016
        %v1165 = vpack.c.b16 %v1021, %v1017
        %v1166 = vpack.c.b16 %v1026, %v1022
        %v1167 = vpack.c.b16 %v1027, %v1023
        %v1168 = vpack.c.b16 %v1028, %v1024
        %v1169 = vpack.c.b16 %v1029, %v1025
        %v1170 = vpack.c.b16 %v1034, %v1030
        %v1171 = vpack.c.b16 %v1035, %v1031
        %v1172 = vpack.c.b16 %v1036, %v1032
        %v1173 = vpack.c.b16 %v1037, %v1033
        %v1174 = vpack.c.b16 %v1042, %v1038
        %v1175 = vpack.c.b16 %v1043, %v1039
        %v1176 = vpack.c.b16 %v1044, %v1040
        %v1177 = vpack.c.b16 %v1045, %v1041
        %v1178 = vpack.c.b16 %v1050, %v1046
        %v1179 = vpack.c.b16 %v1051, %v1047
        %v1180 = vpack.c.b16 %v1052, %v1048
        %v1181 = vpack.c.b16 %v1053, %v1049
        %v1311 = vperm.slane %v669, 0
        %v1312 = vperm.slane %v669, 1
        %v1313 = vperm.slane %v669, 2
        %v1314 = vperm.slane %v669, 3
        %1319 = vmatpush.bf16.msra.mxu0 %v1082
        %1320 = vmatpush.bf16.msra.mxu0 %v1078
        %1321 = vmatpush.bf16.msra.mxu0 %v1074
        %1322 = vmatpush.bf16.msra.mxu0 %v1070
        %1323 = vmatpush.bf16.msra.mxu0 %v1066
        %1324 = vmatpush.bf16.msra.mxu0 %v1062
        %1325 = vmatpush.bf16.msra.mxu0 %v1058
        %1326 = vmatpush.bf16.msra.mxu0 %v1054
        %1327 = vmatmul.bf16.gmra.mxu0 %v537
        %v1328 = vpop.f32.mrf.mxu0
        %v1329 = vadd.f32 %v1311, %v1328
        %v1330 = vpop.f32.mrf.mxu0
        %1331 = vdwg.mxu0
        %1332 = vmatpush.bf16.msra.mxu0 %v1114
        %1333 = vmatpush.bf16.msra.mxu0 %v1110
        %1334 = vmatpush.bf16.msra.mxu0 %v1106
        %1335 = vmatpush.bf16.msra.mxu0 %v1102
        %1336 = vmatpush.bf16.msra.mxu0 %v1098
        %1337 = vmatpush.bf16.msra.mxu0 %v1094
        %1338 = vmatpush.bf16.msra.mxu0 %v1090
        %1339 = vmatpush.bf16.msra.mxu0 %v1086
        %1340 = vmatmul.bf16.gmra.mxu0 %v538
        %v1341 = vpop.f32.mrf.mxu0
        %v1342 = vadd.f32 %v1329, %v1341
        %v1343 = vpop.f32.mrf.mxu0
        %1344 = vdwg.mxu0
        %1345 = vmatpush.bf16.msra.mxu0 %v1146
        %1346 = vmatpush.bf16.msra.mxu0 %v1142
        %1347 = vmatpush.bf16.msra.mxu0 %v1138
        %1348 = vmatpush.bf16.msra.mxu0 %v1134
        %1349 = vmatpush.bf16.msra.mxu0 %v1130
        %1350 = vmatpush.bf16.msra.mxu0 %v1126
        %1351 = vmatpush.bf16.msra.mxu0 %v1122
        %1352 = vmatpush.bf16.msra.mxu0 %v1118
        %1353 = vmatmul.bf16.gmra.mxu0 %v539
        %v1354 = vpop.f32.mrf.mxu0
        %v1355 = vadd.f32 %v1342, %v1354
        %v1356 = vpop.f32.mrf.mxu0
        %1357 = vdwg.mxu0
        %1358 = vmatpush.bf16.msra.mxu0 %v1178
        %1359 = vmatpush.bf16.msra.mxu0 %v1174
        %1360 = vmatpush.bf16.msra.mxu0 %v1170
        %1361 = vmatpush.bf16.msra.mxu0 %v1166
        %1362 = vmatpush.bf16.msra.mxu0 %v1162
        %1363 = vmatpush.bf16.msra.mxu0 %v1158
        %1364 = vmatpush.bf16.msra.mxu0 %v1154
        %1365 = vmatpush.bf16.msra.mxu0 %v1150
        %1366 = vmatmul.bf16.gmra.mxu0 %v540
        %v1367 = vpop.f32.mrf.mxu0
        %v1368 = vadd.f32 %v1355, %v1367
        %v1369 = vpop.f32.mrf.mxu0
        %1370 = vdwg.mxu0
        %1371 = vmatpush.bf16.msra.mxu0 %v1083
        %1372 = vmatpush.bf16.msra.mxu0 %v1079
        %1373 = vmatpush.bf16.msra.mxu0 %v1075
        %1374 = vmatpush.bf16.msra.mxu0 %v1071
        %1375 = vmatpush.bf16.msra.mxu0 %v1067
        %1376 = vmatpush.bf16.msra.mxu0 %v1063
        %1377 = vmatpush.bf16.msra.mxu0 %v1059
        %1378 = vmatpush.bf16.msra.mxu0 %v1055
        %1379 = vmatmul.bf16.gmra.mxu0 %v537
        %v1380 = vpop.f32.mrf.mxu0
        %v1381 = vadd.f32 %v1312, %v1380
        %v1382 = vpop.f32.mrf.mxu0
        %1383 = vdwg.mxu0
        %1384 = vmatpush.bf16.msra.mxu0 %v1115
        %1385 = vmatpush.bf16.msra.mxu0 %v1111
        %1386 = vmatpush.bf16.msra.mxu0 %v1107
        %1387 = vmatpush.bf16.msra.mxu0 %v1103
        %1388 = vmatpush.bf16.msra.mxu0 %v1099
        %1389 = vmatpush.bf16.msra.mxu0 %v1095
        %1390 = vmatpush.bf16.msra.mxu0 %v1091
        %1391 = vmatpush.bf16.msra.mxu0 %v1087
        %1392 = vmatmul.bf16.gmra.mxu0 %v538
        %v1393 = vpop.f32.mrf.mxu0
        %v1394 = vadd.f32 %v1381, %v1393
        %v1395 = vpop.f32.mrf.mxu0
        %1396 = vdwg.mxu0
        %1397 = vmatpush.bf16.msra.mxu0 %v1147
        %1398 = vmatpush.bf16.msra.mxu0 %v1143
        %1399 = vmatpush.bf16.msra.mxu0 %v1139
        %1400 = vmatpush.bf16.msra.mxu0 %v1135
        %1401 = vmatpush.bf16.msra.mxu0 %v1131
        %1402 = vmatpush.bf16.msra.mxu0 %v1127
        %1403 = vmatpush.bf16.msra.mxu0 %v1123
        %1404 = vmatpush.bf16.msra.mxu0 %v1119
        %1405 = vmatmul.bf16.gmra.mxu0 %v539
        %v1406 = vpop.f32.mrf.mxu0
        %v1407 = vadd.f32 %v1394, %v1406
        %v1408 = vpop.f32.mrf.mxu0
        %1409 = vdwg.mxu0
        %1410 = vmatpush.bf16.msra.mxu0 %v1179
        %1411 = vmatpush.bf16.msra.mxu0 %v1175
        %1412 = vmatpush.bf16.msra.mxu0 %v1171
        %1413 = vmatpush.bf16.msra.mxu0 %v1167
        %1414 = vmatpush.bf16.msra.mxu0 %v1163
        %1415 = vmatpush.bf16.msra.mxu0 %v1159
        %1416 = vmatpush.bf16.msra.mxu0 %v1155
        %1417 = vmatpush.bf16.msra.mxu0 %v1151
        %1418 = vmatmul.bf16.gmra.mxu0 %v540
        %v1419 = vpop.f32.mrf.mxu0
        %v1420 = vadd.f32 %v1407, %v1419
        %v1421 = vpop.f32.mrf.mxu0
        %1422 = vdwg.mxu0
        %1423 = vmatpush.bf16.msra.mxu0 %v1084
        %1424 = vmatpush.bf16.msra.mxu0 %v1080
        %1425 = vmatpush.bf16.msra.mxu0 %v1076
        %1426 = vmatpush.bf16.msra.mxu0 %v1072
        %1427 = vmatpush.bf16.msra.mxu0 %v1068
        %1428 = vmatpush.bf16.msra.mxu0 %v1064
        %1429 = vmatpush.bf16.msra.mxu0 %v1060
        %1430 = vmatpush.bf16.msra.mxu0 %v1056
        %1431 = vmatmul.bf16.gmra.mxu0 %v537
        %v1432 = vpop.f32.mrf.mxu0
        %v1433 = vadd.f32 %v1313, %v1432
        %v1434 = vpop.f32.mrf.mxu0
        %1435 = vdwg.mxu0
        %1436 = vmatpush.bf16.msra.mxu0 %v1116
        %1437 = vmatpush.bf16.msra.mxu0 %v1112
        %1438 = vmatpush.bf16.msra.mxu0 %v1108
        %1439 = vmatpush.bf16.msra.mxu0 %v1104
        %1440 = vmatpush.bf16.msra.mxu0 %v1100
        %1441 = vmatpush.bf16.msra.mxu0 %v1096
        %1442 = vmatpush.bf16.msra.mxu0 %v1092
        %1443 = vmatpush.bf16.msra.mxu0 %v1088
        %1444 = vmatmul.bf16.gmra.mxu0 %v538
        %v1445 = vpop.f32.mrf.mxu0
        %v1446 = vadd.f32 %v1433, %v1445
        %v1447 = vpop.f32.mrf.mxu0
        %1448 = vdwg.mxu0
        %1449 = vmatpush.bf16.msra.mxu0 %v1148
        %1450 = vmatpush.bf16.msra.mxu0 %v1144
        %1451 = vmatpush.bf16.msra.mxu0 %v1140
        %1452 = vmatpush.bf16.msra.mxu0 %v1136
        %1453 = vmatpush.bf16.msra.mxu0 %v1132
        %1454 = vmatpush.bf16.msra.mxu0 %v1128
        %1455 = vmatpush.bf16.msra.mxu0 %v1124
        %1456 = vmatpush.bf16.msra.mxu0 %v1120
        %1457 = vmatmul.bf16.gmra.mxu0 %v539
        %v1458 = vpop.f32.mrf.mxu0
        %v1459 = vadd.f32 %v1446, %v1458
        %v1460 = vpop.f32.mrf.mxu0
        %1461 = vdwg.mxu0
        %1462 = vmatpush.bf16.msra.mxu0 %v1180
        %1463 = vmatpush.bf16.msra.mxu0 %v1176
        %1464 = vmatpush.bf16.msra.mxu0 %v1172
        %1465 = vmatpush.bf16.msra.mxu0 %v1168
        %1466 = vmatpush.bf16.msra.mxu0 %v1164
        %1467 = vmatpush.bf16.msra.mxu0 %v1160
        %1468 = vmatpush.bf16.msra.mxu0 %v1156
        %1469 = vmatpush.bf16.msra.mxu0 %v1152
        %1470 = vmatmul.bf16.gmra.mxu0 %v540
        %v1471 = vpop.f32.mrf.mxu0
        %v1472 = vadd.f32 %v1459, %v1471
        %v1473 = vpop.f32.mrf.mxu0
        %1474 = vdwg.mxu0
        %1475 = vmatpush.bf16.msra.mxu0 %v1085
        %1476 = vmatpush.bf16.msra.mxu0 %v1081
        %1477 = vmatpush.bf16.msra.mxu0 %v1077
        %1478 = vmatpush.bf16.msra.mxu0 %v1073
        %1479 = vmatpush.bf16.msra.mxu0 %v1069
        %1480 = vmatpush.bf16.msra.mxu0 %v1065
        %1481 = vmatpush.bf16.msra.mxu0 %v1061
        %1482 = vmatpush.bf16.msra.mxu0 %v1057
        %1483 = vmatmul.bf16.gmra.mxu0 %v537
        %v1484 = vpop.f32.mrf.mxu0
        %v1485 = vadd.f32 %v1314, %v1484
        %v1486 = vpop.f32.mrf.mxu0
        %1487 = vdwg.mxu0
        %1488 = vmatpush.bf16.msra.mxu0 %v1117
        %1489 = vmatpush.bf16.msra.mxu0 %v1113
        %1490 = vmatpush.bf16.msra.mxu0 %v1109
        %1491 = vmatpush.bf16.msra.mxu0 %v1105
        %1492 = vmatpush.bf16.msra.mxu0 %v1101
        %1493 = vmatpush.bf16.msra.mxu0 %v1097
        %1494 = vmatpush.bf16.msra.mxu0 %v1093
        %1495 = vmatpush.bf16.msra.mxu0 %v1089
        %1496 = vmatmul.bf16.gmra.mxu0 %v538
        %v1497 = vpop.f32.mrf.mxu0
        %v1498 = vadd.f32 %v1485, %v1497
        %v1499 = vpop.f32.mrf.mxu0
        %1500 = vdwg.mxu0
        %1501 = vmatpush.bf16.msra.mxu0 %v1149
        %1502 = vmatpush.bf16.msra.mxu0 %v1145
        %1503 = vmatpush.bf16.msra.mxu0 %v1141
        %1504 = vmatpush.bf16.msra.mxu0 %v1137
        %1505 = vmatpush.bf16.msra.mxu0 %v1133
        %1506 = vmatpush.bf16.msra.mxu0 %v1129
        %1507 = vmatpush.bf16.msra.mxu0 %v1125
        %1508 = vmatpush.bf16.msra.mxu0 %v1121
        %1509 = vmatmul.bf16.gmra.mxu0 %v539
        %v1510 = vpop.f32.mrf.mxu0
        %v1511 = vadd.f32 %v1498, %v1510
        %v1512 = vpop.f32.mrf.mxu0
        %1513 = vdwg.mxu0
        %1514 = vmatpush.bf16.msra.mxu0 %v1181
        %1515 = vmatpush.bf16.msra.mxu0 %v1177
        %1516 = vmatpush.bf16.msra.mxu0 %v1173
        %1517 = vmatpush.bf16.msra.mxu0 %v1169
        %1518 = vmatpush.bf16.msra.mxu0 %v1165
        %1519 = vmatpush.bf16.msra.mxu0 %v1161
        %1520 = vmatpush.bf16.msra.mxu0 %v1157
        %1521 = vmatpush.bf16.msra.mxu0 %v1153
        %1522 = vmatmul.bf16.gmra.mxu0 %v540
        %v1523 = vpop.f32.mrf.mxu0
        %v1524 = vadd.f32 %v1511, %v1523
        %v1525 = vpop.f32.mrf.mxu0
        %1526 = vdwg.mxu0
        %vm1527 = vcmp.gt.f32.partialorder %v1368, 0.0
        %vm1528 = vcmp.gt.f32.partialorder %v1420, 0.0
        %vm1529 = vcmp.gt.f32.partialorder %v1472, 0.0
        %vm1530 = vcmp.gt.f32.partialorder %v1524, 0.0
        %v1531 = vmul.f32 %v1368, 0.02
        %v1532 = vmul.f32 %v1420, 0.02
        %v1533 = vmul.f32 %v1472, 0.02
        %v1534 = vmul.f32 %v1524, 0.02
        %v1535 = vsel %vm1527, %v1368, %v1531
        %v1536 = vsel %vm1528, %v1420, %v1532
        %v1537 = vsel %vm1529, %v1472, %v1533
        %v1538 = vsel %vm1530, %v1524, %v1534
        %v1539 = vpack.c.bf16 %v1535, %v1535
        %v1540 = vpack.c.bf16 %v1536, %v1536
        %v1541 = vpack.c.bf16 %v1537, %v1537
        %v1542 = vpack.c.bf16 %v1538, %v1538
        %v1543 = vld [vmem:[%s3] sm:$0xf]
        %v1544 = vld [vmem:[%s3 + $0x4] sm:$0xf]
        %v1545 = vld [vmem:[%s3 + $0x8] sm:$0xf]
        %v1546 = vld [vmem:[%s3 + $0xc] sm:$0xf]
        %v1547 = vld [vmem:[%s3 + $0x10] sm:$0xf]
        %v1548 = vld [vmem:[%s3 + $0x14] sm:$0xf]
        %v1549 = vld [vmem:[%s3 + $0x18] sm:$0xf]
        %v1550 = vld [vmem:[%s3 + $0x1c] sm:$0xf]
        %v1551 = vld [vmem:[%s3 + $0x20] sm:$0xf]
        %v1552 = vld [vmem:[%s3 + $0x24] sm:$0xf]
        %v1553 = vld [vmem:[%s3 + $0x28] sm:$0xf]
        %v1554 = vld [vmem:[%s3 + $0x2c] sm:$0xf]
        %v1555 = vld [vmem:[%s3 + $0x30] sm:$0xf]
        %v1556 = vld [vmem:[%s3 + $0x34] sm:$0xf]
        %v1557 = vld [vmem:[%s3 + $0x38] sm:$0xf]
        %v1558 = vld [vmem:[%s3 + $0x3c] sm:$0xf]
        %v1559 = vld [vmem:[%s3 + $0x40] sm:$0xf]
        %v1560 = vld [vmem:[%s3 + $0x44] sm:$0xf]
        %v1561 = vld [vmem:[%s3 + $0x48] sm:$0xf]
        %v1562 = vld [vmem:[%s3 + $0x4c] sm:$0xf]
        %v1563 = vld [vmem:[%s3 + $0x50] sm:$0xf]
        %v1564 = vld [vmem:[%s3 + $0x54] sm:$0xf]
        %v1565 = vld [vmem:[%s3 + $0x58] sm:$0xf]
        %v1566 = vld [vmem:[%s3 + $0x5c] sm:$0xf]
        %v1567 = vld [vmem:[%s3 + $0x60] sm:$0xf]
        %v1568 = vld [vmem:[%s3 + $0x64] sm:$0xf]
        %v1569 = vld [vmem:[%s3 + $0x68] sm:$0xf]
        %v1570 = vld [vmem:[%s3 + $0x6c] sm:$0xf]
        %v1571 = vld [vmem:[%s3 + $0x70] sm:$0xf]
        %v1572 = vld [vmem:[%s3 + $0x74] sm:$0xf]
        %v1573 = vld [vmem:[%s3 + $0x78] sm:$0xf]
        %v1574 = vld [vmem:[%s3 + $0x7c] sm:$0xf]
        %v1575 = vld [vmem:[%s3 + $0x80] sm:$0xf]
        %v1576 = vld [vmem:[%s3 + $0x84] sm:$0xf]
        %v1577 = vld [vmem:[%s3 + $0x88] sm:$0xf]
        %v1578 = vld [vmem:[%s3 + $0x8c] sm:$0xf]
        %v1579 = vld [vmem:[%s3 + $0x90] sm:$0xf]
        %v1580 = vld [vmem:[%s3 + $0x94] sm:$0xf]
        %v1581 = vld [vmem:[%s3 + $0x98] sm:$0xf]
        %v1582 = vld [vmem:[%s3 + $0x9c] sm:$0xf]
        %v1583 = vld [vmem:[%s3 + $0xa0] sm:$0xf]
        %v1584 = vld [vmem:[%s3 + $0xa4] sm:$0xf]
        %v1585 = vld [vmem:[%s3 + $0xa8] sm:$0xf]
        %v1586 = vld [vmem:[%s3 + $0xac] sm:$0xf]
        %v1587 = vld [vmem:[%s3 + $0xb0] sm:$0xf]
        %v1588 = vld [vmem:[%s3 + $0xb4] sm:$0xf]
        %v1589 = vld [vmem:[%s3 + $0xb8] sm:$0xf]
        %v1590 = vld [vmem:[%s3 + $0xbc] sm:$0xf]
        %v1591 = vld [vmem:[%s3 + $0xc0] sm:$0xf]
        %v1592 = vld [vmem:[%s3 + $0xc4] sm:$0xf]
        %v1593 = vld [vmem:[%s3 + $0xc8] sm:$0xf]
        %v1594 = vld [vmem:[%s3 + $0xcc] sm:$0xf]
        %v1595 = vld [vmem:[%s3 + $0xd0] sm:$0xf]
        %v1596 = vld [vmem:[%s3 + $0xd4] sm:$0xf]
        %v1597 = vld [vmem:[%s3 + $0xd8] sm:$0xf]
        %v1598 = vld [vmem:[%s3 + $0xdc] sm:$0xf]
        %v1599 = vld [vmem:[%s3 + $0xe0] sm:$0xf]
        %v1600 = vld [vmem:[%s3 + $0xe4] sm:$0xf]
        %v1601 = vld [vmem:[%s3 + $0xe8] sm:$0xf]
        %v1602 = vld [vmem:[%s3 + $0xec] sm:$0xf]
        %v1603 = vld [vmem:[%s3 + $0xf0] sm:$0xf]
        %v1604 = vld [vmem:[%s3 + $0xf4] sm:$0xf]
        %v1605 = vld [vmem:[%s3 + $0xf8] sm:$0xf]
        %v1606 = vld [vmem:[%s3 + $0xfc] sm:$0xf]
        %v1607 = vld [vmem:[%s4] sm:$0x1]
        %v1672 = vunpack.c.l.b16 %v1543
        %v1673 = vunpack.c.l.b16 %v1544
        %v1674 = vunpack.c.l.b16 %v1545
        %v1675 = vunpack.c.l.b16 %v1546
        %v1676 = vunpack.c.l.b16 %v1547
        %v1677 = vunpack.c.l.b16 %v1548
        %v1678 = vunpack.c.l.b16 %v1549
        %v1679 = vunpack.c.l.b16 %v1550
        %v1680 = vunpack.c.l.b16 %v1551
        %v1681 = vunpack.c.l.b16 %v1552
        %v1682 = vunpack.c.l.b16 %v1553
        %v1683 = vunpack.c.l.b16 %v1554
        %v1684 = vunpack.c.l.b16 %v1555
        %v1685 = vunpack.c.l.b16 %v1556
        %v1686 = vunpack.c.l.b16 %v1557
        %v1687 = vunpack.c.l.b16 %v1558
        %v1688 = vunpack.c.l.b16 %v1559
        %v1689 = vunpack.c.l.b16 %v1560
        %v1690 = vunpack.c.l.b16 %v1561
        %v1691 = vunpack.c.l.b16 %v1562
        %v1692 = vunpack.c.l.b16 %v1563
        %v1693 = vunpack.c.l.b16 %v1564
        %v1694 = vunpack.c.l.b16 %v1565
        %v1695 = vunpack.c.l.b16 %v1566
        %v1696 = vunpack.c.l.b16 %v1567
        %v1697 = vunpack.c.l.b16 %v1568
        %v1698 = vunpack.c.l.b16 %v1569
        %v1699 = vunpack.c.l.b16 %v1570
        %v1700 = vunpack.c.l.b16 %v1571
        %v1701 = vunpack.c.l.b16 %v1572
        %v1702 = vunpack.c.l.b16 %v1573
        %v1703 = vunpack.c.l.b16 %v1574
        %v1704 = vunpack.c.l.b16 %v1575
        %v1705 = vunpack.c.l.b16 %v1576
        %v1706 = vunpack.c.l.b16 %v1577
        %v1707 = vunpack.c.l.b16 %v1578
        %v1708 = vunpack.c.l.b16 %v1579
        %v1709 = vunpack.c.l.b16 %v1580
        %v1710 = vunpack.c.l.b16 %v1581
        %v1711 = vunpack.c.l.b16 %v1582
        %v1712 = vunpack.c.l.b16 %v1583
        %v1713 = vunpack.c.l.b16 %v1584
        %v1714 = vunpack.c.l.b16 %v1585
        %v1715 = vunpack.c.l.b16 %v1586
        %v1716 = vunpack.c.l.b16 %v1587
        %v1717 = vunpack.c.l.b16 %v1588
        %v1718 = vunpack.c.l.b16 %v1589
        %v1719 = vunpack.c.l.b16 %v1590
        %v1720 = vunpack.c.l.b16 %v1591
        %v1721 = vunpack.c.l.b16 %v1592
        %v1722 = vunpack.c.l.b16 %v1593
        %v1723 = vunpack.c.l.b16 %v1594
        %v1724 = vunpack.c.l.b16 %v1595
        %v1725 = vunpack.c.l.b16 %v1596
        %v1726 = vunpack.c.l.b16 %v1597
        %v1727 = vunpack.c.l.b16 %v1598
        %v1728 = vunpack.c.l.b16 %v1599
        %v1729 = vunpack.c.l.b16 %v1600
        %v1730 = vunpack.c.l.b16 %v1601
        %v1731 = vunpack.c.l.b16 %v1602
        %v1732 = vunpack.c.l.b16 %v1603
        %v1733 = vunpack.c.l.b16 %v1604
        %v1734 = vunpack.c.l.b16 %v1605
        %v1735 = vunpack.c.l.b16 %v1606
        %v1736 = vpack.c.b16 %v1673, %v1672
        %v1737 = vpack.c.b16 %v1675, %v1674
        %v1738 = vpack.c.b16 %v1677, %v1676
        %v1739 = vpack.c.b16 %v1679, %v1678
        %v1740 = vpack.c.b16 %v1681, %v1680
        %v1741 = vpack.c.b16 %v1683, %v1682
        %v1742 = vpack.c.b16 %v1685, %v1684
        %v1743 = vpack.c.b16 %v1687, %v1686
        %v1744 = vpack.c.b16 %v1689, %v1688
        %v1745 = vpack.c.b16 %v1691, %v1690
        %v1746 = vpack.c.b16 %v1693, %v1692
        %v1747 = vpack.c.b16 %v1695, %v1694
        %v1748 = vpack.c.b16 %v1697, %v1696
        %v1749 = vpack.c.b16 %v1699, %v1698
        %v1750 = vpack.c.b16 %v1701, %v1700
        %v1751 = vpack.c.b16 %v1703, %v1702
        %v1752 = vpack.c.b16 %v1705, %v1704
        %v1753 = vpack.c.b16 %v1707, %v1706
        %v1754 = vpack.c.b16 %v1709, %v1708
        %v1755 = vpack.c.b16 %v1711, %v1710
        %v1756 = vpack.c.b16 %v1713, %v1712
        %v1757 = vpack.c.b16 %v1715, %v1714
        %v1758 = vpack.c.b16 %v1717, %v1716
        %v1759 = vpack.c.b16 %v1719, %v1718
        %v1760 = vpack.c.b16 %v1721, %v1720
        %v1761 = vpack.c.b16 %v1723, %v1722
        %v1762 = vpack.c.b16 %v1725, %v1724
        %v1763 = vpack.c.b16 %v1727, %v1726
        %v1764 = vpack.c.b16 %v1729, %v1728
        %v1765 = vpack.c.b16 %v1731, %v1730
        %v1766 = vpack.c.b16 %v1733, %v1732
        %v1767 = vpack.c.b16 %v1735, %v1734
        %1800 = vmatpush.bf16.msra.mxu0 %v1743
        %1801 = vmatpush.bf16.msra.mxu0 %v1742
        %1802 = vmatpush.bf16.msra.mxu0 %v1741
        %1803 = vmatpush.bf16.msra.mxu0 %v1740
        %1804 = vmatpush.bf16.msra.mxu0 %v1739
        %1805 = vmatpush.bf16.msra.mxu0 %v1738
        %1806 = vmatpush.bf16.msra.mxu0 %v1737
        %1807 = vmatpush.bf16.msra.mxu0 %v1736
        %1808 = vmatmul.bf16.gmra.mxu0 %v1539
        %v1809 = vpop.f32.mrf.mxu0
        %v1810 = vadd.f32 %v1607, %v1809
        %v1811 = vpop.f32.mrf.mxu0
        %1812 = vdwg.mxu0
        %1813 = vmatpush.bf16.msra.mxu0 %v1751
        %1814 = vmatpush.bf16.msra.mxu0 %v1750
        %1815 = vmatpush.bf16.msra.mxu0 %v1749
        %1816 = vmatpush.bf16.msra.mxu0 %v1748
        %1817 = vmatpush.bf16.msra.mxu0 %v1747
        %1818 = vmatpush.bf16.msra.mxu0 %v1746
        %1819 = vmatpush.bf16.msra.mxu0 %v1745
        %1820 = vmatpush.bf16.msra.mxu0 %v1744
        %1821 = vmatmul.bf16.gmra.mxu0 %v1540
        %v1822 = vpop.f32.mrf.mxu0
        %v1823 = vadd.f32 %v1810, %v1822
        %v1824 = vpop.f32.mrf.mxu0
        %1825 = vdwg.mxu0
        %1826 = vmatpush.bf16.msra.mxu0 %v1759
        %1827 = vmatpush.bf16.msra.mxu0 %v1758
        %1828 = vmatpush.bf16.msra.mxu0 %v1757
        %1829 = vmatpush.bf16.msra.mxu0 %v1756
        %1830 = vmatpush.bf16.msra.mxu0 %v1755
        %1831 = vmatpush.bf16.msra.mxu0 %v1754
        %1832 = vmatpush.bf16.msra.mxu0 %v1753
        %1833 = vmatpush.bf16.msra.mxu0 %v1752
        %1834 = vmatmul.bf16.gmra.mxu0 %v1541
        %v1835 = vpop.f32.mrf.mxu0
        %v1836 = vadd.f32 %v1823, %v1835
        %v1837 = vpop.f32.mrf.mxu0
        %1838 = vdwg.mxu0
        %1839 = vmatpush.bf16.msra.mxu0 %v1767
        %1840 = vmatpush.bf16.msra.mxu0 %v1766
        %1841 = vmatpush.bf16.msra.mxu0 %v1765
        %1842 = vmatpush.bf16.msra.mxu0 %v1764
        %1843 = vmatpush.bf16.msra.mxu0 %v1763
        %1844 = vmatpush.bf16.msra.mxu0 %v1762
        %1845 = vmatpush.bf16.msra.mxu0 %v1761
        %1846 = vmatpush.bf16.msra.mxu0 %v1760
        %1847 = vmatmul.bf16.gmra.mxu0 %v1542
        %v1848 = vpop.f32.mrf.mxu0
        %v1849 = vadd.f32 %v1836, %v1848
        %v1850 = vpop.f32.mrf.mxu0
        %1851 = vdwg.mxu0
        %vm1852 = vcmp.gt.f32.partialorder %v1849, 0.0
        %v1853 = vmul.f32 %v1849, 0.02
        %v1854 = vsel %vm1852, %v1849, %v1853
        %v1855 = vpack.c.bf16 %v1854, %v1854
        %v1856 = vld [vmem:[%s5] sm:$0xf]
        %v1857 = vld [vmem:[%s5 + $0x4] sm:$0xf]
        %v1858 = vld [vmem:[%s5 + $0x8] sm:$0xf]
        %v1859 = vld [vmem:[%s5 + $0xc] sm:$0xf]
        %v1860 = vld [vmem:[%s5 + $0x10] sm:$0xf]
        %v1861 = vld [vmem:[%s5 + $0x14] sm:$0xf]
        %v1862 = vld [vmem:[%s5 + $0x18] sm:$0xf]
        %v1863 = vld [vmem:[%s5 + $0x1c] sm:$0xf]
        %v1864 = vld [vmem:[%s5 + $0x20] sm:$0xf]
        %v1865 = vld [vmem:[%s5 + $0x24] sm:$0xf]
        %v1866 = vld [vmem:[%s5 + $0x28] sm:$0xf]
        %v1867 = vld [vmem:[%s5 + $0x2c] sm:$0xf]
        %v1868 = vld [vmem:[%s5 + $0x30] sm:$0xf]
        %v1869 = vld [vmem:[%s5 + $0x34] sm:$0xf]
        %v1870 = vld [vmem:[%s5 + $0x38] sm:$0xf]
        %v1871 = vld [vmem:[%s5 + $0x3c] sm:$0xf]
        %v1872 = vld [vmem:[%s6] sm:$0x1]
        %v1889 = vunpack.c.l.b16 %v1856
        %v1890 = vunpack.c.l.b16 %v1857
        %v1891 = vunpack.c.l.b16 %v1858
        %v1892 = vunpack.c.l.b16 %v1859
        %v1893 = vunpack.c.l.b16 %v1860
        %v1894 = vunpack.c.l.b16 %v1861
        %v1895 = vunpack.c.l.b16 %v1862
        %v1896 = vunpack.c.l.b16 %v1863
        %v1897 = vunpack.c.l.b16 %v1864
        %v1898 = vunpack.c.l.b16 %v1865
        %v1899 = vunpack.c.l.b16 %v1866
        %v1900 = vunpack.c.l.b16 %v1867
        %v1901 = vunpack.c.l.b16 %v1868
        %v1902 = vunpack.c.l.b16 %v1869
        %v1903 = vunpack.c.l.b16 %v1870
        %v1904 = vunpack.c.l.b16 %v1871
        %v1905 = vpack.c.b16 %v1890, %v1889
        %v1906 = vpack.c.b16 %v1892, %v1891
        %v1907 = vpack.c.b16 %v1894, %v1893
        %v1908 = vpack.c.b16 %v1896, %v1895
        %v1909 = vpack.c.b16 %v1898, %v1897
        %v1910 = vpack.c.b16 %v1900, %v1899
        %v1911 = vpack.c.b16 %v1902, %v1901
        %v1912 = vpack.c.b16 %v1904, %v1903
        %1921 = vmatpush.bf16.msra.mxu0 %v1912
        %1922 = vmatpush.bf16.msra.mxu0 %v1911
        %1923 = vmatpush.bf16.msra.mxu0 %v1910
        %1924 = vmatpush.bf16.msra.mxu0 %v1909
        %1925 = vmatpush.bf16.msra.mxu0 %v1908
        %1926 = vmatpush.bf16.msra.mxu0 %v1907
        %1927 = vmatpush.bf16.msra.mxu0 %v1906
        %1928 = vmatpush.bf16.msra.mxu0 %v1905
        %1929 = vmatmul.bf16.gmra.mxu0 %v1855
        %v1930 = vpop.f32.mrf.mxu0
        %v1931 = vadd.f32 %v1872, %v1930
        %v1932 = vpop.f32.mrf.mxu0
        %1933 = vdwg.mxu0
        %v1934 = vxor.u32 %v1931, 2147483648
        %v1935 = vmul.f32 %v1934, 1.442695
        %v1936 = vpow.pop %v1935
        %v1937 = vadd.f32 %v1936, 1.0
        %v1938 = vrcp.pop %v1937
        %v1939 = vmul.f32 %v1937, %v1938
        %v1940 = vsub.f32 1.0, %v1939
        %v1941 = vmul.f32 %v1938, %v1940
        %v1942 = vadd.f32 %v1938, %v1941
        %vm1943 = vweird.f32 %v1937
        %vm1944 = vweird.f32 %v1938
        %vm1945 = vmor %vm1943, %vm1944
        %v1946 = vsel %vm1945, %v1938, %v1942
        %v1947 = vand.u32 2147483647, %v1937
        %vm1948 = vcmp.eq.f32.partialorder %v1947, 8.507059e+37
        %v1949 = vand.u32 %v1937, 2147483648
        %v1950 = vor.u32 1.1754944e-38, %v1949
        %v1951 = vsel %vm1948, %v1950, %v1946
        %v1952 = vmul.f32 1.0, %v1951
        %v1953 = vld [vmem:[%s7] sm:$0xff]
        %v1954 = vld [vmem:[%s7 + $0x8] sm:$0xff]
        %v1955 = vld [vmem:[%s7 + $0x10] sm:$0xff]
        %v1956 = vld [vmem:[%s7 + $0x18] sm:$0xff]
        %v1957 = vld [vmem:[%s7 + $0x20] sm:$0xff]
        %v1958 = vld [vmem:[%s7 + $0x28] sm:$0xff]
        %v1959 = vld [vmem:[%s7 + $0x30] sm:$0xff]
        %v1960 = vld [vmem:[%s7 + $0x38] sm:$0xff]
        %v1961 = vld [vmem:[%s7 + $0x40] sm:$0xff]
        %v1962 = vld [vmem:[%s7 + $0x48] sm:$0xff]
        %v1963 = vld [vmem:[%s7 + $0x50] sm:$0xff]
        %v1964 = vld [vmem:[%s7 + $0x58] sm:$0xff]
        %v1965 = vld [vmem:[%s7 + $0x60] sm:$0xff]
        %v1966 = vld [vmem:[%s7 + $0x68] sm:$0xff]
        %v1967 = vld [vmem:[%s7 + $0x70] sm:$0xff]
        %v1968 = vld [vmem:[%s7 + $0x78] sm:$0xff]
        %v1969 = vperm.slane %v1952, 0
        %v1970 = vmul.f32 %v1953, %v1969
        %v1971 = vmul.f32 %v1954, %v1969
        %v1972 = vmul.f32 %v1955, %v1969
        %v1973 = vmul.f32 %v1956, %v1969
        %v1974 = vmul.f32 %v1957, %v1969
        %v1975 = vmul.f32 %v1958, %v1969
        %v1976 = vmul.f32 %v1959, %v1969
        %v1977 = vmul.f32 %v1960, %v1969
        %v1978 = vmul.f32 %v1961, %v1969
        %v1979 = vmul.f32 %v1962, %v1969
        %v1980 = vmul.f32 %v1963, %v1969
        %v1981 = vmul.f32 %v1964, %v1969
        %v1982 = vmul.f32 %v1965, %v1969
        %v1983 = vmul.f32 %v1966, %v1969
        %v1984 = vmul.f32 %v1967, %v1969
        %v1985 = vmul.f32 %v1968, %v1969
        %vm1986 = vcmask 261120
        %v1987 = vsel %vm1986, %v1970, 0.0
        %1988 = vadd.xlane.f32.xlu0 %v1987
        %v1989 = vpop.xlane.xlu0 %1988
        %v1990 = vsel %vm1986, %v1971, 0.0
        %1991 = vadd.xlane.f32.xlu0 %v1990
        %v1992 = vpop.xlane.xlu0 %1991
        %v1993 = vsel %vm1986, %v1972, 0.0
        %1994 = vadd.xlane.f32.xlu0 %v1993
        %v1995 = vpop.xlane.xlu0 %1994
        %v1996 = vsel %vm1986, %v1973, 0.0
        %1997 = vadd.xlane.f32.xlu0 %v1996
        %v1998 = vpop.xlane.xlu0 %1997
        %v1999 = vsel %vm1986, %v1974, 0.0
        %2000 = vadd.xlane.f32.xlu0 %v1999
        %v2001 = vpop.xlane.xlu0 %2000
        %v2002 = vsel %vm1986, %v1975, 0.0
        %2003 = vadd.xlane.f32.xlu0 %v2002
        %v2004 = vpop.xlane.xlu0 %2003
        %v2005 = vsel %vm1986, %v1976, 0.0
        %2006 = vadd.xlane.f32.xlu0 %v2005
        %v2007 = vpop.xlane.xlu0 %2006
        %v2008 = vsel %vm1986, %v1977, 0.0
        %2009 = vadd.xlane.f32.xlu0 %v2008
        %v2010 = vpop.xlane.xlu0 %2009
        %v2011 = vsel %vm1986, %v1978, 0.0
        %2012 = vadd.xlane.f32.xlu0 %v2011
        %v2013 = vpop.xlane.xlu0 %2012
        %v2014 = vsel %vm1986, %v1979, 0.0
        %2015 = vadd.xlane.f32.xlu0 %v2014
        %v2016 = vpop.xlane.xlu0 %2015
        %v2017 = vsel %vm1986, %v1980, 0.0
        %2018 = vadd.xlane.f32.xlu0 %v2017
        %v2019 = vpop.xlane.xlu0 %2018
        %v2020 = vsel %vm1986, %v1981, 0.0
        %2021 = vadd.xlane.f32.xlu0 %v2020
        %v2022 = vpop.xlane.xlu0 %2021
        %v2023 = vsel %vm1986, %v1982, 0.0
        %2024 = vadd.xlane.f32.xlu0 %v2023
        %v2025 = vpop.xlane.xlu0 %2024
        %v2026 = vsel %vm1986, %v1983, 0.0
        %2027 = vadd.xlane.f32.xlu0 %v2026
        %v2028 = vpop.xlane.xlu0 %2027
        %v2029 = vsel %vm1986, %v1984, 0.0
        %2030 = vadd.xlane.f32.xlu0 %v2029
        %v2031 = vpop.xlane.xlu0 %2030
        %v2032 = vsel %vm1986, %v1985, 0.0
        %2033 = vadd.xlane.f32.xlu0 %v2032
        %v2034 = vpop.xlane.xlu0 %2033
        %v2035 = vld [vmem:[%s8] sm:$0xff]
        %v2036 = vld [vmem:[%s8 + $0x8] sm:$0xff]
        %v2037 = vld [vmem:[%s8 + $0x10] sm:$0xff]
        %v2038 = vld [vmem:[%s8 + $0x18] sm:$0xff]
        %v2039 = vld [vmem:[%s8 + $0x20] sm:$0xff]
        %v2040 = vld [vmem:[%s8 + $0x28] sm:$0xff]
        %v2041 = vld [vmem:[%s8 + $0x30] sm:$0xff]
        %v2042 = vld [vmem:[%s8 + $0x38] sm:$0xff]
        %v2043 = vld [vmem:[%s8 + $0x40] sm:$0xff]
        %v2044 = vld [vmem:[%s8 + $0x48] sm:$0xff]
        %v2045 = vld [vmem:[%s8 + $0x50] sm:$0xff]
        %v2046 = vld [vmem:[%s8 + $0x58] sm:$0xff]
        %v2047 = vld [vmem:[%s8 + $0x60] sm:$0xff]
        %v2048 = vld [vmem:[%s8 + $0x68] sm:$0xff]
        %v2049 = vld [vmem:[%s8 + $0x70] sm:$0xff]
        %v2050 = vld [vmem:[%s8 + $0x78] sm:$0xff]
        %v2051 = vadd.f32 %v1989, %v2035
        %v2052 = vadd.f32 %v1992, %v2036
        %v2053 = vadd.f32 %v1995, %v2037
        %v2054 = vadd.f32 %v1998, %v2038
        %v2055 = vadd.f32 %v2001, %v2039
        %v2056 = vadd.f32 %v2004, %v2040
        %v2057 = vadd.f32 %v2007, %v2041
        %v2058 = vadd.f32 %v2010, %v2042
        %v2059 = vadd.f32 %v2013, %v2043
        %v2060 = vadd.f32 %v2016, %v2044
        %v2061 = vadd.f32 %v2019, %v2045
        %v2062 = vadd.f32 %v2022, %v2046
        %v2063 = vadd.f32 %v2025, %v2047
        %v2064 = vadd.f32 %v2028, %v2048
        %v2065 = vadd.f32 %v2031, %v2049
        %v2066 = vadd.f32 %v2034, %v2050
        %vm2067 = vcmask 7168
        %2068 = vst.msk [vmem:[#allocation2] sm:$0xff] %vm2067, %v2051
        %2069 = vst.msk [vmem:[#allocation2 + $0x8] sm:$0xff] %vm2067, %v2052
        %2070 = vst.msk [vmem:[#allocation2 + $0x10] sm:$0xff] %vm2067, %v2053
        %2071 = vst.msk [vmem:[#allocation2 + $0x18] sm:$0xff] %vm2067, %v2054
        %2072 = vst.msk [vmem:[#allocation2 + $0x20] sm:$0xff] %vm2067, %v2055
        %2073 = vst.msk [vmem:[#allocation2 + $0x28] sm:$0xff] %vm2067, %v2056
        %2074 = vst.msk [vmem:[#allocation2 + $0x30] sm:$0xff] %vm2067, %v2057
        %2075 = vst.msk [vmem:[#allocation2 + $0x38] sm:$0xff] %vm2067, %v2058
        %2076 = vst.msk [vmem:[#allocation2 + $0x40] sm:$0xff] %vm2067, %v2059
        %2077 = vst.msk [vmem:[#allocation2 + $0x48] sm:$0xff] %vm2067, %v2060
        %2078 = vst.msk [vmem:[#allocation2 + $0x50] sm:$0xff] %vm2067, %v2061
        %2079 = vst.msk [vmem:[#allocation2 + $0x58] sm:$0xff] %vm2067, %v2062
        %2080 = vst.msk [vmem:[#allocation2 + $0x60] sm:$0xff] %vm2067, %v2063
        %2081 = vst.msk [vmem:[#allocation2 + $0x68] sm:$0xff] %vm2067, %v2064
        %2082 = vst.msk [vmem:[#allocation2 + $0x70] sm:$0xff] %vm2067, %v2065
        %2083 = vst.msk [vmem:[#allocation2 + $0x78] sm:$0xff] %vm2067, %v2066
      $region80: #{autoencoder_forward.1} parent=75 // pred_fallthru
        _
      %v2084 = vld [vmem:[%s10] sm:$0xf]
      %v2085 = vld [vmem:[%s10 + $0x4] sm:$0xf]
      %v2086 = vld [vmem:[%s10 + $0x8] sm:$0xf]
      %v2087 = vld [vmem:[%s10 + $0xc] sm:$0xf]
      %v2088 = vld [vmem:[%s10 + $0x10] sm:$0xf]
      %v2089 = vld [vmem:[%s10 + $0x14] sm:$0xf]
      %v2090 = vld [vmem:[%s10 + $0x18] sm:$0xf]
      %v2091 = vld [vmem:[%s10 + $0x1c] sm:$0xf]
      %v2092 = vld [vmem:[%s10 + $0x20] sm:$0xf]
      %v2093 = vld [vmem:[%s10 + $0x24] sm:$0xf]
      %v2094 = vld [vmem:[%s10 + $0x28] sm:$0xf]
      %v2095 = vld [vmem:[%s10 + $0x2c] sm:$0xf]
      %v2096 = vld [vmem:[%s10 + $0x30] sm:$0xf]
      %v2097 = vld [vmem:[%s10 + $0x34] sm:$0xf]
      %v2098 = vld [vmem:[%s10 + $0x38] sm:$0xf]
      %v2099 = vld [vmem:[%s10 + $0x3c] sm:$0xf]
      %v2100 = vld [vmem:[%s511] sm:$0xff]
      %v2101 = vld [vmem:[%s511 + $0x8] sm:$0xff]
      %v2102 = vld [vmem:[%s511 + $0x10] sm:$0xff]
      %v2103 = vld [vmem:[%s511 + $0x18] sm:$0xff]
      %v2104 = vld [vmem:[%s511 + $0x20] sm:$0xff]
      %v2105 = vld [vmem:[%s511 + $0x28] sm:$0xff]
      %v2106 = vld [vmem:[%s511 + $0x30] sm:$0xff]
      %v2107 = vld [vmem:[%s511 + $0x38] sm:$0xff]
      %v2108 = vld [vmem:[%s511 + $0x40] sm:$0xff]
      %v2109 = vld [vmem:[%s511 + $0x48] sm:$0xff]
      %v2110 = vld [vmem:[%s511 + $0x50] sm:$0xff]
      %v2111 = vld [vmem:[%s511 + $0x58] sm:$0xff]
      %v2112 = vld [vmem:[%s511 + $0x60] sm:$0xff]
      %v2113 = vld [vmem:[%s511 + $0x68] sm:$0xff]
      %v2114 = vld [vmem:[%s511 + $0x70] sm:$0xff]
      %v2115 = vld [vmem:[%s511 + $0x78] sm:$0xff]
      %v2116 = vld [vmem:[%s511 + $0x80] sm:$0xff]
      %v2117 = vld [vmem:[%s511 + $0x88] sm:$0xff]
      %v2118 = vld [vmem:[%s511 + $0x90] sm:$0xff]
      %v2119 = vld [vmem:[%s511 + $0x98] sm:$0xff]
      %v2120 = vld [vmem:[%s511 + $0xa0] sm:$0xff]
      %v2121 = vld [vmem:[%s511 + $0xa8] sm:$0xff]
      %v2122 = vld [vmem:[%s511 + $0xb0] sm:$0xff]
      %v2123 = vld [vmem:[%s511 + $0xb8] sm:$0xff]
      %v2124 = vpack.c.bf16 %v2100, %v2100
      %v2125 = vpack.c.bf16 %v2101, %v2101
      %v2126 = vpack.c.bf16 %v2102, %v2102
      %v2127 = vpack.c.bf16 %v2103, %v2103
      %v2128 = vpack.c.bf16 %v2104, %v2104
      %v2129 = vpack.c.bf16 %v2105, %v2105
      %v2130 = vpack.c.bf16 %v2106, %v2106
      %v2131 = vpack.c.bf16 %v2107, %v2107
      %v2132 = vpack.c.bf16 %v2108, %v2108
      %v2133 = vpack.c.bf16 %v2109, %v2109
      %v2134 = vpack.c.bf16 %v2110, %v2110
      %v2135 = vpack.c.bf16 %v2111, %v2111
      %v2136 = vpack.c.bf16 %v2112, %v2112
      %v2137 = vpack.c.bf16 %v2113, %v2113
      %v2138 = vpack.c.bf16 %v2114, %v2114
      %v2139 = vpack.c.bf16 %v2115, %v2115
      %v2140 = vpack.c.bf16 %v2116, %v2116
      %v2141 = vpack.c.bf16 %v2117, %v2117
      %v2142 = vpack.c.bf16 %v2118, %v2118
      %v2143 = vpack.c.bf16 %v2119, %v2119
      %v2144 = vpack.c.bf16 %v2120, %v2120
      %v2145 = vpack.c.bf16 %v2121, %v2121
      %v2146 = vpack.c.bf16 %v2122, %v2122
      %v2147 = vpack.c.bf16 %v2123, %v2123
      %v2148 = vld [vmem:[#allocation2] sm:$0xff]
      %v2149 = vld [vmem:[#allocation2 + $0x8] sm:$0xff]
      %v2150 = vld [vmem:[#allocation2 + $0x10] sm:$0xff]
      %v2151 = vld [vmem:[#allocation2 + $0x18] sm:$0xff]
      %v2152 = vld [vmem:[#allocation2 + $0x20] sm:$0xff]
      %v2153 = vld [vmem:[#allocation2 + $0x28] sm:$0xff]
      %v2154 = vld [vmem:[#allocation2 + $0x30] sm:$0xff]
      %v2155 = vld [vmem:[#allocation2 + $0x38] sm:$0xff]
      %v2156 = vld [vmem:[#allocation2 + $0x40] sm:$0xff]
      %v2157 = vld [vmem:[#allocation2 + $0x48] sm:$0xff]
      %v2158 = vld [vmem:[#allocation2 + $0x50] sm:$0xff]
      %v2159 = vld [vmem:[#allocation2 + $0x58] sm:$0xff]
      %v2160 = vld [vmem:[#allocation2 + $0x60] sm:$0xff]
      %v2161 = vld [vmem:[#allocation2 + $0x68] sm:$0xff]
      %v2162 = vld [vmem:[#allocation2 + $0x70] sm:$0xff]
      %v2163 = vld [vmem:[#allocation2 + $0x78] sm:$0xff]
      %2165 = vset.pattern.permute.xlu0 0
      %2166 = vperm.xlu0 %2165, %v2148
      %v2167 = vpop.permute.xlu0 %2166
      %2170 = vset.pattern.permute.xlu0 0
      %2171 = vperm.xlu0 %2170, %v2149
      %v2172 = vpop.permute.xlu0 %2171
      %2175 = vset.pattern.permute.xlu0 0
      %2176 = vperm.xlu0 %2175, %v2150
      %v2177 = vpop.permute.xlu0 %2176
      %2180 = vset.pattern.permute.xlu0 0
      %2181 = vperm.xlu0 %2180, %v2151
      %v2182 = vpop.permute.xlu0 %2181
      %2185 = vset.pattern.permute.xlu0 0
      %2186 = vperm.xlu0 %2185, %v2152
      %v2187 = vpop.permute.xlu0 %2186
      %2190 = vset.pattern.permute.xlu0 0
      %2191 = vperm.xlu0 %2190, %v2153
      %v2192 = vpop.permute.xlu0 %2191
      %2195 = vset.pattern.permute.xlu0 0
      %2196 = vperm.xlu0 %2195, %v2154
      %v2197 = vpop.permute.xlu0 %2196
      %2200 = vset.pattern.permute.xlu0 0
      %2201 = vperm.xlu0 %2200, %v2155
      %v2202 = vpop.permute.xlu0 %2201
      %2205 = vset.pattern.permute.xlu0 0
      %2206 = vperm.xlu0 %2205, %v2156
      %v2207 = vpop.permute.xlu0 %2206
      %2210 = vset.pattern.permute.xlu0 0
      %2211 = vperm.xlu0 %2210, %v2157
      %v2212 = vpop.permute.xlu0 %2211
      %2215 = vset.pattern.permute.xlu0 0
      %2216 = vperm.xlu0 %2215, %v2158
      %v2217 = vpop.permute.xlu0 %2216
      %2220 = vset.pattern.permute.xlu0 0
      %2221 = vperm.xlu0 %2220, %v2159
      %v2222 = vpop.permute.xlu0 %2221
      %2225 = vset.pattern.permute.xlu0 0
      %2226 = vperm.xlu0 %2225, %v2160
      %v2227 = vpop.permute.xlu0 %2226
      %2230 = vset.pattern.permute.xlu0 0
      %2231 = vperm.xlu0 %2230, %v2161
      %v2232 = vpop.permute.xlu0 %2231
      %2235 = vset.pattern.permute.xlu0 0
      %2236 = vperm.xlu0 %2235, %v2162
      %v2237 = vpop.permute.xlu0 %2236
      %2240 = vset.pattern.permute.xlu0 0
      %2241 = vperm.xlu0 %2240, %v2163
      %v2242 = vpop.permute.xlu0 %2241
      %v2260 = vunpack.c.l.b16 %v2084
      %v2261 = vunpack.c.l.b16 %v2085
      %v2262 = vunpack.c.l.b16 %v2086
      %v2263 = vunpack.c.l.b16 %v2087
      %v2264 = vunpack.c.l.b16 %v2088
      %v2265 = vunpack.c.l.b16 %v2089
      %v2266 = vunpack.c.l.b16 %v2090
      %v2267 = vunpack.c.l.b16 %v2091
      %v2268 = vunpack.c.l.b16 %v2092
      %v2269 = vunpack.c.l.b16 %v2093
      %v2270 = vunpack.c.l.b16 %v2094
      %v2271 = vunpack.c.l.b16 %v2095
      %v2272 = vunpack.c.l.b16 %v2096
      %v2273 = vunpack.c.l.b16 %v2097
      %v2274 = vunpack.c.l.b16 %v2098
      %v2275 = vunpack.c.l.b16 %v2099
      %v2276 = vpack.c.b16 %v2261, %v2260
      %v2277 = vpack.c.b16 %v2263, %v2262
      %v2278 = vpack.c.b16 %v2265, %v2264
      %v2279 = vpack.c.b16 %v2267, %v2266
      %v2280 = vpack.c.b16 %v2269, %v2268
      %v2281 = vpack.c.b16 %v2271, %v2270
      %v2282 = vpack.c.b16 %v2273, %v2272
      %v2283 = vpack.c.b16 %v2275, %v2274
      %vm2284 = vcmask 64512
      %v2286 = vsel %vm2284, %v2276, 0
      %v2289 = vsel %vm2284, %v2277, 0
      %v2292 = vsel %vm2284, %v2278, 0
      %v2295 = vsel %vm2284, %v2279, 0
      %v2298 = vsel %vm2284, %v2280, 0
      %v2301 = vsel %vm2284, %v2281, 0
      %v2304 = vsel %vm2284, %v2282, 0
      %v2307 = vsel %vm2284, %v2283, 0
      %vm2309 = vcmask 1043456
      %v2311 = vsel %vm2309, %v2124, 0
      %v2314 = vsel %vm2309, %v2125, 0
      %v2317 = vsel %vm2309, %v2126, 0
      %v2320 = vsel %vm2309, %v2127, 0
      %v2323 = vsel %vm2309, %v2128, 0
      %v2326 = vsel %vm2309, %v2129, 0
      %v2329 = vsel %vm2309, %v2130, 0
      %v2332 = vsel %vm2309, %v2131, 0
      %v2335 = vsel %vm2309, %v2132, 0
      %v2338 = vsel %vm2309, %v2133, 0
      %v2341 = vsel %vm2309, %v2134, 0
      %v2344 = vsel %vm2309, %v2135, 0
      %v2347 = vsel %vm2309, %v2136, 0
      %v2350 = vsel %vm2309, %v2137, 0
      %v2353 = vsel %vm2309, %v2138, 0
      %v2356 = vsel %vm2309, %v2139, 0
      %v2359 = vsel %vm2309, %v2140, 0
      %v2362 = vsel %vm2309, %v2141, 0
      %v2365 = vsel %vm2309, %v2142, 0
      %v2368 = vsel %vm2309, %v2143, 0
      %v2371 = vsel %vm2309, %v2144, 0
      %v2374 = vsel %vm2309, %v2145, 0
      %v2377 = vsel %vm2309, %v2146, 0
      %v2380 = vsel %vm2309, %v2147, 0
      %2382 = vmatpush.bf16.msra.mxu0 0
      %2383 = vmatpush.bf16.msra.mxu0 0
      %2384 = vmatpush.bf16.msra.mxu0 0
      %2385 = vmatpush.bf16.msra.mxu0 0
      %2386 = vmatpush.bf16.msra.mxu0 0
      %2387 = vmatpush.bf16.msra.mxu0 0
      %2388 = vmatpush.bf16.msra.mxu0 0
      %2389 = vmatpush.bf16.msra.mxu0 %v2311
      %2390 = vmatmul.bf16.gmra.mxu0 %v2286
      %v2391 = vpop.f32.mrf.mxu0
      %v2392 = vadd.f32 %v2167, %v2391
      %v2393 = vpop.f32.mrf.mxu0
      %v2394 = vadd.f32 %v2172, %v2393
      %2395 = vmatmul.bf16.gmra.mxu0 %v2289
      %v2396 = vpop.f32.mrf.mxu0
      %v2397 = vadd.f32 %v2177, %v2396
      %v2398 = vpop.f32.mrf.mxu0
      %v2399 = vadd.f32 %v2182, %v2398
      %2400 = vmatmul.bf16.gmra.mxu0 %v2292
      %v2401 = vpop.f32.mrf.mxu0
      %v2402 = vadd.f32 %v2187, %v2401
      %v2403 = vpop.f32.mrf.mxu0
      %v2404 = vadd.f32 %v2192, %v2403
      %2405 = vmatmul.bf16.gmra.mxu0 %v2295
      %v2406 = vpop.f32.mrf.mxu0
      %v2407 = vadd.f32 %v2197, %v2406
      %v2408 = vpop.f32.mrf.mxu0
      %v2409 = vadd.f32 %v2202, %v2408
      %2410 = vmatmul.bf16.gmra.mxu0 %v2298
      %v2411 = vpop.f32.mrf.mxu0
      %v2412 = vadd.f32 %v2207, %v2411
      %v2413 = vpop.f32.mrf.mxu0
      %v2414 = vadd.f32 %v2212, %v2413
      %2415 = vmatmul.bf16.gmra.mxu0 %v2301
      %v2416 = vpop.f32.mrf.mxu0
      %v2417 = vadd.f32 %v2217, %v2416
      %v2418 = vpop.f32.mrf.mxu0
      %v2419 = vadd.f32 %v2222, %v2418
      %2420 = vmatmul.bf16.gmra.mxu0 %v2304
      %v2421 = vpop.f32.mrf.mxu0
      %v2422 = vadd.f32 %v2227, %v2421
      %v2423 = vpop.f32.mrf.mxu0
      %v2424 = vadd.f32 %v2232, %v2423
      %2425 = vmatmul.bf16.gmra.mxu0 %v2307
      %v2426 = vpop.f32.mrf.mxu0
      %v2427 = vadd.f32 %v2237, %v2426
      %v2428 = vpop.f32.mrf.mxu0
      %v2429 = vadd.f32 %v2242, %v2428
      %2430 = vdwg.mxu0
      %2431 = vmatpush.bf16.msra.mxu0 0
      %2432 = vmatpush.bf16.msra.mxu0 0
      %2433 = vmatpush.bf16.msra.mxu0 0
      %2434 = vmatpush.bf16.msra.mxu0 0
      %2435 = vmatpush.bf16.msra.mxu0 0
      %2436 = vmatpush.bf16.msra.mxu0 0
      %2437 = vmatpush.bf16.msra.mxu0 0
      %2438 = vmatpush.bf16.msra.mxu0 %v2314
      %2439 = vmatmul.bf16.gmra.mxu0 %v2286
      %v2440 = vpop.f32.mrf.mxu0
      %v2441 = vadd.f32 %v2167, %v2440
      %v2442 = vpop.f32.mrf.mxu0
      %v2443 = vadd.f32 %v2172, %v2442
      %2444 = vmatmul.bf16.gmra.mxu0 %v2289
      %v2445 = vpop.f32.mrf.mxu0
      %v2446 = vadd.f32 %v2177, %v2445
      %v2447 = vpop.f32.mrf.mxu0
      %v2448 = vadd.f32 %v2182, %v2447
      %2449 = vmatmul.bf16.gmra.mxu0 %v2292
      %v2450 = vpop.f32.mrf.mxu0
      %v2451 = vadd.f32 %v2187, %v2450
      %v2452 = vpop.f32.mrf.mxu0
      %v2453 = vadd.f32 %v2192, %v2452
      %2454 = vmatmul.bf16.gmra.mxu0 %v2295
      %v2455 = vpop.f32.mrf.mxu0
      %v2456 = vadd.f32 %v2197, %v2455
      %v2457 = vpop.f32.mrf.mxu0
      %v2458 = vadd.f32 %v2202, %v2457
      %2459 = vmatmul.bf16.gmra.mxu0 %v2298
      %v2460 = vpop.f32.mrf.mxu0
      %v2461 = vadd.f32 %v2207, %v2460
      %v2462 = vpop.f32.mrf.mxu0
      %v2463 = vadd.f32 %v2212, %v2462
      %2464 = vmatmul.bf16.gmra.mxu0 %v2301
      %v2465 = vpop.f32.mrf.mxu0
      %v2466 = vadd.f32 %v2217, %v2465
      %v2467 = vpop.f32.mrf.mxu0
      %v2468 = vadd.f32 %v2222, %v2467
      %2469 = vmatmul.bf16.gmra.mxu0 %v2304
      %v2470 = vpop.f32.mrf.mxu0
      %v2471 = vadd.f32 %v2227, %v2470
      %v2472 = vpop.f32.mrf.mxu0
      %v2473 = vadd.f32 %v2232, %v2472
      %2474 = vmatmul.bf16.gmra.mxu0 %v2307
      %v2475 = vpop.f32.mrf.mxu0
      %v2476 = vadd.f32 %v2237, %v2475
      %v2477 = vpop.f32.mrf.mxu0
      %v2478 = vadd.f32 %v2242, %v2477
      %2479 = vdwg.mxu0
      %2480 = vmatpush.bf16.msra.mxu0 0
      %2481 = vmatpush.bf16.msra.mxu0 0
      %2482 = vmatpush.bf16.msra.mxu0 0
      %2483 = vmatpush.bf16.msra.mxu0 0
      %2484 = vmatpush.bf16.msra.mxu0 0
      %2485 = vmatpush.bf16.msra.mxu0 0
      %2486 = vmatpush.bf16.msra.mxu0 0
      %2487 = vmatpush.bf16.msra.mxu0 %v2317
      %2488 = vmatmul.bf16.gmra.mxu0 %v2286
      %v2489 = vpop.f32.mrf.mxu0
      %v2490 = vadd.f32 %v2167, %v2489
      %v2491 = vpop.f32.mrf.mxu0
      %v2492 = vadd.f32 %v2172, %v2491
      %2493 = vmatmul.bf16.gmra.mxu0 %v2289
      %v2494 = vpop.f32.mrf.mxu0
      %v2495 = vadd.f32 %v2177, %v2494
      %v2496 = vpop.f32.mrf.mxu0
      %v2497 = vadd.f32 %v2182, %v2496
      %2498 = vmatmul.bf16.gmra.mxu0 %v2292
      %v2499 = vpop.f32.mrf.mxu0
      %v2500 = vadd.f32 %v2187, %v2499
      %v2501 = vpop.f32.mrf.mxu0
      %v2502 = vadd.f32 %v2192, %v2501
      %2503 = vmatmul.bf16.gmra.mxu0 %v2295
      %v2504 = vpop.f32.mrf.mxu0
      %v2505 = vadd.f32 %v2197, %v2504
      %v2506 = vpop.f32.mrf.mxu0
      %v2507 = vadd.f32 %v2202, %v2506
      %2508 = vmatmul.bf16.gmra.mxu0 %v2298
      %v2509 = vpop.f32.mrf.mxu0
      %v2510 = vadd.f32 %v2207, %v2509
      %v2511 = vpop.f32.mrf.mxu0
      %v2512 = vadd.f32 %v2212, %v2511
      %2513 = vmatmul.bf16.gmra.mxu0 %v2301
      %v2514 = vpop.f32.mrf.mxu0
      %v2515 = vadd.f32 %v2217, %v2514
      %v2516 = vpop.f32.mrf.mxu0
      %v2517 = vadd.f32 %v2222, %v2516
      %2518 = vmatmul.bf16.gmra.mxu0 %v2304
      %v2519 = vpop.f32.mrf.mxu0
      %v2520 = vadd.f32 %v2227, %v2519
      %v2521 = vpop.f32.mrf.mxu0
      %v2522 = vadd.f32 %v2232, %v2521
      %2523 = vmatmul.bf16.gmra.mxu0 %v2307
      %v2524 = vpop.f32.mrf.mxu0
      %v2525 = vadd.f32 %v2237, %v2524
      %v2526 = vpop.f32.mrf.mxu0
      %v2527 = vadd.f32 %v2242, %v2526
      %2528 = vdwg.mxu0
      %2529 = vmatpush.bf16.msra.mxu0 0
      %2530 = vmatpush.bf16.msra.mxu0 0
      %2531 = vmatpush.bf16.msra.mxu0 0
      %2532 = vmatpush.bf16.msra.mxu0 0
      %2533 = vmatpush.bf16.msra.mxu0 0
      %2534 = vmatpush.bf16.msra.mxu0 0
      %2535 = vmatpush.bf16.msra.mxu0 0
      %2536 = vmatpush.bf16.msra.mxu0 %v2320
      %2537 = vmatmul.bf16.gmra.mxu0 %v2286
      %v2538 = vpop.f32.mrf.mxu0
      %v2539 = vadd.f32 %v2167, %v2538
      %v2540 = vpop.f32.mrf.mxu0
      %v2541 = vadd.f32 %v2172, %v2540
      %2542 = vmatmul.bf16.gmra.mxu0 %v2289
      %v2543 = vpop.f32.mrf.mxu0
      %v2544 = vadd.f32 %v2177, %v2543
      %v2545 = vpop.f32.mrf.mxu0
      %v2546 = vadd.f32 %v2182, %v2545
      %2547 = vmatmul.bf16.gmra.mxu0 %v2292
      %v2548 = vpop.f32.mrf.mxu0
      %v2549 = vadd.f32 %v2187, %v2548
      %v2550 = vpop.f32.mrf.mxu0
      %v2551 = vadd.f32 %v2192, %v2550
      %2552 = vmatmul.bf16.gmra.mxu0 %v2295
      %v2553 = vpop.f32.mrf.mxu0
      %v2554 = vadd.f32 %v2197, %v2553
      %v2555 = vpop.f32.mrf.mxu0
      %v2556 = vadd.f32 %v2202, %v2555
      %2557 = vmatmul.bf16.gmra.mxu0 %v2298
      %v2558 = vpop.f32.mrf.mxu0
      %v2559 = vadd.f32 %v2207, %v2558
      %v2560 = vpop.f32.mrf.mxu0
      %v2561 = vadd.f32 %v2212, %v2560
      %2562 = vmatmul.bf16.gmra.mxu0 %v2301
      %v2563 = vpop.f32.mrf.mxu0
      %v2564 = vadd.f32 %v2217, %v2563
      %v2565 = vpop.f32.mrf.mxu0
      %v2566 = vadd.f32 %v2222, %v2565
      %2567 = vmatmul.bf16.gmra.mxu0 %v2304
      %v2568 = vpop.f32.mrf.mxu0
      %v2569 = vadd.f32 %v2227, %v2568
      %v2570 = vpop.f32.mrf.mxu0
      %v2571 = vadd.f32 %v2232, %v2570
      %2572 = vmatmul.bf16.gmra.mxu0 %v2307
      %v2573 = vpop.f32.mrf.mxu0
      %v2574 = vadd.f32 %v2237, %v2573
      %v2575 = vpop.f32.mrf.mxu0
      %v2576 = vadd.f32 %v2242, %v2575
      %2577 = vdwg.mxu0
      %2578 = vmatpush.bf16.msra.mxu0 0
      %2579 = vmatpush.bf16.msra.mxu0 0
      %2580 = vmatpush.bf16.msra.mxu0 0
      %2581 = vmatpush.bf16.msra.mxu0 0
      %2582 = vmatpush.bf16.msra.mxu0 0
      %2583 = vmatpush.bf16.msra.mxu0 0
      %2584 = vmatpush.bf16.msra.mxu0 0
      %2585 = vmatpush.bf16.msra.mxu0 %v2323
      %2586 = vmatmul.bf16.gmra.mxu0 %v2286
      %v2587 = vpop.f32.mrf.mxu0
      %v2588 = vadd.f32 %v2167, %v2587
      %v2589 = vpop.f32.mrf.mxu0
      %v2590 = vadd.f32 %v2172, %v2589
      %2591 = vmatmul.bf16.gmra.mxu0 %v2289
      %v2592 = vpop.f32.mrf.mxu0
      %v2593 = vadd.f32 %v2177, %v2592
      %v2594 = vpop.f32.mrf.mxu0
      %v2595 = vadd.f32 %v2182, %v2594
      %2596 = vmatmul.bf16.gmra.mxu0 %v2292
      %v2597 = vpop.f32.mrf.mxu0
      %v2598 = vadd.f32 %v2187, %v2597
      %v2599 = vpop.f32.mrf.mxu0
      %v2600 = vadd.f32 %v2192, %v2599
      %2601 = vmatmul.bf16.gmra.mxu0 %v2295
      %v2602 = vpop.f32.mrf.mxu0
      %v2603 = vadd.f32 %v2197, %v2602
      %v2604 = vpop.f32.mrf.mxu0
      %v2605 = vadd.f32 %v2202, %v2604
      %2606 = vmatmul.bf16.gmra.mxu0 %v2298
      %v2607 = vpop.f32.mrf.mxu0
      %v2608 = vadd.f32 %v2207, %v2607
      %v2609 = vpop.f32.mrf.mxu0
      %v2610 = vadd.f32 %v2212, %v2609
      %2611 = vmatmul.bf16.gmra.mxu0 %v2301
      %v2612 = vpop.f32.mrf.mxu0
      %v2613 = vadd.f32 %v2217, %v2612
      %v2614 = vpop.f32.mrf.mxu0
      %v2615 = vadd.f32 %v2222, %v2614
      %2616 = vmatmul.bf16.gmra.mxu0 %v2304
      %v2617 = vpop.f32.mrf.mxu0
      %v2618 = vadd.f32 %v2227, %v2617
      %v2619 = vpop.f32.mrf.mxu0
      %v2620 = vadd.f32 %v2232, %v2619
      %2621 = vmatmul.bf16.gmra.mxu0 %v2307
      %v2622 = vpop.f32.mrf.mxu0
      %v2623 = vadd.f32 %v2237, %v2622
      %v2624 = vpop.f32.mrf.mxu0
      %v2625 = vadd.f32 %v2242, %v2624
      %2626 = vdwg.mxu0
      %2627 = vmatpush.bf16.msra.mxu0 0
      %2628 = vmatpush.bf16.msra.mxu0 0
      %2629 = vmatpush.bf16.msra.mxu0 0
      %2630 = vmatpush.bf16.msra.mxu0 0
      %2631 = vmatpush.bf16.msra.mxu0 0
      %2632 = vmatpush.bf16.msra.mxu0 0
      %2633 = vmatpush.bf16.msra.mxu0 0
      %2634 = vmatpush.bf16.msra.mxu0 %v2326
      %2635 = vmatmul.bf16.gmra.mxu0 %v2286
      %v2636 = vpop.f32.mrf.mxu0
      %v2637 = vadd.f32 %v2167, %v2636
      %v2638 = vpop.f32.mrf.mxu0
      %v2639 = vadd.f32 %v2172, %v2638
      %2640 = vmatmul.bf16.gmra.mxu0 %v2289
      %v2641 = vpop.f32.mrf.mxu0
      %v2642 = vadd.f32 %v2177, %v2641
      %v2643 = vpop.f32.mrf.mxu0
      %v2644 = vadd.f32 %v2182, %v2643
      %2645 = vmatmul.bf16.gmra.mxu0 %v2292
      %v2646 = vpop.f32.mrf.mxu0
      %v2647 = vadd.f32 %v2187, %v2646
      %v2648 = vpop.f32.mrf.mxu0
      %v2649 = vadd.f32 %v2192, %v2648
      %2650 = vmatmul.bf16.gmra.mxu0 %v2295
      %v2651 = vpop.f32.mrf.mxu0
      %v2652 = vadd.f32 %v2197, %v2651
      %v2653 = vpop.f32.mrf.mxu0
      %v2654 = vadd.f32 %v2202, %v2653
      %2655 = vmatmul.bf16.gmra.mxu0 %v2298
      %v2656 = vpop.f32.mrf.mxu0
      %v2657 = vadd.f32 %v2207, %v2656
      %v2658 = vpop.f32.mrf.mxu0
      %v2659 = vadd.f32 %v2212, %v2658
      %2660 = vmatmul.bf16.gmra.mxu0 %v2301
      %v2661 = vpop.f32.mrf.mxu0
      %v2662 = vadd.f32 %v2217, %v2661
      %v2663 = vpop.f32.mrf.mxu0
      %v2664 = vadd.f32 %v2222, %v2663
      %2665 = vmatmul.bf16.gmra.mxu0 %v2304
      %v2666 = vpop.f32.mrf.mxu0
      %v2667 = vadd.f32 %v2227, %v2666
      %v2668 = vpop.f32.mrf.mxu0
      %v2669 = vadd.f32 %v2232, %v2668
      %2670 = vmatmul.bf16.gmra.mxu0 %v2307
      %v2671 = vpop.f32.mrf.mxu0
      %v2672 = vadd.f32 %v2237, %v2671
      %v2673 = vpop.f32.mrf.mxu0
      %v2674 = vadd.f32 %v2242, %v2673
      %2675 = vdwg.mxu0
      %2676 = vmatpush.bf16.msra.mxu0 0
      %2677 = vmatpush.bf16.msra.mxu0 0
      %2678 = vmatpush.bf16.msra.mxu0 0
      %2679 = vmatpush.bf16.msra.mxu0 0
      %2680 = vmatpush.bf16.msra.mxu0 0
      %2681 = vmatpush.bf16.msra.mxu0 0
      %2682 = vmatpush.bf16.msra.mxu0 0
      %2683 = vmatpush.bf16.msra.mxu0 %v2329
      %2684 = vmatmul.bf16.gmra.mxu0 %v2286
      %v2685 = vpop.f32.mrf.mxu0
      %v2686 = vadd.f32 %v2167, %v2685
      %v2687 = vpop.f32.mrf.mxu0
      %v2688 = vadd.f32 %v2172, %v2687
      %2689 = vmatmul.bf16.gmra.mxu0 %v2289
      %v2690 = vpop.f32.mrf.mxu0
      %v2691 = vadd.f32 %v2177, %v2690
      %v2692 = vpop.f32.mrf.mxu0
      %v2693 = vadd.f32 %v2182, %v2692
      %2694 = vmatmul.bf16.gmra.mxu0 %v2292
      %v2695 = vpop.f32.mrf.mxu0
      %v2696 = vadd.f32 %v2187, %v2695
      %v2697 = vpop.f32.mrf.mxu0
      %v2698 = vadd.f32 %v2192, %v2697
      %2699 = vmatmul.bf16.gmra.mxu0 %v2295
      %v2700 = vpop.f32.mrf.mxu0
      %v2701 = vadd.f32 %v2197, %v2700
      %v2702 = vpop.f32.mrf.mxu0
      %v2703 = vadd.f32 %v2202, %v2702
      %2704 = vmatmul.bf16.gmra.mxu0 %v2298
      %v2705 = vpop.f32.mrf.mxu0
      %v2706 = vadd.f32 %v2207, %v2705
      %v2707 = vpop.f32.mrf.mxu0
      %v2708 = vadd.f32 %v2212, %v2707
      %2709 = vmatmul.bf16.gmra.mxu0 %v2301
      %v2710 = vpop.f32.mrf.mxu0
      %v2711 = vadd.f32 %v2217, %v2710
      %v2712 = vpop.f32.mrf.mxu0
      %v2713 = vadd.f32 %v2222, %v2712
      %2714 = vmatmul.bf16.gmra.mxu0 %v2304
      %v2715 = vpop.f32.mrf.mxu0
      %v2716 = vadd.f32 %v2227, %v2715
      %v2717 = vpop.f32.mrf.mxu0
      %v2718 = vadd.f32 %v2232, %v2717
      %2719 = vmatmul.bf16.gmra.mxu0 %v2307
      %v2720 = vpop.f32.mrf.mxu0
      %v2721 = vadd.f32 %v2237, %v2720
      %v2722 = vpop.f32.mrf.mxu0
      %v2723 = vadd.f32 %v2242, %v2722
      %2724 = vdwg.mxu0
      %2725 = vmatpush.bf16.msra.mxu0 0
      %2726 = vmatpush.bf16.msra.mxu0 0
      %2727 = vmatpush.bf16.msra.mxu0 0
      %2728 = vmatpush.bf16.msra.mxu0 0
      %2729 = vmatpush.bf16.msra.mxu0 0
      %2730 = vmatpush.bf16.msra.mxu0 0
      %2731 = vmatpush.bf16.msra.mxu0 0
      %2732 = vmatpush.bf16.msra.mxu0 %v2332
      %2733 = vmatmul.bf16.gmra.mxu0 %v2286
      %v2734 = vpop.f32.mrf.mxu0
      %v2735 = vadd.f32 %v2167, %v2734
      %v2736 = vpop.f32.mrf.mxu0
      %v2737 = vadd.f32 %v2172, %v2736
      %2738 = vmatmul.bf16.gmra.mxu0 %v2289
      %v2739 = vpop.f32.mrf.mxu0
      %v2740 = vadd.f32 %v2177, %v2739
      %v2741 = vpop.f32.mrf.mxu0
      %v2742 = vadd.f32 %v2182, %v2741
      %2743 = vmatmul.bf16.gmra.mxu0 %v2292
      %v2744 = vpop.f32.mrf.mxu0
      %v2745 = vadd.f32 %v2187, %v2744
      %v2746 = vpop.f32.mrf.mxu0
      %v2747 = vadd.f32 %v2192, %v2746
      %2748 = vmatmul.bf16.gmra.mxu0 %v2295
      %v2749 = vpop.f32.mrf.mxu0
      %v2750 = vadd.f32 %v2197, %v2749
      %v2751 = vpop.f32.mrf.mxu0
      %v2752 = vadd.f32 %v2202, %v2751
      %2753 = vmatmul.bf16.gmra.mxu0 %v2298
      %v2754 = vpop.f32.mrf.mxu0
      %v2755 = vadd.f32 %v2207, %v2754
      %v2756 = vpop.f32.mrf.mxu0
      %v2757 = vadd.f32 %v2212, %v2756
      %2758 = vmatmul.bf16.gmra.mxu0 %v2301
      %v2759 = vpop.f32.mrf.mxu0
      %v2760 = vadd.f32 %v2217, %v2759
      %v2761 = vpop.f32.mrf.mxu0
      %v2762 = vadd.f32 %v2222, %v2761
      %2763 = vmatmul.bf16.gmra.mxu0 %v2304
      %v2764 = vpop.f32.mrf.mxu0
      %v2765 = vadd.f32 %v2227, %v2764
      %v2766 = vpop.f32.mrf.mxu0
      %v2767 = vadd.f32 %v2232, %v2766
      %2768 = vmatmul.bf16.gmra.mxu0 %v2307
      %v2769 = vpop.f32.mrf.mxu0
      %v2770 = vadd.f32 %v2237, %v2769
      %v2771 = vpop.f32.mrf.mxu0
      %v2772 = vadd.f32 %v2242, %v2771
      %2773 = vdwg.mxu0
      %2774 = vmatpush.bf16.msra.mxu0 0
      %2775 = vmatpush.bf16.msra.mxu0 0
      %2776 = vmatpush.bf16.msra.mxu0 0
      %2777 = vmatpush.bf16.msra.mxu0 0
      %2778 = vmatpush.bf16.msra.mxu0 0
      %2779 = vmatpush.bf16.msra.mxu0 0
      %2780 = vmatpush.bf16.msra.mxu0 0
      %2781 = vmatpush.bf16.msra.mxu0 %v2335
      %2782 = vmatmul.bf16.gmra.mxu0 %v2286
      %v2783 = vpop.f32.mrf.mxu0
      %v2784 = vadd.f32 %v2167, %v2783
      %v2785 = vpop.f32.mrf.mxu0
      %v2786 = vadd.f32 %v2172, %v2785
      %2787 = vmatmul.bf16.gmra.mxu0 %v2289
      %v2788 = vpop.f32.mrf.mxu0
      %v2789 = vadd.f32 %v2177, %v2788
      %v2790 = vpop.f32.mrf.mxu0
      %v2791 = vadd.f32 %v2182, %v2790
      %2792 = vmatmul.bf16.gmra.mxu0 %v2292
      %v2793 = vpop.f32.mrf.mxu0
      %v2794 = vadd.f32 %v2187, %v2793
      %v2795 = vpop.f32.mrf.mxu0
      %v2796 = vadd.f32 %v2192, %v2795
      %2797 = vmatmul.bf16.gmra.mxu0 %v2295
      %v2798 = vpop.f32.mrf.mxu0
      %v2799 = vadd.f32 %v2197, %v2798
      %v2800 = vpop.f32.mrf.mxu0
      %v2801 = vadd.f32 %v2202, %v2800
      %2802 = vmatmul.bf16.gmra.mxu0 %v2298
      %v2803 = vpop.f32.mrf.mxu0
      %v2804 = vadd.f32 %v2207, %v2803
      %v2805 = vpop.f32.mrf.mxu0
      %v2806 = vadd.f32 %v2212, %v2805
      %2807 = vmatmul.bf16.gmra.mxu0 %v2301
      %v2808 = vpop.f32.mrf.mxu0
      %v2809 = vadd.f32 %v2217, %v2808
      %v2810 = vpop.f32.mrf.mxu0
      %v2811 = vadd.f32 %v2222, %v2810
      %2812 = vmatmul.bf16.gmra.mxu0 %v2304
      %v2813 = vpop.f32.mrf.mxu0
      %v2814 = vadd.f32 %v2227, %v2813
      %v2815 = vpop.f32.mrf.mxu0
      %v2816 = vadd.f32 %v2232, %v2815
      %2817 = vmatmul.bf16.gmra.mxu0 %v2307
      %v2818 = vpop.f32.mrf.mxu0
      %v2819 = vadd.f32 %v2237, %v2818
      %v2820 = vpop.f32.mrf.mxu0
      %v2821 = vadd.f32 %v2242, %v2820
      %2822 = vdwg.mxu0
      %2823 = vmatpush.bf16.msra.mxu0 0
      %2824 = vmatpush.bf16.msra.mxu0 0
      %2825 = vmatpush.bf16.msra.mxu0 0
      %2826 = vmatpush.bf16.msra.mxu0 0
      %2827 = vmatpush.bf16.msra.mxu0 0
      %2828 = vmatpush.bf16.msra.mxu0 0
      %2829 = vmatpush.bf16.msra.mxu0 0
      %2830 = vmatpush.bf16.msra.mxu0 %v2338
      %2831 = vmatmul.bf16.gmra.mxu0 %v2286
      %v2832 = vpop.f32.mrf.mxu0
      %v2833 = vadd.f32 %v2167, %v2832
      %v2834 = vpop.f32.mrf.mxu0
      %v2835 = vadd.f32 %v2172, %v2834
      %2836 = vmatmul.bf16.gmra.mxu0 %v2289
      %v2837 = vpop.f32.mrf.mxu0
      %v2838 = vadd.f32 %v2177, %v2837
      %v2839 = vpop.f32.mrf.mxu0
      %v2840 = vadd.f32 %v2182, %v2839
      %2841 = vmatmul.bf16.gmra.mxu0 %v2292
      %v2842 = vpop.f32.mrf.mxu0
      %v2843 = vadd.f32 %v2187, %v2842
      %v2844 = vpop.f32.mrf.mxu0
      %v2845 = vadd.f32 %v2192, %v2844
      %2846 = vmatmul.bf16.gmra.mxu0 %v2295
      %v2847 = vpop.f32.mrf.mxu0
      %v2848 = vadd.f32 %v2197, %v2847
      %v2849 = vpop.f32.mrf.mxu0
      %v2850 = vadd.f32 %v2202, %v2849
      %2851 = vmatmul.bf16.gmra.mxu0 %v2298
      %v2852 = vpop.f32.mrf.mxu0
      %v2853 = vadd.f32 %v2207, %v2852
      %v2854 = vpop.f32.mrf.mxu0
      %v2855 = vadd.f32 %v2212, %v2854
      %2856 = vmatmul.bf16.gmra.mxu0 %v2301
      %v2857 = vpop.f32.mrf.mxu0
      %v2858 = vadd.f32 %v2217, %v2857
      %v2859 = vpop.f32.mrf.mxu0
      %v2860 = vadd.f32 %v2222, %v2859
      %2861 = vmatmul.bf16.gmra.mxu0 %v2304
      %v2862 = vpop.f32.mrf.mxu0
      %v2863 = vadd.f32 %v2227, %v2862
      %v2864 = vpop.f32.mrf.mxu0
      %v2865 = vadd.f32 %v2232, %v2864
      %2866 = vmatmul.bf16.gmra.mxu0 %v2307
      %v2867 = vpop.f32.mrf.mxu0
      %v2868 = vadd.f32 %v2237, %v2867
      %v2869 = vpop.f32.mrf.mxu0
      %v2870 = vadd.f32 %v2242, %v2869
      %2871 = vdwg.mxu0
      %2872 = vmatpush.bf16.msra.mxu0 0
      %2873 = vmatpush.bf16.msra.mxu0 0
      %2874 = vmatpush.bf16.msra.mxu0 0
      %2875 = vmatpush.bf16.msra.mxu0 0
      %2876 = vmatpush.bf16.msra.mxu0 0
      %2877 = vmatpush.bf16.msra.mxu0 0
      %2878 = vmatpush.bf16.msra.mxu0 0
      %2879 = vmatpush.bf16.msra.mxu0 %v2341
      %2880 = vmatmul.bf16.gmra.mxu0 %v2286
      %v2881 = vpop.f32.mrf.mxu0
      %v2882 = vadd.f32 %v2167, %v2881
      %v2883 = vpop.f32.mrf.mxu0
      %v2884 = vadd.f32 %v2172, %v2883
      %2885 = vmatmul.bf16.gmra.mxu0 %v2289
      %v2886 = vpop.f32.mrf.mxu0
      %v2887 = vadd.f32 %v2177, %v2886
      %v2888 = vpop.f32.mrf.mxu0
      %v2889 = vadd.f32 %v2182, %v2888
      %2890 = vmatmul.bf16.gmra.mxu0 %v2292
      %v2891 = vpop.f32.mrf.mxu0
      %v2892 = vadd.f32 %v2187, %v2891
      %v2893 = vpop.f32.mrf.mxu0
      %v2894 = vadd.f32 %v2192, %v2893
      %2895 = vmatmul.bf16.gmra.mxu0 %v2295
      %v2896 = vpop.f32.mrf.mxu0
      %v2897 = vadd.f32 %v2197, %v2896
      %v2898 = vpop.f32.mrf.mxu0
      %v2899 = vadd.f32 %v2202, %v2898
      %2900 = vmatmul.bf16.gmra.mxu0 %v2298
      %v2901 = vpop.f32.mrf.mxu0
      %v2902 = vadd.f32 %v2207, %v2901
      %v2903 = vpop.f32.mrf.mxu0
      %v2904 = vadd.f32 %v2212, %v2903
      %2905 = vmatmul.bf16.gmra.mxu0 %v2301
      %v2906 = vpop.f32.mrf.mxu0
      %v2907 = vadd.f32 %v2217, %v2906
      %v2908 = vpop.f32.mrf.mxu0
      %v2909 = vadd.f32 %v2222, %v2908
      %2910 = vmatmul.bf16.gmra.mxu0 %v2304
      %v2911 = vpop.f32.mrf.mxu0
      %v2912 = vadd.f32 %v2227, %v2911
      %v2913 = vpop.f32.mrf.mxu0
      %v2914 = vadd.f32 %v2232, %v2913
      %2915 = vmatmul.bf16.gmra.mxu0 %v2307
      %v2916 = vpop.f32.mrf.mxu0
      %v2917 = vadd.f32 %v2237, %v2916
      %v2918 = vpop.f32.mrf.mxu0
      %v2919 = vadd.f32 %v2242, %v2918
      %2920 = vdwg.mxu0
      %2921 = vmatpush.bf16.msra.mxu0 0
      %2922 = vmatpush.bf16.msra.mxu0 0
      %2923 = vmatpush.bf16.msra.mxu0 0
      %2924 = vmatpush.bf16.msra.mxu0 0
      %2925 = vmatpush.bf16.msra.mxu0 0
      %2926 = vmatpush.bf16.msra.mxu0 0
      %2927 = vmatpush.bf16.msra.mxu0 0
      %2928 = vmatpush.bf16.msra.mxu0 %v2344
      %2929 = vmatmul.bf16.gmra.mxu0 %v2286
      %v2930 = vpop.f32.mrf.mxu0
      %v2931 = vadd.f32 %v2167, %v2930
      %v2932 = vpop.f32.mrf.mxu0
      %v2933 = vadd.f32 %v2172, %v2932
      %2934 = vmatmul.bf16.gmra.mxu0 %v2289
      %v2935 = vpop.f32.mrf.mxu0
      %v2936 = vadd.f32 %v2177, %v2935
      %v2937 = vpop.f32.mrf.mxu0
      %v2938 = vadd.f32 %v2182, %v2937
      %2939 = vmatmul.bf16.gmra.mxu0 %v2292
      %v2940 = vpop.f32.mrf.mxu0
      %v2941 = vadd.f32 %v2187, %v2940
      %v2942 = vpop.f32.mrf.mxu0
      %v2943 = vadd.f32 %v2192, %v2942
      %2944 = vmatmul.bf16.gmra.mxu0 %v2295
      %v2945 = vpop.f32.mrf.mxu0
      %v2946 = vadd.f32 %v2197, %v2945
      %v2947 = vpop.f32.mrf.mxu0
      %v2948 = vadd.f32 %v2202, %v2947
      %2949 = vmatmul.bf16.gmra.mxu0 %v2298
      %v2950 = vpop.f32.mrf.mxu0
      %v2951 = vadd.f32 %v2207, %v2950
      %v2952 = vpop.f32.mrf.mxu0
      %v2953 = vadd.f32 %v2212, %v2952
      %2954 = vmatmul.bf16.gmra.mxu0 %v2301
      %v2955 = vpop.f32.mrf.mxu0
      %v2956 = vadd.f32 %v2217, %v2955
      %v2957 = vpop.f32.mrf.mxu0
      %v2958 = vadd.f32 %v2222, %v2957
      %2959 = vmatmul.bf16.gmra.mxu0 %v2304
      %v2960 = vpop.f32.mrf.mxu0
      %v2961 = vadd.f32 %v2227, %v2960
      %v2962 = vpop.f32.mrf.mxu0
      %v2963 = vadd.f32 %v2232, %v2962
      %2964 = vmatmul.bf16.gmra.mxu0 %v2307
      %v2965 = vpop.f32.mrf.mxu0
      %v2966 = vadd.f32 %v2237, %v2965
      %v2967 = vpop.f32.mrf.mxu0
      %v2968 = vadd.f32 %v2242, %v2967
      %2969 = vdwg.mxu0
      %2970 = vmatpush.bf16.msra.mxu0 0
      %2971 = vmatpush.bf16.msra.mxu0 0
      %2972 = vmatpush.bf16.msra.mxu0 0
      %2973 = vmatpush.bf16.msra.mxu0 0
      %2974 = vmatpush.bf16.msra.mxu0 0
      %2975 = vmatpush.bf16.msra.mxu0 0
      %2976 = vmatpush.bf16.msra.mxu0 0
      %2977 = vmatpush.bf16.msra.mxu0 %v2347
      %2978 = vmatmul.bf16.gmra.mxu0 %v2286
      %v2979 = vpop.f32.mrf.mxu0
      %v2980 = vadd.f32 %v2167, %v2979
      %v2981 = vpop.f32.mrf.mxu0
      %v2982 = vadd.f32 %v2172, %v2981
      %2983 = vmatmul.bf16.gmra.mxu0 %v2289
      %v2984 = vpop.f32.mrf.mxu0
      %v2985 = vadd.f32 %v2177, %v2984
      %v2986 = vpop.f32.mrf.mxu0
      %v2987 = vadd.f32 %v2182, %v2986
      %2988 = vmatmul.bf16.gmra.mxu0 %v2292
      %v2989 = vpop.f32.mrf.mxu0
      %v2990 = vadd.f32 %v2187, %v2989
      %v2991 = vpop.f32.mrf.mxu0
      %v2992 = vadd.f32 %v2192, %v2991
      %2993 = vmatmul.bf16.gmra.mxu0 %v2295
      %v2994 = vpop.f32.mrf.mxu0
      %v2995 = vadd.f32 %v2197, %v2994
      %v2996 = vpop.f32.mrf.mxu0
      %v2997 = vadd.f32 %v2202, %v2996
      %2998 = vmatmul.bf16.gmra.mxu0 %v2298
      %v2999 = vpop.f32.mrf.mxu0
      %v3000 = vadd.f32 %v2207, %v2999
      %v3001 = vpop.f32.mrf.mxu0
      %v3002 = vadd.f32 %v2212, %v3001
      %3003 = vmatmul.bf16.gmra.mxu0 %v2301
      %v3004 = vpop.f32.mrf.mxu0
      %v3005 = vadd.f32 %v2217, %v3004
      %v3006 = vpop.f32.mrf.mxu0
      %v3007 = vadd.f32 %v2222, %v3006
      %3008 = vmatmul.bf16.gmra.mxu0 %v2304
      %v3009 = vpop.f32.mrf.mxu0
      %v3010 = vadd.f32 %v2227, %v3009
      %v3011 = vpop.f32.mrf.mxu0
      %v3012 = vadd.f32 %v2232, %v3011
      %3013 = vmatmul.bf16.gmra.mxu0 %v2307
      %v3014 = vpop.f32.mrf.mxu0
      %v3015 = vadd.f32 %v2237, %v3014
      %v3016 = vpop.f32.mrf.mxu0
      %v3017 = vadd.f32 %v2242, %v3016
      %3018 = vdwg.mxu0
      %3019 = vmatpush.bf16.msra.mxu0 0
      %3020 = vmatpush.bf16.msra.mxu0 0
      %3021 = vmatpush.bf16.msra.mxu0 0
      %3022 = vmatpush.bf16.msra.mxu0 0
      %3023 = vmatpush.bf16.msra.mxu0 0
      %3024 = vmatpush.bf16.msra.mxu0 0
      %3025 = vmatpush.bf16.msra.mxu0 0
      %3026 = vmatpush.bf16.msra.mxu0 %v2350
      %3027 = vmatmul.bf16.gmra.mxu0 %v2286
      %v3028 = vpop.f32.mrf.mxu0
      %v3029 = vadd.f32 %v2167, %v3028
      %v3030 = vpop.f32.mrf.mxu0
      %v3031 = vadd.f32 %v2172, %v3030
      %3032 = vmatmul.bf16.gmra.mxu0 %v2289
      %v3033 = vpop.f32.mrf.mxu0
      %v3034 = vadd.f32 %v2177, %v3033
      %v3035 = vpop.f32.mrf.mxu0
      %v3036 = vadd.f32 %v2182, %v3035
      %3037 = vmatmul.bf16.gmra.mxu0 %v2292
      %v3038 = vpop.f32.mrf.mxu0
      %v3039 = vadd.f32 %v2187, %v3038
      %v3040 = vpop.f32.mrf.mxu0
      %v3041 = vadd.f32 %v2192, %v3040
      %3042 = vmatmul.bf16.gmra.mxu0 %v2295
      %v3043 = vpop.f32.mrf.mxu0
      %v3044 = vadd.f32 %v2197, %v3043
      %v3045 = vpop.f32.mrf.mxu0
      %v3046 = vadd.f32 %v2202, %v3045
      %3047 = vmatmul.bf16.gmra.mxu0 %v2298
      %v3048 = vpop.f32.mrf.mxu0
      %v3049 = vadd.f32 %v2207, %v3048
      %v3050 = vpop.f32.mrf.mxu0
      %v3051 = vadd.f32 %v2212, %v3050
      %3052 = vmatmul.bf16.gmra.mxu0 %v2301
      %v3053 = vpop.f32.mrf.mxu0
      %v3054 = vadd.f32 %v2217, %v3053
      %v3055 = vpop.f32.mrf.mxu0
      %v3056 = vadd.f32 %v2222, %v3055
      %3057 = vmatmul.bf16.gmra.mxu0 %v2304
      %v3058 = vpop.f32.mrf.mxu0
      %v3059 = vadd.f32 %v2227, %v3058
      %v3060 = vpop.f32.mrf.mxu0
      %v3061 = vadd.f32 %v2232, %v3060
      %3062 = vmatmul.bf16.gmra.mxu0 %v2307
      %v3063 = vpop.f32.mrf.mxu0
      %v3064 = vadd.f32 %v2237, %v3063
      %v3065 = vpop.f32.mrf.mxu0
      %v3066 = vadd.f32 %v2242, %v3065
      %3067 = vdwg.mxu0
      %3068 = vmatpush.bf16.msra.mxu0 0
      %3069 = vmatpush.bf16.msra.mxu0 0
      %3070 = vmatpush.bf16.msra.mxu0 0
      %3071 = vmatpush.bf16.msra.mxu0 0
      %3072 = vmatpush.bf16.msra.mxu0 0
      %3073 = vmatpush.bf16.msra.mxu0 0
      %3074 = vmatpush.bf16.msra.mxu0 0
      %3075 = vmatpush.bf16.msra.mxu0 %v2353
      %3076 = vmatmul.bf16.gmra.mxu0 %v2286
      %v3077 = vpop.f32.mrf.mxu0
      %v3078 = vadd.f32 %v2167, %v3077
      %v3079 = vpop.f32.mrf.mxu0
      %v3080 = vadd.f32 %v2172, %v3079
      %3081 = vmatmul.bf16.gmra.mxu0 %v2289
      %v3082 = vpop.f32.mrf.mxu0
      %v3083 = vadd.f32 %v2177, %v3082
      %v3084 = vpop.f32.mrf.mxu0
      %v3085 = vadd.f32 %v2182, %v3084
      %3086 = vmatmul.bf16.gmra.mxu0 %v2292
      %v3087 = vpop.f32.mrf.mxu0
      %v3088 = vadd.f32 %v2187, %v3087
      %v3089 = vpop.f32.mrf.mxu0
      %v3090 = vadd.f32 %v2192, %v3089
      %3091 = vmatmul.bf16.gmra.mxu0 %v2295
      %v3092 = vpop.f32.mrf.mxu0
      %v3093 = vadd.f32 %v2197, %v3092
      %v3094 = vpop.f32.mrf.mxu0
      %v3095 = vadd.f32 %v2202, %v3094
      %3096 = vmatmul.bf16.gmra.mxu0 %v2298
      %v3097 = vpop.f32.mrf.mxu0
      %v3098 = vadd.f32 %v2207, %v3097
      %v3099 = vpop.f32.mrf.mxu0
      %v3100 = vadd.f32 %v2212, %v3099
      %3101 = vmatmul.bf16.gmra.mxu0 %v2301
      %v3102 = vpop.f32.mrf.mxu0
      %v3103 = vadd.f32 %v2217, %v3102
      %v3104 = vpop.f32.mrf.mxu0
      %v3105 = vadd.f32 %v2222, %v3104
      %3106 = vmatmul.bf16.gmra.mxu0 %v2304
      %v3107 = vpop.f32.mrf.mxu0
      %v3108 = vadd.f32 %v2227, %v3107
      %v3109 = vpop.f32.mrf.mxu0
      %v3110 = vadd.f32 %v2232, %v3109
      %3111 = vmatmul.bf16.gmra.mxu0 %v2307
      %v3112 = vpop.f32.mrf.mxu0
      %v3113 = vadd.f32 %v2237, %v3112
      %v3114 = vpop.f32.mrf.mxu0
      %v3115 = vadd.f32 %v2242, %v3114
      %3116 = vdwg.mxu0
      %3117 = vmatpush.bf16.msra.mxu0 0
      %3118 = vmatpush.bf16.msra.mxu0 0
      %3119 = vmatpush.bf16.msra.mxu0 0
      %3120 = vmatpush.bf16.msra.mxu0 0
      %3121 = vmatpush.bf16.msra.mxu0 0
      %3122 = vmatpush.bf16.msra.mxu0 0
      %3123 = vmatpush.bf16.msra.mxu0 0
      %3124 = vmatpush.bf16.msra.mxu0 %v2356
      %3125 = vmatmul.bf16.gmra.mxu0 %v2286
      %v3126 = vpop.f32.mrf.mxu0
      %v3127 = vadd.f32 %v2167, %v3126
      %v3128 = vpop.f32.mrf.mxu0
      %v3129 = vadd.f32 %v2172, %v3128
      %3130 = vmatmul.bf16.gmra.mxu0 %v2289
      %v3131 = vpop.f32.mrf.mxu0
      %v3132 = vadd.f32 %v2177, %v3131
      %v3133 = vpop.f32.mrf.mxu0
      %v3134 = vadd.f32 %v2182, %v3133
      %3135 = vmatmul.bf16.gmra.mxu0 %v2292
      %v3136 = vpop.f32.mrf.mxu0
      %v3137 = vadd.f32 %v2187, %v3136
      %v3138 = vpop.f32.mrf.mxu0
      %v3139 = vadd.f32 %v2192, %v3138
      %3140 = vmatmul.bf16.gmra.mxu0 %v2295
      %v3141 = vpop.f32.mrf.mxu0
      %v3142 = vadd.f32 %v2197, %v3141
      %v3143 = vpop.f32.mrf.mxu0
      %v3144 = vadd.f32 %v2202, %v3143
      %3145 = vmatmul.bf16.gmra.mxu0 %v2298
      %v3146 = vpop.f32.mrf.mxu0
      %v3147 = vadd.f32 %v2207, %v3146
      %v3148 = vpop.f32.mrf.mxu0
      %v3149 = vadd.f32 %v2212, %v3148
      %3150 = vmatmul.bf16.gmra.mxu0 %v2301
      %v3151 = vpop.f32.mrf.mxu0
      %v3152 = vadd.f32 %v2217, %v3151
      %v3153 = vpop.f32.mrf.mxu0
      %v3154 = vadd.f32 %v2222, %v3153
      %3155 = vmatmul.bf16.gmra.mxu0 %v2304
      %v3156 = vpop.f32.mrf.mxu0
      %v3157 = vadd.f32 %v2227, %v3156
      %v3158 = vpop.f32.mrf.mxu0
      %v3159 = vadd.f32 %v2232, %v3158
      %3160 = vmatmul.bf16.gmra.mxu0 %v2307
      %v3161 = vpop.f32.mrf.mxu0
      %v3162 = vadd.f32 %v2237, %v3161
      %v3163 = vpop.f32.mrf.mxu0
      %v3164 = vadd.f32 %v2242, %v3163
      %3165 = vdwg.mxu0
      %3166 = vmatpush.bf16.msra.mxu0 0
      %3167 = vmatpush.bf16.msra.mxu0 0
      %3168 = vmatpush.bf16.msra.mxu0 0
      %3169 = vmatpush.bf16.msra.mxu0 0
      %3170 = vmatpush.bf16.msra.mxu0 0
      %3171 = vmatpush.bf16.msra.mxu0 0
      %3172 = vmatpush.bf16.msra.mxu0 0
      %3173 = vmatpush.bf16.msra.mxu0 %v2359
      %3174 = vmatmul.bf16.gmra.mxu0 %v2286
      %v3175 = vpop.f32.mrf.mxu0
      %v3176 = vadd.f32 %v2167, %v3175
      %v3177 = vpop.f32.mrf.mxu0
      %v3178 = vadd.f32 %v2172, %v3177
      %3179 = vmatmul.bf16.gmra.mxu0 %v2289
      %v3180 = vpop.f32.mrf.mxu0
      %v3181 = vadd.f32 %v2177, %v3180
      %v3182 = vpop.f32.mrf.mxu0
      %v3183 = vadd.f32 %v2182, %v3182
      %3184 = vmatmul.bf16.gmra.mxu0 %v2292
      %v3185 = vpop.f32.mrf.mxu0
      %v3186 = vadd.f32 %v2187, %v3185
      %v3187 = vpop.f32.mrf.mxu0
      %v3188 = vadd.f32 %v2192, %v3187
      %3189 = vmatmul.bf16.gmra.mxu0 %v2295
      %v3190 = vpop.f32.mrf.mxu0
      %v3191 = vadd.f32 %v2197, %v3190
      %v3192 = vpop.f32.mrf.mxu0
      %v3193 = vadd.f32 %v2202, %v3192
      %3194 = vmatmul.bf16.gmra.mxu0 %v2298
      %v3195 = vpop.f32.mrf.mxu0
      %v3196 = vadd.f32 %v2207, %v3195
      %v3197 = vpop.f32.mrf.mxu0
      %v3198 = vadd.f32 %v2212, %v3197
      %3199 = vmatmul.bf16.gmra.mxu0 %v2301
      %v3200 = vpop.f32.mrf.mxu0
      %v3201 = vadd.f32 %v2217, %v3200
      %v3202 = vpop.f32.mrf.mxu0
      %v3203 = vadd.f32 %v2222, %v3202
      %3204 = vmatmul.bf16.gmra.mxu0 %v2304
      %v3205 = vpop.f32.mrf.mxu0
      %v3206 = vadd.f32 %v2227, %v3205
      %v3207 = vpop.f32.mrf.mxu0
      %v3208 = vadd.f32 %v2232, %v3207
      %3209 = vmatmul.bf16.gmra.mxu0 %v2307
      %v3210 = vpop.f32.mrf.mxu0
      %v3211 = vadd.f32 %v2237, %v3210
      %v3212 = vpop.f32.mrf.mxu0
      %v3213 = vadd.f32 %v2242, %v3212
      %3214 = vdwg.mxu0
      %3215 = vmatpush.bf16.msra.mxu0 0
      %3216 = vmatpush.bf16.msra.mxu0 0
      %3217 = vmatpush.bf16.msra.mxu0 0
      %3218 = vmatpush.bf16.msra.mxu0 0
      %3219 = vmatpush.bf16.msra.mxu0 0
      %3220 = vmatpush.bf16.msra.mxu0 0
      %3221 = vmatpush.bf16.msra.mxu0 0
      %3222 = vmatpush.bf16.msra.mxu0 %v2362
      %3223 = vmatmul.bf16.gmra.mxu0 %v2286
      %v3224 = vpop.f32.mrf.mxu0
      %v3225 = vadd.f32 %v2167, %v3224
      %v3226 = vpop.f32.mrf.mxu0
      %v3227 = vadd.f32 %v2172, %v3226
      %3228 = vmatmul.bf16.gmra.mxu0 %v2289
      %v3229 = vpop.f32.mrf.mxu0
      %v3230 = vadd.f32 %v2177, %v3229
      %v3231 = vpop.f32.mrf.mxu0
      %v3232 = vadd.f32 %v2182, %v3231
      %3233 = vmatmul.bf16.gmra.mxu0 %v2292
      %v3234 = vpop.f32.mrf.mxu0
      %v3235 = vadd.f32 %v2187, %v3234
      %v3236 = vpop.f32.mrf.mxu0
      %v3237 = vadd.f32 %v2192, %v3236
      %3238 = vmatmul.bf16.gmra.mxu0 %v2295
      %v3239 = vpop.f32.mrf.mxu0
      %v3240 = vadd.f32 %v2197, %v3239
      %v3241 = vpop.f32.mrf.mxu0
      %v3242 = vadd.f32 %v2202, %v3241
      %3243 = vmatmul.bf16.gmra.mxu0 %v2298
      %v3244 = vpop.f32.mrf.mxu0
      %v3245 = vadd.f32 %v2207, %v3244
      %v3246 = vpop.f32.mrf.mxu0
      %v3247 = vadd.f32 %v2212, %v3246
      %3248 = vmatmul.bf16.gmra.mxu0 %v2301
      %v3249 = vpop.f32.mrf.mxu0
      %v3250 = vadd.f32 %v2217, %v3249
      %v3251 = vpop.f32.mrf.mxu0
      %v3252 = vadd.f32 %v2222, %v3251
      %3253 = vmatmul.bf16.gmra.mxu0 %v2304
      %v3254 = vpop.f32.mrf.mxu0
      %v3255 = vadd.f32 %v2227, %v3254
      %v3256 = vpop.f32.mrf.mxu0
      %v3257 = vadd.f32 %v2232, %v3256
      %3258 = vmatmul.bf16.gmra.mxu0 %v2307
      %v3259 = vpop.f32.mrf.mxu0
      %v3260 = vadd.f32 %v2237, %v3259
      %v3261 = vpop.f32.mrf.mxu0
      %v3262 = vadd.f32 %v2242, %v3261
      %3263 = vdwg.mxu0
      %3264 = vmatpush.bf16.msra.mxu0 0
      %3265 = vmatpush.bf16.msra.mxu0 0
      %3266 = vmatpush.bf16.msra.mxu0 0
      %3267 = vmatpush.bf16.msra.mxu0 0
      %3268 = vmatpush.bf16.msra.mxu0 0
      %3269 = vmatpush.bf16.msra.mxu0 0
      %3270 = vmatpush.bf16.msra.mxu0 0
      %3271 = vmatpush.bf16.msra.mxu0 %v2365
      %3272 = vmatmul.bf16.gmra.mxu0 %v2286
      %v3273 = vpop.f32.mrf.mxu0
      %v3274 = vadd.f32 %v2167, %v3273
      %v3275 = vpop.f32.mrf.mxu0
      %v3276 = vadd.f32 %v2172, %v3275
      %3277 = vmatmul.bf16.gmra.mxu0 %v2289
      %v3278 = vpop.f32.mrf.mxu0
      %v3279 = vadd.f32 %v2177, %v3278
      %v3280 = vpop.f32.mrf.mxu0
      %v3281 = vadd.f32 %v2182, %v3280
      %3282 = vmatmul.bf16.gmra.mxu0 %v2292
      %v3283 = vpop.f32.mrf.mxu0
      %v3284 = vadd.f32 %v2187, %v3283
      %v3285 = vpop.f32.mrf.mxu0
      %v3286 = vadd.f32 %v2192, %v3285
      %3287 = vmatmul.bf16.gmra.mxu0 %v2295
      %v3288 = vpop.f32.mrf.mxu0
      %v3289 = vadd.f32 %v2197, %v3288
      %v3290 = vpop.f32.mrf.mxu0
      %v3291 = vadd.f32 %v2202, %v3290
      %3292 = vmatmul.bf16.gmra.mxu0 %v2298
      %v3293 = vpop.f32.mrf.mxu0
      %v3294 = vadd.f32 %v2207, %v3293
      %v3295 = vpop.f32.mrf.mxu0
      %v3296 = vadd.f32 %v2212, %v3295
      %3297 = vmatmul.bf16.gmra.mxu0 %v2301
      %v3298 = vpop.f32.mrf.mxu0
      %v3299 = vadd.f32 %v2217, %v3298
      %v3300 = vpop.f32.mrf.mxu0
      %v3301 = vadd.f32 %v2222, %v3300
      %3302 = vmatmul.bf16.gmra.mxu0 %v2304
      %v3303 = vpop.f32.mrf.mxu0
      %v3304 = vadd.f32 %v2227, %v3303
      %v3305 = vpop.f32.mrf.mxu0
      %v3306 = vadd.f32 %v2232, %v3305
      %3307 = vmatmul.bf16.gmra.mxu0 %v2307
      %v3308 = vpop.f32.mrf.mxu0
      %v3309 = vadd.f32 %v2237, %v3308
      %v3310 = vpop.f32.mrf.mxu0
      %v3311 = vadd.f32 %v2242, %v3310
      %3312 = vdwg.mxu0
      %3313 = vmatpush.bf16.msra.mxu0 0
      %3314 = vmatpush.bf16.msra.mxu0 0
      %3315 = vmatpush.bf16.msra.mxu0 0
      %3316 = vmatpush.bf16.msra.mxu0 0
      %3317 = vmatpush.bf16.msra.mxu0 0
      %3318 = vmatpush.bf16.msra.mxu0 0
      %3319 = vmatpush.bf16.msra.mxu0 0
      %3320 = vmatpush.bf16.msra.mxu0 %v2368
      %3321 = vmatmul.bf16.gmra.mxu0 %v2286
      %v3322 = vpop.f32.mrf.mxu0
      %v3323 = vadd.f32 %v2167, %v3322
      %v3324 = vpop.f32.mrf.mxu0
      %v3325 = vadd.f32 %v2172, %v3324
      %3326 = vmatmul.bf16.gmra.mxu0 %v2289
      %v3327 = vpop.f32.mrf.mxu0
      %v3328 = vadd.f32 %v2177, %v3327
      %v3329 = vpop.f32.mrf.mxu0
      %v3330 = vadd.f32 %v2182, %v3329
      %3331 = vmatmul.bf16.gmra.mxu0 %v2292
      %v3332 = vpop.f32.mrf.mxu0
      %v3333 = vadd.f32 %v2187, %v3332
      %v3334 = vpop.f32.mrf.mxu0
      %v3335 = vadd.f32 %v2192, %v3334
      %3336 = vmatmul.bf16.gmra.mxu0 %v2295
      %v3337 = vpop.f32.mrf.mxu0
      %v3338 = vadd.f32 %v2197, %v3337
      %v3339 = vpop.f32.mrf.mxu0
      %v3340 = vadd.f32 %v2202, %v3339
      %3341 = vmatmul.bf16.gmra.mxu0 %v2298
      %v3342 = vpop.f32.mrf.mxu0
      %v3343 = vadd.f32 %v2207, %v3342
      %v3344 = vpop.f32.mrf.mxu0
      %v3345 = vadd.f32 %v2212, %v3344
      %3346 = vmatmul.bf16.gmra.mxu0 %v2301
      %v3347 = vpop.f32.mrf.mxu0
      %v3348 = vadd.f32 %v2217, %v3347
      %v3349 = vpop.f32.mrf.mxu0
      %v3350 = vadd.f32 %v2222, %v3349
      %3351 = vmatmul.bf16.gmra.mxu0 %v2304
      %v3352 = vpop.f32.mrf.mxu0
      %v3353 = vadd.f32 %v2227, %v3352
      %v3354 = vpop.f32.mrf.mxu0
      %v3355 = vadd.f32 %v2232, %v3354
      %3356 = vmatmul.bf16.gmra.mxu0 %v2307
      %v3357 = vpop.f32.mrf.mxu0
      %v3358 = vadd.f32 %v2237, %v3357
      %v3359 = vpop.f32.mrf.mxu0
      %v3360 = vadd.f32 %v2242, %v3359
      %3361 = vdwg.mxu0
      %3362 = vmatpush.bf16.msra.mxu0 0
      %3363 = vmatpush.bf16.msra.mxu0 0
      %3364 = vmatpush.bf16.msra.mxu0 0
      %3365 = vmatpush.bf16.msra.mxu0 0
      %3366 = vmatpush.bf16.msra.mxu0 0
      %3367 = vmatpush.bf16.msra.mxu0 0
      %3368 = vmatpush.bf16.msra.mxu0 0
      %3369 = vmatpush.bf16.msra.mxu0 %v2371
      %3370 = vmatmul.bf16.gmra.mxu0 %v2286
      %v3371 = vpop.f32.mrf.mxu0
      %v3372 = vadd.f32 %v2167, %v3371
      %v3373 = vpop.f32.mrf.mxu0
      %v3374 = vadd.f32 %v2172, %v3373
      %3375 = vmatmul.bf16.gmra.mxu0 %v2289
      %v3376 = vpop.f32.mrf.mxu0
      %v3377 = vadd.f32 %v2177, %v3376
      %v3378 = vpop.f32.mrf.mxu0
      %v3379 = vadd.f32 %v2182, %v3378
      %3380 = vmatmul.bf16.gmra.mxu0 %v2292
      %v3381 = vpop.f32.mrf.mxu0
      %v3382 = vadd.f32 %v2187, %v3381
      %v3383 = vpop.f32.mrf.mxu0
      %v3384 = vadd.f32 %v2192, %v3383
      %3385 = vmatmul.bf16.gmra.mxu0 %v2295
      %v3386 = vpop.f32.mrf.mxu0
      %v3387 = vadd.f32 %v2197, %v3386
      %v3388 = vpop.f32.mrf.mxu0
      %v3389 = vadd.f32 %v2202, %v3388
      %3390 = vmatmul.bf16.gmra.mxu0 %v2298
      %v3391 = vpop.f32.mrf.mxu0
      %v3392 = vadd.f32 %v2207, %v3391
      %v3393 = vpop.f32.mrf.mxu0
      %v3394 = vadd.f32 %v2212, %v3393
      %3395 = vmatmul.bf16.gmra.mxu0 %v2301
      %v3396 = vpop.f32.mrf.mxu0
      %v3397 = vadd.f32 %v2217, %v3396
      %v3398 = vpop.f32.mrf.mxu0
      %v3399 = vadd.f32 %v2222, %v3398
      %3400 = vmatmul.bf16.gmra.mxu0 %v2304
      %v3401 = vpop.f32.mrf.mxu0
      %v3402 = vadd.f32 %v2227, %v3401
      %v3403 = vpop.f32.mrf.mxu0
      %v3404 = vadd.f32 %v2232, %v3403
      %3405 = vmatmul.bf16.gmra.mxu0 %v2307
      %v3406 = vpop.f32.mrf.mxu0
      %v3407 = vadd.f32 %v2237, %v3406
      %v3408 = vpop.f32.mrf.mxu0
      %v3409 = vadd.f32 %v2242, %v3408
      %3410 = vdwg.mxu0
      %3411 = vmatpush.bf16.msra.mxu0 0
      %3412 = vmatpush.bf16.msra.mxu0 0
      %3413 = vmatpush.bf16.msra.mxu0 0
      %3414 = vmatpush.bf16.msra.mxu0 0
      %3415 = vmatpush.bf16.msra.mxu0 0
      %3416 = vmatpush.bf16.msra.mxu0 0
      %3417 = vmatpush.bf16.msra.mxu0 0
      %3418 = vmatpush.bf16.msra.mxu0 %v2374
      %3419 = vmatmul.bf16.gmra.mxu0 %v2286
      %v3420 = vpop.f32.mrf.mxu0
      %v3421 = vadd.f32 %v2167, %v3420
      %v3422 = vpop.f32.mrf.mxu0
      %v3423 = vadd.f32 %v2172, %v3422
      %3424 = vmatmul.bf16.gmra.mxu0 %v2289
      %v3425 = vpop.f32.mrf.mxu0
      %v3426 = vadd.f32 %v2177, %v3425
      %v3427 = vpop.f32.mrf.mxu0
      %v3428 = vadd.f32 %v2182, %v3427
      %3429 = vmatmul.bf16.gmra.mxu0 %v2292
      %v3430 = vpop.f32.mrf.mxu0
      %v3431 = vadd.f32 %v2187, %v3430
      %v3432 = vpop.f32.mrf.mxu0
      %v3433 = vadd.f32 %v2192, %v3432
      %3434 = vmatmul.bf16.gmra.mxu0 %v2295
      %v3435 = vpop.f32.mrf.mxu0
      %v3436 = vadd.f32 %v2197, %v3435
      %v3437 = vpop.f32.mrf.mxu0
      %v3438 = vadd.f32 %v2202, %v3437
      %3439 = vmatmul.bf16.gmra.mxu0 %v2298
      %v3440 = vpop.f32.mrf.mxu0
      %v3441 = vadd.f32 %v2207, %v3440
      %v3442 = vpop.f32.mrf.mxu0
      %v3443 = vadd.f32 %v2212, %v3442
      %3444 = vmatmul.bf16.gmra.mxu0 %v2301
      %v3445 = vpop.f32.mrf.mxu0
      %v3446 = vadd.f32 %v2217, %v3445
      %v3447 = vpop.f32.mrf.mxu0
      %v3448 = vadd.f32 %v2222, %v3447
      %3449 = vmatmul.bf16.gmra.mxu0 %v2304
      %v3450 = vpop.f32.mrf.mxu0
      %v3451 = vadd.f32 %v2227, %v3450
      %v3452 = vpop.f32.mrf.mxu0
      %v3453 = vadd.f32 %v2232, %v3452
      %3454 = vmatmul.bf16.gmra.mxu0 %v2307
      %v3455 = vpop.f32.mrf.mxu0
      %v3456 = vadd.f32 %v2237, %v3455
      %v3457 = vpop.f32.mrf.mxu0
      %v3458 = vadd.f32 %v2242, %v3457
      %3459 = vdwg.mxu0
      %3460 = vmatpush.bf16.msra.mxu0 0
      %3461 = vmatpush.bf16.msra.mxu0 0
      %3462 = vmatpush.bf16.msra.mxu0 0
      %3463 = vmatpush.bf16.msra.mxu0 0
      %3464 = vmatpush.bf16.msra.mxu0 0
      %3465 = vmatpush.bf16.msra.mxu0 0
      %3466 = vmatpush.bf16.msra.mxu0 0
      %3467 = vmatpush.bf16.msra.mxu0 %v2377
      %3468 = vmatmul.bf16.gmra.mxu0 %v2286
      %v3469 = vpop.f32.mrf.mxu0
      %v3470 = vadd.f32 %v2167, %v3469
      %v3471 = vpop.f32.mrf.mxu0
      %v3472 = vadd.f32 %v2172, %v3471
      %3473 = vmatmul.bf16.gmra.mxu0 %v2289
      %v3474 = vpop.f32.mrf.mxu0
      %v3475 = vadd.f32 %v2177, %v3474
      %v3476 = vpop.f32.mrf.mxu0
      %v3477 = vadd.f32 %v2182, %v3476
      %3478 = vmatmul.bf16.gmra.mxu0 %v2292
      %v3479 = vpop.f32.mrf.mxu0
      %v3480 = vadd.f32 %v2187, %v3479
      %v3481 = vpop.f32.mrf.mxu0
      %v3482 = vadd.f32 %v2192, %v3481
      %3483 = vmatmul.bf16.gmra.mxu0 %v2295
      %v3484 = vpop.f32.mrf.mxu0
      %v3485 = vadd.f32 %v2197, %v3484
      %v3486 = vpop.f32.mrf.mxu0
      %v3487 = vadd.f32 %v2202, %v3486
      %3488 = vmatmul.bf16.gmra.mxu0 %v2298
      %v3489 = vpop.f32.mrf.mxu0
      %v3490 = vadd.f32 %v2207, %v3489
      %v3491 = vpop.f32.mrf.mxu0
      %v3492 = vadd.f32 %v2212, %v3491
      %3493 = vmatmul.bf16.gmra.mxu0 %v2301
      %v3494 = vpop.f32.mrf.mxu0
      %v3495 = vadd.f32 %v2217, %v3494
      %v3496 = vpop.f32.mrf.mxu0
      %v3497 = vadd.f32 %v2222, %v3496
      %3498 = vmatmul.bf16.gmra.mxu0 %v2304
      %v3499 = vpop.f32.mrf.mxu0
      %v3500 = vadd.f32 %v2227, %v3499
      %v3501 = vpop.f32.mrf.mxu0
      %v3502 = vadd.f32 %v2232, %v3501
      %3503 = vmatmul.bf16.gmra.mxu0 %v2307
      %v3504 = vpop.f32.mrf.mxu0
      %v3505 = vadd.f32 %v2237, %v3504
      %v3506 = vpop.f32.mrf.mxu0
      %v3507 = vadd.f32 %v2242, %v3506
      %3508 = vdwg.mxu0
      %3509 = vmatpush.bf16.msra.mxu0 0
      %3510 = vmatpush.bf16.msra.mxu0 0
      %3511 = vmatpush.bf16.msra.mxu0 0
      %3512 = vmatpush.bf16.msra.mxu0 0
      %3513 = vmatpush.bf16.msra.mxu0 0
      %3514 = vmatpush.bf16.msra.mxu0 0
      %3515 = vmatpush.bf16.msra.mxu0 0
      %3516 = vmatpush.bf16.msra.mxu0 %v2380
      %3517 = vmatmul.bf16.gmra.mxu0 %v2286
      %v3518 = vpop.f32.mrf.mxu0
      %v3519 = vadd.f32 %v2167, %v3518
      %v3520 = vpop.f32.mrf.mxu0
      %v3521 = vadd.f32 %v2172, %v3520
      %3522 = vmatmul.bf16.gmra.mxu0 %v2289
      %v3523 = vpop.f32.mrf.mxu0
      %v3524 = vadd.f32 %v2177, %v3523
      %v3525 = vpop.f32.mrf.mxu0
      %v3526 = vadd.f32 %v2182, %v3525
      %3527 = vmatmul.bf16.gmra.mxu0 %v2292
      %v3528 = vpop.f32.mrf.mxu0
      %v3529 = vadd.f32 %v2187, %v3528
      %v3530 = vpop.f32.mrf.mxu0
      %v3531 = vadd.f32 %v2192, %v3530
      %3532 = vmatmul.bf16.gmra.mxu0 %v2295
      %v3533 = vpop.f32.mrf.mxu0
      %v3534 = vadd.f32 %v2197, %v3533
      %v3535 = vpop.f32.mrf.mxu0
      %v3536 = vadd.f32 %v2202, %v3535
      %3537 = vmatmul.bf16.gmra.mxu0 %v2298
      %v3538 = vpop.f32.mrf.mxu0
      %v3539 = vadd.f32 %v2207, %v3538
      %v3540 = vpop.f32.mrf.mxu0
      %v3541 = vadd.f32 %v2212, %v3540
      %3542 = vmatmul.bf16.gmra.mxu0 %v2301
      %v3543 = vpop.f32.mrf.mxu0
      %v3544 = vadd.f32 %v2217, %v3543
      %v3545 = vpop.f32.mrf.mxu0
      %v3546 = vadd.f32 %v2222, %v3545
      %3547 = vmatmul.bf16.gmra.mxu0 %v2304
      %v3548 = vpop.f32.mrf.mxu0
      %v3549 = vadd.f32 %v2227, %v3548
      %v3550 = vpop.f32.mrf.mxu0
      %v3551 = vadd.f32 %v2232, %v3550
      %3552 = vmatmul.bf16.gmra.mxu0 %v2307
      %v3553 = vpop.f32.mrf.mxu0
      %v3554 = vadd.f32 %v2237, %v3553
      %v3555 = vpop.f32.mrf.mxu0
      %v3556 = vadd.f32 %v2242, %v3555
      %3557 = vdwg.mxu0
      %vm3558 = vcmp.gt.f32.partialorder %v2392, 0.0
      %vm3559 = vcmp.gt.f32.partialorder %v2441, 0.0
      %vm3560 = vcmp.gt.f32.partialorder %v2490, 0.0
      %vm3561 = vcmp.gt.f32.partialorder %v2539, 0.0
      %vm3562 = vcmp.gt.f32.partialorder %v2588, 0.0
      %vm3563 = vcmp.gt.f32.partialorder %v2637, 0.0
      %vm3564 = vcmp.gt.f32.partialorder %v2686, 0.0
      %vm3565 = vcmp.gt.f32.partialorder %v2735, 0.0
      %vm3566 = vcmp.gt.f32.partialorder %v2784, 0.0
      %vm3567 = vcmp.gt.f32.partialorder %v2833, 0.0
      %vm3568 = vcmp.gt.f32.partialorder %v2882, 0.0
      %vm3569 = vcmp.gt.f32.partialorder %v2931, 0.0
      %vm3570 = vcmp.gt.f32.partialorder %v2980, 0.0
      %vm3571 = vcmp.gt.f32.partialorder %v3029, 0.0
      %vm3572 = vcmp.gt.f32.partialorder %v3078, 0.0
      %vm3573 = vcmp.gt.f32.partialorder %v3127, 0.0
      %vm3574 = vcmp.gt.f32.partialorder %v3176, 0.0
      %vm3575 = vcmp.gt.f32.partialorder %v3225, 0.0
      %vm3576 = vcmp.gt.f32.partialorder %v3274, 0.0
      %vm3577 = vcmp.gt.f32.partialorder %v3323, 0.0
      %vm3578 = vcmp.gt.f32.partialorder %v3372, 0.0
      %vm3579 = vcmp.gt.f32.partialorder %v3421, 0.0
      %vm3580 = vcmp.gt.f32.partialorder %v3470, 0.0
      %vm3581 = vcmp.gt.f32.partialorder %v3519, 0.0
      %vm3582 = vcmp.gt.f32.partialorder %v2394, 0.0
      %vm3583 = vcmp.gt.f32.partialorder %v2443, 0.0
      %vm3584 = vcmp.gt.f32.partialorder %v2492, 0.0
      %vm3585 = vcmp.gt.f32.partialorder %v2541, 0.0
      %vm3586 = vcmp.gt.f32.partialorder %v2590, 0.0
      %vm3587 = vcmp.gt.f32.partialorder %v2639, 0.0
      %vm3588 = vcmp.gt.f32.partialorder %v2688, 0.0
      %vm3589 = vcmp.gt.f32.partialorder %v2737, 0.0
      %vm3590 = vcmp.gt.f32.partialorder %v2786, 0.0
      %vm3591 = vcmp.gt.f32.partialorder %v2835, 0.0
      %vm3592 = vcmp.gt.f32.partialorder %v2884, 0.0
      %vm3593 = vcmp.gt.f32.partialorder %v2933, 0.0
      %vm3594 = vcmp.gt.f32.partialorder %v2982, 0.0
      %vm3595 = vcmp.gt.f32.partialorder %v3031, 0.0
      %vm3596 = vcmp.gt.f32.partialorder %v3080, 0.0
      %vm3597 = vcmp.gt.f32.partialorder %v3129, 0.0
      %vm3598 = vcmp.gt.f32.partialorder %v3178, 0.0
      %vm3599 = vcmp.gt.f32.partialorder %v3227, 0.0
      %vm3600 = vcmp.gt.f32.partialorder %v3276, 0.0
      %vm3601 = vcmp.gt.f32.partialorder %v3325, 0.0
      %vm3602 = vcmp.gt.f32.partialorder %v3374, 0.0
      %vm3603 = vcmp.gt.f32.partialorder %v3423, 0.0
      %vm3604 = vcmp.gt.f32.partialorder %v3472, 0.0
      %vm3605 = vcmp.gt.f32.partialorder %v3521, 0.0
      %vm3606 = vcmp.gt.f32.partialorder %v2397, 0.0
      %vm3607 = vcmp.gt.f32.partialorder %v2446, 0.0
      %vm3608 = vcmp.gt.f32.partialorder %v2495, 0.0
      %vm3609 = vcmp.gt.f32.partialorder %v2544, 0.0
      %vm3610 = vcmp.gt.f32.partialorder %v2593, 0.0
      %vm3611 = vcmp.gt.f32.partialorder %v2642, 0.0
      %vm3612 = vcmp.gt.f32.partialorder %v2691, 0.0
      %vm3613 = vcmp.gt.f32.partialorder %v2740, 0.0
      %vm3614 = vcmp.gt.f32.partialorder %v2789, 0.0
      %vm3615 = vcmp.gt.f32.partialorder %v2838, 0.0
      %vm3616 = vcmp.gt.f32.partialorder %v2887, 0.0
      %vm3617 = vcmp.gt.f32.partialorder %v2936, 0.0
      %vm3618 = vcmp.gt.f32.partialorder %v2985, 0.0
      %vm3619 = vcmp.gt.f32.partialorder %v3034, 0.0
      %vm3620 = vcmp.gt.f32.partialorder %v3083, 0.0
      %vm3621 = vcmp.gt.f32.partialorder %v3132, 0.0
      %vm3622 = vcmp.gt.f32.partialorder %v3181, 0.0
      %vm3623 = vcmp.gt.f32.partialorder %v3230, 0.0
      %vm3624 = vcmp.gt.f32.partialorder %v3279, 0.0
      %vm3625 = vcmp.gt.f32.partialorder %v3328, 0.0
      %vm3626 = vcmp.gt.f32.partialorder %v3377, 0.0
      %vm3627 = vcmp.gt.f32.partialorder %v3426, 0.0
      %vm3628 = vcmp.gt.f32.partialorder %v3475, 0.0
      %vm3629 = vcmp.gt.f32.partialorder %v3524, 0.0
      %vm3630 = vcmp.gt.f32.partialorder %v2399, 0.0
      %vm3631 = vcmp.gt.f32.partialorder %v2448, 0.0
      %vm3632 = vcmp.gt.f32.partialorder %v2497, 0.0
      %vm3633 = vcmp.gt.f32.partialorder %v2546, 0.0
      %vm3634 = vcmp.gt.f32.partialorder %v2595, 0.0
      %vm3635 = vcmp.gt.f32.partialorder %v2644, 0.0
      %vm3636 = vcmp.gt.f32.partialorder %v2693, 0.0
      %vm3637 = vcmp.gt.f32.partialorder %v2742, 0.0
      %vm3638 = vcmp.gt.f32.partialorder %v2791, 0.0
      %vm3639 = vcmp.gt.f32.partialorder %v2840, 0.0
      %vm3640 = vcmp.gt.f32.partialorder %v2889, 0.0
      %vm3641 = vcmp.gt.f32.partialorder %v2938, 0.0
      %vm3642 = vcmp.gt.f32.partialorder %v2987, 0.0
      %vm3643 = vcmp.gt.f32.partialorder %v3036, 0.0
      %vm3644 = vcmp.gt.f32.partialorder %v3085, 0.0
      %vm3645 = vcmp.gt.f32.partialorder %v3134, 0.0
      %vm3646 = vcmp.gt.f32.partialorder %v3183, 0.0
      %vm3647 = vcmp.gt.f32.partialorder %v3232, 0.0
      %vm3648 = vcmp.gt.f32.partialorder %v3281, 0.0
      %vm3649 = vcmp.gt.f32.partialorder %v3330, 0.0
      %vm3650 = vcmp.gt.f32.partialorder %v3379, 0.0
      %vm3651 = vcmp.gt.f32.partialorder %v3428, 0.0
      %vm3652 = vcmp.gt.f32.partialorder %v3477, 0.0
      %vm3653 = vcmp.gt.f32.partialorder %v3526, 0.0
      %vm3654 = vcmp.gt.f32.partialorder %v2402, 0.0
      %vm3655 = vcmp.gt.f32.partialorder %v2451, 0.0
      %vm3656 = vcmp.gt.f32.partialorder %v2500, 0.0
      %vm3657 = vcmp.gt.f32.partialorder %v2549, 0.0
      %vm3658 = vcmp.gt.f32.partialorder %v2598, 0.0
      %vm3659 = vcmp.gt.f32.partialorder %v2647, 0.0
      %vm3660 = vcmp.gt.f32.partialorder %v2696, 0.0
      %vm3661 = vcmp.gt.f32.partialorder %v2745, 0.0
      %vm3662 = vcmp.gt.f32.partialorder %v2794, 0.0
      %vm3663 = vcmp.gt.f32.partialorder %v2843, 0.0
      %vm3664 = vcmp.gt.f32.partialorder %v2892, 0.0
      %vm3665 = vcmp.gt.f32.partialorder %v2941, 0.0
      %vm3666 = vcmp.gt.f32.partialorder %v2990, 0.0
      %vm3667 = vcmp.gt.f32.partialorder %v3039, 0.0
      %vm3668 = vcmp.gt.f32.partialorder %v3088, 0.0
      %vm3669 = vcmp.gt.f32.partialorder %v3137, 0.0
      %vm3670 = vcmp.gt.f32.partialorder %v3186, 0.0
      %vm3671 = vcmp.gt.f32.partialorder %v3235, 0.0
      %vm3672 = vcmp.gt.f32.partialorder %v3284, 0.0
      %vm3673 = vcmp.gt.f32.partialorder %v3333, 0.0
      %vm3674 = vcmp.gt.f32.partialorder %v3382, 0.0
      %vm3675 = vcmp.gt.f32.partialorder %v3431, 0.0
      %vm3676 = vcmp.gt.f32.partialorder %v3480, 0.0
      %vm3677 = vcmp.gt.f32.partialorder %v3529, 0.0
      %vm3678 = vcmp.gt.f32.partialorder %v2404, 0.0
      %vm3679 = vcmp.gt.f32.partialorder %v2453, 0.0
      %vm3680 = vcmp.gt.f32.partialorder %v2502, 0.0
      %vm3681 = vcmp.gt.f32.partialorder %v2551, 0.0
      %vm3682 = vcmp.gt.f32.partialorder %v2600, 0.0
      %vm3683 = vcmp.gt.f32.partialorder %v2649, 0.0
      %vm3684 = vcmp.gt.f32.partialorder %v2698, 0.0
      %vm3685 = vcmp.gt.f32.partialorder %v2747, 0.0
      %vm3686 = vcmp.gt.f32.partialorder %v2796, 0.0
      %vm3687 = vcmp.gt.f32.partialorder %v2845, 0.0
      %vm3688 = vcmp.gt.f32.partialorder %v2894, 0.0
      %vm3689 = vcmp.gt.f32.partialorder %v2943, 0.0
      %vm3690 = vcmp.gt.f32.partialorder %v2992, 0.0
      %vm3691 = vcmp.gt.f32.partialorder %v3041, 0.0
      %vm3692 = vcmp.gt.f32.partialorder %v3090, 0.0
      %vm3693 = vcmp.gt.f32.partialorder %v3139, 0.0
      %vm3694 = vcmp.gt.f32.partialorder %v3188, 0.0
      %vm3695 = vcmp.gt.f32.partialorder %v3237, 0.0
      %vm3696 = vcmp.gt.f32.partialorder %v3286, 0.0
      %vm3697 = vcmp.gt.f32.partialorder %v3335, 0.0
      %vm3698 = vcmp.gt.f32.partialorder %v3384, 0.0
      %vm3699 = vcmp.gt.f32.partialorder %v3433, 0.0
      %vm3700 = vcmp.gt.f32.partialorder %v3482, 0.0
      %vm3701 = vcmp.gt.f32.partialorder %v3531, 0.0
      %vm3702 = vcmp.gt.f32.partialorder %v2407, 0.0
      %vm3703 = vcmp.gt.f32.partialorder %v2456, 0.0
      %vm3704 = vcmp.gt.f32.partialorder %v2505, 0.0
      %vm3705 = vcmp.gt.f32.partialorder %v2554, 0.0
      %vm3706 = vcmp.gt.f32.partialorder %v2603, 0.0
      %vm3707 = vcmp.gt.f32.partialorder %v2652, 0.0
      %vm3708 = vcmp.gt.f32.partialorder %v2701, 0.0
      %vm3709 = vcmp.gt.f32.partialorder %v2750, 0.0
      %vm3710 = vcmp.gt.f32.partialorder %v2799, 0.0
      %vm3711 = vcmp.gt.f32.partialorder %v2848, 0.0
      %vm3712 = vcmp.gt.f32.partialorder %v2897, 0.0
      %vm3713 = vcmp.gt.f32.partialorder %v2946, 0.0
      %vm3714 = vcmp.gt.f32.partialorder %v2995, 0.0
      %vm3715 = vcmp.gt.f32.partialorder %v3044, 0.0
      %vm3716 = vcmp.gt.f32.partialorder %v3093, 0.0
      %vm3717 = vcmp.gt.f32.partialorder %v3142, 0.0
      %vm3718 = vcmp.gt.f32.partialorder %v3191, 0.0
      %vm3719 = vcmp.gt.f32.partialorder %v3240, 0.0
      %vm3720 = vcmp.gt.f32.partialorder %v3289, 0.0
      %vm3721 = vcmp.gt.f32.partialorder %v3338, 0.0
      %vm3722 = vcmp.gt.f32.partialorder %v3387, 0.0
      %vm3723 = vcmp.gt.f32.partialorder %v3436, 0.0
      %vm3724 = vcmp.gt.f32.partialorder %v3485, 0.0
      %vm3725 = vcmp.gt.f32.partialorder %v3534, 0.0
      %vm3726 = vcmp.gt.f32.partialorder %v2409, 0.0
      %vm3727 = vcmp.gt.f32.partialorder %v2458, 0.0
      %vm3728 = vcmp.gt.f32.partialorder %v2507, 0.0
      %vm3729 = vcmp.gt.f32.partialorder %v2556, 0.0
      %vm3730 = vcmp.gt.f32.partialorder %v2605, 0.0
      %vm3731 = vcmp.gt.f32.partialorder %v2654, 0.0
      %vm3732 = vcmp.gt.f32.partialorder %v2703, 0.0
      %vm3733 = vcmp.gt.f32.partialorder %v2752, 0.0
      %vm3734 = vcmp.gt.f32.partialorder %v2801, 0.0
      %vm3735 = vcmp.gt.f32.partialorder %v2850, 0.0
      %vm3736 = vcmp.gt.f32.partialorder %v2899, 0.0
      %vm3737 = vcmp.gt.f32.partialorder %v2948, 0.0
      %vm3738 = vcmp.gt.f32.partialorder %v2997, 0.0
      %vm3739 = vcmp.gt.f32.partialorder %v3046, 0.0
      %vm3740 = vcmp.gt.f32.partialorder %v3095, 0.0
      %vm3741 = vcmp.gt.f32.partialorder %v3144, 0.0
      %vm3742 = vcmp.gt.f32.partialorder %v3193, 0.0
      %vm3743 = vcmp.gt.f32.partialorder %v3242, 0.0
      %vm3744 = vcmp.gt.f32.partialorder %v3291, 0.0
      %vm3745 = vcmp.gt.f32.partialorder %v3340, 0.0
      %vm3746 = vcmp.gt.f32.partialorder %v3389, 0.0
      %vm3747 = vcmp.gt.f32.partialorder %v3438, 0.0
      %vm3748 = vcmp.gt.f32.partialorder %v3487, 0.0
      %vm3749 = vcmp.gt.f32.partialorder %v3536, 0.0
      %vm3750 = vcmp.gt.f32.partialorder %v2412, 0.0
      %vm3751 = vcmp.gt.f32.partialorder %v2461, 0.0
      %vm3752 = vcmp.gt.f32.partialorder %v2510, 0.0
      %vm3753 = vcmp.gt.f32.partialorder %v2559, 0.0
      %vm3754 = vcmp.gt.f32.partialorder %v2608, 0.0
      %vm3755 = vcmp.gt.f32.partialorder %v2657, 0.0
      %vm3756 = vcmp.gt.f32.partialorder %v2706, 0.0
      %vm3757 = vcmp.gt.f32.partialorder %v2755, 0.0
      %vm3758 = vcmp.gt.f32.partialorder %v2804, 0.0
      %vm3759 = vcmp.gt.f32.partialorder %v2853, 0.0
      %vm3760 = vcmp.gt.f32.partialorder %v2902, 0.0
      %vm3761 = vcmp.gt.f32.partialorder %v2951, 0.0
      %vm3762 = vcmp.gt.f32.partialorder %v3000, 0.0
      %vm3763 = vcmp.gt.f32.partialorder %v3049, 0.0
      %vm3764 = vcmp.gt.f32.partialorder %v3098, 0.0
      %vm3765 = vcmp.gt.f32.partialorder %v3147, 0.0
      %vm3766 = vcmp.gt.f32.partialorder %v3196, 0.0
      %vm3767 = vcmp.gt.f32.partialorder %v3245, 0.0
      %vm3768 = vcmp.gt.f32.partialorder %v3294, 0.0
      %vm3769 = vcmp.gt.f32.partialorder %v3343, 0.0
      %vm3770 = vcmp.gt.f32.partialorder %v3392, 0.0
      %vm3771 = vcmp.gt.f32.partialorder %v3441, 0.0
      %vm3772 = vcmp.gt.f32.partialorder %v3490, 0.0
      %vm3773 = vcmp.gt.f32.partialorder %v3539, 0.0
      %vm3774 = vcmp.gt.f32.partialorder %v2414, 0.0
      %vm3775 = vcmp.gt.f32.partialorder %v2463, 0.0
      %vm3776 = vcmp.gt.f32.partialorder %v2512, 0.0
      %vm3777 = vcmp.gt.f32.partialorder %v2561, 0.0
      %vm3778 = vcmp.gt.f32.partialorder %v2610, 0.0
      %vm3779 = vcmp.gt.f32.partialorder %v2659, 0.0
      %vm3780 = vcmp.gt.f32.partialorder %v2708, 0.0
      %vm3781 = vcmp.gt.f32.partialorder %v2757, 0.0
      %vm3782 = vcmp.gt.f32.partialorder %v2806, 0.0
      %vm3783 = vcmp.gt.f32.partialorder %v2855, 0.0
      %vm3784 = vcmp.gt.f32.partialorder %v2904, 0.0
      %vm3785 = vcmp.gt.f32.partialorder %v2953, 0.0
      %vm3786 = vcmp.gt.f32.partialorder %v3002, 0.0
      %vm3787 = vcmp.gt.f32.partialorder %v3051, 0.0
      %vm3788 = vcmp.gt.f32.partialorder %v3100, 0.0
      %vm3789 = vcmp.gt.f32.partialorder %v3149, 0.0
      %vm3790 = vcmp.gt.f32.partialorder %v3198, 0.0
      %vm3791 = vcmp.gt.f32.partialorder %v3247, 0.0
      %vm3792 = vcmp.gt.f32.partialorder %v3296, 0.0
      %vm3793 = vcmp.gt.f32.partialorder %v3345, 0.0
      %vm3794 = vcmp.gt.f32.partialorder %v3394, 0.0
      %vm3795 = vcmp.gt.f32.partialorder %v3443, 0.0
      %vm3796 = vcmp.gt.f32.partialorder %v3492, 0.0
      %vm3797 = vcmp.gt.f32.partialorder %v3541, 0.0
      %vm3798 = vcmp.gt.f32.partialorder %v2417, 0.0
      %vm3799 = vcmp.gt.f32.partialorder %v2466, 0.0
      %vm3800 = vcmp.gt.f32.partialorder %v2515, 0.0
      %vm3801 = vcmp.gt.f32.partialorder %v2564, 0.0
      %vm3802 = vcmp.gt.f32.partialorder %v2613, 0.0
      %vm3803 = vcmp.gt.f32.partialorder %v2662, 0.0
      %vm3804 = vcmp.gt.f32.partialorder %v2711, 0.0
      %vm3805 = vcmp.gt.f32.partialorder %v2760, 0.0
      %vm3806 = vcmp.gt.f32.partialorder %v2809, 0.0
      %vm3807 = vcmp.gt.f32.partialorder %v2858, 0.0
      %vm3808 = vcmp.gt.f32.partialorder %v2907, 0.0
      %vm3809 = vcmp.gt.f32.partialorder %v2956, 0.0
      %vm3810 = vcmp.gt.f32.partialorder %v3005, 0.0
      %vm3811 = vcmp.gt.f32.partialorder %v3054, 0.0
      %vm3812 = vcmp.gt.f32.partialorder %v3103, 0.0
      %vm3813 = vcmp.gt.f32.partialorder %v3152, 0.0
      %vm3814 = vcmp.gt.f32.partialorder %v3201, 0.0
      %vm3815 = vcmp.gt.f32.partialorder %v3250, 0.0
      %vm3816 = vcmp.gt.f32.partialorder %v3299, 0.0
      %vm3817 = vcmp.gt.f32.partialorder %v3348, 0.0
      %vm3818 = vcmp.gt.f32.partialorder %v3397, 0.0
      %vm3819 = vcmp.gt.f32.partialorder %v3446, 0.0
      %vm3820 = vcmp.gt.f32.partialorder %v3495, 0.0
      %vm3821 = vcmp.gt.f32.partialorder %v3544, 0.0
      %vm3822 = vcmp.gt.f32.partialorder %v2419, 0.0
      %vm3823 = vcmp.gt.f32.partialorder %v2468, 0.0
      %vm3824 = vcmp.gt.f32.partialorder %v2517, 0.0
      %vm3825 = vcmp.gt.f32.partialorder %v2566, 0.0
      %vm3826 = vcmp.gt.f32.partialorder %v2615, 0.0
      %vm3827 = vcmp.gt.f32.partialorder %v2664, 0.0
      %vm3828 = vcmp.gt.f32.partialorder %v2713, 0.0
      %vm3829 = vcmp.gt.f32.partialorder %v2762, 0.0
      %vm3830 = vcmp.gt.f32.partialorder %v2811, 0.0
      %vm3831 = vcmp.gt.f32.partialorder %v2860, 0.0
      %vm3832 = vcmp.gt.f32.partialorder %v2909, 0.0
      %vm3833 = vcmp.gt.f32.partialorder %v2958, 0.0
      %vm3834 = vcmp.gt.f32.partialorder %v3007, 0.0
      %vm3835 = vcmp.gt.f32.partialorder %v3056, 0.0
      %vm3836 = vcmp.gt.f32.partialorder %v3105, 0.0
      %vm3837 = vcmp.gt.f32.partialorder %v3154, 0.0
      %vm3838 = vcmp.gt.f32.partialorder %v3203, 0.0
      %vm3839 = vcmp.gt.f32.partialorder %v3252, 0.0
      %vm3840 = vcmp.gt.f32.partialorder %v3301, 0.0
      %vm3841 = vcmp.gt.f32.partialorder %v3350, 0.0
      %vm3842 = vcmp.gt.f32.partialorder %v3399, 0.0
      %vm3843 = vcmp.gt.f32.partialorder %v3448, 0.0
      %vm3844 = vcmp.gt.f32.partialorder %v3497, 0.0
      %vm3845 = vcmp.gt.f32.partialorder %v3546, 0.0
      %vm3846 = vcmp.gt.f32.partialorder %v2422, 0.0
      %vm3847 = vcmp.gt.f32.partialorder %v2471, 0.0
      %vm3848 = vcmp.gt.f32.partialorder %v2520, 0.0
      %vm3849 = vcmp.gt.f32.partialorder %v2569, 0.0
      %vm3850 = vcmp.gt.f32.partialorder %v2618, 0.0
      %vm3851 = vcmp.gt.f32.partialorder %v2667, 0.0
      %vm3852 = vcmp.gt.f32.partialorder %v2716, 0.0
      %vm3853 = vcmp.gt.f32.partialorder %v2765, 0.0
      %vm3854 = vcmp.gt.f32.partialorder %v2814, 0.0
      %vm3855 = vcmp.gt.f32.partialorder %v2863, 0.0
      %vm3856 = vcmp.gt.f32.partialorder %v2912, 0.0
      %vm3857 = vcmp.gt.f32.partialorder %v2961, 0.0
      %vm3858 = vcmp.gt.f32.partialorder %v3010, 0.0
      %vm3859 = vcmp.gt.f32.partialorder %v3059, 0.0
      %vm3860 = vcmp.gt.f32.partialorder %v3108, 0.0
      %vm3861 = vcmp.gt.f32.partialorder %v3157, 0.0
      %vm3862 = vcmp.gt.f32.partialorder %v3206, 0.0
      %vm3863 = vcmp.gt.f32.partialorder %v3255, 0.0
      %vm3864 = vcmp.gt.f32.partialorder %v3304, 0.0
      %vm3865 = vcmp.gt.f32.partialorder %v3353, 0.0
      %vm3866 = vcmp.gt.f32.partialorder %v3402, 0.0
      %vm3867 = vcmp.gt.f32.partialorder %v3451, 0.0
      %vm3868 = vcmp.gt.f32.partialorder %v3500, 0.0
      %vm3869 = vcmp.gt.f32.partialorder %v3549, 0.0
      %vm3870 = vcmp.gt.f32.partialorder %v2424, 0.0
      %vm3871 = vcmp.gt.f32.partialorder %v2473, 0.0
      %vm3872 = vcmp.gt.f32.partialorder %v2522, 0.0
      %vm3873 = vcmp.gt.f32.partialorder %v2571, 0.0
      %vm3874 = vcmp.gt.f32.partialorder %v2620, 0.0
      %vm3875 = vcmp.gt.f32.partialorder %v2669, 0.0
      %vm3876 = vcmp.gt.f32.partialorder %v2718, 0.0
      %vm3877 = vcmp.gt.f32.partialorder %v2767, 0.0
      %vm3878 = vcmp.gt.f32.partialorder %v2816, 0.0
      %vm3879 = vcmp.gt.f32.partialorder %v2865, 0.0
      %vm3880 = vcmp.gt.f32.partialorder %v2914, 0.0
      %vm3881 = vcmp.gt.f32.partialorder %v2963, 0.0
      %vm3882 = vcmp.gt.f32.partialorder %v3012, 0.0
      %vm3883 = vcmp.gt.f32.partialorder %v3061, 0.0
      %vm3884 = vcmp.gt.f32.partialorder %v3110, 0.0
      %vm3885 = vcmp.gt.f32.partialorder %v3159, 0.0
      %vm3886 = vcmp.gt.f32.partialorder %v3208, 0.0
      %vm3887 = vcmp.gt.f32.partialorder %v3257, 0.0
      %vm3888 = vcmp.gt.f32.partialorder %v3306, 0.0
      %vm3889 = vcmp.gt.f32.partialorder %v3355, 0.0
      %vm3890 = vcmp.gt.f32.partialorder %v3404, 0.0
      %vm3891 = vcmp.gt.f32.partialorder %v3453, 0.0
      %vm3892 = vcmp.gt.f32.partialorder %v3502, 0.0
      %vm3893 = vcmp.gt.f32.partialorder %v3551, 0.0
      %vm3894 = vcmp.gt.f32.partialorder %v2427, 0.0
      %vm3895 = vcmp.gt.f32.partialorder %v2476, 0.0
      %vm3896 = vcmp.gt.f32.partialorder %v2525, 0.0
      %vm3897 = vcmp.gt.f32.partialorder %v2574, 0.0
      %vm3898 = vcmp.gt.f32.partialorder %v2623, 0.0
      %vm3899 = vcmp.gt.f32.partialorder %v2672, 0.0
      %vm3900 = vcmp.gt.f32.partialorder %v2721, 0.0
      %vm3901 = vcmp.gt.f32.partialorder %v2770, 0.0
      %vm3902 = vcmp.gt.f32.partialorder %v2819, 0.0
      %vm3903 = vcmp.gt.f32.partialorder %v2868, 0.0
      %vm3904 = vcmp.gt.f32.partialorder %v2917, 0.0
      %vm3905 = vcmp.gt.f32.partialorder %v2966, 0.0
      %vm3906 = vcmp.gt.f32.partialorder %v3015, 0.0
      %vm3907 = vcmp.gt.f32.partialorder %v3064, 0.0
      %vm3908 = vcmp.gt.f32.partialorder %v3113, 0.0
      %vm3909 = vcmp.gt.f32.partialorder %v3162, 0.0
      %vm3910 = vcmp.gt.f32.partialorder %v3211, 0.0
      %vm3911 = vcmp.gt.f32.partialorder %v3260, 0.0
      %vm3912 = vcmp.gt.f32.partialorder %v3309, 0.0
      %vm3913 = vcmp.gt.f32.partialorder %v3358, 0.0
      %vm3914 = vcmp.gt.f32.partialorder %v3407, 0.0
      %vm3915 = vcmp.gt.f32.partialorder %v3456, 0.0
      %vm3916 = vcmp.gt.f32.partialorder %v3505, 0.0
      %vm3917 = vcmp.gt.f32.partialorder %v3554, 0.0
      %vm3918 = vcmp.gt.f32.partialorder %v2429, 0.0
      %vm3919 = vcmp.gt.f32.partialorder %v2478, 0.0
      %vm3920 = vcmp.gt.f32.partialorder %v2527, 0.0
      %vm3921 = vcmp.gt.f32.partialorder %v2576, 0.0
      %vm3922 = vcmp.gt.f32.partialorder %v2625, 0.0
      %vm3923 = vcmp.gt.f32.partialorder %v2674, 0.0
      %vm3924 = vcmp.gt.f32.partialorder %v2723, 0.0
      %vm3925 = vcmp.gt.f32.partialorder %v2772, 0.0
      %vm3926 = vcmp.gt.f32.partialorder %v2821, 0.0
      %vm3927 = vcmp.gt.f32.partialorder %v2870, 0.0
      %vm3928 = vcmp.gt.f32.partialorder %v2919, 0.0
      %vm3929 = vcmp.gt.f32.partialorder %v2968, 0.0
      %vm3930 = vcmp.gt.f32.partialorder %v3017, 0.0
      %vm3931 = vcmp.gt.f32.partialorder %v3066, 0.0
      %vm3932 = vcmp.gt.f32.partialorder %v3115, 0.0
      %vm3933 = vcmp.gt.f32.partialorder %v3164, 0.0
      %vm3934 = vcmp.gt.f32.partialorder %v3213, 0.0
      %vm3935 = vcmp.gt.f32.partialorder %v3262, 0.0
      %vm3936 = vcmp.gt.f32.partialorder %v3311, 0.0
      %vm3937 = vcmp.gt.f32.partialorder %v3360, 0.0
      %vm3938 = vcmp.gt.f32.partialorder %v3409, 0.0
      %vm3939 = vcmp.gt.f32.partialorder %v3458, 0.0
      %vm3940 = vcmp.gt.f32.partialorder %v3507, 0.0
      %vm3941 = vcmp.gt.f32.partialorder %v3556, 0.0
      %v3942 = vmul.f32 %v2392, 0.02
      %v3943 = vmul.f32 %v2441, 0.02
      %v3944 = vmul.f32 %v2490, 0.02
      %v3945 = vmul.f32 %v2539, 0.02
      %v3946 = vmul.f32 %v2588, 0.02
      %v3947 = vmul.f32 %v2637, 0.02
      %v3948 = vmul.f32 %v2686, 0.02
      %v3949 = vmul.f32 %v2735, 0.02
      %v3950 = vmul.f32 %v2784, 0.02
      %v3951 = vmul.f32 %v2833, 0.02
      %v3952 = vmul.f32 %v2882, 0.02
      %v3953 = vmul.f32 %v2931, 0.02
      %v3954 = vmul.f32 %v2980, 0.02
      %v3955 = vmul.f32 %v3029, 0.02
      %v3956 = vmul.f32 %v3078, 0.02
      %v3957 = vmul.f32 %v3127, 0.02
      %v3958 = vmul.f32 %v3176, 0.02
      %v3959 = vmul.f32 %v3225, 0.02
      %v3960 = vmul.f32 %v3274, 0.02
      %v3961 = vmul.f32 %v3323, 0.02
      %v3962 = vmul.f32 %v3372, 0.02
      %v3963 = vmul.f32 %v3421, 0.02
      %v3964 = vmul.f32 %v3470, 0.02
      %v3965 = vmul.f32 %v3519, 0.02
      %v3966 = vmul.f32 %v2394, 0.02
      %v3967 = vmul.f32 %v2443, 0.02
      %v3968 = vmul.f32 %v2492, 0.02
      %v3969 = vmul.f32 %v2541, 0.02
      %v3970 = vmul.f32 %v2590, 0.02
      %v3971 = vmul.f32 %v2639, 0.02
      %v3972 = vmul.f32 %v2688, 0.02
      %v3973 = vmul.f32 %v2737, 0.02
      %v3974 = vmul.f32 %v2786, 0.02
      %v3975 = vmul.f32 %v2835, 0.02
      %v3976 = vmul.f32 %v2884, 0.02
      %v3977 = vmul.f32 %v2933, 0.02
      %v3978 = vmul.f32 %v2982, 0.02
      %v3979 = vmul.f32 %v3031, 0.02
      %v3980 = vmul.f32 %v3080, 0.02
      %v3981 = vmul.f32 %v3129, 0.02
      %v3982 = vmul.f32 %v3178, 0.02
      %v3983 = vmul.f32 %v3227, 0.02
      %v3984 = vmul.f32 %v3276, 0.02
      %v3985 = vmul.f32 %v3325, 0.02
      %v3986 = vmul.f32 %v3374, 0.02
      %v3987 = vmul.f32 %v3423, 0.02
      %v3988 = vmul.f32 %v3472, 0.02
      %v3989 = vmul.f32 %v3521, 0.02
      %v3990 = vmul.f32 %v2397, 0.02
      %v3991 = vmul.f32 %v2446, 0.02
      %v3992 = vmul.f32 %v2495, 0.02
      %v3993 = vmul.f32 %v2544, 0.02
      %v3994 = vmul.f32 %v2593, 0.02
      %v3995 = vmul.f32 %v2642, 0.02
      %v3996 = vmul.f32 %v2691, 0.02
      %v3997 = vmul.f32 %v2740, 0.02
      %v3998 = vmul.f32 %v2789, 0.02
      %v3999 = vmul.f32 %v2838, 0.02
      %v4000 = vmul.f32 %v2887, 0.02
      %v4001 = vmul.f32 %v2936, 0.02
      %v4002 = vmul.f32 %v2985, 0.02
      %v4003 = vmul.f32 %v3034, 0.02
      %v4004 = vmul.f32 %v3083, 0.02
      %v4005 = vmul.f32 %v3132, 0.02
      %v4006 = vmul.f32 %v3181, 0.02
      %v4007 = vmul.f32 %v3230, 0.02
      %v4008 = vmul.f32 %v3279, 0.02
      %v4009 = vmul.f32 %v3328, 0.02
      %v4010 = vmul.f32 %v3377, 0.02
      %v4011 = vmul.f32 %v3426, 0.02
      %v4012 = vmul.f32 %v3475, 0.02
      %v4013 = vmul.f32 %v3524, 0.02
      %v4014 = vmul.f32 %v2399, 0.02
      %v4015 = vmul.f32 %v2448, 0.02
      %v4016 = vmul.f32 %v2497, 0.02
      %v4017 = vmul.f32 %v2546, 0.02
      %v4018 = vmul.f32 %v2595, 0.02
      %v4019 = vmul.f32 %v2644, 0.02
      %v4020 = vmul.f32 %v2693, 0.02
      %v4021 = vmul.f32 %v2742, 0.02
      %v4022 = vmul.f32 %v2791, 0.02
      %v4023 = vmul.f32 %v2840, 0.02
      %v4024 = vmul.f32 %v2889, 0.02
      %v4025 = vmul.f32 %v2938, 0.02
      %v4026 = vmul.f32 %v2987, 0.02
      %v4027 = vmul.f32 %v3036, 0.02
      %v4028 = vmul.f32 %v3085, 0.02
      %v4029 = vmul.f32 %v3134, 0.02
      %v4030 = vmul.f32 %v3183, 0.02
      %v4031 = vmul.f32 %v3232, 0.02
      %v4032 = vmul.f32 %v3281, 0.02
      %v4033 = vmul.f32 %v3330, 0.02
      %v4034 = vmul.f32 %v3379, 0.02
      %v4035 = vmul.f32 %v3428, 0.02
      %v4036 = vmul.f32 %v3477, 0.02
      %v4037 = vmul.f32 %v3526, 0.02
      %v4038 = vmul.f32 %v2402, 0.02
      %v4039 = vmul.f32 %v2451, 0.02
      %v4040 = vmul.f32 %v2500, 0.02
      %v4041 = vmul.f32 %v2549, 0.02
      %v4042 = vmul.f32 %v2598, 0.02
      %v4043 = vmul.f32 %v2647, 0.02
      %v4044 = vmul.f32 %v2696, 0.02
      %v4045 = vmul.f32 %v2745, 0.02
      %v4046 = vmul.f32 %v2794, 0.02
      %v4047 = vmul.f32 %v2843, 0.02
      %v4048 = vmul.f32 %v2892, 0.02
      %v4049 = vmul.f32 %v2941, 0.02
      %v4050 = vmul.f32 %v2990, 0.02
      %v4051 = vmul.f32 %v3039, 0.02
      %v4052 = vmul.f32 %v3088, 0.02
      %v4053 = vmul.f32 %v3137, 0.02
      %v4054 = vmul.f32 %v3186, 0.02
      %v4055 = vmul.f32 %v3235, 0.02
      %v4056 = vmul.f32 %v3284, 0.02
      %v4057 = vmul.f32 %v3333, 0.02
      %v4058 = vmul.f32 %v3382, 0.02
      %v4059 = vmul.f32 %v3431, 0.02
      %v4060 = vmul.f32 %v3480, 0.02
      %v4061 = vmul.f32 %v3529, 0.02
      %v4062 = vmul.f32 %v2404, 0.02
      %v4063 = vmul.f32 %v2453, 0.02
      %v4064 = vmul.f32 %v2502, 0.02
      %v4065 = vmul.f32 %v2551, 0.02
      %v4066 = vmul.f32 %v2600, 0.02
      %v4067 = vmul.f32 %v2649, 0.02
      %v4068 = vmul.f32 %v2698, 0.02
      %v4069 = vmul.f32 %v2747, 0.02
      %v4070 = vmul.f32 %v2796, 0.02
      %v4071 = vmul.f32 %v2845, 0.02
      %v4072 = vmul.f32 %v2894, 0.02
      %v4073 = vmul.f32 %v2943, 0.02
      %v4074 = vmul.f32 %v2992, 0.02
      %v4075 = vmul.f32 %v3041, 0.02
      %v4076 = vmul.f32 %v3090, 0.02
      %v4077 = vmul.f32 %v3139, 0.02
      %v4078 = vmul.f32 %v3188, 0.02
      %v4079 = vmul.f32 %v3237, 0.02
      %v4080 = vmul.f32 %v3286, 0.02
      %v4081 = vmul.f32 %v3335, 0.02
      %v4082 = vmul.f32 %v3384, 0.02
      %v4083 = vmul.f32 %v3433, 0.02
      %v4084 = vmul.f32 %v3482, 0.02
      %v4085 = vmul.f32 %v3531, 0.02
      %v4086 = vmul.f32 %v2407, 0.02
      %v4087 = vmul.f32 %v2456, 0.02
      %v4088 = vmul.f32 %v2505, 0.02
      %v4089 = vmul.f32 %v2554, 0.02
      %v4090 = vmul.f32 %v2603, 0.02
      %v4091 = vmul.f32 %v2652, 0.02
      %v4092 = vmul.f32 %v2701, 0.02
      %v4093 = vmul.f32 %v2750, 0.02
      %v4094 = vmul.f32 %v2799, 0.02
      %v4095 = vmul.f32 %v2848, 0.02
      %v4096 = vmul.f32 %v2897, 0.02
      %v4097 = vmul.f32 %v2946, 0.02
      %v4098 = vmul.f32 %v2995, 0.02
      %v4099 = vmul.f32 %v3044, 0.02
      %v4100 = vmul.f32 %v3093, 0.02
      %v4101 = vmul.f32 %v3142, 0.02
      %v4102 = vmul.f32 %v3191, 0.02
      %v4103 = vmul.f32 %v3240, 0.02
      %v4104 = vmul.f32 %v3289, 0.02
      %v4105 = vmul.f32 %v3338, 0.02
      %v4106 = vmul.f32 %v3387, 0.02
      %v4107 = vmul.f32 %v3436, 0.02
      %v4108 = vmul.f32 %v3485, 0.02
      %v4109 = vmul.f32 %v3534, 0.02
      %v4110 = vmul.f32 %v2409, 0.02
      %v4111 = vmul.f32 %v2458, 0.02
      %v4112 = vmul.f32 %v2507, 0.02
      %v4113 = vmul.f32 %v2556, 0.02
      %v4114 = vmul.f32 %v2605, 0.02
      %v4115 = vmul.f32 %v2654, 0.02
      %v4116 = vmul.f32 %v2703, 0.02
      %v4117 = vmul.f32 %v2752, 0.02
      %v4118 = vmul.f32 %v2801, 0.02
      %v4119 = vmul.f32 %v2850, 0.02
      %v4120 = vmul.f32 %v2899, 0.02
      %v4121 = vmul.f32 %v2948, 0.02
      %v4122 = vmul.f32 %v2997, 0.02
      %v4123 = vmul.f32 %v3046, 0.02
      %v4124 = vmul.f32 %v3095, 0.02
      %v4125 = vmul.f32 %v3144, 0.02
      %v4126 = vmul.f32 %v3193, 0.02
      %v4127 = vmul.f32 %v3242, 0.02
      %v4128 = vmul.f32 %v3291, 0.02
      %v4129 = vmul.f32 %v3340, 0.02
      %v4130 = vmul.f32 %v3389, 0.02
      %v4131 = vmul.f32 %v3438, 0.02
      %v4132 = vmul.f32 %v3487, 0.02
      %v4133 = vmul.f32 %v3536, 0.02
      %v4134 = vmul.f32 %v2412, 0.02
      %v4135 = vmul.f32 %v2461, 0.02
      %v4136 = vmul.f32 %v2510, 0.02
      %v4137 = vmul.f32 %v2559, 0.02
      %v4138 = vmul.f32 %v2608, 0.02
      %v4139 = vmul.f32 %v2657, 0.02
      %v4140 = vmul.f32 %v2706, 0.02
      %v4141 = vmul.f32 %v2755, 0.02
      %v4142 = vmul.f32 %v2804, 0.02
      %v4143 = vmul.f32 %v2853, 0.02
      %v4144 = vmul.f32 %v2902, 0.02
      %v4145 = vmul.f32 %v2951, 0.02
      %v4146 = vmul.f32 %v3000, 0.02
      %v4147 = vmul.f32 %v3049, 0.02
      %v4148 = vmul.f32 %v3098, 0.02
      %v4149 = vmul.f32 %v3147, 0.02
      %v4150 = vmul.f32 %v3196, 0.02
      %v4151 = vmul.f32 %v3245, 0.02
      %v4152 = vmul.f32 %v3294, 0.02
      %v4153 = vmul.f32 %v3343, 0.02
      %v4154 = vmul.f32 %v3392, 0.02
      %v4155 = vmul.f32 %v3441, 0.02
      %v4156 = vmul.f32 %v3490, 0.02
      %v4157 = vmul.f32 %v3539, 0.02
      %v4158 = vmul.f32 %v2414, 0.02
      %v4159 = vmul.f32 %v2463, 0.02
      %v4160 = vmul.f32 %v2512, 0.02
      %v4161 = vmul.f32 %v2561, 0.02
      %v4162 = vmul.f32 %v2610, 0.02
      %v4163 = vmul.f32 %v2659, 0.02
      %v4164 = vmul.f32 %v2708, 0.02
      %v4165 = vmul.f32 %v2757, 0.02
      %v4166 = vmul.f32 %v2806, 0.02
      %v4167 = vmul.f32 %v2855, 0.02
      %v4168 = vmul.f32 %v2904, 0.02
      %v4169 = vmul.f32 %v2953, 0.02
      %v4170 = vmul.f32 %v3002, 0.02
      %v4171 = vmul.f32 %v3051, 0.02
      %v4172 = vmul.f32 %v3100, 0.02
      %v4173 = vmul.f32 %v3149, 0.02
      %v4174 = vmul.f32 %v3198, 0.02
      %v4175 = vmul.f32 %v3247, 0.02
      %v4176 = vmul.f32 %v3296, 0.02
      %v4177 = vmul.f32 %v3345, 0.02
      %v4178 = vmul.f32 %v3394, 0.02
      %v4179 = vmul.f32 %v3443, 0.02
      %v4180 = vmul.f32 %v3492, 0.02
      %v4181 = vmul.f32 %v3541, 0.02
      %v4182 = vmul.f32 %v2417, 0.02
      %v4183 = vmul.f32 %v2466, 0.02
      %v4184 = vmul.f32 %v2515, 0.02
      %v4185 = vmul.f32 %v2564, 0.02
      %v4186 = vmul.f32 %v2613, 0.02
      %v4187 = vmul.f32 %v2662, 0.02
      %v4188 = vmul.f32 %v2711, 0.02
      %v4189 = vmul.f32 %v2760, 0.02
      %v4190 = vmul.f32 %v2809, 0.02
      %v4191 = vmul.f32 %v2858, 0.02
      %v4192 = vmul.f32 %v2907, 0.02
      %v4193 = vmul.f32 %v2956, 0.02
      %v4194 = vmul.f32 %v3005, 0.02
      %v4195 = vmul.f32 %v3054, 0.02
      %v4196 = vmul.f32 %v3103, 0.02
      %v4197 = vmul.f32 %v3152, 0.02
      %v4198 = vmul.f32 %v3201, 0.02
      %v4199 = vmul.f32 %v3250, 0.02
      %v4200 = vmul.f32 %v3299, 0.02
      %v4201 = vmul.f32 %v3348, 0.02
      %v4202 = vmul.f32 %v3397, 0.02
      %v4203 = vmul.f32 %v3446, 0.02
      %v4204 = vmul.f32 %v3495, 0.02
      %v4205 = vmul.f32 %v3544, 0.02
      %v4206 = vmul.f32 %v2419, 0.02
      %v4207 = vmul.f32 %v2468, 0.02
      %v4208 = vmul.f32 %v2517, 0.02
      %v4209 = vmul.f32 %v2566, 0.02
      %v4210 = vmul.f32 %v2615, 0.02
      %v4211 = vmul.f32 %v2664, 0.02
      %v4212 = vmul.f32 %v2713, 0.02
      %v4213 = vmul.f32 %v2762, 0.02
      %v4214 = vmul.f32 %v2811, 0.02
      %v4215 = vmul.f32 %v2860, 0.02
      %v4216 = vmul.f32 %v2909, 0.02
      %v4217 = vmul.f32 %v2958, 0.02
      %v4218 = vmul.f32 %v3007, 0.02
      %v4219 = vmul.f32 %v3056, 0.02
      %v4220 = vmul.f32 %v3105, 0.02
      %v4221 = vmul.f32 %v3154, 0.02
      %v4222 = vmul.f32 %v3203, 0.02
      %v4223 = vmul.f32 %v3252, 0.02
      %v4224 = vmul.f32 %v3301, 0.02
      %v4225 = vmul.f32 %v3350, 0.02
      %v4226 = vmul.f32 %v3399, 0.02
      %v4227 = vmul.f32 %v3448, 0.02
      %v4228 = vmul.f32 %v3497, 0.02
      %v4229 = vmul.f32 %v3546, 0.02
      %v4230 = vmul.f32 %v2422, 0.02
      %v4231 = vmul.f32 %v2471, 0.02
      %v4232 = vmul.f32 %v2520, 0.02
      %v4233 = vmul.f32 %v2569, 0.02
      %v4234 = vmul.f32 %v2618, 0.02
      %v4235 = vmul.f32 %v2667, 0.02
      %v4236 = vmul.f32 %v2716, 0.02
      %v4237 = vmul.f32 %v2765, 0.02
      %v4238 = vmul.f32 %v2814, 0.02
      %v4239 = vmul.f32 %v2863, 0.02
      %v4240 = vmul.f32 %v2912, 0.02
      %v4241 = vmul.f32 %v2961, 0.02
      %v4242 = vmul.f32 %v3010, 0.02
      %v4243 = vmul.f32 %v3059, 0.02
      %v4244 = vmul.f32 %v3108, 0.02
      %v4245 = vmul.f32 %v3157, 0.02
      %v4246 = vmul.f32 %v3206, 0.02
      %v4247 = vmul.f32 %v3255, 0.02
      %v4248 = vmul.f32 %v3304, 0.02
      %v4249 = vmul.f32 %v3353, 0.02
      %v4250 = vmul.f32 %v3402, 0.02
      %v4251 = vmul.f32 %v3451, 0.02
      %v4252 = vmul.f32 %v3500, 0.02
      %v4253 = vmul.f32 %v3549, 0.02
      %v4254 = vmul.f32 %v2424, 0.02
      %v4255 = vmul.f32 %v2473, 0.02
      %v4256 = vmul.f32 %v2522, 0.02
      %v4257 = vmul.f32 %v2571, 0.02
      %v4258 = vmul.f32 %v2620, 0.02
      %v4259 = vmul.f32 %v2669, 0.02
      %v4260 = vmul.f32 %v2718, 0.02
      %v4261 = vmul.f32 %v2767, 0.02
      %v4262 = vmul.f32 %v2816, 0.02
      %v4263 = vmul.f32 %v2865, 0.02
      %v4264 = vmul.f32 %v2914, 0.02
      %v4265 = vmul.f32 %v2963, 0.02
      %v4266 = vmul.f32 %v3012, 0.02
      %v4267 = vmul.f32 %v3061, 0.02
      %v4268 = vmul.f32 %v3110, 0.02
      %v4269 = vmul.f32 %v3159, 0.02
      %v4270 = vmul.f32 %v3208, 0.02
      %v4271 = vmul.f32 %v3257, 0.02
      %v4272 = vmul.f32 %v3306, 0.02
      %v4273 = vmul.f32 %v3355, 0.02
      %v4274 = vmul.f32 %v3404, 0.02
      %v4275 = vmul.f32 %v3453, 0.02
      %v4276 = vmul.f32 %v3502, 0.02
      %v4277 = vmul.f32 %v3551, 0.02
      %v4278 = vmul.f32 %v2427, 0.02
      %v4279 = vmul.f32 %v2476, 0.02
      %v4280 = vmul.f32 %v2525, 0.02
      %v4281 = vmul.f32 %v2574, 0.02
      %v4282 = vmul.f32 %v2623, 0.02
      %v4283 = vmul.f32 %v2672, 0.02
      %v4284 = vmul.f32 %v2721, 0.02
      %v4285 = vmul.f32 %v2770, 0.02
      %v4286 = vmul.f32 %v2819, 0.02
      %v4287 = vmul.f32 %v2868, 0.02
      %v4288 = vmul.f32 %v2917, 0.02
      %v4289 = vmul.f32 %v2966, 0.02
      %v4290 = vmul.f32 %v3015, 0.02
      %v4291 = vmul.f32 %v3064, 0.02
      %v4292 = vmul.f32 %v3113, 0.02
      %v4293 = vmul.f32 %v3162, 0.02
      %v4294 = vmul.f32 %v3211, 0.02
      %v4295 = vmul.f32 %v3260, 0.02
      %v4296 = vmul.f32 %v3309, 0.02
      %v4297 = vmul.f32 %v3358, 0.02
      %v4298 = vmul.f32 %v3407, 0.02
      %v4299 = vmul.f32 %v3456, 0.02
      %v4300 = vmul.f32 %v3505, 0.02
      %v4301 = vmul.f32 %v3554, 0.02
      %v4302 = vmul.f32 %v2429, 0.02
      %v4303 = vmul.f32 %v2478, 0.02
      %v4304 = vmul.f32 %v2527, 0.02
      %v4305 = vmul.f32 %v2576, 0.02
      %v4306 = vmul.f32 %v2625, 0.02
      %v4307 = vmul.f32 %v2674, 0.02
      %v4308 = vmul.f32 %v2723, 0.02
      %v4309 = vmul.f32 %v2772, 0.02
      %v4310 = vmul.f32 %v2821, 0.02
      %v4311 = vmul.f32 %v2870, 0.02
      %v4312 = vmul.f32 %v2919, 0.02
      %v4313 = vmul.f32 %v2968, 0.02
      %v4314 = vmul.f32 %v3017, 0.02
      %v4315 = vmul.f32 %v3066, 0.02
      %v4316 = vmul.f32 %v3115, 0.02
      %v4317 = vmul.f32 %v3164, 0.02
      %v4318 = vmul.f32 %v3213, 0.02
      %v4319 = vmul.f32 %v3262, 0.02
      %v4320 = vmul.f32 %v3311, 0.02
      %v4321 = vmul.f32 %v3360, 0.02
      %v4322 = vmul.f32 %v3409, 0.02
      %v4323 = vmul.f32 %v3458, 0.02
      %v4324 = vmul.f32 %v3507, 0.02
      %v4325 = vmul.f32 %v3556, 0.02
      %v4326 = vsel %vm3558, %v2392, %v3942
      %v4327 = vsel %vm3559, %v2441, %v3943
      %v4328 = vsel %vm3560, %v2490, %v3944
      %v4329 = vsel %vm3561, %v2539, %v3945
      %v4330 = vsel %vm3562, %v2588, %v3946
      %v4331 = vsel %vm3563, %v2637, %v3947
      %v4332 = vsel %vm3564, %v2686, %v3948
      %v4333 = vsel %vm3565, %v2735, %v3949
      %v4334 = vsel %vm3566, %v2784, %v3950
      %v4335 = vsel %vm3567, %v2833, %v3951
      %v4336 = vsel %vm3568, %v2882, %v3952
      %v4337 = vsel %vm3569, %v2931, %v3953
      %v4338 = vsel %vm3570, %v2980, %v3954
      %v4339 = vsel %vm3571, %v3029, %v3955
      %v4340 = vsel %vm3572, %v3078, %v3956
      %v4341 = vsel %vm3573, %v3127, %v3957
      %v4342 = vsel %vm3574, %v3176, %v3958
      %v4343 = vsel %vm3575, %v3225, %v3959
      %v4344 = vsel %vm3576, %v3274, %v3960
      %v4345 = vsel %vm3577, %v3323, %v3961
      %v4346 = vsel %vm3578, %v3372, %v3962
      %v4347 = vsel %vm3579, %v3421, %v3963
      %v4348 = vsel %vm3580, %v3470, %v3964
      %v4349 = vsel %vm3581, %v3519, %v3965
      %v4350 = vsel %vm3582, %v2394, %v3966
      %v4351 = vsel %vm3583, %v2443, %v3967
      %v4352 = vsel %vm3584, %v2492, %v3968
      %v4353 = vsel %vm3585, %v2541, %v3969
      %v4354 = vsel %vm3586, %v2590, %v3970
      %v4355 = vsel %vm3587, %v2639, %v3971
      %v4356 = vsel %vm3588, %v2688, %v3972
      %v4357 = vsel %vm3589, %v2737, %v3973
      %v4358 = vsel %vm3590, %v2786, %v3974
      %v4359 = vsel %vm3591, %v2835, %v3975
      %v4360 = vsel %vm3592, %v2884, %v3976
      %v4361 = vsel %vm3593, %v2933, %v3977
      %v4362 = vsel %vm3594, %v2982, %v3978
      %v4363 = vsel %vm3595, %v3031, %v3979
      %v4364 = vsel %vm3596, %v3080, %v3980
      %v4365 = vsel %vm3597, %v3129, %v3981
      %v4366 = vsel %vm3598, %v3178, %v3982
      %v4367 = vsel %vm3599, %v3227, %v3983
      %v4368 = vsel %vm3600, %v3276, %v3984
      %v4369 = vsel %vm3601, %v3325, %v3985
      %v4370 = vsel %vm3602, %v3374, %v3986
      %v4371 = vsel %vm3603, %v3423, %v3987
      %v4372 = vsel %vm3604, %v3472, %v3988
      %v4373 = vsel %vm3605, %v3521, %v3989
      %v4374 = vsel %vm3606, %v2397, %v3990
      %v4375 = vsel %vm3607, %v2446, %v3991
      %v4376 = vsel %vm3608, %v2495, %v3992
      %v4377 = vsel %vm3609, %v2544, %v3993
      %v4378 = vsel %vm3610, %v2593, %v3994
      %v4379 = vsel %vm3611, %v2642, %v3995
      %v4380 = vsel %vm3612, %v2691, %v3996
      %v4381 = vsel %vm3613, %v2740, %v3997
      %v4382 = vsel %vm3614, %v2789, %v3998
      %v4383 = vsel %vm3615, %v2838, %v3999
      %v4384 = vsel %vm3616, %v2887, %v4000
      %v4385 = vsel %vm3617, %v2936, %v4001
      %v4386 = vsel %vm3618, %v2985, %v4002
      %v4387 = vsel %vm3619, %v3034, %v4003
      %v4388 = vsel %vm3620, %v3083, %v4004
      %v4389 = vsel %vm3621, %v3132, %v4005
      %v4390 = vsel %vm3622, %v3181, %v4006
      %v4391 = vsel %vm3623, %v3230, %v4007
      %v4392 = vsel %vm3624, %v3279, %v4008
      %v4393 = vsel %vm3625, %v3328, %v4009
      %v4394 = vsel %vm3626, %v3377, %v4010
      %v4395 = vsel %vm3627, %v3426, %v4011
      %v4396 = vsel %vm3628, %v3475, %v4012
      %v4397 = vsel %vm3629, %v3524, %v4013
      %v4398 = vsel %vm3630, %v2399, %v4014
      %v4399 = vsel %vm3631, %v2448, %v4015
      %v4400 = vsel %vm3632, %v2497, %v4016
      %v4401 = vsel %vm3633, %v2546, %v4017
      %v4402 = vsel %vm3634, %v2595, %v4018
      %v4403 = vsel %vm3635, %v2644, %v4019
      %v4404 = vsel %vm3636, %v2693, %v4020
      %v4405 = vsel %vm3637, %v2742, %v4021
      %v4406 = vsel %vm3638, %v2791, %v4022
      %v4407 = vsel %vm3639, %v2840, %v4023
      %v4408 = vsel %vm3640, %v2889, %v4024
      %v4409 = vsel %vm3641, %v2938, %v4025
      %v4410 = vsel %vm3642, %v2987, %v4026
      %v4411 = vsel %vm3643, %v3036, %v4027
      %v4412 = vsel %vm3644, %v3085, %v4028
      %v4413 = vsel %vm3645, %v3134, %v4029
      %v4414 = vsel %vm3646, %v3183, %v4030
      %v4415 = vsel %vm3647, %v3232, %v4031
      %v4416 = vsel %vm3648, %v3281, %v4032
      %v4417 = vsel %vm3649, %v3330, %v4033
      %v4418 = vsel %vm3650, %v3379, %v4034
      %v4419 = vsel %vm3651, %v3428, %v4035
      %v4420 = vsel %vm3652, %v3477, %v4036
      %v4421 = vsel %vm3653, %v3526, %v4037
      %v4422 = vsel %vm3654, %v2402, %v4038
      %v4423 = vsel %vm3655, %v2451, %v4039
      %v4424 = vsel %vm3656, %v2500, %v4040
      %v4425 = vsel %vm3657, %v2549, %v4041
      %v4426 = vsel %vm3658, %v2598, %v4042
      %v4427 = vsel %vm3659, %v2647, %v4043
      %v4428 = vsel %vm3660, %v2696, %v4044
      %v4429 = vsel %vm3661, %v2745, %v4045
      %v4430 = vsel %vm3662, %v2794, %v4046
      %v4431 = vsel %vm3663, %v2843, %v4047
      %v4432 = vsel %vm3664, %v2892, %v4048
      %v4433 = vsel %vm3665, %v2941, %v4049
      %v4434 = vsel %vm3666, %v2990, %v4050
      %v4435 = vsel %vm3667, %v3039, %v4051
      %v4436 = vsel %vm3668, %v3088, %v4052
      %v4437 = vsel %vm3669, %v3137, %v4053
      %v4438 = vsel %vm3670, %v3186, %v4054
      %v4439 = vsel %vm3671, %v3235, %v4055
      %v4440 = vsel %vm3672, %v3284, %v4056
      %v4441 = vsel %vm3673, %v3333, %v4057
      %v4442 = vsel %vm3674, %v3382, %v4058
      %v4443 = vsel %vm3675, %v3431, %v4059
      %v4444 = vsel %vm3676, %v3480, %v4060
      %v4445 = vsel %vm3677, %v3529, %v4061
      %v4446 = vsel %vm3678, %v2404, %v4062
      %v4447 = vsel %vm3679, %v2453, %v4063
      %v4448 = vsel %vm3680, %v2502, %v4064
      %v4449 = vsel %vm3681, %v2551, %v4065
      %v4450 = vsel %vm3682, %v2600, %v4066
      %v4451 = vsel %vm3683, %v2649, %v4067
      %v4452 = vsel %vm3684, %v2698, %v4068
      %v4453 = vsel %vm3685, %v2747, %v4069
      %v4454 = vsel %vm3686, %v2796, %v4070
      %v4455 = vsel %vm3687, %v2845, %v4071
      %v4456 = vsel %vm3688, %v2894, %v4072
      %v4457 = vsel %vm3689, %v2943, %v4073
      %v4458 = vsel %vm3690, %v2992, %v4074
      %v4459 = vsel %vm3691, %v3041, %v4075
      %v4460 = vsel %vm3692, %v3090, %v4076
      %v4461 = vsel %vm3693, %v3139, %v4077
      %v4462 = vsel %vm3694, %v3188, %v4078
      %v4463 = vsel %vm3695, %v3237, %v4079
      %v4464 = vsel %vm3696, %v3286, %v4080
      %v4465 = vsel %vm3697, %v3335, %v4081
      %v4466 = vsel %vm3698, %v3384, %v4082
      %v4467 = vsel %vm3699, %v3433, %v4083
      %v4468 = vsel %vm3700, %v3482, %v4084
      %v4469 = vsel %vm3701, %v3531, %v4085
      %v4470 = vsel %vm3702, %v2407, %v4086
      %v4471 = vsel %vm3703, %v2456, %v4087
      %v4472 = vsel %vm3704, %v2505, %v4088
      %v4473 = vsel %vm3705, %v2554, %v4089
      %v4474 = vsel %vm3706, %v2603, %v4090
      %v4475 = vsel %vm3707, %v2652, %v4091
      %v4476 = vsel %vm3708, %v2701, %v4092
      %v4477 = vsel %vm3709, %v2750, %v4093
      %v4478 = vsel %vm3710, %v2799, %v4094
      %v4479 = vsel %vm3711, %v2848, %v4095
      %v4480 = vsel %vm3712, %v2897, %v4096
      %v4481 = vsel %vm3713, %v2946, %v4097
      %v4482 = vsel %vm3714, %v2995, %v4098
      %v4483 = vsel %vm3715, %v3044, %v4099
      %v4484 = vsel %vm3716, %v3093, %v4100
      %v4485 = vsel %vm3717, %v3142, %v4101
      %v4486 = vsel %vm3718, %v3191, %v4102
      %v4487 = vsel %vm3719, %v3240, %v4103
      %v4488 = vsel %vm3720, %v3289, %v4104
      %v4489 = vsel %vm3721, %v3338, %v4105
      %v4490 = vsel %vm3722, %v3387, %v4106
      %v4491 = vsel %vm3723, %v3436, %v4107
      %v4492 = vsel %vm3724, %v3485, %v4108
      %v4493 = vsel %vm3725, %v3534, %v4109
      %v4494 = vsel %vm3726, %v2409, %v4110
      %v4495 = vsel %vm3727, %v2458, %v4111
      %v4496 = vsel %vm3728, %v2507, %v4112
      %v4497 = vsel %vm3729, %v2556, %v4113
      %v4498 = vsel %vm3730, %v2605, %v4114
      %v4499 = vsel %vm3731, %v2654, %v4115
      %v4500 = vsel %vm3732, %v2703, %v4116
      %v4501 = vsel %vm3733, %v2752, %v4117
      %v4502 = vsel %vm3734, %v2801, %v4118
      %v4503 = vsel %vm3735, %v2850, %v4119
      %v4504 = vsel %vm3736, %v2899, %v4120
      %v4505 = vsel %vm3737, %v2948, %v4121
      %v4506 = vsel %vm3738, %v2997, %v4122
      %v4507 = vsel %vm3739, %v3046, %v4123
      %v4508 = vsel %vm3740, %v3095, %v4124
      %v4509 = vsel %vm3741, %v3144, %v4125
      %v4510 = vsel %vm3742, %v3193, %v4126
      %v4511 = vsel %vm3743, %v3242, %v4127
      %v4512 = vsel %vm3744, %v3291, %v4128
      %v4513 = vsel %vm3745, %v3340, %v4129
      %v4514 = vsel %vm3746, %v3389, %v4130
      %v4515 = vsel %vm3747, %v3438, %v4131
      %v4516 = vsel %vm3748, %v3487, %v4132
      %v4517 = vsel %vm3749, %v3536, %v4133
      %v4518 = vsel %vm3750, %v2412, %v4134
      %v4519 = vsel %vm3751, %v2461, %v4135
      %v4520 = vsel %vm3752, %v2510, %v4136
      %v4521 = vsel %vm3753, %v2559, %v4137
      %v4522 = vsel %vm3754, %v2608, %v4138
      %v4523 = vsel %vm3755, %v2657, %v4139
      %v4524 = vsel %vm3756, %v2706, %v4140
      %v4525 = vsel %vm3757, %v2755, %v4141
      %v4526 = vsel %vm3758, %v2804, %v4142
      %v4527 = vsel %vm3759, %v2853, %v4143
      %v4528 = vsel %vm3760, %v2902, %v4144
      %v4529 = vsel %vm3761, %v2951, %v4145
      %v4530 = vsel %vm3762, %v3000, %v4146
      %v4531 = vsel %vm3763, %v3049, %v4147
      %v4532 = vsel %vm3764, %v3098, %v4148
      %v4533 = vsel %vm3765, %v3147, %v4149
      %v4534 = vsel %vm3766, %v3196, %v4150
      %v4535 = vsel %vm3767, %v3245, %v4151
      %v4536 = vsel %vm3768, %v3294, %v4152
      %v4537 = vsel %vm3769, %v3343, %v4153
      %v4538 = vsel %vm3770, %v3392, %v4154
      %v4539 = vsel %vm3771, %v3441, %v4155
      %v4540 = vsel %vm3772, %v3490, %v4156
      %v4541 = vsel %vm3773, %v3539, %v4157
      %v4542 = vsel %vm3774, %v2414, %v4158
      %v4543 = vsel %vm3775, %v2463, %v4159
      %v4544 = vsel %vm3776, %v2512, %v4160
      %v4545 = vsel %vm3777, %v2561, %v4161
      %v4546 = vsel %vm3778, %v2610, %v4162
      %v4547 = vsel %vm3779, %v2659, %v4163
      %v4548 = vsel %vm3780, %v2708, %v4164
      %v4549 = vsel %vm3781, %v2757, %v4165
      %v4550 = vsel %vm3782, %v2806, %v4166
      %v4551 = vsel %vm3783, %v2855, %v4167
      %v4552 = vsel %vm3784, %v2904, %v4168
      %v4553 = vsel %vm3785, %v2953, %v4169
      %v4554 = vsel %vm3786, %v3002, %v4170
      %v4555 = vsel %vm3787, %v3051, %v4171
      %v4556 = vsel %vm3788, %v3100, %v4172
      %v4557 = vsel %vm3789, %v3149, %v4173
      %v4558 = vsel %vm3790, %v3198, %v4174
      %v4559 = vsel %vm3791, %v3247, %v4175
      %v4560 = vsel %vm3792, %v3296, %v4176
      %v4561 = vsel %vm3793, %v3345, %v4177
      %v4562 = vsel %vm3794, %v3394, %v4178
      %v4563 = vsel %vm3795, %v3443, %v4179
      %v4564 = vsel %vm3796, %v3492, %v4180
      %v4565 = vsel %vm3797, %v3541, %v4181
      %v4566 = vsel %vm3798, %v2417, %v4182
      %v4567 = vsel %vm3799, %v2466, %v4183
      %v4568 = vsel %vm3800, %v2515, %v4184
      %v4569 = vsel %vm3801, %v2564, %v4185
      %v4570 = vsel %vm3802, %v2613, %v4186
      %v4571 = vsel %vm3803, %v2662, %v4187
      %v4572 = vsel %vm3804, %v2711, %v4188
      %v4573 = vsel %vm3805, %v2760, %v4189
      %v4574 = vsel %vm3806, %v2809, %v4190
      %v4575 = vsel %vm3807, %v2858, %v4191
      %v4576 = vsel %vm3808, %v2907, %v4192
      %v4577 = vsel %vm3809, %v2956, %v4193
      %v4578 = vsel %vm3810, %v3005, %v4194
      %v4579 = vsel %vm3811, %v3054, %v4195
      %v4580 = vsel %vm3812, %v3103, %v4196
      %v4581 = vsel %vm3813, %v3152, %v4197
      %v4582 = vsel %vm3814, %v3201, %v4198
      %v4583 = vsel %vm3815, %v3250, %v4199
      %v4584 = vsel %vm3816, %v3299, %v4200
      %v4585 = vsel %vm3817, %v3348, %v4201
      %v4586 = vsel %vm3818, %v3397, %v4202
      %v4587 = vsel %vm3819, %v3446, %v4203
      %v4588 = vsel %vm3820, %v3495, %v4204
      %v4589 = vsel %vm3821, %v3544, %v4205
      %v4590 = vsel %vm3822, %v2419, %v4206
      %v4591 = vsel %vm3823, %v2468, %v4207
      %v4592 = vsel %vm3824, %v2517, %v4208
      %v4593 = vsel %vm3825, %v2566, %v4209
      %v4594 = vsel %vm3826, %v2615, %v4210
      %v4595 = vsel %vm3827, %v2664, %v4211
      %v4596 = vsel %vm3828, %v2713, %v4212
      %v4597 = vsel %vm3829, %v2762, %v4213
      %v4598 = vsel %vm3830, %v2811, %v4214
      %v4599 = vsel %vm3831, %v2860, %v4215
      %v4600 = vsel %vm3832, %v2909, %v4216
      %v4601 = vsel %vm3833, %v2958, %v4217
      %v4602 = vsel %vm3834, %v3007, %v4218
      %v4603 = vsel %vm3835, %v3056, %v4219
      %v4604 = vsel %vm3836, %v3105, %v4220
      %v4605 = vsel %vm3837, %v3154, %v4221
      %v4606 = vsel %vm3838, %v3203, %v4222
      %v4607 = vsel %vm3839, %v3252, %v4223
      %v4608 = vsel %vm3840, %v3301, %v4224
      %v4609 = vsel %vm3841, %v3350, %v4225
      %v4610 = vsel %vm3842, %v3399, %v4226
      %v4611 = vsel %vm3843, %v3448, %v4227
      %v4612 = vsel %vm3844, %v3497, %v4228
      %v4613 = vsel %vm3845, %v3546, %v4229
      %v4614 = vsel %vm3846, %v2422, %v4230
      %v4615 = vsel %vm3847, %v2471, %v4231
      %v4616 = vsel %vm3848, %v2520, %v4232
      %v4617 = vsel %vm3849, %v2569, %v4233
      %v4618 = vsel %vm3850, %v2618, %v4234
      %v4619 = vsel %vm3851, %v2667, %v4235
      %v4620 = vsel %vm3852, %v2716, %v4236
      %v4621 = vsel %vm3853, %v2765, %v4237
      %v4622 = vsel %vm3854, %v2814, %v4238
      %v4623 = vsel %vm3855, %v2863, %v4239
      %v4624 = vsel %vm3856, %v2912, %v4240
      %v4625 = vsel %vm3857, %v2961, %v4241
      %v4626 = vsel %vm3858, %v3010, %v4242
      %v4627 = vsel %vm3859, %v3059, %v4243
      %v4628 = vsel %vm3860, %v3108, %v4244
      %v4629 = vsel %vm3861, %v3157, %v4245
      %v4630 = vsel %vm3862, %v3206, %v4246
      %v4631 = vsel %vm3863, %v3255, %v4247
      %v4632 = vsel %vm3864, %v3304, %v4248
      %v4633 = vsel %vm3865, %v3353, %v4249
      %v4634 = vsel %vm3866, %v3402, %v4250
      %v4635 = vsel %vm3867, %v3451, %v4251
      %v4636 = vsel %vm3868, %v3500, %v4252
      %v4637 = vsel %vm3869, %v3549, %v4253
      %v4638 = vsel %vm3870, %v2424, %v4254
      %v4639 = vsel %vm3871, %v2473, %v4255
      %v4640 = vsel %vm3872, %v2522, %v4256
      %v4641 = vsel %vm3873, %v2571, %v4257
      %v4642 = vsel %vm3874, %v2620, %v4258
      %v4643 = vsel %vm3875, %v2669, %v4259
      %v4644 = vsel %vm3876, %v2718, %v4260
      %v4645 = vsel %vm3877, %v2767, %v4261
      %v4646 = vsel %vm3878, %v2816, %v4262
      %v4647 = vsel %vm3879, %v2865, %v4263
      %v4648 = vsel %vm3880, %v2914, %v4264
      %v4649 = vsel %vm3881, %v2963, %v4265
      %v4650 = vsel %vm3882, %v3012, %v4266
      %v4651 = vsel %vm3883, %v3061, %v4267
      %v4652 = vsel %vm3884, %v3110, %v4268
      %v4653 = vsel %vm3885, %v3159, %v4269
      %v4654 = vsel %vm3886, %v3208, %v4270
      %v4655 = vsel %vm3887, %v3257, %v4271
      %v4656 = vsel %vm3888, %v3306, %v4272
      %v4657 = vsel %vm3889, %v3355, %v4273
      %v4658 = vsel %vm3890, %v3404, %v4274
      %v4659 = vsel %vm3891, %v3453, %v4275
      %v4660 = vsel %vm3892, %v3502, %v4276
      %v4661 = vsel %vm3893, %v3551, %v4277
      %v4662 = vsel %vm3894, %v2427, %v4278
      %v4663 = vsel %vm3895, %v2476, %v4279
      %v4664 = vsel %vm3896, %v2525, %v4280
      %v4665 = vsel %vm3897, %v2574, %v4281
      %v4666 = vsel %vm3898, %v2623, %v4282
      %v4667 = vsel %vm3899, %v2672, %v4283
      %v4668 = vsel %vm3900, %v2721, %v4284
      %v4669 = vsel %vm3901, %v2770, %v4285
      %v4670 = vsel %vm3902, %v2819, %v4286
      %v4671 = vsel %vm3903, %v2868, %v4287
      %v4672 = vsel %vm3904, %v2917, %v4288
      %v4673 = vsel %vm3905, %v2966, %v4289
      %v4674 = vsel %vm3906, %v3015, %v4290
      %v4675 = vsel %vm3907, %v3064, %v4291
      %v4676 = vsel %vm3908, %v3113, %v4292
      %v4677 = vsel %vm3909, %v3162, %v4293
      %v4678 = vsel %vm3910, %v3211, %v4294
      %v4679 = vsel %vm3911, %v3260, %v4295
      %v4680 = vsel %vm3912, %v3309, %v4296
      %v4681 = vsel %vm3913, %v3358, %v4297
      %v4682 = vsel %vm3914, %v3407, %v4298
      %v4683 = vsel %vm3915, %v3456, %v4299
      %v4684 = vsel %vm3916, %v3505, %v4300
      %v4685 = vsel %vm3917, %v3554, %v4301
      %v4686 = vsel %vm3918, %v2429, %v4302
      %v4687 = vsel %vm3919, %v2478, %v4303
      %v4688 = vsel %vm3920, %v2527, %v4304
      %v4689 = vsel %vm3921, %v2576, %v4305
      %v4690 = vsel %vm3922, %v2625, %v4306
      %v4691 = vsel %vm3923, %v2674, %v4307
      %v4692 = vsel %vm3924, %v2723, %v4308
      %v4693 = vsel %vm3925, %v2772, %v4309
      %v4694 = vsel %vm3926, %v2821, %v4310
      %v4695 = vsel %vm3927, %v2870, %v4311
      %v4696 = vsel %vm3928, %v2919, %v4312
      %v4697 = vsel %vm3929, %v2968, %v4313
      %v4698 = vsel %vm3930, %v3017, %v4314
      %v4699 = vsel %vm3931, %v3066, %v4315
      %v4700 = vsel %vm3932, %v3115, %v4316
      %v4701 = vsel %vm3933, %v3164, %v4317
      %v4702 = vsel %vm3934, %v3213, %v4318
      %v4703 = vsel %vm3935, %v3262, %v4319
      %v4704 = vsel %vm3936, %v3311, %v4320
      %v4705 = vsel %vm3937, %v3360, %v4321
      %v4706 = vsel %vm3938, %v3409, %v4322
      %v4707 = vsel %vm3939, %v3458, %v4323
      %v4708 = vsel %vm3940, %v3507, %v4324
      %v4709 = vsel %vm3941, %v3556, %v4325
      %v4710 = vld [vmem:[%s11] sm:$0xf]
      %v4711 = vld [vmem:[%s11 + $0x4] sm:$0xf]
      %v4712 = vld [vmem:[%s11 + $0x8] sm:$0xf]
      %v4713 = vld [vmem:[%s11 + $0xc] sm:$0xf]
      %v4714 = vld [vmem:[%s11 + $0x10] sm:$0xf]
      %v4715 = vld [vmem:[%s11 + $0x14] sm:$0xf]
      %v4716 = vld [vmem:[%s11 + $0x18] sm:$0xf]
      %v4717 = vld [vmem:[%s11 + $0x1c] sm:$0xf]
      %v4718 = vld [vmem:[%s11 + $0x20] sm:$0xf]
      %v4719 = vld [vmem:[%s11 + $0x24] sm:$0xf]
      %v4720 = vld [vmem:[%s11 + $0x28] sm:$0xf]
      %v4721 = vld [vmem:[%s11 + $0x2c] sm:$0xf]
      %v4722 = vld [vmem:[%s11 + $0x30] sm:$0xf]
      %v4723 = vld [vmem:[%s11 + $0x34] sm:$0xf]
      %v4724 = vld [vmem:[%s11 + $0x38] sm:$0xf]
      %v4725 = vld [vmem:[%s11 + $0x3c] sm:$0xf]
      %v4726 = vpack.c.bf16 %v4350, %v4326
      %v4727 = vpack.c.bf16 %v4351, %v4327
      %v4728 = vpack.c.bf16 %v4352, %v4328
      %v4729 = vpack.c.bf16 %v4353, %v4329
      %v4730 = vpack.c.bf16 %v4354, %v4330
      %v4731 = vpack.c.bf16 %v4355, %v4331
      %v4732 = vpack.c.bf16 %v4356, %v4332
      %v4733 = vpack.c.bf16 %v4357, %v4333
      %v4734 = vpack.c.bf16 %v4358, %v4334
      %v4735 = vpack.c.bf16 %v4359, %v4335
      %v4736 = vpack.c.bf16 %v4360, %v4336
      %v4737 = vpack.c.bf16 %v4361, %v4337
      %v4738 = vpack.c.bf16 %v4362, %v4338
      %v4739 = vpack.c.bf16 %v4363, %v4339
      %v4740 = vpack.c.bf16 %v4364, %v4340
      %v4741 = vpack.c.bf16 %v4365, %v4341
      %v4742 = vpack.c.bf16 %v4366, %v4342
      %v4743 = vpack.c.bf16 %v4367, %v4343
      %v4744 = vpack.c.bf16 %v4368, %v4344
      %v4745 = vpack.c.bf16 %v4369, %v4345
      %v4746 = vpack.c.bf16 %v4370, %v4346
      %v4747 = vpack.c.bf16 %v4371, %v4347
      %v4748 = vpack.c.bf16 %v4372, %v4348
      %v4749 = vpack.c.bf16 %v4373, %v4349
      %v4750 = vpack.c.bf16 %v4398, %v4374
      %v4751 = vpack.c.bf16 %v4399, %v4375
      %v4752 = vpack.c.bf16 %v4400, %v4376
      %v4753 = vpack.c.bf16 %v4401, %v4377
      %v4754 = vpack.c.bf16 %v4402, %v4378
      %v4755 = vpack.c.bf16 %v4403, %v4379
      %v4756 = vpack.c.bf16 %v4404, %v4380
      %v4757 = vpack.c.bf16 %v4405, %v4381
      %v4758 = vpack.c.bf16 %v4406, %v4382
      %v4759 = vpack.c.bf16 %v4407, %v4383
      %v4760 = vpack.c.bf16 %v4408, %v4384
      %v4761 = vpack.c.bf16 %v4409, %v4385
      %v4762 = vpack.c.bf16 %v4410, %v4386
      %v4763 = vpack.c.bf16 %v4411, %v4387
      %v4764 = vpack.c.bf16 %v4412, %v4388
      %v4765 = vpack.c.bf16 %v4413, %v4389
      %v4766 = vpack.c.bf16 %v4414, %v4390
      %v4767 = vpack.c.bf16 %v4415, %v4391
      %v4768 = vpack.c.bf16 %v4416, %v4392
      %v4769 = vpack.c.bf16 %v4417, %v4393
      %v4770 = vpack.c.bf16 %v4418, %v4394
      %v4771 = vpack.c.bf16 %v4419, %v4395
      %v4772 = vpack.c.bf16 %v4420, %v4396
      %v4773 = vpack.c.bf16 %v4421, %v4397
      %v4774 = vpack.c.bf16 %v4446, %v4422
      %v4775 = vpack.c.bf16 %v4447, %v4423
      %v4776 = vpack.c.bf16 %v4448, %v4424
      %v4777 = vpack.c.bf16 %v4449, %v4425
      %v4778 = vpack.c.bf16 %v4450, %v4426
      %v4779 = vpack.c.bf16 %v4451, %v4427
      %v4780 = vpack.c.bf16 %v4452, %v4428
      %v4781 = vpack.c.bf16 %v4453, %v4429
      %v4782 = vpack.c.bf16 %v4454, %v4430
      %v4783 = vpack.c.bf16 %v4455, %v4431
      %v4784 = vpack.c.bf16 %v4456, %v4432
      %v4785 = vpack.c.bf16 %v4457, %v4433
      %v4786 = vpack.c.bf16 %v4458, %v4434
      %v4787 = vpack.c.bf16 %v4459, %v4435
      %v4788 = vpack.c.bf16 %v4460, %v4436
      %v4789 = vpack.c.bf16 %v4461, %v4437
      %v4790 = vpack.c.bf16 %v4462, %v4438
      %v4791 = vpack.c.bf16 %v4463, %v4439
      %v4792 = vpack.c.bf16 %v4464, %v4440
      %v4793 = vpack.c.bf16 %v4465, %v4441
      %v4794 = vpack.c.bf16 %v4466, %v4442
      %v4795 = vpack.c.bf16 %v4467, %v4443
      %v4796 = vpack.c.bf16 %v4468, %v4444
      %v4797 = vpack.c.bf16 %v4469, %v4445
      %v4798 = vpack.c.bf16 %v4494, %v4470
      %v4799 = vpack.c.bf16 %v4495, %v4471
      %v4800 = vpack.c.bf16 %v4496, %v4472
      %v4801 = vpack.c.bf16 %v4497, %v4473
      %v4802 = vpack.c.bf16 %v4498, %v4474
      %v4803 = vpack.c.bf16 %v4499, %v4475
      %v4804 = vpack.c.bf16 %v4500, %v4476
      %v4805 = vpack.c.bf16 %v4501, %v4477
      %v4806 = vpack.c.bf16 %v4502, %v4478
      %v4807 = vpack.c.bf16 %v4503, %v4479
      %v4808 = vpack.c.bf16 %v4504, %v4480
      %v4809 = vpack.c.bf16 %v4505, %v4481
      %v4810 = vpack.c.bf16 %v4506, %v4482
      %v4811 = vpack.c.bf16 %v4507, %v4483
      %v4812 = vpack.c.bf16 %v4508, %v4484
      %v4813 = vpack.c.bf16 %v4509, %v4485
      %v4814 = vpack.c.bf16 %v4510, %v4486
      %v4815 = vpack.c.bf16 %v4511, %v4487
      %v4816 = vpack.c.bf16 %v4512, %v4488
      %v4817 = vpack.c.bf16 %v4513, %v4489
      %v4818 = vpack.c.bf16 %v4514, %v4490
      %v4819 = vpack.c.bf16 %v4515, %v4491
      %v4820 = vpack.c.bf16 %v4516, %v4492
      %v4821 = vpack.c.bf16 %v4517, %v4493
      %v4822 = vpack.c.bf16 %v4542, %v4518
      %v4823 = vpack.c.bf16 %v4543, %v4519
      %v4824 = vpack.c.bf16 %v4544, %v4520
      %v4825 = vpack.c.bf16 %v4545, %v4521
      %v4826 = vpack.c.bf16 %v4546, %v4522
      %v4827 = vpack.c.bf16 %v4547, %v4523
      %v4828 = vpack.c.bf16 %v4548, %v4524
      %v4829 = vpack.c.bf16 %v4549, %v4525
      %v4830 = vpack.c.bf16 %v4550, %v4526
      %v4831 = vpack.c.bf16 %v4551, %v4527
      %v4832 = vpack.c.bf16 %v4552, %v4528
      %v4833 = vpack.c.bf16 %v4553, %v4529
      %v4834 = vpack.c.bf16 %v4554, %v4530
      %v4835 = vpack.c.bf16 %v4555, %v4531
      %v4836 = vpack.c.bf16 %v4556, %v4532
      %v4837 = vpack.c.bf16 %v4557, %v4533
      %v4838 = vpack.c.bf16 %v4558, %v4534
      %v4839 = vpack.c.bf16 %v4559, %v4535
      %v4840 = vpack.c.bf16 %v4560, %v4536
      %v4841 = vpack.c.bf16 %v4561, %v4537
      %v4842 = vpack.c.bf16 %v4562, %v4538
      %v4843 = vpack.c.bf16 %v4563, %v4539
      %v4844 = vpack.c.bf16 %v4564, %v4540
      %v4845 = vpack.c.bf16 %v4565, %v4541
      %v4846 = vpack.c.bf16 %v4590, %v4566
      %v4847 = vpack.c.bf16 %v4591, %v4567
      %v4848 = vpack.c.bf16 %v4592, %v4568
      %v4849 = vpack.c.bf16 %v4593, %v4569
      %v4850 = vpack.c.bf16 %v4594, %v4570
      %v4851 = vpack.c.bf16 %v4595, %v4571
      %v4852 = vpack.c.bf16 %v4596, %v4572
      %v4853 = vpack.c.bf16 %v4597, %v4573
      %v4854 = vpack.c.bf16 %v4598, %v4574
      %v4855 = vpack.c.bf16 %v4599, %v4575
      %v4856 = vpack.c.bf16 %v4600, %v4576
      %v4857 = vpack.c.bf16 %v4601, %v4577
      %v4858 = vpack.c.bf16 %v4602, %v4578
      %v4859 = vpack.c.bf16 %v4603, %v4579
      %v4860 = vpack.c.bf16 %v4604, %v4580
      %v4861 = vpack.c.bf16 %v4605, %v4581
      %v4862 = vpack.c.bf16 %v4606, %v4582
      %v4863 = vpack.c.bf16 %v4607, %v4583
      %v4864 = vpack.c.bf16 %v4608, %v4584
      %v4865 = vpack.c.bf16 %v4609, %v4585
      %v4866 = vpack.c.bf16 %v4610, %v4586
      %v4867 = vpack.c.bf16 %v4611, %v4587
      %v4868 = vpack.c.bf16 %v4612, %v4588
      %v4869 = vpack.c.bf16 %v4613, %v4589
      %v4870 = vpack.c.bf16 %v4638, %v4614
      %v4871 = vpack.c.bf16 %v4639, %v4615
      %v4872 = vpack.c.bf16 %v4640, %v4616
      %v4873 = vpack.c.bf16 %v4641, %v4617
      %v4874 = vpack.c.bf16 %v4642, %v4618
      %v4875 = vpack.c.bf16 %v4643, %v4619
      %v4876 = vpack.c.bf16 %v4644, %v4620
      %v4877 = vpack.c.bf16 %v4645, %v4621
      %v4878 = vpack.c.bf16 %v4646, %v4622
      %v4879 = vpack.c.bf16 %v4647, %v4623
      %v4880 = vpack.c.bf16 %v4648, %v4624
      %v4881 = vpack.c.bf16 %v4649, %v4625
      %v4882 = vpack.c.bf16 %v4650, %v4626
      %v4883 = vpack.c.bf16 %v4651, %v4627
      %v4884 = vpack.c.bf16 %v4652, %v4628
      %v4885 = vpack.c.bf16 %v4653, %v4629
      %v4886 = vpack.c.bf16 %v4654, %v4630
      %v4887 = vpack.c.bf16 %v4655, %v4631
      %v4888 = vpack.c.bf16 %v4656, %v4632
      %v4889 = vpack.c.bf16 %v4657, %v4633
      %v4890 = vpack.c.bf16 %v4658, %v4634
      %v4891 = vpack.c.bf16 %v4659, %v4635
      %v4892 = vpack.c.bf16 %v4660, %v4636
      %v4893 = vpack.c.bf16 %v4661, %v4637
      %v4894 = vpack.c.bf16 %v4686, %v4662
      %v4895 = vpack.c.bf16 %v4687, %v4663
      %v4896 = vpack.c.bf16 %v4688, %v4664
      %v4897 = vpack.c.bf16 %v4689, %v4665
      %v4898 = vpack.c.bf16 %v4690, %v4666
      %v4899 = vpack.c.bf16 %v4691, %v4667
      %v4900 = vpack.c.bf16 %v4692, %v4668
      %v4901 = vpack.c.bf16 %v4693, %v4669
      %v4902 = vpack.c.bf16 %v4694, %v4670
      %v4903 = vpack.c.bf16 %v4695, %v4671
      %v4904 = vpack.c.bf16 %v4696, %v4672
      %v4905 = vpack.c.bf16 %v4697, %v4673
      %v4906 = vpack.c.bf16 %v4698, %v4674
      %v4907 = vpack.c.bf16 %v4699, %v4675
      %v4908 = vpack.c.bf16 %v4700, %v4676
      %v4909 = vpack.c.bf16 %v4701, %v4677
      %v4910 = vpack.c.bf16 %v4702, %v4678
      %v4911 = vpack.c.bf16 %v4703, %v4679
      %v4912 = vpack.c.bf16 %v4704, %v4680
      %v4913 = vpack.c.bf16 %v4705, %v4681
      %v4914 = vpack.c.bf16 %v4706, %v4682
      %v4915 = vpack.c.bf16 %v4707, %v4683
      %v4916 = vpack.c.bf16 %v4708, %v4684
      %v4917 = vpack.c.bf16 %v4709, %v4685
      %v4918 = vld [vmem:[%s12] sm:$0xff]
      %v4919 = vld [vmem:[%s12 + $0x8] sm:$0xff]
      %v4920 = vld [vmem:[%s12 + $0x10] sm:$0xff]
      %v4921 = vld [vmem:[%s12 + $0x18] sm:$0xff]
      %v4922 = vld [vmem:[%s12 + $0x20] sm:$0xff]
      %v4923 = vld [vmem:[%s12 + $0x28] sm:$0xff]
      %v4924 = vld [vmem:[%s12 + $0x30] sm:$0xff]
      %v4925 = vld [vmem:[%s12 + $0x38] sm:$0xff]
      %v4926 = vld [vmem:[%s12 + $0x40] sm:$0xff]
      %v4927 = vld [vmem:[%s12 + $0x48] sm:$0xff]
      %v4928 = vld [vmem:[%s12 + $0x50] sm:$0xff]
      %v4929 = vld [vmem:[%s12 + $0x58] sm:$0xff]
      %v4930 = vld [vmem:[%s12 + $0x60] sm:$0xff]
      %v4931 = vld [vmem:[%s12 + $0x68] sm:$0xff]
      %v4932 = vld [vmem:[%s12 + $0x70] sm:$0xff]
      %v4933 = vld [vmem:[%s12 + $0x78] sm:$0xff]
      %4935 = vset.pattern.permute.xlu0 0
      %4936 = vperm.xlu0 %4935, %v4918
      %v4937 = vpop.permute.xlu0 %4936
      %4940 = vset.pattern.permute.xlu0 0
      %4941 = vperm.xlu0 %4940, %v4919
      %v4942 = vpop.permute.xlu0 %4941
      %4945 = vset.pattern.permute.xlu0 0
      %4946 = vperm.xlu0 %4945, %v4920
      %v4947 = vpop.permute.xlu0 %4946
      %4950 = vset.pattern.permute.xlu0 0
      %4951 = vperm.xlu0 %4950, %v4921
      %v4952 = vpop.permute.xlu0 %4951
      %4955 = vset.pattern.permute.xlu0 0
      %4956 = vperm.xlu0 %4955, %v4922
      %v4957 = vpop.permute.xlu0 %4956
      %4960 = vset.pattern.permute.xlu0 0
      %4961 = vperm.xlu0 %4960, %v4923
      %v4962 = vpop.permute.xlu0 %4961
      %4965 = vset.pattern.permute.xlu0 0
      %4966 = vperm.xlu0 %4965, %v4924
      %v4967 = vpop.permute.xlu0 %4966
      %4970 = vset.pattern.permute.xlu0 0
      %4971 = vperm.xlu0 %4970, %v4925
      %v4972 = vpop.permute.xlu0 %4971
      %4975 = vset.pattern.permute.xlu0 0
      %4976 = vperm.xlu0 %4975, %v4926
      %v4977 = vpop.permute.xlu0 %4976
      %4980 = vset.pattern.permute.xlu0 0
      %4981 = vperm.xlu0 %4980, %v4927
      %v4982 = vpop.permute.xlu0 %4981
      %4985 = vset.pattern.permute.xlu0 0
      %4986 = vperm.xlu0 %4985, %v4928
      %v4987 = vpop.permute.xlu0 %4986
      %4990 = vset.pattern.permute.xlu0 0
      %4991 = vperm.xlu0 %4990, %v4929
      %v4992 = vpop.permute.xlu0 %4991
      %4995 = vset.pattern.permute.xlu0 0
      %4996 = vperm.xlu0 %4995, %v4930
      %v4997 = vpop.permute.xlu0 %4996
      %5000 = vset.pattern.permute.xlu0 0
      %5001 = vperm.xlu0 %5000, %v4931
      %v5002 = vpop.permute.xlu0 %5001
      %5005 = vset.pattern.permute.xlu0 0
      %5006 = vperm.xlu0 %5005, %v4932
      %v5007 = vpop.permute.xlu0 %5006
      %5010 = vset.pattern.permute.xlu0 0
      %5011 = vperm.xlu0 %5010, %v4933
      %v5012 = vpop.permute.xlu0 %5011
      %v5030 = vunpack.c.l.b16 %v4710
      %v5031 = vunpack.c.l.b16 %v4711
      %v5032 = vunpack.c.l.b16 %v4712
      %v5033 = vunpack.c.l.b16 %v4713
      %v5034 = vunpack.c.l.b16 %v4714
      %v5035 = vunpack.c.l.b16 %v4715
      %v5036 = vunpack.c.l.b16 %v4716
      %v5037 = vunpack.c.l.b16 %v4717
      %v5038 = vunpack.c.l.b16 %v4718
      %v5039 = vunpack.c.l.b16 %v4719
      %v5040 = vunpack.c.l.b16 %v4720
      %v5041 = vunpack.c.l.b16 %v4721
      %v5042 = vunpack.c.l.b16 %v4722
      %v5043 = vunpack.c.l.b16 %v4723
      %v5044 = vunpack.c.l.b16 %v4724
      %v5045 = vunpack.c.l.b16 %v4725
      %v5046 = vpack.c.b16 %v5031, %v5030
      %v5047 = vpack.c.b16 %v5033, %v5032
      %v5048 = vpack.c.b16 %v5035, %v5034
      %v5049 = vpack.c.b16 %v5037, %v5036
      %v5050 = vpack.c.b16 %v5039, %v5038
      %v5051 = vpack.c.b16 %v5041, %v5040
      %v5052 = vpack.c.b16 %v5043, %v5042
      %v5053 = vpack.c.b16 %v5045, %v5044
      %5062 = vmatpush.bf16.msra.mxu0 %v4894
      %5063 = vmatpush.bf16.msra.mxu0 %v4870
      %5064 = vmatpush.bf16.msra.mxu0 %v4846
      %5065 = vmatpush.bf16.msra.mxu0 %v4822
      %5066 = vmatpush.bf16.msra.mxu0 %v4798
      %5067 = vmatpush.bf16.msra.mxu0 %v4774
      %5068 = vmatpush.bf16.msra.mxu0 %v4750
      %5069 = vmatpush.bf16.msra.mxu0 %v4726
      %5070 = vmatmul.bf16.gmra.mxu0 %v5046
      %v5071 = vpop.f32.mrf.mxu0
      %v5072 = vadd.f32 %v4937, %v5071
      %v5073 = vpop.f32.mrf.mxu0
      %v5074 = vadd.f32 %v4942, %v5073
      %5075 = vmatmul.bf16.gmra.mxu0 %v5047
      %v5076 = vpop.f32.mrf.mxu0
      %v5077 = vadd.f32 %v4947, %v5076
      %v5078 = vpop.f32.mrf.mxu0
      %v5079 = vadd.f32 %v4952, %v5078
      %5080 = vmatmul.bf16.gmra.mxu0 %v5048
      %v5081 = vpop.f32.mrf.mxu0
      %v5082 = vadd.f32 %v4957, %v5081
      %v5083 = vpop.f32.mrf.mxu0
      %v5084 = vadd.f32 %v4962, %v5083
      %5085 = vmatmul.bf16.gmra.mxu0 %v5049
      %v5086 = vpop.f32.mrf.mxu0
      %v5087 = vadd.f32 %v4967, %v5086
      %v5088 = vpop.f32.mrf.mxu0
      %v5089 = vadd.f32 %v4972, %v5088
      %5090 = vmatmul.bf16.gmra.mxu0 %v5050
      %v5091 = vpop.f32.mrf.mxu0
      %v5092 = vadd.f32 %v4977, %v5091
      %v5093 = vpop.f32.mrf.mxu0
      %v5094 = vadd.f32 %v4982, %v5093
      %5095 = vmatmul.bf16.gmra.mxu0 %v5051
      %v5096 = vpop.f32.mrf.mxu0
      %v5097 = vadd.f32 %v4987, %v5096
      %v5098 = vpop.f32.mrf.mxu0
      %v5099 = vadd.f32 %v4992, %v5098
      %5100 = vmatmul.bf16.gmra.mxu0 %v5052
      %v5101 = vpop.f32.mrf.mxu0
      %v5102 = vadd.f32 %v4997, %v5101
      %v5103 = vpop.f32.mrf.mxu0
      %v5104 = vadd.f32 %v5002, %v5103
      %5105 = vmatmul.bf16.gmra.mxu0 %v5053
      %v5106 = vpop.f32.mrf.mxu0
      %v5107 = vadd.f32 %v5007, %v5106
      %v5108 = vpop.f32.mrf.mxu0
      %v5109 = vadd.f32 %v5012, %v5108
      %5110 = vdwg.mxu0
      %5111 = vmatpush.bf16.msra.mxu0 %v4895
      %5112 = vmatpush.bf16.msra.mxu0 %v4871
      %5113 = vmatpush.bf16.msra.mxu0 %v4847
      %5114 = vmatpush.bf16.msra.mxu0 %v4823
      %5115 = vmatpush.bf16.msra.mxu0 %v4799
      %5116 = vmatpush.bf16.msra.mxu0 %v4775
      %5117 = vmatpush.bf16.msra.mxu0 %v4751
      %5118 = vmatpush.bf16.msra.mxu0 %v4727
      %5119 = vmatmul.bf16.gmra.mxu0 %v5046
      %v5120 = vpop.f32.mrf.mxu0
      %v5121 = vadd.f32 %v4937, %v5120
      %v5122 = vpop.f32.mrf.mxu0
      %v5123 = vadd.f32 %v4942, %v5122
      %5124 = vmatmul.bf16.gmra.mxu0 %v5047
      %v5125 = vpop.f32.mrf.mxu0
      %v5126 = vadd.f32 %v4947, %v5125
      %v5127 = vpop.f32.mrf.mxu0
      %v5128 = vadd.f32 %v4952, %v5127
      %5129 = vmatmul.bf16.gmra.mxu0 %v5048
      %v5130 = vpop.f32.mrf.mxu0
      %v5131 = vadd.f32 %v4957, %v5130
      %v5132 = vpop.f32.mrf.mxu0
      %v5133 = vadd.f32 %v4962, %v5132
      %5134 = vmatmul.bf16.gmra.mxu0 %v5049
      %v5135 = vpop.f32.mrf.mxu0
      %v5136 = vadd.f32 %v4967, %v5135
      %v5137 = vpop.f32.mrf.mxu0
      %v5138 = vadd.f32 %v4972, %v5137
      %5139 = vmatmul.bf16.gmra.mxu0 %v5050
      %v5140 = vpop.f32.mrf.mxu0
      %v5141 = vadd.f32 %v4977, %v5140
      %v5142 = vpop.f32.mrf.mxu0
      %v5143 = vadd.f32 %v4982, %v5142
      %5144 = vmatmul.bf16.gmra.mxu0 %v5051
      %v5145 = vpop.f32.mrf.mxu0
      %v5146 = vadd.f32 %v4987, %v5145
      %v5147 = vpop.f32.mrf.mxu0
      %v5148 = vadd.f32 %v4992, %v5147
      %5149 = vmatmul.bf16.gmra.mxu0 %v5052
      %v5150 = vpop.f32.mrf.mxu0
      %v5151 = vadd.f32 %v4997, %v5150
      %v5152 = vpop.f32.mrf.mxu0
      %v5153 = vadd.f32 %v5002, %v5152
      %5154 = vmatmul.bf16.gmra.mxu0 %v5053
      %v5155 = vpop.f32.mrf.mxu0
      %v5156 = vadd.f32 %v5007, %v5155
      %v5157 = vpop.f32.mrf.mxu0
      %v5158 = vadd.f32 %v5012, %v5157
      %5159 = vdwg.mxu0
      %5160 = vmatpush.bf16.msra.mxu0 %v4896
      %5161 = vmatpush.bf16.msra.mxu0 %v4872
      %5162 = vmatpush.bf16.msra.mxu0 %v4848
      %5163 = vmatpush.bf16.msra.mxu0 %v4824
      %5164 = vmatpush.bf16.msra.mxu0 %v4800
      %5165 = vmatpush.bf16.msra.mxu0 %v4776
      %5166 = vmatpush.bf16.msra.mxu0 %v4752
      %5167 = vmatpush.bf16.msra.mxu0 %v4728
      %5168 = vmatmul.bf16.gmra.mxu0 %v5046
      %v5169 = vpop.f32.mrf.mxu0
      %v5170 = vadd.f32 %v4937, %v5169
      %v5171 = vpop.f32.mrf.mxu0
      %v5172 = vadd.f32 %v4942, %v5171
      %5173 = vmatmul.bf16.gmra.mxu0 %v5047
      %v5174 = vpop.f32.mrf.mxu0
      %v5175 = vadd.f32 %v4947, %v5174
      %v5176 = vpop.f32.mrf.mxu0
      %v5177 = vadd.f32 %v4952, %v5176
      %5178 = vmatmul.bf16.gmra.mxu0 %v5048
      %v5179 = vpop.f32.mrf.mxu0
      %v5180 = vadd.f32 %v4957, %v5179
      %v5181 = vpop.f32.mrf.mxu0
      %v5182 = vadd.f32 %v4962, %v5181
      %5183 = vmatmul.bf16.gmra.mxu0 %v5049
      %v5184 = vpop.f32.mrf.mxu0
      %v5185 = vadd.f32 %v4967, %v5184
      %v5186 = vpop.f32.mrf.mxu0
      %v5187 = vadd.f32 %v4972, %v5186
      %5188 = vmatmul.bf16.gmra.mxu0 %v5050
      %v5189 = vpop.f32.mrf.mxu0
      %v5190 = vadd.f32 %v4977, %v5189
      %v5191 = vpop.f32.mrf.mxu0
      %v5192 = vadd.f32 %v4982, %v5191
      %5193 = vmatmul.bf16.gmra.mxu0 %v5051
      %v5194 = vpop.f32.mrf.mxu0
      %v5195 = vadd.f32 %v4987, %v5194
      %v5196 = vpop.f32.mrf.mxu0
      %v5197 = vadd.f32 %v4992, %v5196
      %5198 = vmatmul.bf16.gmra.mxu0 %v5052
      %v5199 = vpop.f32.mrf.mxu0
      %v5200 = vadd.f32 %v4997, %v5199
      %v5201 = vpop.f32.mrf.mxu0
      %v5202 = vadd.f32 %v5002, %v5201
      %5203 = vmatmul.bf16.gmra.mxu0 %v5053
      %v5204 = vpop.f32.mrf.mxu0
      %v5205 = vadd.f32 %v5007, %v5204
      %v5206 = vpop.f32.mrf.mxu0
      %v5207 = vadd.f32 %v5012, %v5206
      %5208 = vdwg.mxu0
      %5209 = vmatpush.bf16.msra.mxu0 %v4897
      %5210 = vmatpush.bf16.msra.mxu0 %v4873
      %5211 = vmatpush.bf16.msra.mxu0 %v4849
      %5212 = vmatpush.bf16.msra.mxu0 %v4825
      %5213 = vmatpush.bf16.msra.mxu0 %v4801
      %5214 = vmatpush.bf16.msra.mxu0 %v4777
      %5215 = vmatpush.bf16.msra.mxu0 %v4753
      %5216 = vmatpush.bf16.msra.mxu0 %v4729
      %5217 = vmatmul.bf16.gmra.mxu0 %v5046
      %v5218 = vpop.f32.mrf.mxu0
      %v5219 = vadd.f32 %v4937, %v5218
      %v5220 = vpop.f32.mrf.mxu0
      %v5221 = vadd.f32 %v4942, %v5220
      %5222 = vmatmul.bf16.gmra.mxu0 %v5047
      %v5223 = vpop.f32.mrf.mxu0
      %v5224 = vadd.f32 %v4947, %v5223
      %v5225 = vpop.f32.mrf.mxu0
      %v5226 = vadd.f32 %v4952, %v5225
      %5227 = vmatmul.bf16.gmra.mxu0 %v5048
      %v5228 = vpop.f32.mrf.mxu0
      %v5229 = vadd.f32 %v4957, %v5228
      %v5230 = vpop.f32.mrf.mxu0
      %v5231 = vadd.f32 %v4962, %v5230
      %5232 = vmatmul.bf16.gmra.mxu0 %v5049
      %v5233 = vpop.f32.mrf.mxu0
      %v5234 = vadd.f32 %v4967, %v5233
      %v5235 = vpop.f32.mrf.mxu0
      %v5236 = vadd.f32 %v4972, %v5235
      %5237 = vmatmul.bf16.gmra.mxu0 %v5050
      %v5238 = vpop.f32.mrf.mxu0
      %v5239 = vadd.f32 %v4977, %v5238
      %v5240 = vpop.f32.mrf.mxu0
      %v5241 = vadd.f32 %v4982, %v5240
      %5242 = vmatmul.bf16.gmra.mxu0 %v5051
      %v5243 = vpop.f32.mrf.mxu0
      %v5244 = vadd.f32 %v4987, %v5243
      %v5245 = vpop.f32.mrf.mxu0
      %v5246 = vadd.f32 %v4992, %v5245
      %5247 = vmatmul.bf16.gmra.mxu0 %v5052
      %v5248 = vpop.f32.mrf.mxu0
      %v5249 = vadd.f32 %v4997, %v5248
      %v5250 = vpop.f32.mrf.mxu0
      %v5251 = vadd.f32 %v5002, %v5250
      %5252 = vmatmul.bf16.gmra.mxu0 %v5053
      %v5253 = vpop.f32.mrf.mxu0
      %v5254 = vadd.f32 %v5007, %v5253
      %v5255 = vpop.f32.mrf.mxu0
      %v5256 = vadd.f32 %v5012, %v5255
      %5257 = vdwg.mxu0
      %5258 = vmatpush.bf16.msra.mxu0 %v4898
      %5259 = vmatpush.bf16.msra.mxu0 %v4874
      %5260 = vmatpush.bf16.msra.mxu0 %v4850
      %5261 = vmatpush.bf16.msra.mxu0 %v4826
      %5262 = vmatpush.bf16.msra.mxu0 %v4802
      %5263 = vmatpush.bf16.msra.mxu0 %v4778
      %5264 = vmatpush.bf16.msra.mxu0 %v4754
      %5265 = vmatpush.bf16.msra.mxu0 %v4730
      %5266 = vmatmul.bf16.gmra.mxu0 %v5046
      %v5267 = vpop.f32.mrf.mxu0
      %v5268 = vadd.f32 %v4937, %v5267
      %v5269 = vpop.f32.mrf.mxu0
      %v5270 = vadd.f32 %v4942, %v5269
      %5271 = vmatmul.bf16.gmra.mxu0 %v5047
      %v5272 = vpop.f32.mrf.mxu0
      %v5273 = vadd.f32 %v4947, %v5272
      %v5274 = vpop.f32.mrf.mxu0
      %v5275 = vadd.f32 %v4952, %v5274
      %5276 = vmatmul.bf16.gmra.mxu0 %v5048
      %v5277 = vpop.f32.mrf.mxu0
      %v5278 = vadd.f32 %v4957, %v5277
      %v5279 = vpop.f32.mrf.mxu0
      %v5280 = vadd.f32 %v4962, %v5279
      %5281 = vmatmul.bf16.gmra.mxu0 %v5049
      %v5282 = vpop.f32.mrf.mxu0
      %v5283 = vadd.f32 %v4967, %v5282
      %v5284 = vpop.f32.mrf.mxu0
      %v5285 = vadd.f32 %v4972, %v5284
      %5286 = vmatmul.bf16.gmra.mxu0 %v5050
      %v5287 = vpop.f32.mrf.mxu0
      %v5288 = vadd.f32 %v4977, %v5287
      %v5289 = vpop.f32.mrf.mxu0
      %v5290 = vadd.f32 %v4982, %v5289
      %5291 = vmatmul.bf16.gmra.mxu0 %v5051
      %v5292 = vpop.f32.mrf.mxu0
      %v5293 = vadd.f32 %v4987, %v5292
      %v5294 = vpop.f32.mrf.mxu0
      %v5295 = vadd.f32 %v4992, %v5294
      %5296 = vmatmul.bf16.gmra.mxu0 %v5052
      %v5297 = vpop.f32.mrf.mxu0
      %v5298 = vadd.f32 %v4997, %v5297
      %v5299 = vpop.f32.mrf.mxu0
      %v5300 = vadd.f32 %v5002, %v5299
      %5301 = vmatmul.bf16.gmra.mxu0 %v5053
      %v5302 = vpop.f32.mrf.mxu0
      %v5303 = vadd.f32 %v5007, %v5302
      %v5304 = vpop.f32.mrf.mxu0
      %v5305 = vadd.f32 %v5012, %v5304
      %5306 = vdwg.mxu0
      %5307 = vmatpush.bf16.msra.mxu0 %v4899
      %5308 = vmatpush.bf16.msra.mxu0 %v4875
      %5309 = vmatpush.bf16.msra.mxu0 %v4851
      %5310 = vmatpush.bf16.msra.mxu0 %v4827
      %5311 = vmatpush.bf16.msra.mxu0 %v4803
      %5312 = vmatpush.bf16.msra.mxu0 %v4779
      %5313 = vmatpush.bf16.msra.mxu0 %v4755
      %5314 = vmatpush.bf16.msra.mxu0 %v4731
      %5315 = vmatmul.bf16.gmra.mxu0 %v5046
      %v5316 = vpop.f32.mrf.mxu0
      %v5317 = vadd.f32 %v4937, %v5316
      %v5318 = vpop.f32.mrf.mxu0
      %v5319 = vadd.f32 %v4942, %v5318
      %5320 = vmatmul.bf16.gmra.mxu0 %v5047
      %v5321 = vpop.f32.mrf.mxu0
      %v5322 = vadd.f32 %v4947, %v5321
      %v5323 = vpop.f32.mrf.mxu0
      %v5324 = vadd.f32 %v4952, %v5323
      %5325 = vmatmul.bf16.gmra.mxu0 %v5048
      %v5326 = vpop.f32.mrf.mxu0
      %v5327 = vadd.f32 %v4957, %v5326
      %v5328 = vpop.f32.mrf.mxu0
      %v5329 = vadd.f32 %v4962, %v5328
      %5330 = vmatmul.bf16.gmra.mxu0 %v5049
      %v5331 = vpop.f32.mrf.mxu0
      %v5332 = vadd.f32 %v4967, %v5331
      %v5333 = vpop.f32.mrf.mxu0
      %v5334 = vadd.f32 %v4972, %v5333
      %5335 = vmatmul.bf16.gmra.mxu0 %v5050
      %v5336 = vpop.f32.mrf.mxu0
      %v5337 = vadd.f32 %v4977, %v5336
      %v5338 = vpop.f32.mrf.mxu0
      %v5339 = vadd.f32 %v4982, %v5338
      %5340 = vmatmul.bf16.gmra.mxu0 %v5051
      %v5341 = vpop.f32.mrf.mxu0
      %v5342 = vadd.f32 %v4987, %v5341
      %v5343 = vpop.f32.mrf.mxu0
      %v5344 = vadd.f32 %v4992, %v5343
      %5345 = vmatmul.bf16.gmra.mxu0 %v5052
      %v5346 = vpop.f32.mrf.mxu0
      %v5347 = vadd.f32 %v4997, %v5346
      %v5348 = vpop.f32.mrf.mxu0
      %v5349 = vadd.f32 %v5002, %v5348
      %5350 = vmatmul.bf16.gmra.mxu0 %v5053
      %v5351 = vpop.f32.mrf.mxu0
      %v5352 = vadd.f32 %v5007, %v5351
      %v5353 = vpop.f32.mrf.mxu0
      %v5354 = vadd.f32 %v5012, %v5353
      %5355 = vdwg.mxu0
      %5356 = vmatpush.bf16.msra.mxu0 %v4900
      %5357 = vmatpush.bf16.msra.mxu0 %v4876
      %5358 = vmatpush.bf16.msra.mxu0 %v4852
      %5359 = vmatpush.bf16.msra.mxu0 %v4828
      %5360 = vmatpush.bf16.msra.mxu0 %v4804
      %5361 = vmatpush.bf16.msra.mxu0 %v4780
      %5362 = vmatpush.bf16.msra.mxu0 %v4756
      %5363 = vmatpush.bf16.msra.mxu0 %v4732
      %5364 = vmatmul.bf16.gmra.mxu0 %v5046
      %v5365 = vpop.f32.mrf.mxu0
      %v5366 = vadd.f32 %v4937, %v5365
      %v5367 = vpop.f32.mrf.mxu0
      %v5368 = vadd.f32 %v4942, %v5367
      %5369 = vmatmul.bf16.gmra.mxu0 %v5047
      %v5370 = vpop.f32.mrf.mxu0
      %v5371 = vadd.f32 %v4947, %v5370
      %v5372 = vpop.f32.mrf.mxu0
      %v5373 = vadd.f32 %v4952, %v5372
      %5374 = vmatmul.bf16.gmra.mxu0 %v5048
      %v5375 = vpop.f32.mrf.mxu0
      %v5376 = vadd.f32 %v4957, %v5375
      %v5377 = vpop.f32.mrf.mxu0
      %v5378 = vadd.f32 %v4962, %v5377
      %5379 = vmatmul.bf16.gmra.mxu0 %v5049
      %v5380 = vpop.f32.mrf.mxu0
      %v5381 = vadd.f32 %v4967, %v5380
      %v5382 = vpop.f32.mrf.mxu0
      %v5383 = vadd.f32 %v4972, %v5382
      %5384 = vmatmul.bf16.gmra.mxu0 %v5050
      %v5385 = vpop.f32.mrf.mxu0
      %v5386 = vadd.f32 %v4977, %v5385
      %v5387 = vpop.f32.mrf.mxu0
      %v5388 = vadd.f32 %v4982, %v5387
      %5389 = vmatmul.bf16.gmra.mxu0 %v5051
      %v5390 = vpop.f32.mrf.mxu0
      %v5391 = vadd.f32 %v4987, %v5390
      %v5392 = vpop.f32.mrf.mxu0
      %v5393 = vadd.f32 %v4992, %v5392
      %5394 = vmatmul.bf16.gmra.mxu0 %v5052
      %v5395 = vpop.f32.mrf.mxu0
      %v5396 = vadd.f32 %v4997, %v5395
      %v5397 = vpop.f32.mrf.mxu0
      %v5398 = vadd.f32 %v5002, %v5397
      %5399 = vmatmul.bf16.gmra.mxu0 %v5053
      %v5400 = vpop.f32.mrf.mxu0
      %v5401 = vadd.f32 %v5007, %v5400
      %v5402 = vpop.f32.mrf.mxu0
      %v5403 = vadd.f32 %v5012, %v5402
      %5404 = vdwg.mxu0
      %5405 = vmatpush.bf16.msra.mxu0 %v4901
      %5406 = vmatpush.bf16.msra.mxu0 %v4877
      %5407 = vmatpush.bf16.msra.mxu0 %v4853
      %5408 = vmatpush.bf16.msra.mxu0 %v4829
      %5409 = vmatpush.bf16.msra.mxu0 %v4805
      %5410 = vmatpush.bf16.msra.mxu0 %v4781
      %5411 = vmatpush.bf16.msra.mxu0 %v4757
      %5412 = vmatpush.bf16.msra.mxu0 %v4733
      %5413 = vmatmul.bf16.gmra.mxu0 %v5046
      %v5414 = vpop.f32.mrf.mxu0
      %v5415 = vadd.f32 %v4937, %v5414
      %v5416 = vpop.f32.mrf.mxu0
      %v5417 = vadd.f32 %v4942, %v5416
      %5418 = vmatmul.bf16.gmra.mxu0 %v5047
      %v5419 = vpop.f32.mrf.mxu0
      %v5420 = vadd.f32 %v4947, %v5419
      %v5421 = vpop.f32.mrf.mxu0
      %v5422 = vadd.f32 %v4952, %v5421
      %5423 = vmatmul.bf16.gmra.mxu0 %v5048
      %v5424 = vpop.f32.mrf.mxu0
      %v5425 = vadd.f32 %v4957, %v5424
      %v5426 = vpop.f32.mrf.mxu0
      %v5427 = vadd.f32 %v4962, %v5426
      %5428 = vmatmul.bf16.gmra.mxu0 %v5049
      %v5429 = vpop.f32.mrf.mxu0
      %v5430 = vadd.f32 %v4967, %v5429
      %v5431 = vpop.f32.mrf.mxu0
      %v5432 = vadd.f32 %v4972, %v5431
      %5433 = vmatmul.bf16.gmra.mxu0 %v5050
      %v5434 = vpop.f32.mrf.mxu0
      %v5435 = vadd.f32 %v4977, %v5434
      %v5436 = vpop.f32.mrf.mxu0
      %v5437 = vadd.f32 %v4982, %v5436
      %5438 = vmatmul.bf16.gmra.mxu0 %v5051
      %v5439 = vpop.f32.mrf.mxu0
      %v5440 = vadd.f32 %v4987, %v5439
      %v5441 = vpop.f32.mrf.mxu0
      %v5442 = vadd.f32 %v4992, %v5441
      %5443 = vmatmul.bf16.gmra.mxu0 %v5052
      %v5444 = vpop.f32.mrf.mxu0
      %v5445 = vadd.f32 %v4997, %v5444
      %v5446 = vpop.f32.mrf.mxu0
      %v5447 = vadd.f32 %v5002, %v5446
      %5448 = vmatmul.bf16.gmra.mxu0 %v5053
      %v5449 = vpop.f32.mrf.mxu0
      %v5450 = vadd.f32 %v5007, %v5449
      %v5451 = vpop.f32.mrf.mxu0
      %v5452 = vadd.f32 %v5012, %v5451
      %5453 = vdwg.mxu0
      %5454 = vmatpush.bf16.msra.mxu0 %v4902
      %5455 = vmatpush.bf16.msra.mxu0 %v4878
      %5456 = vmatpush.bf16.msra.mxu0 %v4854
      %5457 = vmatpush.bf16.msra.mxu0 %v4830
      %5458 = vmatpush.bf16.msra.mxu0 %v4806
      %5459 = vmatpush.bf16.msra.mxu0 %v4782
      %5460 = vmatpush.bf16.msra.mxu0 %v4758
      %5461 = vmatpush.bf16.msra.mxu0 %v4734
      %5462 = vmatmul.bf16.gmra.mxu0 %v5046
      %v5463 = vpop.f32.mrf.mxu0
      %v5464 = vadd.f32 %v4937, %v5463
      %v5465 = vpop.f32.mrf.mxu0
      %v5466 = vadd.f32 %v4942, %v5465
      %5467 = vmatmul.bf16.gmra.mxu0 %v5047
      %v5468 = vpop.f32.mrf.mxu0
      %v5469 = vadd.f32 %v4947, %v5468
      %v5470 = vpop.f32.mrf.mxu0
      %v5471 = vadd.f32 %v4952, %v5470
      %5472 = vmatmul.bf16.gmra.mxu0 %v5048
      %v5473 = vpop.f32.mrf.mxu0
      %v5474 = vadd.f32 %v4957, %v5473
      %v5475 = vpop.f32.mrf.mxu0
      %v5476 = vadd.f32 %v4962, %v5475
      %5477 = vmatmul.bf16.gmra.mxu0 %v5049
      %v5478 = vpop.f32.mrf.mxu0
      %v5479 = vadd.f32 %v4967, %v5478
      %v5480 = vpop.f32.mrf.mxu0
      %v5481 = vadd.f32 %v4972, %v5480
      %5482 = vmatmul.bf16.gmra.mxu0 %v5050
      %v5483 = vpop.f32.mrf.mxu0
      %v5484 = vadd.f32 %v4977, %v5483
      %v5485 = vpop.f32.mrf.mxu0
      %v5486 = vadd.f32 %v4982, %v5485
      %5487 = vmatmul.bf16.gmra.mxu0 %v5051
      %v5488 = vpop.f32.mrf.mxu0
      %v5489 = vadd.f32 %v4987, %v5488
      %v5490 = vpop.f32.mrf.mxu0
      %v5491 = vadd.f32 %v4992, %v5490
      %5492 = vmatmul.bf16.gmra.mxu0 %v5052
      %v5493 = vpop.f32.mrf.mxu0
      %v5494 = vadd.f32 %v4997, %v5493
      %v5495 = vpop.f32.mrf.mxu0
      %v5496 = vadd.f32 %v5002, %v5495
      %5497 = vmatmul.bf16.gmra.mxu0 %v5053
      %v5498 = vpop.f32.mrf.mxu0
      %v5499 = vadd.f32 %v5007, %v5498
      %v5500 = vpop.f32.mrf.mxu0
      %v5501 = vadd.f32 %v5012, %v5500
      %5502 = vdwg.mxu0
      %5503 = vmatpush.bf16.msra.mxu0 %v4903
      %5504 = vmatpush.bf16.msra.mxu0 %v4879
      %5505 = vmatpush.bf16.msra.mxu0 %v4855
      %5506 = vmatpush.bf16.msra.mxu0 %v4831
      %5507 = vmatpush.bf16.msra.mxu0 %v4807
      %5508 = vmatpush.bf16.msra.mxu0 %v4783
      %5509 = vmatpush.bf16.msra.mxu0 %v4759
      %5510 = vmatpush.bf16.msra.mxu0 %v4735
      %5511 = vmatmul.bf16.gmra.mxu0 %v5046
      %v5512 = vpop.f32.mrf.mxu0
      %v5513 = vadd.f32 %v4937, %v5512
      %v5514 = vpop.f32.mrf.mxu0
      %v5515 = vadd.f32 %v4942, %v5514
      %5516 = vmatmul.bf16.gmra.mxu0 %v5047
      %v5517 = vpop.f32.mrf.mxu0
      %v5518 = vadd.f32 %v4947, %v5517
      %v5519 = vpop.f32.mrf.mxu0
      %v5520 = vadd.f32 %v4952, %v5519
      %5521 = vmatmul.bf16.gmra.mxu0 %v5048
      %v5522 = vpop.f32.mrf.mxu0
      %v5523 = vadd.f32 %v4957, %v5522
      %v5524 = vpop.f32.mrf.mxu0
      %v5525 = vadd.f32 %v4962, %v5524
      %5526 = vmatmul.bf16.gmra.mxu0 %v5049
      %v5527 = vpop.f32.mrf.mxu0
      %v5528 = vadd.f32 %v4967, %v5527
      %v5529 = vpop.f32.mrf.mxu0
      %v5530 = vadd.f32 %v4972, %v5529
      %5531 = vmatmul.bf16.gmra.mxu0 %v5050
      %v5532 = vpop.f32.mrf.mxu0
      %v5533 = vadd.f32 %v4977, %v5532
      %v5534 = vpop.f32.mrf.mxu0
      %v5535 = vadd.f32 %v4982, %v5534
      %5536 = vmatmul.bf16.gmra.mxu0 %v5051
      %v5537 = vpop.f32.mrf.mxu0
      %v5538 = vadd.f32 %v4987, %v5537
      %v5539 = vpop.f32.mrf.mxu0
      %v5540 = vadd.f32 %v4992, %v5539
      %5541 = vmatmul.bf16.gmra.mxu0 %v5052
      %v5542 = vpop.f32.mrf.mxu0
      %v5543 = vadd.f32 %v4997, %v5542
      %v5544 = vpop.f32.mrf.mxu0
      %v5545 = vadd.f32 %v5002, %v5544
      %5546 = vmatmul.bf16.gmra.mxu0 %v5053
      %v5547 = vpop.f32.mrf.mxu0
      %v5548 = vadd.f32 %v5007, %v5547
      %v5549 = vpop.f32.mrf.mxu0
      %v5550 = vadd.f32 %v5012, %v5549
      %5551 = vdwg.mxu0
      %5552 = vmatpush.bf16.msra.mxu0 %v4904
      %5553 = vmatpush.bf16.msra.mxu0 %v4880
      %5554 = vmatpush.bf16.msra.mxu0 %v4856
      %5555 = vmatpush.bf16.msra.mxu0 %v4832
      %5556 = vmatpush.bf16.msra.mxu0 %v4808
      %5557 = vmatpush.bf16.msra.mxu0 %v4784
      %5558 = vmatpush.bf16.msra.mxu0 %v4760
      %5559 = vmatpush.bf16.msra.mxu0 %v4736
      %5560 = vmatmul.bf16.gmra.mxu0 %v5046
      %v5561 = vpop.f32.mrf.mxu0
      %v5562 = vadd.f32 %v4937, %v5561
      %v5563 = vpop.f32.mrf.mxu0
      %v5564 = vadd.f32 %v4942, %v5563
      %5565 = vmatmul.bf16.gmra.mxu0 %v5047
      %v5566 = vpop.f32.mrf.mxu0
      %v5567 = vadd.f32 %v4947, %v5566
      %v5568 = vpop.f32.mrf.mxu0
      %v5569 = vadd.f32 %v4952, %v5568
      %5570 = vmatmul.bf16.gmra.mxu0 %v5048
      %v5571 = vpop.f32.mrf.mxu0
      %v5572 = vadd.f32 %v4957, %v5571
      %v5573 = vpop.f32.mrf.mxu0
      %v5574 = vadd.f32 %v4962, %v5573
      %5575 = vmatmul.bf16.gmra.mxu0 %v5049
      %v5576 = vpop.f32.mrf.mxu0
      %v5577 = vadd.f32 %v4967, %v5576
      %v5578 = vpop.f32.mrf.mxu0
      %v5579 = vadd.f32 %v4972, %v5578
      %5580 = vmatmul.bf16.gmra.mxu0 %v5050
      %v5581 = vpop.f32.mrf.mxu0
      %v5582 = vadd.f32 %v4977, %v5581
      %v5583 = vpop.f32.mrf.mxu0
      %v5584 = vadd.f32 %v4982, %v5583
      %5585 = vmatmul.bf16.gmra.mxu0 %v5051
      %v5586 = vpop.f32.mrf.mxu0
      %v5587 = vadd.f32 %v4987, %v5586
      %v5588 = vpop.f32.mrf.mxu0
      %v5589 = vadd.f32 %v4992, %v5588
      %5590 = vmatmul.bf16.gmra.mxu0 %v5052
      %v5591 = vpop.f32.mrf.mxu0
      %v5592 = vadd.f32 %v4997, %v5591
      %v5593 = vpop.f32.mrf.mxu0
      %v5594 = vadd.f32 %v5002, %v5593
      %5595 = vmatmul.bf16.gmra.mxu0 %v5053
      %v5596 = vpop.f32.mrf.mxu0
      %v5597 = vadd.f32 %v5007, %v5596
      %v5598 = vpop.f32.mrf.mxu0
      %v5599 = vadd.f32 %v5012, %v5598
      %5600 = vdwg.mxu0
      %5601 = vmatpush.bf16.msra.mxu0 %v4905
      %5602 = vmatpush.bf16.msra.mxu0 %v4881
      %5603 = vmatpush.bf16.msra.mxu0 %v4857
      %5604 = vmatpush.bf16.msra.mxu0 %v4833
      %5605 = vmatpush.bf16.msra.mxu0 %v4809
      %5606 = vmatpush.bf16.msra.mxu0 %v4785
      %5607 = vmatpush.bf16.msra.mxu0 %v4761
      %5608 = vmatpush.bf16.msra.mxu0 %v4737
      %5609 = vmatmul.bf16.gmra.mxu0 %v5046
      %v5610 = vpop.f32.mrf.mxu0
      %v5611 = vadd.f32 %v4937, %v5610
      %v5612 = vpop.f32.mrf.mxu0
      %v5613 = vadd.f32 %v4942, %v5612
      %5614 = vmatmul.bf16.gmra.mxu0 %v5047
      %v5615 = vpop.f32.mrf.mxu0
      %v5616 = vadd.f32 %v4947, %v5615
      %v5617 = vpop.f32.mrf.mxu0
      %v5618 = vadd.f32 %v4952, %v5617
      %5619 = vmatmul.bf16.gmra.mxu0 %v5048
      %v5620 = vpop.f32.mrf.mxu0
      %v5621 = vadd.f32 %v4957, %v5620
      %v5622 = vpop.f32.mrf.mxu0
      %v5623 = vadd.f32 %v4962, %v5622
      %5624 = vmatmul.bf16.gmra.mxu0 %v5049
      %v5625 = vpop.f32.mrf.mxu0
      %v5626 = vadd.f32 %v4967, %v5625
      %v5627 = vpop.f32.mrf.mxu0
      %v5628 = vadd.f32 %v4972, %v5627
      %5629 = vmatmul.bf16.gmra.mxu0 %v5050
      %v5630 = vpop.f32.mrf.mxu0
      %v5631 = vadd.f32 %v4977, %v5630
      %v5632 = vpop.f32.mrf.mxu0
      %v5633 = vadd.f32 %v4982, %v5632
      %5634 = vmatmul.bf16.gmra.mxu0 %v5051
      %v5635 = vpop.f32.mrf.mxu0
      %v5636 = vadd.f32 %v4987, %v5635
      %v5637 = vpop.f32.mrf.mxu0
      %v5638 = vadd.f32 %v4992, %v5637
      %5639 = vmatmul.bf16.gmra.mxu0 %v5052
      %v5640 = vpop.f32.mrf.mxu0
      %v5641 = vadd.f32 %v4997, %v5640
      %v5642 = vpop.f32.mrf.mxu0
      %v5643 = vadd.f32 %v5002, %v5642
      %5644 = vmatmul.bf16.gmra.mxu0 %v5053
      %v5645 = vpop.f32.mrf.mxu0
      %v5646 = vadd.f32 %v5007, %v5645
      %v5647 = vpop.f32.mrf.mxu0
      %v5648 = vadd.f32 %v5012, %v5647
      %5649 = vdwg.mxu0
      %5650 = vmatpush.bf16.msra.mxu0 %v4906
      %5651 = vmatpush.bf16.msra.mxu0 %v4882
      %5652 = vmatpush.bf16.msra.mxu0 %v4858
      %5653 = vmatpush.bf16.msra.mxu0 %v4834
      %5654 = vmatpush.bf16.msra.mxu0 %v4810
      %5655 = vmatpush.bf16.msra.mxu0 %v4786
      %5656 = vmatpush.bf16.msra.mxu0 %v4762
      %5657 = vmatpush.bf16.msra.mxu0 %v4738
      %5658 = vmatmul.bf16.gmra.mxu0 %v5046
      %v5659 = vpop.f32.mrf.mxu0
      %v5660 = vadd.f32 %v4937, %v5659
      %v5661 = vpop.f32.mrf.mxu0
      %v5662 = vadd.f32 %v4942, %v5661
      %5663 = vmatmul.bf16.gmra.mxu0 %v5047
      %v5664 = vpop.f32.mrf.mxu0
      %v5665 = vadd.f32 %v4947, %v5664
      %v5666 = vpop.f32.mrf.mxu0
      %v5667 = vadd.f32 %v4952, %v5666
      %5668 = vmatmul.bf16.gmra.mxu0 %v5048
      %v5669 = vpop.f32.mrf.mxu0
      %v5670 = vadd.f32 %v4957, %v5669
      %v5671 = vpop.f32.mrf.mxu0
      %v5672 = vadd.f32 %v4962, %v5671
      %5673 = vmatmul.bf16.gmra.mxu0 %v5049
      %v5674 = vpop.f32.mrf.mxu0
      %v5675 = vadd.f32 %v4967, %v5674
      %v5676 = vpop.f32.mrf.mxu0
      %v5677 = vadd.f32 %v4972, %v5676
      %5678 = vmatmul.bf16.gmra.mxu0 %v5050
      %v5679 = vpop.f32.mrf.mxu0
      %v5680 = vadd.f32 %v4977, %v5679
      %v5681 = vpop.f32.mrf.mxu0
      %v5682 = vadd.f32 %v4982, %v5681
      %5683 = vmatmul.bf16.gmra.mxu0 %v5051
      %v5684 = vpop.f32.mrf.mxu0
      %v5685 = vadd.f32 %v4987, %v5684
      %v5686 = vpop.f32.mrf.mxu0
      %v5687 = vadd.f32 %v4992, %v5686
      %5688 = vmatmul.bf16.gmra.mxu0 %v5052
      %v5689 = vpop.f32.mrf.mxu0
      %v5690 = vadd.f32 %v4997, %v5689
      %v5691 = vpop.f32.mrf.mxu0
      %v5692 = vadd.f32 %v5002, %v5691
      %5693 = vmatmul.bf16.gmra.mxu0 %v5053
      %v5694 = vpop.f32.mrf.mxu0
      %v5695 = vadd.f32 %v5007, %v5694
      %v5696 = vpop.f32.mrf.mxu0
      %v5697 = vadd.f32 %v5012, %v5696
      %5698 = vdwg.mxu0
      %5699 = vmatpush.bf16.msra.mxu0 %v4907
      %5700 = vmatpush.bf16.msra.mxu0 %v4883
      %5701 = vmatpush.bf16.msra.mxu0 %v4859
      %5702 = vmatpush.bf16.msra.mxu0 %v4835
      %5703 = vmatpush.bf16.msra.mxu0 %v4811
      %5704 = vmatpush.bf16.msra.mxu0 %v4787
      %5705 = vmatpush.bf16.msra.mxu0 %v4763
      %5706 = vmatpush.bf16.msra.mxu0 %v4739
      %5707 = vmatmul.bf16.gmra.mxu0 %v5046
      %v5708 = vpop.f32.mrf.mxu0
      %v5709 = vadd.f32 %v4937, %v5708
      %v5710 = vpop.f32.mrf.mxu0
      %v5711 = vadd.f32 %v4942, %v5710
      %5712 = vmatmul.bf16.gmra.mxu0 %v5047
      %v5713 = vpop.f32.mrf.mxu0
      %v5714 = vadd.f32 %v4947, %v5713
      %v5715 = vpop.f32.mrf.mxu0
      %v5716 = vadd.f32 %v4952, %v5715
      %5717 = vmatmul.bf16.gmra.mxu0 %v5048
      %v5718 = vpop.f32.mrf.mxu0
      %v5719 = vadd.f32 %v4957, %v5718
      %v5720 = vpop.f32.mrf.mxu0
      %v5721 = vadd.f32 %v4962, %v5720
      %5722 = vmatmul.bf16.gmra.mxu0 %v5049
      %v5723 = vpop.f32.mrf.mxu0
      %v5724 = vadd.f32 %v4967, %v5723
      %v5725 = vpop.f32.mrf.mxu0
      %v5726 = vadd.f32 %v4972, %v5725
      %5727 = vmatmul.bf16.gmra.mxu0 %v5050
      %v5728 = vpop.f32.mrf.mxu0
      %v5729 = vadd.f32 %v4977, %v5728
      %v5730 = vpop.f32.mrf.mxu0
      %v5731 = vadd.f32 %v4982, %v5730
      %5732 = vmatmul.bf16.gmra.mxu0 %v5051
      %v5733 = vpop.f32.mrf.mxu0
      %v5734 = vadd.f32 %v4987, %v5733
      %v5735 = vpop.f32.mrf.mxu0
      %v5736 = vadd.f32 %v4992, %v5735
      %5737 = vmatmul.bf16.gmra.mxu0 %v5052
      %v5738 = vpop.f32.mrf.mxu0
      %v5739 = vadd.f32 %v4997, %v5738
      %v5740 = vpop.f32.mrf.mxu0
      %v5741 = vadd.f32 %v5002, %v5740
      %5742 = vmatmul.bf16.gmra.mxu0 %v5053
      %v5743 = vpop.f32.mrf.mxu0
      %v5744 = vadd.f32 %v5007, %v5743
      %v5745 = vpop.f32.mrf.mxu0
      %v5746 = vadd.f32 %v5012, %v5745
      %5747 = vdwg.mxu0
      %5748 = vmatpush.bf16.msra.mxu0 %v4908
      %5749 = vmatpush.bf16.msra.mxu0 %v4884
      %5750 = vmatpush.bf16.msra.mxu0 %v4860
      %5751 = vmatpush.bf16.msra.mxu0 %v4836
      %5752 = vmatpush.bf16.msra.mxu0 %v4812
      %5753 = vmatpush.bf16.msra.mxu0 %v4788
      %5754 = vmatpush.bf16.msra.mxu0 %v4764
      %5755 = vmatpush.bf16.msra.mxu0 %v4740
      %5756 = vmatmul.bf16.gmra.mxu0 %v5046
      %v5757 = vpop.f32.mrf.mxu0
      %v5758 = vadd.f32 %v4937, %v5757
      %v5759 = vpop.f32.mrf.mxu0
      %v5760 = vadd.f32 %v4942, %v5759
      %5761 = vmatmul.bf16.gmra.mxu0 %v5047
      %v5762 = vpop.f32.mrf.mxu0
      %v5763 = vadd.f32 %v4947, %v5762
      %v5764 = vpop.f32.mrf.mxu0
      %v5765 = vadd.f32 %v4952, %v5764
      %5766 = vmatmul.bf16.gmra.mxu0 %v5048
      %v5767 = vpop.f32.mrf.mxu0
      %v5768 = vadd.f32 %v4957, %v5767
      %v5769 = vpop.f32.mrf.mxu0
      %v5770 = vadd.f32 %v4962, %v5769
      %5771 = vmatmul.bf16.gmra.mxu0 %v5049
      %v5772 = vpop.f32.mrf.mxu0
      %v5773 = vadd.f32 %v4967, %v5772
      %v5774 = vpop.f32.mrf.mxu0
      %v5775 = vadd.f32 %v4972, %v5774
      %5776 = vmatmul.bf16.gmra.mxu0 %v5050
      %v5777 = vpop.f32.mrf.mxu0
      %v5778 = vadd.f32 %v4977, %v5777
      %v5779 = vpop.f32.mrf.mxu0
      %v5780 = vadd.f32 %v4982, %v5779
      %5781 = vmatmul.bf16.gmra.mxu0 %v5051
      %v5782 = vpop.f32.mrf.mxu0
      %v5783 = vadd.f32 %v4987, %v5782
      %v5784 = vpop.f32.mrf.mxu0
      %v5785 = vadd.f32 %v4992, %v5784
      %5786 = vmatmul.bf16.gmra.mxu0 %v5052
      %v5787 = vpop.f32.mrf.mxu0
      %v5788 = vadd.f32 %v4997, %v5787
      %v5789 = vpop.f32.mrf.mxu0
      %v5790 = vadd.f32 %v5002, %v5789
      %5791 = vmatmul.bf16.gmra.mxu0 %v5053
      %v5792 = vpop.f32.mrf.mxu0
      %v5793 = vadd.f32 %v5007, %v5792
      %v5794 = vpop.f32.mrf.mxu0
      %v5795 = vadd.f32 %v5012, %v5794
      %5796 = vdwg.mxu0
      %5797 = vmatpush.bf16.msra.mxu0 %v4909
      %5798 = vmatpush.bf16.msra.mxu0 %v4885
      %5799 = vmatpush.bf16.msra.mxu0 %v4861
      %5800 = vmatpush.bf16.msra.mxu0 %v4837
      %5801 = vmatpush.bf16.msra.mxu0 %v4813
      %5802 = vmatpush.bf16.msra.mxu0 %v4789
      %5803 = vmatpush.bf16.msra.mxu0 %v4765
      %5804 = vmatpush.bf16.msra.mxu0 %v4741
      %5805 = vmatmul.bf16.gmra.mxu0 %v5046
      %v5806 = vpop.f32.mrf.mxu0
      %v5807 = vadd.f32 %v4937, %v5806
      %v5808 = vpop.f32.mrf.mxu0
      %v5809 = vadd.f32 %v4942, %v5808
      %5810 = vmatmul.bf16.gmra.mxu0 %v5047
      %v5811 = vpop.f32.mrf.mxu0
      %v5812 = vadd.f32 %v4947, %v5811
      %v5813 = vpop.f32.mrf.mxu0
      %v5814 = vadd.f32 %v4952, %v5813
      %5815 = vmatmul.bf16.gmra.mxu0 %v5048
      %v5816 = vpop.f32.mrf.mxu0
      %v5817 = vadd.f32 %v4957, %v5816
      %v5818 = vpop.f32.mrf.mxu0
      %v5819 = vadd.f32 %v4962, %v5818
      %5820 = vmatmul.bf16.gmra.mxu0 %v5049
      %v5821 = vpop.f32.mrf.mxu0
      %v5822 = vadd.f32 %v4967, %v5821
      %v5823 = vpop.f32.mrf.mxu0
      %v5824 = vadd.f32 %v4972, %v5823
      %5825 = vmatmul.bf16.gmra.mxu0 %v5050
      %v5826 = vpop.f32.mrf.mxu0
      %v5827 = vadd.f32 %v4977, %v5826
      %v5828 = vpop.f32.mrf.mxu0
      %v5829 = vadd.f32 %v4982, %v5828
      %5830 = vmatmul.bf16.gmra.mxu0 %v5051
      %v5831 = vpop.f32.mrf.mxu0
      %v5832 = vadd.f32 %v4987, %v5831
      %v5833 = vpop.f32.mrf.mxu0
      %v5834 = vadd.f32 %v4992, %v5833
      %5835 = vmatmul.bf16.gmra.mxu0 %v5052
      %v5836 = vpop.f32.mrf.mxu0
      %v5837 = vadd.f32 %v4997, %v5836
      %v5838 = vpop.f32.mrf.mxu0
      %v5839 = vadd.f32 %v5002, %v5838
      %5840 = vmatmul.bf16.gmra.mxu0 %v5053
      %v5841 = vpop.f32.mrf.mxu0
      %v5842 = vadd.f32 %v5007, %v5841
      %v5843 = vpop.f32.mrf.mxu0
      %v5844 = vadd.f32 %v5012, %v5843
      %5845 = vdwg.mxu0
      %5846 = vmatpush.bf16.msra.mxu0 %v4910
      %5847 = vmatpush.bf16.msra.mxu0 %v4886
      %5848 = vmatpush.bf16.msra.mxu0 %v4862
      %5849 = vmatpush.bf16.msra.mxu0 %v4838
      %5850 = vmatpush.bf16.msra.mxu0 %v4814
      %5851 = vmatpush.bf16.msra.mxu0 %v4790
      %5852 = vmatpush.bf16.msra.mxu0 %v4766
      %5853 = vmatpush.bf16.msra.mxu0 %v4742
      %5854 = vmatmul.bf16.gmra.mxu0 %v5046
      %v5855 = vpop.f32.mrf.mxu0
      %v5856 = vadd.f32 %v4937, %v5855
      %v5857 = vpop.f32.mrf.mxu0
      %v5858 = vadd.f32 %v4942, %v5857
      %5859 = vmatmul.bf16.gmra.mxu0 %v5047
      %v5860 = vpop.f32.mrf.mxu0
      %v5861 = vadd.f32 %v4947, %v5860
      %v5862 = vpop.f32.mrf.mxu0
      %v5863 = vadd.f32 %v4952, %v5862
      %5864 = vmatmul.bf16.gmra.mxu0 %v5048
      %v5865 = vpop.f32.mrf.mxu0
      %v5866 = vadd.f32 %v4957, %v5865
      %v5867 = vpop.f32.mrf.mxu0
      %v5868 = vadd.f32 %v4962, %v5867
      %5869 = vmatmul.bf16.gmra.mxu0 %v5049
      %v5870 = vpop.f32.mrf.mxu0
      %v5871 = vadd.f32 %v4967, %v5870
      %v5872 = vpop.f32.mrf.mxu0
      %v5873 = vadd.f32 %v4972, %v5872
      %5874 = vmatmul.bf16.gmra.mxu0 %v5050
      %v5875 = vpop.f32.mrf.mxu0
      %v5876 = vadd.f32 %v4977, %v5875
      %v5877 = vpop.f32.mrf.mxu0
      %v5878 = vadd.f32 %v4982, %v5877
      %5879 = vmatmul.bf16.gmra.mxu0 %v5051
      %v5880 = vpop.f32.mrf.mxu0
      %v5881 = vadd.f32 %v4987, %v5880
      %v5882 = vpop.f32.mrf.mxu0
      %v5883 = vadd.f32 %v4992, %v5882
      %5884 = vmatmul.bf16.gmra.mxu0 %v5052
      %v5885 = vpop.f32.mrf.mxu0
      %v5886 = vadd.f32 %v4997, %v5885
      %v5887 = vpop.f32.mrf.mxu0
      %v5888 = vadd.f32 %v5002, %v5887
      %5889 = vmatmul.bf16.gmra.mxu0 %v5053
      %v5890 = vpop.f32.mrf.mxu0
      %v5891 = vadd.f32 %v5007, %v5890
      %v5892 = vpop.f32.mrf.mxu0
      %v5893 = vadd.f32 %v5012, %v5892
      %5894 = vdwg.mxu0
      %5895 = vmatpush.bf16.msra.mxu0 %v4911
      %5896 = vmatpush.bf16.msra.mxu0 %v4887
      %5897 = vmatpush.bf16.msra.mxu0 %v4863
      %5898 = vmatpush.bf16.msra.mxu0 %v4839
      %5899 = vmatpush.bf16.msra.mxu0 %v4815
      %5900 = vmatpush.bf16.msra.mxu0 %v4791
      %5901 = vmatpush.bf16.msra.mxu0 %v4767
      %5902 = vmatpush.bf16.msra.mxu0 %v4743
      %5903 = vmatmul.bf16.gmra.mxu0 %v5046
      %v5904 = vpop.f32.mrf.mxu0
      %v5905 = vadd.f32 %v4937, %v5904
      %v5906 = vpop.f32.mrf.mxu0
      %v5907 = vadd.f32 %v4942, %v5906
      %5908 = vmatmul.bf16.gmra.mxu0 %v5047
      %v5909 = vpop.f32.mrf.mxu0
      %v5910 = vadd.f32 %v4947, %v5909
      %v5911 = vpop.f32.mrf.mxu0
      %v5912 = vadd.f32 %v4952, %v5911
      %5913 = vmatmul.bf16.gmra.mxu0 %v5048
      %v5914 = vpop.f32.mrf.mxu0
      %v5915 = vadd.f32 %v4957, %v5914
      %v5916 = vpop.f32.mrf.mxu0
      %v5917 = vadd.f32 %v4962, %v5916
      %5918 = vmatmul.bf16.gmra.mxu0 %v5049
      %v5919 = vpop.f32.mrf.mxu0
      %v5920 = vadd.f32 %v4967, %v5919
      %v5921 = vpop.f32.mrf.mxu0
      %v5922 = vadd.f32 %v4972, %v5921
      %5923 = vmatmul.bf16.gmra.mxu0 %v5050
      %v5924 = vpop.f32.mrf.mxu0
      %v5925 = vadd.f32 %v4977, %v5924
      %v5926 = vpop.f32.mrf.mxu0
      %v5927 = vadd.f32 %v4982, %v5926
      %5928 = vmatmul.bf16.gmra.mxu0 %v5051
      %v5929 = vpop.f32.mrf.mxu0
      %v5930 = vadd.f32 %v4987, %v5929
      %v5931 = vpop.f32.mrf.mxu0
      %v5932 = vadd.f32 %v4992, %v5931
      %5933 = vmatmul.bf16.gmra.mxu0 %v5052
      %v5934 = vpop.f32.mrf.mxu0
      %v5935 = vadd.f32 %v4997, %v5934
      %v5936 = vpop.f32.mrf.mxu0
      %v5937 = vadd.f32 %v5002, %v5936
      %5938 = vmatmul.bf16.gmra.mxu0 %v5053
      %v5939 = vpop.f32.mrf.mxu0
      %v5940 = vadd.f32 %v5007, %v5939
      %v5941 = vpop.f32.mrf.mxu0
      %v5942 = vadd.f32 %v5012, %v5941
      %5943 = vdwg.mxu0
      %5944 = vmatpush.bf16.msra.mxu0 %v4912
      %5945 = vmatpush.bf16.msra.mxu0 %v4888
      %5946 = vmatpush.bf16.msra.mxu0 %v4864
      %5947 = vmatpush.bf16.msra.mxu0 %v4840
      %5948 = vmatpush.bf16.msra.mxu0 %v4816
      %5949 = vmatpush.bf16.msra.mxu0 %v4792
      %5950 = vmatpush.bf16.msra.mxu0 %v4768
      %5951 = vmatpush.bf16.msra.mxu0 %v4744
      %5952 = vmatmul.bf16.gmra.mxu0 %v5046
      %v5953 = vpop.f32.mrf.mxu0
      %v5954 = vadd.f32 %v4937, %v5953
      %v5955 = vpop.f32.mrf.mxu0
      %v5956 = vadd.f32 %v4942, %v5955
      %5957 = vmatmul.bf16.gmra.mxu0 %v5047
      %v5958 = vpop.f32.mrf.mxu0
      %v5959 = vadd.f32 %v4947, %v5958
      %v5960 = vpop.f32.mrf.mxu0
      %v5961 = vadd.f32 %v4952, %v5960
      %5962 = vmatmul.bf16.gmra.mxu0 %v5048
      %v5963 = vpop.f32.mrf.mxu0
      %v5964 = vadd.f32 %v4957, %v5963
      %v5965 = vpop.f32.mrf.mxu0
      %v5966 = vadd.f32 %v4962, %v5965
      %5967 = vmatmul.bf16.gmra.mxu0 %v5049
      %v5968 = vpop.f32.mrf.mxu0
      %v5969 = vadd.f32 %v4967, %v5968
      %v5970 = vpop.f32.mrf.mxu0
      %v5971 = vadd.f32 %v4972, %v5970
      %5972 = vmatmul.bf16.gmra.mxu0 %v5050
      %v5973 = vpop.f32.mrf.mxu0
      %v5974 = vadd.f32 %v4977, %v5973
      %v5975 = vpop.f32.mrf.mxu0
      %v5976 = vadd.f32 %v4982, %v5975
      %5977 = vmatmul.bf16.gmra.mxu0 %v5051
      %v5978 = vpop.f32.mrf.mxu0
      %v5979 = vadd.f32 %v4987, %v5978
      %v5980 = vpop.f32.mrf.mxu0
      %v5981 = vadd.f32 %v4992, %v5980
      %5982 = vmatmul.bf16.gmra.mxu0 %v5052
      %v5983 = vpop.f32.mrf.mxu0
      %v5984 = vadd.f32 %v4997, %v5983
      %v5985 = vpop.f32.mrf.mxu0
      %v5986 = vadd.f32 %v5002, %v5985
      %5987 = vmatmul.bf16.gmra.mxu0 %v5053
      %v5988 = vpop.f32.mrf.mxu0
      %v5989 = vadd.f32 %v5007, %v5988
      %v5990 = vpop.f32.mrf.mxu0
      %v5991 = vadd.f32 %v5012, %v5990
      %5992 = vdwg.mxu0
      %5993 = vmatpush.bf16.msra.mxu0 %v4913
      %5994 = vmatpush.bf16.msra.mxu0 %v4889
      %5995 = vmatpush.bf16.msra.mxu0 %v4865
      %5996 = vmatpush.bf16.msra.mxu0 %v4841
      %5997 = vmatpush.bf16.msra.mxu0 %v4817
      %5998 = vmatpush.bf16.msra.mxu0 %v4793
      %5999 = vmatpush.bf16.msra.mxu0 %v4769
      %6000 = vmatpush.bf16.msra.mxu0 %v4745
      %6001 = vmatmul.bf16.gmra.mxu0 %v5046
      %v6002 = vpop.f32.mrf.mxu0
      %v6003 = vadd.f32 %v4937, %v6002
      %v6004 = vpop.f32.mrf.mxu0
      %v6005 = vadd.f32 %v4942, %v6004
      %6006 = vmatmul.bf16.gmra.mxu0 %v5047
      %v6007 = vpop.f32.mrf.mxu0
      %v6008 = vadd.f32 %v4947, %v6007
      %v6009 = vpop.f32.mrf.mxu0
      %v6010 = vadd.f32 %v4952, %v6009
      %6011 = vmatmul.bf16.gmra.mxu0 %v5048
      %v6012 = vpop.f32.mrf.mxu0
      %v6013 = vadd.f32 %v4957, %v6012
      %v6014 = vpop.f32.mrf.mxu0
      %v6015 = vadd.f32 %v4962, %v6014
      %6016 = vmatmul.bf16.gmra.mxu0 %v5049
      %v6017 = vpop.f32.mrf.mxu0
      %v6018 = vadd.f32 %v4967, %v6017
      %v6019 = vpop.f32.mrf.mxu0
      %v6020 = vadd.f32 %v4972, %v6019
      %6021 = vmatmul.bf16.gmra.mxu0 %v5050
      %v6022 = vpop.f32.mrf.mxu0
      %v6023 = vadd.f32 %v4977, %v6022
      %v6024 = vpop.f32.mrf.mxu0
      %v6025 = vadd.f32 %v4982, %v6024
      %6026 = vmatmul.bf16.gmra.mxu0 %v5051
      %v6027 = vpop.f32.mrf.mxu0
      %v6028 = vadd.f32 %v4987, %v6027
      %v6029 = vpop.f32.mrf.mxu0
      %v6030 = vadd.f32 %v4992, %v6029
      %6031 = vmatmul.bf16.gmra.mxu0 %v5052
      %v6032 = vpop.f32.mrf.mxu0
      %v6033 = vadd.f32 %v4997, %v6032
      %v6034 = vpop.f32.mrf.mxu0
      %v6035 = vadd.f32 %v5002, %v6034
      %6036 = vmatmul.bf16.gmra.mxu0 %v5053
      %v6037 = vpop.f32.mrf.mxu0
      %v6038 = vadd.f32 %v5007, %v6037
      %v6039 = vpop.f32.mrf.mxu0
      %v6040 = vadd.f32 %v5012, %v6039
      %6041 = vdwg.mxu0
      %6042 = vmatpush.bf16.msra.mxu0 %v4914
      %6043 = vmatpush.bf16.msra.mxu0 %v4890
      %6044 = vmatpush.bf16.msra.mxu0 %v4866
      %6045 = vmatpush.bf16.msra.mxu0 %v4842
      %6046 = vmatpush.bf16.msra.mxu0 %v4818
      %6047 = vmatpush.bf16.msra.mxu0 %v4794
      %6048 = vmatpush.bf16.msra.mxu0 %v4770
      %6049 = vmatpush.bf16.msra.mxu0 %v4746
      %6050 = vmatmul.bf16.gmra.mxu0 %v5046
      %v6051 = vpop.f32.mrf.mxu0
      %v6052 = vadd.f32 %v4937, %v6051
      %v6053 = vpop.f32.mrf.mxu0
      %v6054 = vadd.f32 %v4942, %v6053
      %6055 = vmatmul.bf16.gmra.mxu0 %v5047
      %v6056 = vpop.f32.mrf.mxu0
      %v6057 = vadd.f32 %v4947, %v6056
      %v6058 = vpop.f32.mrf.mxu0
      %v6059 = vadd.f32 %v4952, %v6058
      %6060 = vmatmul.bf16.gmra.mxu0 %v5048
      %v6061 = vpop.f32.mrf.mxu0
      %v6062 = vadd.f32 %v4957, %v6061
      %v6063 = vpop.f32.mrf.mxu0
      %v6064 = vadd.f32 %v4962, %v6063
      %6065 = vmatmul.bf16.gmra.mxu0 %v5049
      %v6066 = vpop.f32.mrf.mxu0
      %v6067 = vadd.f32 %v4967, %v6066
      %v6068 = vpop.f32.mrf.mxu0
      %v6069 = vadd.f32 %v4972, %v6068
      %6070 = vmatmul.bf16.gmra.mxu0 %v5050
      %v6071 = vpop.f32.mrf.mxu0
      %v6072 = vadd.f32 %v4977, %v6071
      %v6073 = vpop.f32.mrf.mxu0
      %v6074 = vadd.f32 %v4982, %v6073
      %6075 = vmatmul.bf16.gmra.mxu0 %v5051
      %v6076 = vpop.f32.mrf.mxu0
      %v6077 = vadd.f32 %v4987, %v6076
      %v6078 = vpop.f32.mrf.mxu0
      %v6079 = vadd.f32 %v4992, %v6078
      %6080 = vmatmul.bf16.gmra.mxu0 %v5052
      %v6081 = vpop.f32.mrf.mxu0
      %v6082 = vadd.f32 %v4997, %v6081
      %v6083 = vpop.f32.mrf.mxu0
      %v6084 = vadd.f32 %v5002, %v6083
      %6085 = vmatmul.bf16.gmra.mxu0 %v5053
      %v6086 = vpop.f32.mrf.mxu0
      %v6087 = vadd.f32 %v5007, %v6086
      %v6088 = vpop.f32.mrf.mxu0
      %v6089 = vadd.f32 %v5012, %v6088
      %6090 = vdwg.mxu0
      %6091 = vmatpush.bf16.msra.mxu0 %v4915
      %6092 = vmatpush.bf16.msra.mxu0 %v4891
      %6093 = vmatpush.bf16.msra.mxu0 %v4867
      %6094 = vmatpush.bf16.msra.mxu0 %v4843
      %6095 = vmatpush.bf16.msra.mxu0 %v4819
      %6096 = vmatpush.bf16.msra.mxu0 %v4795
      %6097 = vmatpush.bf16.msra.mxu0 %v4771
      %6098 = vmatpush.bf16.msra.mxu0 %v4747
      %6099 = vmatmul.bf16.gmra.mxu0 %v5046
      %v6100 = vpop.f32.mrf.mxu0
      %v6101 = vadd.f32 %v4937, %v6100
      %v6102 = vpop.f32.mrf.mxu0
      %v6103 = vadd.f32 %v4942, %v6102
      %6104 = vmatmul.bf16.gmra.mxu0 %v5047
      %v6105 = vpop.f32.mrf.mxu0
      %v6106 = vadd.f32 %v4947, %v6105
      %v6107 = vpop.f32.mrf.mxu0
      %v6108 = vadd.f32 %v4952, %v6107
      %6109 = vmatmul.bf16.gmra.mxu0 %v5048
      %v6110 = vpop.f32.mrf.mxu0
      %v6111 = vadd.f32 %v4957, %v6110
      %v6112 = vpop.f32.mrf.mxu0
      %v6113 = vadd.f32 %v4962, %v6112
      %6114 = vmatmul.bf16.gmra.mxu0 %v5049
      %v6115 = vpop.f32.mrf.mxu0
      %v6116 = vadd.f32 %v4967, %v6115
      %v6117 = vpop.f32.mrf.mxu0
      %v6118 = vadd.f32 %v4972, %v6117
      %6119 = vmatmul.bf16.gmra.mxu0 %v5050
      %v6120 = vpop.f32.mrf.mxu0
      %v6121 = vadd.f32 %v4977, %v6120
      %v6122 = vpop.f32.mrf.mxu0
      %v6123 = vadd.f32 %v4982, %v6122
      %6124 = vmatmul.bf16.gmra.mxu0 %v5051
      %v6125 = vpop.f32.mrf.mxu0
      %v6126 = vadd.f32 %v4987, %v6125
      %v6127 = vpop.f32.mrf.mxu0
      %v6128 = vadd.f32 %v4992, %v6127
      %6129 = vmatmul.bf16.gmra.mxu0 %v5052
      %v6130 = vpop.f32.mrf.mxu0
      %v6131 = vadd.f32 %v4997, %v6130
      %v6132 = vpop.f32.mrf.mxu0
      %v6133 = vadd.f32 %v5002, %v6132
      %6134 = vmatmul.bf16.gmra.mxu0 %v5053
      %v6135 = vpop.f32.mrf.mxu0
      %v6136 = vadd.f32 %v5007, %v6135
      %v6137 = vpop.f32.mrf.mxu0
      %v6138 = vadd.f32 %v5012, %v6137
      %6139 = vdwg.mxu0
      %6140 = vmatpush.bf16.msra.mxu0 %v4916
      %6141 = vmatpush.bf16.msra.mxu0 %v4892
      %6142 = vmatpush.bf16.msra.mxu0 %v4868
      %6143 = vmatpush.bf16.msra.mxu0 %v4844
      %6144 = vmatpush.bf16.msra.mxu0 %v4820
      %6145 = vmatpush.bf16.msra.mxu0 %v4796
      %6146 = vmatpush.bf16.msra.mxu0 %v4772
      %6147 = vmatpush.bf16.msra.mxu0 %v4748
      %6148 = vmatmul.bf16.gmra.mxu0 %v5046
      %v6149 = vpop.f32.mrf.mxu0
      %v6150 = vadd.f32 %v4937, %v6149
      %v6151 = vpop.f32.mrf.mxu0
      %v6152 = vadd.f32 %v4942, %v6151
      %6153 = vmatmul.bf16.gmra.mxu0 %v5047
      %v6154 = vpop.f32.mrf.mxu0
      %v6155 = vadd.f32 %v4947, %v6154
      %v6156 = vpop.f32.mrf.mxu0
      %v6157 = vadd.f32 %v4952, %v6156
      %6158 = vmatmul.bf16.gmra.mxu0 %v5048
      %v6159 = vpop.f32.mrf.mxu0
      %v6160 = vadd.f32 %v4957, %v6159
      %v6161 = vpop.f32.mrf.mxu0
      %v6162 = vadd.f32 %v4962, %v6161
      %6163 = vmatmul.bf16.gmra.mxu0 %v5049
      %v6164 = vpop.f32.mrf.mxu0
      %v6165 = vadd.f32 %v4967, %v6164
      %v6166 = vpop.f32.mrf.mxu0
      %v6167 = vadd.f32 %v4972, %v6166
      %6168 = vmatmul.bf16.gmra.mxu0 %v5050
      %v6169 = vpop.f32.mrf.mxu0
      %v6170 = vadd.f32 %v4977, %v6169
      %v6171 = vpop.f32.mrf.mxu0
      %v6172 = vadd.f32 %v4982, %v6171
      %6173 = vmatmul.bf16.gmra.mxu0 %v5051
      %v6174 = vpop.f32.mrf.mxu0
      %v6175 = vadd.f32 %v4987, %v6174
      %v6176 = vpop.f32.mrf.mxu0
      %v6177 = vadd.f32 %v4992, %v6176
      %6178 = vmatmul.bf16.gmra.mxu0 %v5052
      %v6179 = vpop.f32.mrf.mxu0
      %v6180 = vadd.f32 %v4997, %v6179
      %v6181 = vpop.f32.mrf.mxu0
      %v6182 = vadd.f32 %v5002, %v6181
      %6183 = vmatmul.bf16.gmra.mxu0 %v5053
      %v6184 = vpop.f32.mrf.mxu0
      %v6185 = vadd.f32 %v5007, %v6184
      %v6186 = vpop.f32.mrf.mxu0
      %v6187 = vadd.f32 %v5012, %v6186
      %6188 = vdwg.mxu0
      %6189 = vmatpush.bf16.msra.mxu0 %v4917
      %6190 = vmatpush.bf16.msra.mxu0 %v4893
      %6191 = vmatpush.bf16.msra.mxu0 %v4869
      %6192 = vmatpush.bf16.msra.mxu0 %v4845
      %6193 = vmatpush.bf16.msra.mxu0 %v4821
      %6194 = vmatpush.bf16.msra.mxu0 %v4797
      %6195 = vmatpush.bf16.msra.mxu0 %v4773
      %6196 = vmatpush.bf16.msra.mxu0 %v4749
      %6197 = vmatmul.bf16.gmra.mxu0 %v5046
      %v6198 = vpop.f32.mrf.mxu0
      %v6199 = vadd.f32 %v4937, %v6198
      %v6200 = vpop.f32.mrf.mxu0
      %v6201 = vadd.f32 %v4942, %v6200
      %6202 = vmatmul.bf16.gmra.mxu0 %v5047
      %v6203 = vpop.f32.mrf.mxu0
      %v6204 = vadd.f32 %v4947, %v6203
      %v6205 = vpop.f32.mrf.mxu0
      %v6206 = vadd.f32 %v4952, %v6205
      %6207 = vmatmul.bf16.gmra.mxu0 %v5048
      %v6208 = vpop.f32.mrf.mxu0
      %v6209 = vadd.f32 %v4957, %v6208
      %v6210 = vpop.f32.mrf.mxu0
      %v6211 = vadd.f32 %v4962, %v6210
      %6212 = vmatmul.bf16.gmra.mxu0 %v5049
      %v6213 = vpop.f32.mrf.mxu0
      %v6214 = vadd.f32 %v4967, %v6213
      %v6215 = vpop.f32.mrf.mxu0
      %v6216 = vadd.f32 %v4972, %v6215
      %6217 = vmatmul.bf16.gmra.mxu0 %v5050
      %v6218 = vpop.f32.mrf.mxu0
      %v6219 = vadd.f32 %v4977, %v6218
      %v6220 = vpop.f32.mrf.mxu0
      %v6221 = vadd.f32 %v4982, %v6220
      %6222 = vmatmul.bf16.gmra.mxu0 %v5051
      %v6223 = vpop.f32.mrf.mxu0
      %v6224 = vadd.f32 %v4987, %v6223
      %v6225 = vpop.f32.mrf.mxu0
      %v6226 = vadd.f32 %v4992, %v6225
      %6227 = vmatmul.bf16.gmra.mxu0 %v5052
      %v6228 = vpop.f32.mrf.mxu0
      %v6229 = vadd.f32 %v4997, %v6228
      %v6230 = vpop.f32.mrf.mxu0
      %v6231 = vadd.f32 %v5002, %v6230
      %6232 = vmatmul.bf16.gmra.mxu0 %v5053
      %v6233 = vpop.f32.mrf.mxu0
      %v6234 = vadd.f32 %v5007, %v6233
      %v6235 = vpop.f32.mrf.mxu0
      %v6236 = vadd.f32 %v5012, %v6235
      %6237 = vdwg.mxu0
      %vm6238 = vcmp.gt.f32.partialorder %v5072, 0.0
      %vm6239 = vcmp.gt.f32.partialorder %v5121, 0.0
      %vm6240 = vcmp.gt.f32.partialorder %v5170, 0.0
      %vm6241 = vcmp.gt.f32.partialorder %v5219, 0.0
      %vm6242 = vcmp.gt.f32.partialorder %v5268, 0.0
      %vm6243 = vcmp.gt.f32.partialorder %v5317, 0.0
      %vm6244 = vcmp.gt.f32.partialorder %v5366, 0.0
      %vm6245 = vcmp.gt.f32.partialorder %v5415, 0.0
      %vm6246 = vcmp.gt.f32.partialorder %v5464, 0.0
      %vm6247 = vcmp.gt.f32.partialorder %v5513, 0.0
      %vm6248 = vcmp.gt.f32.partialorder %v5562, 0.0
      %vm6249 = vcmp.gt.f32.partialorder %v5611, 0.0
      %vm6250 = vcmp.gt.f32.partialorder %v5660, 0.0
      %vm6251 = vcmp.gt.f32.partialorder %v5709, 0.0
      %vm6252 = vcmp.gt.f32.partialorder %v5758, 0.0
      %vm6253 = vcmp.gt.f32.partialorder %v5807, 0.0
      %vm6254 = vcmp.gt.f32.partialorder %v5856, 0.0
      %vm6255 = vcmp.gt.f32.partialorder %v5905, 0.0
      %vm6256 = vcmp.gt.f32.partialorder %v5954, 0.0
      %vm6257 = vcmp.gt.f32.partialorder %v6003, 0.0
      %vm6258 = vcmp.gt.f32.partialorder %v6052, 0.0
      %vm6259 = vcmp.gt.f32.partialorder %v6101, 0.0
      %vm6260 = vcmp.gt.f32.partialorder %v6150, 0.0
      %vm6261 = vcmp.gt.f32.partialorder %v6199, 0.0
      %vm6262 = vcmp.gt.f32.partialorder %v5074, 0.0
      %vm6263 = vcmp.gt.f32.partialorder %v5123, 0.0
      %vm6264 = vcmp.gt.f32.partialorder %v5172, 0.0
      %vm6265 = vcmp.gt.f32.partialorder %v5221, 0.0
      %vm6266 = vcmp.gt.f32.partialorder %v5270, 0.0
      %vm6267 = vcmp.gt.f32.partialorder %v5319, 0.0
      %vm6268 = vcmp.gt.f32.partialorder %v5368, 0.0
      %vm6269 = vcmp.gt.f32.partialorder %v5417, 0.0
      %vm6270 = vcmp.gt.f32.partialorder %v5466, 0.0
      %vm6271 = vcmp.gt.f32.partialorder %v5515, 0.0
      %vm6272 = vcmp.gt.f32.partialorder %v5564, 0.0
      %vm6273 = vcmp.gt.f32.partialorder %v5613, 0.0
      %vm6274 = vcmp.gt.f32.partialorder %v5662, 0.0
      %vm6275 = vcmp.gt.f32.partialorder %v5711, 0.0
      %vm6276 = vcmp.gt.f32.partialorder %v5760, 0.0
      %vm6277 = vcmp.gt.f32.partialorder %v5809, 0.0
      %vm6278 = vcmp.gt.f32.partialorder %v5858, 0.0
      %vm6279 = vcmp.gt.f32.partialorder %v5907, 0.0
      %vm6280 = vcmp.gt.f32.partialorder %v5956, 0.0
      %vm6281 = vcmp.gt.f32.partialorder %v6005, 0.0
      %vm6282 = vcmp.gt.f32.partialorder %v6054, 0.0
      %vm6283 = vcmp.gt.f32.partialorder %v6103, 0.0
      %vm6284 = vcmp.gt.f32.partialorder %v6152, 0.0
      %vm6285 = vcmp.gt.f32.partialorder %v6201, 0.0
      %vm6286 = vcmp.gt.f32.partialorder %v5077, 0.0
      %vm6287 = vcmp.gt.f32.partialorder %v5126, 0.0
      %vm6288 = vcmp.gt.f32.partialorder %v5175, 0.0
      %vm6289 = vcmp.gt.f32.partialorder %v5224, 0.0
      %vm6290 = vcmp.gt.f32.partialorder %v5273, 0.0
      %vm6291 = vcmp.gt.f32.partialorder %v5322, 0.0
      %vm6292 = vcmp.gt.f32.partialorder %v5371, 0.0
      %vm6293 = vcmp.gt.f32.partialorder %v5420, 0.0
      %vm6294 = vcmp.gt.f32.partialorder %v5469, 0.0
      %vm6295 = vcmp.gt.f32.partialorder %v5518, 0.0
      %vm6296 = vcmp.gt.f32.partialorder %v5567, 0.0
      %vm6297 = vcmp.gt.f32.partialorder %v5616, 0.0
      %vm6298 = vcmp.gt.f32.partialorder %v5665, 0.0
      %vm6299 = vcmp.gt.f32.partialorder %v5714, 0.0
      %vm6300 = vcmp.gt.f32.partialorder %v5763, 0.0
      %vm6301 = vcmp.gt.f32.partialorder %v5812, 0.0
      %vm6302 = vcmp.gt.f32.partialorder %v5861, 0.0
      %vm6303 = vcmp.gt.f32.partialorder %v5910, 0.0
      %vm6304 = vcmp.gt.f32.partialorder %v5959, 0.0
      %vm6305 = vcmp.gt.f32.partialorder %v6008, 0.0
      %vm6306 = vcmp.gt.f32.partialorder %v6057, 0.0
      %vm6307 = vcmp.gt.f32.partialorder %v6106, 0.0
      %vm6308 = vcmp.gt.f32.partialorder %v6155, 0.0
      %vm6309 = vcmp.gt.f32.partialorder %v6204, 0.0
      %vm6310 = vcmp.gt.f32.partialorder %v5079, 0.0
      %vm6311 = vcmp.gt.f32.partialorder %v5128, 0.0
      %vm6312 = vcmp.gt.f32.partialorder %v5177, 0.0
      %vm6313 = vcmp.gt.f32.partialorder %v5226, 0.0
      %vm6314 = vcmp.gt.f32.partialorder %v5275, 0.0
      %vm6315 = vcmp.gt.f32.partialorder %v5324, 0.0
      %vm6316 = vcmp.gt.f32.partialorder %v5373, 0.0
      %vm6317 = vcmp.gt.f32.partialorder %v5422, 0.0
      %vm6318 = vcmp.gt.f32.partialorder %v5471, 0.0
      %vm6319 = vcmp.gt.f32.partialorder %v5520, 0.0
      %vm6320 = vcmp.gt.f32.partialorder %v5569, 0.0
      %vm6321 = vcmp.gt.f32.partialorder %v5618, 0.0
      %vm6322 = vcmp.gt.f32.partialorder %v5667, 0.0
      %vm6323 = vcmp.gt.f32.partialorder %v5716, 0.0
      %vm6324 = vcmp.gt.f32.partialorder %v5765, 0.0
      %vm6325 = vcmp.gt.f32.partialorder %v5814, 0.0
      %vm6326 = vcmp.gt.f32.partialorder %v5863, 0.0
      %vm6327 = vcmp.gt.f32.partialorder %v5912, 0.0
      %vm6328 = vcmp.gt.f32.partialorder %v5961, 0.0
      %vm6329 = vcmp.gt.f32.partialorder %v6010, 0.0
      %vm6330 = vcmp.gt.f32.partialorder %v6059, 0.0
      %vm6331 = vcmp.gt.f32.partialorder %v6108, 0.0
      %vm6332 = vcmp.gt.f32.partialorder %v6157, 0.0
      %vm6333 = vcmp.gt.f32.partialorder %v6206, 0.0
      %vm6334 = vcmp.gt.f32.partialorder %v5082, 0.0
      %vm6335 = vcmp.gt.f32.partialorder %v5131, 0.0
      %vm6336 = vcmp.gt.f32.partialorder %v5180, 0.0
      %vm6337 = vcmp.gt.f32.partialorder %v5229, 0.0
      %vm6338 = vcmp.gt.f32.partialorder %v5278, 0.0
      %vm6339 = vcmp.gt.f32.partialorder %v5327, 0.0
      %vm6340 = vcmp.gt.f32.partialorder %v5376, 0.0
      %vm6341 = vcmp.gt.f32.partialorder %v5425, 0.0
      %vm6342 = vcmp.gt.f32.partialorder %v5474, 0.0
      %vm6343 = vcmp.gt.f32.partialorder %v5523, 0.0
      %vm6344 = vcmp.gt.f32.partialorder %v5572, 0.0
      %vm6345 = vcmp.gt.f32.partialorder %v5621, 0.0
      %vm6346 = vcmp.gt.f32.partialorder %v5670, 0.0
      %vm6347 = vcmp.gt.f32.partialorder %v5719, 0.0
      %vm6348 = vcmp.gt.f32.partialorder %v5768, 0.0
      %vm6349 = vcmp.gt.f32.partialorder %v5817, 0.0
      %vm6350 = vcmp.gt.f32.partialorder %v5866, 0.0
      %vm6351 = vcmp.gt.f32.partialorder %v5915, 0.0
      %vm6352 = vcmp.gt.f32.partialorder %v5964, 0.0
      %vm6353 = vcmp.gt.f32.partialorder %v6013, 0.0
      %vm6354 = vcmp.gt.f32.partialorder %v6062, 0.0
      %vm6355 = vcmp.gt.f32.partialorder %v6111, 0.0
      %vm6356 = vcmp.gt.f32.partialorder %v6160, 0.0
      %vm6357 = vcmp.gt.f32.partialorder %v6209, 0.0
      %vm6358 = vcmp.gt.f32.partialorder %v5084, 0.0
      %vm6359 = vcmp.gt.f32.partialorder %v5133, 0.0
      %vm6360 = vcmp.gt.f32.partialorder %v5182, 0.0
      %vm6361 = vcmp.gt.f32.partialorder %v5231, 0.0
      %vm6362 = vcmp.gt.f32.partialorder %v5280, 0.0
      %vm6363 = vcmp.gt.f32.partialorder %v5329, 0.0
      %vm6364 = vcmp.gt.f32.partialorder %v5378, 0.0
      %vm6365 = vcmp.gt.f32.partialorder %v5427, 0.0
      %vm6366 = vcmp.gt.f32.partialorder %v5476, 0.0
      %vm6367 = vcmp.gt.f32.partialorder %v5525, 0.0
      %vm6368 = vcmp.gt.f32.partialorder %v5574, 0.0
      %vm6369 = vcmp.gt.f32.partialorder %v5623, 0.0
      %vm6370 = vcmp.gt.f32.partialorder %v5672, 0.0
      %vm6371 = vcmp.gt.f32.partialorder %v5721, 0.0
      %vm6372 = vcmp.gt.f32.partialorder %v5770, 0.0
      %vm6373 = vcmp.gt.f32.partialorder %v5819, 0.0
      %vm6374 = vcmp.gt.f32.partialorder %v5868, 0.0
      %vm6375 = vcmp.gt.f32.partialorder %v5917, 0.0
      %vm6376 = vcmp.gt.f32.partialorder %v5966, 0.0
      %vm6377 = vcmp.gt.f32.partialorder %v6015, 0.0
      %vm6378 = vcmp.gt.f32.partialorder %v6064, 0.0
      %vm6379 = vcmp.gt.f32.partialorder %v6113, 0.0
      %vm6380 = vcmp.gt.f32.partialorder %v6162, 0.0
      %vm6381 = vcmp.gt.f32.partialorder %v6211, 0.0
      %vm6382 = vcmp.gt.f32.partialorder %v5087, 0.0
      %vm6383 = vcmp.gt.f32.partialorder %v5136, 0.0
      %vm6384 = vcmp.gt.f32.partialorder %v5185, 0.0
      %vm6385 = vcmp.gt.f32.partialorder %v5234, 0.0
      %vm6386 = vcmp.gt.f32.partialorder %v5283, 0.0
      %vm6387 = vcmp.gt.f32.partialorder %v5332, 0.0
      %vm6388 = vcmp.gt.f32.partialorder %v5381, 0.0
      %vm6389 = vcmp.gt.f32.partialorder %v5430, 0.0
      %vm6390 = vcmp.gt.f32.partialorder %v5479, 0.0
      %vm6391 = vcmp.gt.f32.partialorder %v5528, 0.0
      %vm6392 = vcmp.gt.f32.partialorder %v5577, 0.0
      %vm6393 = vcmp.gt.f32.partialorder %v5626, 0.0
      %vm6394 = vcmp.gt.f32.partialorder %v5675, 0.0
      %vm6395 = vcmp.gt.f32.partialorder %v5724, 0.0
      %vm6396 = vcmp.gt.f32.partialorder %v5773, 0.0
      %vm6397 = vcmp.gt.f32.partialorder %v5822, 0.0
      %vm6398 = vcmp.gt.f32.partialorder %v5871, 0.0
      %vm6399 = vcmp.gt.f32.partialorder %v5920, 0.0
      %vm6400 = vcmp.gt.f32.partialorder %v5969, 0.0
      %vm6401 = vcmp.gt.f32.partialorder %v6018, 0.0
      %vm6402 = vcmp.gt.f32.partialorder %v6067, 0.0
      %vm6403 = vcmp.gt.f32.partialorder %v6116, 0.0
      %vm6404 = vcmp.gt.f32.partialorder %v6165, 0.0
      %vm6405 = vcmp.gt.f32.partialorder %v6214, 0.0
      %vm6406 = vcmp.gt.f32.partialorder %v5089, 0.0
      %vm6407 = vcmp.gt.f32.partialorder %v5138, 0.0
      %vm6408 = vcmp.gt.f32.partialorder %v5187, 0.0
      %vm6409 = vcmp.gt.f32.partialorder %v5236, 0.0
      %vm6410 = vcmp.gt.f32.partialorder %v5285, 0.0
      %vm6411 = vcmp.gt.f32.partialorder %v5334, 0.0
      %vm6412 = vcmp.gt.f32.partialorder %v5383, 0.0
      %vm6413 = vcmp.gt.f32.partialorder %v5432, 0.0
      %vm6414 = vcmp.gt.f32.partialorder %v5481, 0.0
      %vm6415 = vcmp.gt.f32.partialorder %v5530, 0.0
      %vm6416 = vcmp.gt.f32.partialorder %v5579, 0.0
      %vm6417 = vcmp.gt.f32.partialorder %v5628, 0.0
      %vm6418 = vcmp.gt.f32.partialorder %v5677, 0.0
      %vm6419 = vcmp.gt.f32.partialorder %v5726, 0.0
      %vm6420 = vcmp.gt.f32.partialorder %v5775, 0.0
      %vm6421 = vcmp.gt.f32.partialorder %v5824, 0.0
      %vm6422 = vcmp.gt.f32.partialorder %v5873, 0.0
      %vm6423 = vcmp.gt.f32.partialorder %v5922, 0.0
      %vm6424 = vcmp.gt.f32.partialorder %v5971, 0.0
      %vm6425 = vcmp.gt.f32.partialorder %v6020, 0.0
      %vm6426 = vcmp.gt.f32.partialorder %v6069, 0.0
      %vm6427 = vcmp.gt.f32.partialorder %v6118, 0.0
      %vm6428 = vcmp.gt.f32.partialorder %v6167, 0.0
      %vm6429 = vcmp.gt.f32.partialorder %v6216, 0.0
      %vm6430 = vcmp.gt.f32.partialorder %v5092, 0.0
      %vm6431 = vcmp.gt.f32.partialorder %v5141, 0.0
      %vm6432 = vcmp.gt.f32.partialorder %v5190, 0.0
      %vm6433 = vcmp.gt.f32.partialorder %v5239, 0.0
      %vm6434 = vcmp.gt.f32.partialorder %v5288, 0.0
      %vm6435 = vcmp.gt.f32.partialorder %v5337, 0.0
      %vm6436 = vcmp.gt.f32.partialorder %v5386, 0.0
      %vm6437 = vcmp.gt.f32.partialorder %v5435, 0.0
      %vm6438 = vcmp.gt.f32.partialorder %v5484, 0.0
      %vm6439 = vcmp.gt.f32.partialorder %v5533, 0.0
      %vm6440 = vcmp.gt.f32.partialorder %v5582, 0.0
      %vm6441 = vcmp.gt.f32.partialorder %v5631, 0.0
      %vm6442 = vcmp.gt.f32.partialorder %v5680, 0.0
      %vm6443 = vcmp.gt.f32.partialorder %v5729, 0.0
      %vm6444 = vcmp.gt.f32.partialorder %v5778, 0.0
      %vm6445 = vcmp.gt.f32.partialorder %v5827, 0.0
      %vm6446 = vcmp.gt.f32.partialorder %v5876, 0.0
      %vm6447 = vcmp.gt.f32.partialorder %v5925, 0.0
      %vm6448 = vcmp.gt.f32.partialorder %v5974, 0.0
      %vm6449 = vcmp.gt.f32.partialorder %v6023, 0.0
      %vm6450 = vcmp.gt.f32.partialorder %v6072, 0.0
      %vm6451 = vcmp.gt.f32.partialorder %v6121, 0.0
      %vm6452 = vcmp.gt.f32.partialorder %v6170, 0.0
      %vm6453 = vcmp.gt.f32.partialorder %v6219, 0.0
      %vm6454 = vcmp.gt.f32.partialorder %v5094, 0.0
      %vm6455 = vcmp.gt.f32.partialorder %v5143, 0.0
      %vm6456 = vcmp.gt.f32.partialorder %v5192, 0.0
      %vm6457 = vcmp.gt.f32.partialorder %v5241, 0.0
      %vm6458 = vcmp.gt.f32.partialorder %v5290, 0.0
      %vm6459 = vcmp.gt.f32.partialorder %v5339, 0.0
      %vm6460 = vcmp.gt.f32.partialorder %v5388, 0.0
      %vm6461 = vcmp.gt.f32.partialorder %v5437, 0.0
      %vm6462 = vcmp.gt.f32.partialorder %v5486, 0.0
      %vm6463 = vcmp.gt.f32.partialorder %v5535, 0.0
      %vm6464 = vcmp.gt.f32.partialorder %v5584, 0.0
      %vm6465 = vcmp.gt.f32.partialorder %v5633, 0.0
      %vm6466 = vcmp.gt.f32.partialorder %v5682, 0.0
      %vm6467 = vcmp.gt.f32.partialorder %v5731, 0.0
      %vm6468 = vcmp.gt.f32.partialorder %v5780, 0.0
      %vm6469 = vcmp.gt.f32.partialorder %v5829, 0.0
      %vm6470 = vcmp.gt.f32.partialorder %v5878, 0.0
      %vm6471 = vcmp.gt.f32.partialorder %v5927, 0.0
      %vm6472 = vcmp.gt.f32.partialorder %v5976, 0.0
      %vm6473 = vcmp.gt.f32.partialorder %v6025, 0.0
      %vm6474 = vcmp.gt.f32.partialorder %v6074, 0.0
      %vm6475 = vcmp.gt.f32.partialorder %v6123, 0.0
      %vm6476 = vcmp.gt.f32.partialorder %v6172, 0.0
      %vm6477 = vcmp.gt.f32.partialorder %v6221, 0.0
      %vm6478 = vcmp.gt.f32.partialorder %v5097, 0.0
      %vm6479 = vcmp.gt.f32.partialorder %v5146, 0.0
      %vm6480 = vcmp.gt.f32.partialorder %v5195, 0.0
      %vm6481 = vcmp.gt.f32.partialorder %v5244, 0.0
      %vm6482 = vcmp.gt.f32.partialorder %v5293, 0.0
      %vm6483 = vcmp.gt.f32.partialorder %v5342, 0.0
      %vm6484 = vcmp.gt.f32.partialorder %v5391, 0.0
      %vm6485 = vcmp.gt.f32.partialorder %v5440, 0.0
      %vm6486 = vcmp.gt.f32.partialorder %v5489, 0.0
      %vm6487 = vcmp.gt.f32.partialorder %v5538, 0.0
      %vm6488 = vcmp.gt.f32.partialorder %v5587, 0.0
      %vm6489 = vcmp.gt.f32.partialorder %v5636, 0.0
      %vm6490 = vcmp.gt.f32.partialorder %v5685, 0.0
      %vm6491 = vcmp.gt.f32.partialorder %v5734, 0.0
      %vm6492 = vcmp.gt.f32.partialorder %v5783, 0.0
      %vm6493 = vcmp.gt.f32.partialorder %v5832, 0.0
      %vm6494 = vcmp.gt.f32.partialorder %v5881, 0.0
      %vm6495 = vcmp.gt.f32.partialorder %v5930, 0.0
      %vm6496 = vcmp.gt.f32.partialorder %v5979, 0.0
      %vm6497 = vcmp.gt.f32.partialorder %v6028, 0.0
      %vm6498 = vcmp.gt.f32.partialorder %v6077, 0.0
      %vm6499 = vcmp.gt.f32.partialorder %v6126, 0.0
      %vm6500 = vcmp.gt.f32.partialorder %v6175, 0.0
      %vm6501 = vcmp.gt.f32.partialorder %v6224, 0.0
      %vm6502 = vcmp.gt.f32.partialorder %v5099, 0.0
      %vm6503 = vcmp.gt.f32.partialorder %v5148, 0.0
      %vm6504 = vcmp.gt.f32.partialorder %v5197, 0.0
      %vm6505 = vcmp.gt.f32.partialorder %v5246, 0.0
      %vm6506 = vcmp.gt.f32.partialorder %v5295, 0.0
      %vm6507 = vcmp.gt.f32.partialorder %v5344, 0.0
      %vm6508 = vcmp.gt.f32.partialorder %v5393, 0.0
      %vm6509 = vcmp.gt.f32.partialorder %v5442, 0.0
      %vm6510 = vcmp.gt.f32.partialorder %v5491, 0.0
      %vm6511 = vcmp.gt.f32.partialorder %v5540, 0.0
      %vm6512 = vcmp.gt.f32.partialorder %v5589, 0.0
      %vm6513 = vcmp.gt.f32.partialorder %v5638, 0.0
      %vm6514 = vcmp.gt.f32.partialorder %v5687, 0.0
      %vm6515 = vcmp.gt.f32.partialorder %v5736, 0.0
      %vm6516 = vcmp.gt.f32.partialorder %v5785, 0.0
      %vm6517 = vcmp.gt.f32.partialorder %v5834, 0.0
      %vm6518 = vcmp.gt.f32.partialorder %v5883, 0.0
      %vm6519 = vcmp.gt.f32.partialorder %v5932, 0.0
      %vm6520 = vcmp.gt.f32.partialorder %v5981, 0.0
      %vm6521 = vcmp.gt.f32.partialorder %v6030, 0.0
      %vm6522 = vcmp.gt.f32.partialorder %v6079, 0.0
      %vm6523 = vcmp.gt.f32.partialorder %v6128, 0.0
      %vm6524 = vcmp.gt.f32.partialorder %v6177, 0.0
      %vm6525 = vcmp.gt.f32.partialorder %v6226, 0.0
      %vm6526 = vcmp.gt.f32.partialorder %v5102, 0.0
      %vm6527 = vcmp.gt.f32.partialorder %v5151, 0.0
      %vm6528 = vcmp.gt.f32.partialorder %v5200, 0.0
      %vm6529 = vcmp.gt.f32.partialorder %v5249, 0.0
      %vm6530 = vcmp.gt.f32.partialorder %v5298, 0.0
      %vm6531 = vcmp.gt.f32.partialorder %v5347, 0.0
      %vm6532 = vcmp.gt.f32.partialorder %v5396, 0.0
      %vm6533 = vcmp.gt.f32.partialorder %v5445, 0.0
      %vm6534 = vcmp.gt.f32.partialorder %v5494, 0.0
      %vm6535 = vcmp.gt.f32.partialorder %v5543, 0.0
      %vm6536 = vcmp.gt.f32.partialorder %v5592, 0.0
      %vm6537 = vcmp.gt.f32.partialorder %v5641, 0.0
      %vm6538 = vcmp.gt.f32.partialorder %v5690, 0.0
      %vm6539 = vcmp.gt.f32.partialorder %v5739, 0.0
      %vm6540 = vcmp.gt.f32.partialorder %v5788, 0.0
      %vm6541 = vcmp.gt.f32.partialorder %v5837, 0.0
      %vm6542 = vcmp.gt.f32.partialorder %v5886, 0.0
      %vm6543 = vcmp.gt.f32.partialorder %v5935, 0.0
      %vm6544 = vcmp.gt.f32.partialorder %v5984, 0.0
      %vm6545 = vcmp.gt.f32.partialorder %v6033, 0.0
      %vm6546 = vcmp.gt.f32.partialorder %v6082, 0.0
      %vm6547 = vcmp.gt.f32.partialorder %v6131, 0.0
      %vm6548 = vcmp.gt.f32.partialorder %v6180, 0.0
      %vm6549 = vcmp.gt.f32.partialorder %v6229, 0.0
      %vm6550 = vcmp.gt.f32.partialorder %v5104, 0.0
      %vm6551 = vcmp.gt.f32.partialorder %v5153, 0.0
      %vm6552 = vcmp.gt.f32.partialorder %v5202, 0.0
      %vm6553 = vcmp.gt.f32.partialorder %v5251, 0.0
      %vm6554 = vcmp.gt.f32.partialorder %v5300, 0.0
      %vm6555 = vcmp.gt.f32.partialorder %v5349, 0.0
      %vm6556 = vcmp.gt.f32.partialorder %v5398, 0.0
      %vm6557 = vcmp.gt.f32.partialorder %v5447, 0.0
      %vm6558 = vcmp.gt.f32.partialorder %v5496, 0.0
      %vm6559 = vcmp.gt.f32.partialorder %v5545, 0.0
      %vm6560 = vcmp.gt.f32.partialorder %v5594, 0.0
      %vm6561 = vcmp.gt.f32.partialorder %v5643, 0.0
      %vm6562 = vcmp.gt.f32.partialorder %v5692, 0.0
      %vm6563 = vcmp.gt.f32.partialorder %v5741, 0.0
      %vm6564 = vcmp.gt.f32.partialorder %v5790, 0.0
      %vm6565 = vcmp.gt.f32.partialorder %v5839, 0.0
      %vm6566 = vcmp.gt.f32.partialorder %v5888, 0.0
      %vm6567 = vcmp.gt.f32.partialorder %v5937, 0.0
      %vm6568 = vcmp.gt.f32.partialorder %v5986, 0.0
      %vm6569 = vcmp.gt.f32.partialorder %v6035, 0.0
      %vm6570 = vcmp.gt.f32.partialorder %v6084, 0.0
      %vm6571 = vcmp.gt.f32.partialorder %v6133, 0.0
      %vm6572 = vcmp.gt.f32.partialorder %v6182, 0.0
      %vm6573 = vcmp.gt.f32.partialorder %v6231, 0.0
      %vm6574 = vcmp.gt.f32.partialorder %v5107, 0.0
      %vm6575 = vcmp.gt.f32.partialorder %v5156, 0.0
      %vm6576 = vcmp.gt.f32.partialorder %v5205, 0.0
      %vm6577 = vcmp.gt.f32.partialorder %v5254, 0.0
      %vm6578 = vcmp.gt.f32.partialorder %v5303, 0.0
      %vm6579 = vcmp.gt.f32.partialorder %v5352, 0.0
      %vm6580 = vcmp.gt.f32.partialorder %v5401, 0.0
      %vm6581 = vcmp.gt.f32.partialorder %v5450, 0.0
      %vm6582 = vcmp.gt.f32.partialorder %v5499, 0.0
      %vm6583 = vcmp.gt.f32.partialorder %v5548, 0.0
      %vm6584 = vcmp.gt.f32.partialorder %v5597, 0.0
      %vm6585 = vcmp.gt.f32.partialorder %v5646, 0.0
      %vm6586 = vcmp.gt.f32.partialorder %v5695, 0.0
      %vm6587 = vcmp.gt.f32.partialorder %v5744, 0.0
      %vm6588 = vcmp.gt.f32.partialorder %v5793, 0.0
      %vm6589 = vcmp.gt.f32.partialorder %v5842, 0.0
      %vm6590 = vcmp.gt.f32.partialorder %v5891, 0.0
      %vm6591 = vcmp.gt.f32.partialorder %v5940, 0.0
      %vm6592 = vcmp.gt.f32.partialorder %v5989, 0.0
      %vm6593 = vcmp.gt.f32.partialorder %v6038, 0.0
      %vm6594 = vcmp.gt.f32.partialorder %v6087, 0.0
      %vm6595 = vcmp.gt.f32.partialorder %v6136, 0.0
      %vm6596 = vcmp.gt.f32.partialorder %v6185, 0.0
      %vm6597 = vcmp.gt.f32.partialorder %v6234, 0.0
      %vm6598 = vcmp.gt.f32.partialorder %v5109, 0.0
      %vm6599 = vcmp.gt.f32.partialorder %v5158, 0.0
      %vm6600 = vcmp.gt.f32.partialorder %v5207, 0.0
      %vm6601 = vcmp.gt.f32.partialorder %v5256, 0.0
      %vm6602 = vcmp.gt.f32.partialorder %v5305, 0.0
      %vm6603 = vcmp.gt.f32.partialorder %v5354, 0.0
      %vm6604 = vcmp.gt.f32.partialorder %v5403, 0.0
      %vm6605 = vcmp.gt.f32.partialorder %v5452, 0.0
      %vm6606 = vcmp.gt.f32.partialorder %v5501, 0.0
      %vm6607 = vcmp.gt.f32.partialorder %v5550, 0.0
      %vm6608 = vcmp.gt.f32.partialorder %v5599, 0.0
      %vm6609 = vcmp.gt.f32.partialorder %v5648, 0.0
      %vm6610 = vcmp.gt.f32.partialorder %v5697, 0.0
      %vm6611 = vcmp.gt.f32.partialorder %v5746, 0.0
      %vm6612 = vcmp.gt.f32.partialorder %v5795, 0.0
      %vm6613 = vcmp.gt.f32.partialorder %v5844, 0.0
      %vm6614 = vcmp.gt.f32.partialorder %v5893, 0.0
      %vm6615 = vcmp.gt.f32.partialorder %v5942, 0.0
      %vm6616 = vcmp.gt.f32.partialorder %v5991, 0.0
      %vm6617 = vcmp.gt.f32.partialorder %v6040, 0.0
      %vm6618 = vcmp.gt.f32.partialorder %v6089, 0.0
      %vm6619 = vcmp.gt.f32.partialorder %v6138, 0.0
      %vm6620 = vcmp.gt.f32.partialorder %v6187, 0.0
      %vm6621 = vcmp.gt.f32.partialorder %v6236, 0.0
      %v6622 = vmul.f32 %v5072, 0.02
      %v6623 = vmul.f32 %v5121, 0.02
      %v6624 = vmul.f32 %v5170, 0.02
      %v6625 = vmul.f32 %v5219, 0.02
      %v6626 = vmul.f32 %v5268, 0.02
      %v6627 = vmul.f32 %v5317, 0.02
      %v6628 = vmul.f32 %v5366, 0.02
      %v6629 = vmul.f32 %v5415, 0.02
      %v6630 = vmul.f32 %v5464, 0.02
      %v6631 = vmul.f32 %v5513, 0.02
      %v6632 = vmul.f32 %v5562, 0.02
      %v6633 = vmul.f32 %v5611, 0.02
      %v6634 = vmul.f32 %v5660, 0.02
      %v6635 = vmul.f32 %v5709, 0.02
      %v6636 = vmul.f32 %v5758, 0.02
      %v6637 = vmul.f32 %v5807, 0.02
      %v6638 = vmul.f32 %v5856, 0.02
      %v6639 = vmul.f32 %v5905, 0.02
      %v6640 = vmul.f32 %v5954, 0.02
      %v6641 = vmul.f32 %v6003, 0.02
      %v6642 = vmul.f32 %v6052, 0.02
      %v6643 = vmul.f32 %v6101, 0.02
      %v6644 = vmul.f32 %v6150, 0.02
      %v6645 = vmul.f32 %v6199, 0.02
      %v6646 = vmul.f32 %v5074, 0.02
      %v6647 = vmul.f32 %v5123, 0.02
      %v6648 = vmul.f32 %v5172, 0.02
      %v6649 = vmul.f32 %v5221, 0.02
      %v6650 = vmul.f32 %v5270, 0.02
      %v6651 = vmul.f32 %v5319, 0.02
      %v6652 = vmul.f32 %v5368, 0.02
      %v6653 = vmul.f32 %v5417, 0.02
      %v6654 = vmul.f32 %v5466, 0.02
      %v6655 = vmul.f32 %v5515, 0.02
      %v6656 = vmul.f32 %v5564, 0.02
      %v6657 = vmul.f32 %v5613, 0.02
      %v6658 = vmul.f32 %v5662, 0.02
      %v6659 = vmul.f32 %v5711, 0.02
      %v6660 = vmul.f32 %v5760, 0.02
      %v6661 = vmul.f32 %v5809, 0.02
      %v6662 = vmul.f32 %v5858, 0.02
      %v6663 = vmul.f32 %v5907, 0.02
      %v6664 = vmul.f32 %v5956, 0.02
      %v6665 = vmul.f32 %v6005, 0.02
      %v6666 = vmul.f32 %v6054, 0.02
      %v6667 = vmul.f32 %v6103, 0.02
      %v6668 = vmul.f32 %v6152, 0.02
      %v6669 = vmul.f32 %v6201, 0.02
      %v6670 = vmul.f32 %v5077, 0.02
      %v6671 = vmul.f32 %v5126, 0.02
      %v6672 = vmul.f32 %v5175, 0.02
      %v6673 = vmul.f32 %v5224, 0.02
      %v6674 = vmul.f32 %v5273, 0.02
      %v6675 = vmul.f32 %v5322, 0.02
      %v6676 = vmul.f32 %v5371, 0.02
      %v6677 = vmul.f32 %v5420, 0.02
      %v6678 = vmul.f32 %v5469, 0.02
      %v6679 = vmul.f32 %v5518, 0.02
      %v6680 = vmul.f32 %v5567, 0.02
      %v6681 = vmul.f32 %v5616, 0.02
      %v6682 = vmul.f32 %v5665, 0.02
      %v6683 = vmul.f32 %v5714, 0.02
      %v6684 = vmul.f32 %v5763, 0.02
      %v6685 = vmul.f32 %v5812, 0.02
      %v6686 = vmul.f32 %v5861, 0.02
      %v6687 = vmul.f32 %v5910, 0.02
      %v6688 = vmul.f32 %v5959, 0.02
      %v6689 = vmul.f32 %v6008, 0.02
      %v6690 = vmul.f32 %v6057, 0.02
      %v6691 = vmul.f32 %v6106, 0.02
      %v6692 = vmul.f32 %v6155, 0.02
      %v6693 = vmul.f32 %v6204, 0.02
      %v6694 = vmul.f32 %v5079, 0.02
      %v6695 = vmul.f32 %v5128, 0.02
      %v6696 = vmul.f32 %v5177, 0.02
      %v6697 = vmul.f32 %v5226, 0.02
      %v6698 = vmul.f32 %v5275, 0.02
      %v6699 = vmul.f32 %v5324, 0.02
      %v6700 = vmul.f32 %v5373, 0.02
      %v6701 = vmul.f32 %v5422, 0.02
      %v6702 = vmul.f32 %v5471, 0.02
      %v6703 = vmul.f32 %v5520, 0.02
      %v6704 = vmul.f32 %v5569, 0.02
      %v6705 = vmul.f32 %v5618, 0.02
      %v6706 = vmul.f32 %v5667, 0.02
      %v6707 = vmul.f32 %v5716, 0.02
      %v6708 = vmul.f32 %v5765, 0.02
      %v6709 = vmul.f32 %v5814, 0.02
      %v6710 = vmul.f32 %v5863, 0.02
      %v6711 = vmul.f32 %v5912, 0.02
      %v6712 = vmul.f32 %v5961, 0.02
      %v6713 = vmul.f32 %v6010, 0.02
      %v6714 = vmul.f32 %v6059, 0.02
      %v6715 = vmul.f32 %v6108, 0.02
      %v6716 = vmul.f32 %v6157, 0.02
      %v6717 = vmul.f32 %v6206, 0.02
      %v6718 = vmul.f32 %v5082, 0.02
      %v6719 = vmul.f32 %v5131, 0.02
      %v6720 = vmul.f32 %v5180, 0.02
      %v6721 = vmul.f32 %v5229, 0.02
      %v6722 = vmul.f32 %v5278, 0.02
      %v6723 = vmul.f32 %v5327, 0.02
      %v6724 = vmul.f32 %v5376, 0.02
      %v6725 = vmul.f32 %v5425, 0.02
      %v6726 = vmul.f32 %v5474, 0.02
      %v6727 = vmul.f32 %v5523, 0.02
      %v6728 = vmul.f32 %v5572, 0.02
      %v6729 = vmul.f32 %v5621, 0.02
      %v6730 = vmul.f32 %v5670, 0.02
      %v6731 = vmul.f32 %v5719, 0.02
      %v6732 = vmul.f32 %v5768, 0.02
      %v6733 = vmul.f32 %v5817, 0.02
      %v6734 = vmul.f32 %v5866, 0.02
      %v6735 = vmul.f32 %v5915, 0.02
      %v6736 = vmul.f32 %v5964, 0.02
      %v6737 = vmul.f32 %v6013, 0.02
      %v6738 = vmul.f32 %v6062, 0.02
      %v6739 = vmul.f32 %v6111, 0.02
      %v6740 = vmul.f32 %v6160, 0.02
      %v6741 = vmul.f32 %v6209, 0.02
      %v6742 = vmul.f32 %v5084, 0.02
      %v6743 = vmul.f32 %v5133, 0.02
      %v6744 = vmul.f32 %v5182, 0.02
      %v6745 = vmul.f32 %v5231, 0.02
      %v6746 = vmul.f32 %v5280, 0.02
      %v6747 = vmul.f32 %v5329, 0.02
      %v6748 = vmul.f32 %v5378, 0.02
      %v6749 = vmul.f32 %v5427, 0.02
      %v6750 = vmul.f32 %v5476, 0.02
      %v6751 = vmul.f32 %v5525, 0.02
      %v6752 = vmul.f32 %v5574, 0.02
      %v6753 = vmul.f32 %v5623, 0.02
      %v6754 = vmul.f32 %v5672, 0.02
      %v6755 = vmul.f32 %v5721, 0.02
      %v6756 = vmul.f32 %v5770, 0.02
      %v6757 = vmul.f32 %v5819, 0.02
      %v6758 = vmul.f32 %v5868, 0.02
      %v6759 = vmul.f32 %v5917, 0.02
      %v6760 = vmul.f32 %v5966, 0.02
      %v6761 = vmul.f32 %v6015, 0.02
      %v6762 = vmul.f32 %v6064, 0.02
      %v6763 = vmul.f32 %v6113, 0.02
      %v6764 = vmul.f32 %v6162, 0.02
      %v6765 = vmul.f32 %v6211, 0.02
      %v6766 = vmul.f32 %v5087, 0.02
      %v6767 = vmul.f32 %v5136, 0.02
      %v6768 = vmul.f32 %v5185, 0.02
      %v6769 = vmul.f32 %v5234, 0.02
      %v6770 = vmul.f32 %v5283, 0.02
      %v6771 = vmul.f32 %v5332, 0.02
      %v6772 = vmul.f32 %v5381, 0.02
      %v6773 = vmul.f32 %v5430, 0.02
      %v6774 = vmul.f32 %v5479, 0.02
      %v6775 = vmul.f32 %v5528, 0.02
      %v6776 = vmul.f32 %v5577, 0.02
      %v6777 = vmul.f32 %v5626, 0.02
      %v6778 = vmul.f32 %v5675, 0.02
      %v6779 = vmul.f32 %v5724, 0.02
      %v6780 = vmul.f32 %v5773, 0.02
      %v6781 = vmul.f32 %v5822, 0.02
      %v6782 = vmul.f32 %v5871, 0.02
      %v6783 = vmul.f32 %v5920, 0.02
      %v6784 = vmul.f32 %v5969, 0.02
      %v6785 = vmul.f32 %v6018, 0.02
      %v6786 = vmul.f32 %v6067, 0.02
      %v6787 = vmul.f32 %v6116, 0.02
      %v6788 = vmul.f32 %v6165, 0.02
      %v6789 = vmul.f32 %v6214, 0.02
      %v6790 = vmul.f32 %v5089, 0.02
      %v6791 = vmul.f32 %v5138, 0.02
      %v6792 = vmul.f32 %v5187, 0.02
      %v6793 = vmul.f32 %v5236, 0.02
      %v6794 = vmul.f32 %v5285, 0.02
      %v6795 = vmul.f32 %v5334, 0.02
      %v6796 = vmul.f32 %v5383, 0.02
      %v6797 = vmul.f32 %v5432, 0.02
      %v6798 = vmul.f32 %v5481, 0.02
      %v6799 = vmul.f32 %v5530, 0.02
      %v6800 = vmul.f32 %v5579, 0.02
      %v6801 = vmul.f32 %v5628, 0.02
      %v6802 = vmul.f32 %v5677, 0.02
      %v6803 = vmul.f32 %v5726, 0.02
      %v6804 = vmul.f32 %v5775, 0.02
      %v6805 = vmul.f32 %v5824, 0.02
      %v6806 = vmul.f32 %v5873, 0.02
      %v6807 = vmul.f32 %v5922, 0.02
      %v6808 = vmul.f32 %v5971, 0.02
      %v6809 = vmul.f32 %v6020, 0.02
      %v6810 = vmul.f32 %v6069, 0.02
      %v6811 = vmul.f32 %v6118, 0.02
      %v6812 = vmul.f32 %v6167, 0.02
      %v6813 = vmul.f32 %v6216, 0.02
      %v6814 = vmul.f32 %v5092, 0.02
      %v6815 = vmul.f32 %v5141, 0.02
      %v6816 = vmul.f32 %v5190, 0.02
      %v6817 = vmul.f32 %v5239, 0.02
      %v6818 = vmul.f32 %v5288, 0.02
      %v6819 = vmul.f32 %v5337, 0.02
      %v6820 = vmul.f32 %v5386, 0.02
      %v6821 = vmul.f32 %v5435, 0.02
      %v6822 = vmul.f32 %v5484, 0.02
      %v6823 = vmul.f32 %v5533, 0.02
      %v6824 = vmul.f32 %v5582, 0.02
      %v6825 = vmul.f32 %v5631, 0.02
      %v6826 = vmul.f32 %v5680, 0.02
      %v6827 = vmul.f32 %v5729, 0.02
      %v6828 = vmul.f32 %v5778, 0.02
      %v6829 = vmul.f32 %v5827, 0.02
      %v6830 = vmul.f32 %v5876, 0.02
      %v6831 = vmul.f32 %v5925, 0.02
      %v6832 = vmul.f32 %v5974, 0.02
      %v6833 = vmul.f32 %v6023, 0.02
      %v6834 = vmul.f32 %v6072, 0.02
      %v6835 = vmul.f32 %v6121, 0.02
      %v6836 = vmul.f32 %v6170, 0.02
      %v6837 = vmul.f32 %v6219, 0.02
      %v6838 = vmul.f32 %v5094, 0.02
      %v6839 = vmul.f32 %v5143, 0.02
      %v6840 = vmul.f32 %v5192, 0.02
      %v6841 = vmul.f32 %v5241, 0.02
      %v6842 = vmul.f32 %v5290, 0.02
      %v6843 = vmul.f32 %v5339, 0.02
      %v6844 = vmul.f32 %v5388, 0.02
      %v6845 = vmul.f32 %v5437, 0.02
      %v6846 = vmul.f32 %v5486, 0.02
      %v6847 = vmul.f32 %v5535, 0.02
      %v6848 = vmul.f32 %v5584, 0.02
      %v6849 = vmul.f32 %v5633, 0.02
      %v6850 = vmul.f32 %v5682, 0.02
      %v6851 = vmul.f32 %v5731, 0.02
      %v6852 = vmul.f32 %v5780, 0.02
      %v6853 = vmul.f32 %v5829, 0.02
      %v6854 = vmul.f32 %v5878, 0.02
      %v6855 = vmul.f32 %v5927, 0.02
      %v6856 = vmul.f32 %v5976, 0.02
      %v6857 = vmul.f32 %v6025, 0.02
      %v6858 = vmul.f32 %v6074, 0.02
      %v6859 = vmul.f32 %v6123, 0.02
      %v6860 = vmul.f32 %v6172, 0.02
      %v6861 = vmul.f32 %v6221, 0.02
      %v6862 = vmul.f32 %v5097, 0.02
      %v6863 = vmul.f32 %v5146, 0.02
      %v6864 = vmul.f32 %v5195, 0.02
      %v6865 = vmul.f32 %v5244, 0.02
      %v6866 = vmul.f32 %v5293, 0.02
      %v6867 = vmul.f32 %v5342, 0.02
      %v6868 = vmul.f32 %v5391, 0.02
      %v6869 = vmul.f32 %v5440, 0.02
      %v6870 = vmul.f32 %v5489, 0.02
      %v6871 = vmul.f32 %v5538, 0.02
      %v6872 = vmul.f32 %v5587, 0.02
      %v6873 = vmul.f32 %v5636, 0.02
      %v6874 = vmul.f32 %v5685, 0.02
      %v6875 = vmul.f32 %v5734, 0.02
      %v6876 = vmul.f32 %v5783, 0.02
      %v6877 = vmul.f32 %v5832, 0.02
      %v6878 = vmul.f32 %v5881, 0.02
      %v6879 = vmul.f32 %v5930, 0.02
      %v6880 = vmul.f32 %v5979, 0.02
      %v6881 = vmul.f32 %v6028, 0.02
      %v6882 = vmul.f32 %v6077, 0.02
      %v6883 = vmul.f32 %v6126, 0.02
      %v6884 = vmul.f32 %v6175, 0.02
      %v6885 = vmul.f32 %v6224, 0.02
      %v6886 = vmul.f32 %v5099, 0.02
      %v6887 = vmul.f32 %v5148, 0.02
      %v6888 = vmul.f32 %v5197, 0.02
      %v6889 = vmul.f32 %v5246, 0.02
      %v6890 = vmul.f32 %v5295, 0.02
      %v6891 = vmul.f32 %v5344, 0.02
      %v6892 = vmul.f32 %v5393, 0.02
      %v6893 = vmul.f32 %v5442, 0.02
      %v6894 = vmul.f32 %v5491, 0.02
      %v6895 = vmul.f32 %v5540, 0.02
      %v6896 = vmul.f32 %v5589, 0.02
      %v6897 = vmul.f32 %v5638, 0.02
      %v6898 = vmul.f32 %v5687, 0.02
      %v6899 = vmul.f32 %v5736, 0.02
      %v6900 = vmul.f32 %v5785, 0.02
      %v6901 = vmul.f32 %v5834, 0.02
      %v6902 = vmul.f32 %v5883, 0.02
      %v6903 = vmul.f32 %v5932, 0.02
      %v6904 = vmul.f32 %v5981, 0.02
      %v6905 = vmul.f32 %v6030, 0.02
      %v6906 = vmul.f32 %v6079, 0.02
      %v6907 = vmul.f32 %v6128, 0.02
      %v6908 = vmul.f32 %v6177, 0.02
      %v6909 = vmul.f32 %v6226, 0.02
      %v6910 = vmul.f32 %v5102, 0.02
      %v6911 = vmul.f32 %v5151, 0.02
      %v6912 = vmul.f32 %v5200, 0.02
      %v6913 = vmul.f32 %v5249, 0.02
      %v6914 = vmul.f32 %v5298, 0.02
      %v6915 = vmul.f32 %v5347, 0.02
      %v6916 = vmul.f32 %v5396, 0.02
      %v6917 = vmul.f32 %v5445, 0.02
      %v6918 = vmul.f32 %v5494, 0.02
      %v6919 = vmul.f32 %v5543, 0.02
      %v6920 = vmul.f32 %v5592, 0.02
      %v6921 = vmul.f32 %v5641, 0.02
      %v6922 = vmul.f32 %v5690, 0.02
      %v6923 = vmul.f32 %v5739, 0.02
      %v6924 = vmul.f32 %v5788, 0.02
      %v6925 = vmul.f32 %v5837, 0.02
      %v6926 = vmul.f32 %v5886, 0.02
      %v6927 = vmul.f32 %v5935, 0.02
      %v6928 = vmul.f32 %v5984, 0.02
      %v6929 = vmul.f32 %v6033, 0.02
      %v6930 = vmul.f32 %v6082, 0.02
      %v6931 = vmul.f32 %v6131, 0.02
      %v6932 = vmul.f32 %v6180, 0.02
      %v6933 = vmul.f32 %v6229, 0.02
      %v6934 = vmul.f32 %v5104, 0.02
      %v6935 = vmul.f32 %v5153, 0.02
      %v6936 = vmul.f32 %v5202, 0.02
      %v6937 = vmul.f32 %v5251, 0.02
      %v6938 = vmul.f32 %v5300, 0.02
      %v6939 = vmul.f32 %v5349, 0.02
      %v6940 = vmul.f32 %v5398, 0.02
      %v6941 = vmul.f32 %v5447, 0.02
      %v6942 = vmul.f32 %v5496, 0.02
      %v6943 = vmul.f32 %v5545, 0.02
      %v6944 = vmul.f32 %v5594, 0.02
      %v6945 = vmul.f32 %v5643, 0.02
      %v6946 = vmul.f32 %v5692, 0.02
      %v6947 = vmul.f32 %v5741, 0.02
      %v6948 = vmul.f32 %v5790, 0.02
      %v6949 = vmul.f32 %v5839, 0.02
      %v6950 = vmul.f32 %v5888, 0.02
      %v6951 = vmul.f32 %v5937, 0.02
      %v6952 = vmul.f32 %v5986, 0.02
      %v6953 = vmul.f32 %v6035, 0.02
      %v6954 = vmul.f32 %v6084, 0.02
      %v6955 = vmul.f32 %v6133, 0.02
      %v6956 = vmul.f32 %v6182, 0.02
      %v6957 = vmul.f32 %v6231, 0.02
      %v6958 = vmul.f32 %v5107, 0.02
      %v6959 = vmul.f32 %v5156, 0.02
      %v6960 = vmul.f32 %v5205, 0.02
      %v6961 = vmul.f32 %v5254, 0.02
      %v6962 = vmul.f32 %v5303, 0.02
      %v6963 = vmul.f32 %v5352, 0.02
      %v6964 = vmul.f32 %v5401, 0.02
      %v6965 = vmul.f32 %v5450, 0.02
      %v6966 = vmul.f32 %v5499, 0.02
      %v6967 = vmul.f32 %v5548, 0.02
      %v6968 = vmul.f32 %v5597, 0.02
      %v6969 = vmul.f32 %v5646, 0.02
      %v6970 = vmul.f32 %v5695, 0.02
      %v6971 = vmul.f32 %v5744, 0.02
      %v6972 = vmul.f32 %v5793, 0.02
      %v6973 = vmul.f32 %v5842, 0.02
      %v6974 = vmul.f32 %v5891, 0.02
      %v6975 = vmul.f32 %v5940, 0.02
      %v6976 = vmul.f32 %v5989, 0.02
      %v6977 = vmul.f32 %v6038, 0.02
      %v6978 = vmul.f32 %v6087, 0.02
      %v6979 = vmul.f32 %v6136, 0.02
      %v6980 = vmul.f32 %v6185, 0.02
      %v6981 = vmul.f32 %v6234, 0.02
      %v6982 = vmul.f32 %v5109, 0.02
      %v6983 = vmul.f32 %v5158, 0.02
      %v6984 = vmul.f32 %v5207, 0.02
      %v6985 = vmul.f32 %v5256, 0.02
      %v6986 = vmul.f32 %v5305, 0.02
      %v6987 = vmul.f32 %v5354, 0.02
      %v6988 = vmul.f32 %v5403, 0.02
      %v6989 = vmul.f32 %v5452, 0.02
      %v6990 = vmul.f32 %v5501, 0.02
      %v6991 = vmul.f32 %v5550, 0.02
      %v6992 = vmul.f32 %v5599, 0.02
      %v6993 = vmul.f32 %v5648, 0.02
      %v6994 = vmul.f32 %v5697, 0.02
      %v6995 = vmul.f32 %v5746, 0.02
      %v6996 = vmul.f32 %v5795, 0.02
      %v6997 = vmul.f32 %v5844, 0.02
      %v6998 = vmul.f32 %v5893, 0.02
      %v6999 = vmul.f32 %v5942, 0.02
      %v7000 = vmul.f32 %v5991, 0.02
      %v7001 = vmul.f32 %v6040, 0.02
      %v7002 = vmul.f32 %v6089, 0.02
      %v7003 = vmul.f32 %v6138, 0.02
      %v7004 = vmul.f32 %v6187, 0.02
      %v7005 = vmul.f32 %v6236, 0.02
      %v7006 = vsel %vm6238, %v5072, %v6622
      %v7007 = vsel %vm6239, %v5121, %v6623
      %v7008 = vsel %vm6240, %v5170, %v6624
      %v7009 = vsel %vm6241, %v5219, %v6625
      %v7010 = vsel %vm6242, %v5268, %v6626
      %v7011 = vsel %vm6243, %v5317, %v6627
      %v7012 = vsel %vm6244, %v5366, %v6628
      %v7013 = vsel %vm6245, %v5415, %v6629
      %v7014 = vsel %vm6246, %v5464, %v6630
      %v7015 = vsel %vm6247, %v5513, %v6631
      %v7016 = vsel %vm6248, %v5562, %v6632
      %v7017 = vsel %vm6249, %v5611, %v6633
      %v7018 = vsel %vm6250, %v5660, %v6634
      %v7019 = vsel %vm6251, %v5709, %v6635
      %v7020 = vsel %vm6252, %v5758, %v6636
      %v7021 = vsel %vm6253, %v5807, %v6637
      %v7022 = vsel %vm6254, %v5856, %v6638
      %v7023 = vsel %vm6255, %v5905, %v6639
      %v7024 = vsel %vm6256, %v5954, %v6640
      %v7025 = vsel %vm6257, %v6003, %v6641
      %v7026 = vsel %vm6258, %v6052, %v6642
      %v7027 = vsel %vm6259, %v6101, %v6643
      %v7028 = vsel %vm6260, %v6150, %v6644
      %v7029 = vsel %vm6261, %v6199, %v6645
      %v7030 = vsel %vm6262, %v5074, %v6646
      %v7031 = vsel %vm6263, %v5123, %v6647
      %v7032 = vsel %vm6264, %v5172, %v6648
      %v7033 = vsel %vm6265, %v5221, %v6649
      %v7034 = vsel %vm6266, %v5270, %v6650
      %v7035 = vsel %vm6267, %v5319, %v6651
      %v7036 = vsel %vm6268, %v5368, %v6652
      %v7037 = vsel %vm6269, %v5417, %v6653
      %v7038 = vsel %vm6270, %v5466, %v6654
      %v7039 = vsel %vm6271, %v5515, %v6655
      %v7040 = vsel %vm6272, %v5564, %v6656
      %v7041 = vsel %vm6273, %v5613, %v6657
      %v7042 = vsel %vm6274, %v5662, %v6658
      %v7043 = vsel %vm6275, %v5711, %v6659
      %v7044 = vsel %vm6276, %v5760, %v6660
      %v7045 = vsel %vm6277, %v5809, %v6661
      %v7046 = vsel %vm6278, %v5858, %v6662
      %v7047 = vsel %vm6279, %v5907, %v6663
      %v7048 = vsel %vm6280, %v5956, %v6664
      %v7049 = vsel %vm6281, %v6005, %v6665
      %v7050 = vsel %vm6282, %v6054, %v6666
      %v7051 = vsel %vm6283, %v6103, %v6667
      %v7052 = vsel %vm6284, %v6152, %v6668
      %v7053 = vsel %vm6285, %v6201, %v6669
      %v7054 = vsel %vm6286, %v5077, %v6670
      %v7055 = vsel %vm6287, %v5126, %v6671
      %v7056 = vsel %vm6288, %v5175, %v6672
      %v7057 = vsel %vm6289, %v5224, %v6673
      %v7058 = vsel %vm6290, %v5273, %v6674
      %v7059 = vsel %vm6291, %v5322, %v6675
      %v7060 = vsel %vm6292, %v5371, %v6676
      %v7061 = vsel %vm6293, %v5420, %v6677
      %v7062 = vsel %vm6294, %v5469, %v6678
      %v7063 = vsel %vm6295, %v5518, %v6679
      %v7064 = vsel %vm6296, %v5567, %v6680
      %v7065 = vsel %vm6297, %v5616, %v6681
      %v7066 = vsel %vm6298, %v5665, %v6682
      %v7067 = vsel %vm6299, %v5714, %v6683
      %v7068 = vsel %vm6300, %v5763, %v6684
      %v7069 = vsel %vm6301, %v5812, %v6685
      %v7070 = vsel %vm6302, %v5861, %v6686
      %v7071 = vsel %vm6303, %v5910, %v6687
      %v7072 = vsel %vm6304, %v5959, %v6688
      %v7073 = vsel %vm6305, %v6008, %v6689
      %v7074 = vsel %vm6306, %v6057, %v6690
      %v7075 = vsel %vm6307, %v6106, %v6691
      %v7076 = vsel %vm6308, %v6155, %v6692
      %v7077 = vsel %vm6309, %v6204, %v6693
      %v7078 = vsel %vm6310, %v5079, %v6694
      %v7079 = vsel %vm6311, %v5128, %v6695
      %v7080 = vsel %vm6312, %v5177, %v6696
      %v7081 = vsel %vm6313, %v5226, %v6697
      %v7082 = vsel %vm6314, %v5275, %v6698
      %v7083 = vsel %vm6315, %v5324, %v6699
      %v7084 = vsel %vm6316, %v5373, %v6700
      %v7085 = vsel %vm6317, %v5422, %v6701
      %v7086 = vsel %vm6318, %v5471, %v6702
      %v7087 = vsel %vm6319, %v5520, %v6703
      %v7088 = vsel %vm6320, %v5569, %v6704
      %v7089 = vsel %vm6321, %v5618, %v6705
      %v7090 = vsel %vm6322, %v5667, %v6706
      %v7091 = vsel %vm6323, %v5716, %v6707
      %v7092 = vsel %vm6324, %v5765, %v6708
      %v7093 = vsel %vm6325, %v5814, %v6709
      %v7094 = vsel %vm6326, %v5863, %v6710
      %v7095 = vsel %vm6327, %v5912, %v6711
      %v7096 = vsel %vm6328, %v5961, %v6712
      %v7097 = vsel %vm6329, %v6010, %v6713
      %v7098 = vsel %vm6330, %v6059, %v6714
      %v7099 = vsel %vm6331, %v6108, %v6715
      %v7100 = vsel %vm6332, %v6157, %v6716
      %v7101 = vsel %vm6333, %v6206, %v6717
      %v7102 = vsel %vm6334, %v5082, %v6718
      %v7103 = vsel %vm6335, %v5131, %v6719
      %v7104 = vsel %vm6336, %v5180, %v6720
      %v7105 = vsel %vm6337, %v5229, %v6721
      %v7106 = vsel %vm6338, %v5278, %v6722
      %v7107 = vsel %vm6339, %v5327, %v6723
      %v7108 = vsel %vm6340, %v5376, %v6724
      %v7109 = vsel %vm6341, %v5425, %v6725
      %v7110 = vsel %vm6342, %v5474, %v6726
      %v7111 = vsel %vm6343, %v5523, %v6727
      %v7112 = vsel %vm6344, %v5572, %v6728
      %v7113 = vsel %vm6345, %v5621, %v6729
      %v7114 = vsel %vm6346, %v5670, %v6730
      %v7115 = vsel %vm6347, %v5719, %v6731
      %v7116 = vsel %vm6348, %v5768, %v6732
      %v7117 = vsel %vm6349, %v5817, %v6733
      %v7118 = vsel %vm6350, %v5866, %v6734
      %v7119 = vsel %vm6351, %v5915, %v6735
      %v7120 = vsel %vm6352, %v5964, %v6736
      %v7121 = vsel %vm6353, %v6013, %v6737
      %v7122 = vsel %vm6354, %v6062, %v6738
      %v7123 = vsel %vm6355, %v6111, %v6739
      %v7124 = vsel %vm6356, %v6160, %v6740
      %v7125 = vsel %vm6357, %v6209, %v6741
      %v7126 = vsel %vm6358, %v5084, %v6742
      %v7127 = vsel %vm6359, %v5133, %v6743
      %v7128 = vsel %vm6360, %v5182, %v6744
      %v7129 = vsel %vm6361, %v5231, %v6745
      %v7130 = vsel %vm6362, %v5280, %v6746
      %v7131 = vsel %vm6363, %v5329, %v6747
      %v7132 = vsel %vm6364, %v5378, %v6748
      %v7133 = vsel %vm6365, %v5427, %v6749
      %v7134 = vsel %vm6366, %v5476, %v6750
      %v7135 = vsel %vm6367, %v5525, %v6751
      %v7136 = vsel %vm6368, %v5574, %v6752
      %v7137 = vsel %vm6369, %v5623, %v6753
      %v7138 = vsel %vm6370, %v5672, %v6754
      %v7139 = vsel %vm6371, %v5721, %v6755
      %v7140 = vsel %vm6372, %v5770, %v6756
      %v7141 = vsel %vm6373, %v5819, %v6757
      %v7142 = vsel %vm6374, %v5868, %v6758
      %v7143 = vsel %vm6375, %v5917, %v6759
      %v7144 = vsel %vm6376, %v5966, %v6760
      %v7145 = vsel %vm6377, %v6015, %v6761
      %v7146 = vsel %vm6378, %v6064, %v6762
      %v7147 = vsel %vm6379, %v6113, %v6763
      %v7148 = vsel %vm6380, %v6162, %v6764
      %v7149 = vsel %vm6381, %v6211, %v6765
      %v7150 = vsel %vm6382, %v5087, %v6766
      %v7151 = vsel %vm6383, %v5136, %v6767
      %v7152 = vsel %vm6384, %v5185, %v6768
      %v7153 = vsel %vm6385, %v5234, %v6769
      %v7154 = vsel %vm6386, %v5283, %v6770
      %v7155 = vsel %vm6387, %v5332, %v6771
      %v7156 = vsel %vm6388, %v5381, %v6772
      %v7157 = vsel %vm6389, %v5430, %v6773
      %v7158 = vsel %vm6390, %v5479, %v6774
      %v7159 = vsel %vm6391, %v5528, %v6775
      %v7160 = vsel %vm6392, %v5577, %v6776
      %v7161 = vsel %vm6393, %v5626, %v6777
      %v7162 = vsel %vm6394, %v5675, %v6778
      %v7163 = vsel %vm6395, %v5724, %v6779
      %v7164 = vsel %vm6396, %v5773, %v6780
      %v7165 = vsel %vm6397, %v5822, %v6781
      %v7166 = vsel %vm6398, %v5871, %v6782
      %v7167 = vsel %vm6399, %v5920, %v6783
      %v7168 = vsel %vm6400, %v5969, %v6784
      %v7169 = vsel %vm6401, %v6018, %v6785
      %v7170 = vsel %vm6402, %v6067, %v6786
      %v7171 = vsel %vm6403, %v6116, %v6787
      %v7172 = vsel %vm6404, %v6165, %v6788
      %v7173 = vsel %vm6405, %v6214, %v6789
      %v7174 = vsel %vm6406, %v5089, %v6790
      %v7175 = vsel %vm6407, %v5138, %v6791
      %v7176 = vsel %vm6408, %v5187, %v6792
      %v7177 = vsel %vm6409, %v5236, %v6793
      %v7178 = vsel %vm6410, %v5285, %v6794
      %v7179 = vsel %vm6411, %v5334, %v6795
      %v7180 = vsel %vm6412, %v5383, %v6796
      %v7181 = vsel %vm6413, %v5432, %v6797
      %v7182 = vsel %vm6414, %v5481, %v6798
      %v7183 = vsel %vm6415, %v5530, %v6799
      %v7184 = vsel %vm6416, %v5579, %v6800
      %v7185 = vsel %vm6417, %v5628, %v6801
      %v7186 = vsel %vm6418, %v5677, %v6802
      %v7187 = vsel %vm6419, %v5726, %v6803
      %v7188 = vsel %vm6420, %v5775, %v6804
      %v7189 = vsel %vm6421, %v5824, %v6805
      %v7190 = vsel %vm6422, %v5873, %v6806
      %v7191 = vsel %vm6423, %v5922, %v6807
      %v7192 = vsel %vm6424, %v5971, %v6808
      %v7193 = vsel %vm6425, %v6020, %v6809
      %v7194 = vsel %vm6426, %v6069, %v6810
      %v7195 = vsel %vm6427, %v6118, %v6811
      %v7196 = vsel %vm6428, %v6167, %v6812
      %v7197 = vsel %vm6429, %v6216, %v6813
      %v7198 = vsel %vm6430, %v5092, %v6814
      %v7199 = vsel %vm6431, %v5141, %v6815
      %v7200 = vsel %vm6432, %v5190, %v6816
      %v7201 = vsel %vm6433, %v5239, %v6817
      %v7202 = vsel %vm6434, %v5288, %v6818
      %v7203 = vsel %vm6435, %v5337, %v6819
      %v7204 = vsel %vm6436, %v5386, %v6820
      %v7205 = vsel %vm6437, %v5435, %v6821
      %v7206 = vsel %vm6438, %v5484, %v6822
      %v7207 = vsel %vm6439, %v5533, %v6823
      %v7208 = vsel %vm6440, %v5582, %v6824
      %v7209 = vsel %vm6441, %v5631, %v6825
      %v7210 = vsel %vm6442, %v5680, %v6826
      %v7211 = vsel %vm6443, %v5729, %v6827
      %v7212 = vsel %vm6444, %v5778, %v6828
      %v7213 = vsel %vm6445, %v5827, %v6829
      %v7214 = vsel %vm6446, %v5876, %v6830
      %v7215 = vsel %vm6447, %v5925, %v6831
      %v7216 = vsel %vm6448, %v5974, %v6832
      %v7217 = vsel %vm6449, %v6023, %v6833
      %v7218 = vsel %vm6450, %v6072, %v6834
      %v7219 = vsel %vm6451, %v6121, %v6835
      %v7220 = vsel %vm6452, %v6170, %v6836
      %v7221 = vsel %vm6453, %v6219, %v6837
      %v7222 = vsel %vm6454, %v5094, %v6838
      %v7223 = vsel %vm6455, %v5143, %v6839
      %v7224 = vsel %vm6456, %v5192, %v6840
      %v7225 = vsel %vm6457, %v5241, %v6841
      %v7226 = vsel %vm6458, %v5290, %v6842
      %v7227 = vsel %vm6459, %v5339, %v6843
      %v7228 = vsel %vm6460, %v5388, %v6844
      %v7229 = vsel %vm6461, %v5437, %v6845
      %v7230 = vsel %vm6462, %v5486, %v6846
      %v7231 = vsel %vm6463, %v5535, %v6847
      %v7232 = vsel %vm6464, %v5584, %v6848
      %v7233 = vsel %vm6465, %v5633, %v6849
      %v7234 = vsel %vm6466, %v5682, %v6850
      %v7235 = vsel %vm6467, %v5731, %v6851
      %v7236 = vsel %vm6468, %v5780, %v6852
      %v7237 = vsel %vm6469, %v5829, %v6853
      %v7238 = vsel %vm6470, %v5878, %v6854
      %v7239 = vsel %vm6471, %v5927, %v6855
      %v7240 = vsel %vm6472, %v5976, %v6856
      %v7241 = vsel %vm6473, %v6025, %v6857
      %v7242 = vsel %vm6474, %v6074, %v6858
      %v7243 = vsel %vm6475, %v6123, %v6859
      %v7244 = vsel %vm6476, %v6172, %v6860
      %v7245 = vsel %vm6477, %v6221, %v6861
      %v7246 = vsel %vm6478, %v5097, %v6862
      %v7247 = vsel %vm6479, %v5146, %v6863
      %v7248 = vsel %vm6480, %v5195, %v6864
      %v7249 = vsel %vm6481, %v5244, %v6865
      %v7250 = vsel %vm6482, %v5293, %v6866
      %v7251 = vsel %vm6483, %v5342, %v6867
      %v7252 = vsel %vm6484, %v5391, %v6868
      %v7253 = vsel %vm6485, %v5440, %v6869
      %v7254 = vsel %vm6486, %v5489, %v6870
      %v7255 = vsel %vm6487, %v5538, %v6871
      %v7256 = vsel %vm6488, %v5587, %v6872
      %v7257 = vsel %vm6489, %v5636, %v6873
      %v7258 = vsel %vm6490, %v5685, %v6874
      %v7259 = vsel %vm6491, %v5734, %v6875
      %v7260 = vsel %vm6492, %v5783, %v6876
      %v7261 = vsel %vm6493, %v5832, %v6877
      %v7262 = vsel %vm6494, %v5881, %v6878
      %v7263 = vsel %vm6495, %v5930, %v6879
      %v7264 = vsel %vm6496, %v5979, %v6880
      %v7265 = vsel %vm6497, %v6028, %v6881
      %v7266 = vsel %vm6498, %v6077, %v6882
      %v7267 = vsel %vm6499, %v6126, %v6883
      %v7268 = vsel %vm6500, %v6175, %v6884
      %v7269 = vsel %vm6501, %v6224, %v6885
      %v7270 = vsel %vm6502, %v5099, %v6886
      %v7271 = vsel %vm6503, %v5148, %v6887
      %v7272 = vsel %vm6504, %v5197, %v6888
      %v7273 = vsel %vm6505, %v5246, %v6889
      %v7274 = vsel %vm6506, %v5295, %v6890
      %v7275 = vsel %vm6507, %v5344, %v6891
      %v7276 = vsel %vm6508, %v5393, %v6892
      %v7277 = vsel %vm6509, %v5442, %v6893
      %v7278 = vsel %vm6510, %v5491, %v6894
      %v7279 = vsel %vm6511, %v5540, %v6895
      %v7280 = vsel %vm6512, %v5589, %v6896
      %v7281 = vsel %vm6513, %v5638, %v6897
      %v7282 = vsel %vm6514, %v5687, %v6898
      %v7283 = vsel %vm6515, %v5736, %v6899
      %v7284 = vsel %vm6516, %v5785, %v6900
      %v7285 = vsel %vm6517, %v5834, %v6901
      %v7286 = vsel %vm6518, %v5883, %v6902
      %v7287 = vsel %vm6519, %v5932, %v6903
      %v7288 = vsel %vm6520, %v5981, %v6904
      %v7289 = vsel %vm6521, %v6030, %v6905
      %v7290 = vsel %vm6522, %v6079, %v6906
      %v7291 = vsel %vm6523, %v6128, %v6907
      %v7292 = vsel %vm6524, %v6177, %v6908
      %v7293 = vsel %vm6525, %v6226, %v6909
      %v7294 = vsel %vm6526, %v5102, %v6910
      %v7295 = vsel %vm6527, %v5151, %v6911
      %v7296 = vsel %vm6528, %v5200, %v6912
      %v7297 = vsel %vm6529, %v5249, %v6913
      %v7298 = vsel %vm6530, %v5298, %v6914
      %v7299 = vsel %vm6531, %v5347, %v6915
      %v7300 = vsel %vm6532, %v5396, %v6916
      %v7301 = vsel %vm6533, %v5445, %v6917
      %v7302 = vsel %vm6534, %v5494, %v6918
      %v7303 = vsel %vm6535, %v5543, %v6919
      %v7304 = vsel %vm6536, %v5592, %v6920
      %v7305 = vsel %vm6537, %v5641, %v6921
      %v7306 = vsel %vm6538, %v5690, %v6922
      %v7307 = vsel %vm6539, %v5739, %v6923
      %v7308 = vsel %vm6540, %v5788, %v6924
      %v7309 = vsel %vm6541, %v5837, %v6925
      %v7310 = vsel %vm6542, %v5886, %v6926
      %v7311 = vsel %vm6543, %v5935, %v6927
      %v7312 = vsel %vm6544, %v5984, %v6928
      %v7313 = vsel %vm6545, %v6033, %v6929
      %v7314 = vsel %vm6546, %v6082, %v6930
      %v7315 = vsel %vm6547, %v6131, %v6931
      %v7316 = vsel %vm6548, %v6180, %v6932
      %v7317 = vsel %vm6549, %v6229, %v6933
      %v7318 = vsel %vm6550, %v5104, %v6934
      %v7319 = vsel %vm6551, %v5153, %v6935
      %v7320 = vsel %vm6552, %v5202, %v6936
      %v7321 = vsel %vm6553, %v5251, %v6937
      %v7322 = vsel %vm6554, %v5300, %v6938
      %v7323 = vsel %vm6555, %v5349, %v6939
      %v7324 = vsel %vm6556, %v5398, %v6940
      %v7325 = vsel %vm6557, %v5447, %v6941
      %v7326 = vsel %vm6558, %v5496, %v6942
      %v7327 = vsel %vm6559, %v5545, %v6943
      %v7328 = vsel %vm6560, %v5594, %v6944
      %v7329 = vsel %vm6561, %v5643, %v6945
      %v7330 = vsel %vm6562, %v5692, %v6946
      %v7331 = vsel %vm6563, %v5741, %v6947
      %v7332 = vsel %vm6564, %v5790, %v6948
      %v7333 = vsel %vm6565, %v5839, %v6949
      %v7334 = vsel %vm6566, %v5888, %v6950
      %v7335 = vsel %vm6567, %v5937, %v6951
      %v7336 = vsel %vm6568, %v5986, %v6952
      %v7337 = vsel %vm6569, %v6035, %v6953
      %v7338 = vsel %vm6570, %v6084, %v6954
      %v7339 = vsel %vm6571, %v6133, %v6955
      %v7340 = vsel %vm6572, %v6182, %v6956
      %v7341 = vsel %vm6573, %v6231, %v6957
      %v7342 = vsel %vm6574, %v5107, %v6958
      %v7343 = vsel %vm6575, %v5156, %v6959
      %v7344 = vsel %vm6576, %v5205, %v6960
      %v7345 = vsel %vm6577, %v5254, %v6961
      %v7346 = vsel %vm6578, %v5303, %v6962
      %v7347 = vsel %vm6579, %v5352, %v6963
      %v7348 = vsel %vm6580, %v5401, %v6964
      %v7349 = vsel %vm6581, %v5450, %v6965
      %v7350 = vsel %vm6582, %v5499, %v6966
      %v7351 = vsel %vm6583, %v5548, %v6967
      %v7352 = vsel %vm6584, %v5597, %v6968
      %v7353 = vsel %vm6585, %v5646, %v6969
      %v7354 = vsel %vm6586, %v5695, %v6970
      %v7355 = vsel %vm6587, %v5744, %v6971
      %v7356 = vsel %vm6588, %v5793, %v6972
      %v7357 = vsel %vm6589, %v5842, %v6973
      %v7358 = vsel %vm6590, %v5891, %v6974
      %v7359 = vsel %vm6591, %v5940, %v6975
      %v7360 = vsel %vm6592, %v5989, %v6976
      %v7361 = vsel %vm6593, %v6038, %v6977
      %v7362 = vsel %vm6594, %v6087, %v6978
      %v7363 = vsel %vm6595, %v6136, %v6979
      %v7364 = vsel %vm6596, %v6185, %v6980
      %v7365 = vsel %vm6597, %v6234, %v6981
      %v7366 = vsel %vm6598, %v5109, %v6982
      %v7367 = vsel %vm6599, %v5158, %v6983
      %v7368 = vsel %vm6600, %v5207, %v6984
      %v7369 = vsel %vm6601, %v5256, %v6985
      %v7370 = vsel %vm6602, %v5305, %v6986
      %v7371 = vsel %vm6603, %v5354, %v6987
      %v7372 = vsel %vm6604, %v5403, %v6988
      %v7373 = vsel %vm6605, %v5452, %v6989
      %v7374 = vsel %vm6606, %v5501, %v6990
      %v7375 = vsel %vm6607, %v5550, %v6991
      %v7376 = vsel %vm6608, %v5599, %v6992
      %v7377 = vsel %vm6609, %v5648, %v6993
      %v7378 = vsel %vm6610, %v5697, %v6994
      %v7379 = vsel %vm6611, %v5746, %v6995
      %v7380 = vsel %vm6612, %v5795, %v6996
      %v7381 = vsel %vm6613, %v5844, %v6997
      %v7382 = vsel %vm6614, %v5893, %v6998
      %v7383 = vsel %vm6615, %v5942, %v6999
      %v7384 = vsel %vm6616, %v5991, %v7000
      %v7385 = vsel %vm6617, %v6040, %v7001
      %v7386 = vsel %vm6618, %v6089, %v7002
      %v7387 = vsel %vm6619, %v6138, %v7003
      %v7388 = vsel %vm6620, %v6187, %v7004
      %v7389 = vsel %vm6621, %v6236, %v7005
      %v7390 = vld [vmem:[%s13] sm:$0xf]
      %v7391 = vld [vmem:[%s13 + $0x4] sm:$0xf]
      %v7392 = vpack.c.bf16 %v7030, %v7006
      %v7393 = vpack.c.bf16 %v7031, %v7007
      %v7394 = vpack.c.bf16 %v7032, %v7008
      %v7395 = vpack.c.bf16 %v7033, %v7009
      %v7396 = vpack.c.bf16 %v7034, %v7010
      %v7397 = vpack.c.bf16 %v7035, %v7011
      %v7398 = vpack.c.bf16 %v7036, %v7012
      %v7399 = vpack.c.bf16 %v7037, %v7013
      %v7400 = vpack.c.bf16 %v7038, %v7014
      %v7401 = vpack.c.bf16 %v7039, %v7015
      %v7402 = vpack.c.bf16 %v7040, %v7016
      %v7403 = vpack.c.bf16 %v7041, %v7017
      %v7404 = vpack.c.bf16 %v7042, %v7018
      %v7405 = vpack.c.bf16 %v7043, %v7019
      %v7406 = vpack.c.bf16 %v7044, %v7020
      %v7407 = vpack.c.bf16 %v7045, %v7021
      %v7408 = vpack.c.bf16 %v7046, %v7022
      %v7409 = vpack.c.bf16 %v7047, %v7023
      %v7410 = vpack.c.bf16 %v7048, %v7024
      %v7411 = vpack.c.bf16 %v7049, %v7025
      %v7412 = vpack.c.bf16 %v7050, %v7026
      %v7413 = vpack.c.bf16 %v7051, %v7027
      %v7414 = vpack.c.bf16 %v7052, %v7028
      %v7415 = vpack.c.bf16 %v7053, %v7029
      %v7416 = vpack.c.bf16 %v7078, %v7054
      %v7417 = vpack.c.bf16 %v7079, %v7055
      %v7418 = vpack.c.bf16 %v7080, %v7056
      %v7419 = vpack.c.bf16 %v7081, %v7057
      %v7420 = vpack.c.bf16 %v7082, %v7058
      %v7421 = vpack.c.bf16 %v7083, %v7059
      %v7422 = vpack.c.bf16 %v7084, %v7060
      %v7423 = vpack.c.bf16 %v7085, %v7061
      %v7424 = vpack.c.bf16 %v7086, %v7062
      %v7425 = vpack.c.bf16 %v7087, %v7063
      %v7426 = vpack.c.bf16 %v7088, %v7064
      %v7427 = vpack.c.bf16 %v7089, %v7065
      %v7428 = vpack.c.bf16 %v7090, %v7066
      %v7429 = vpack.c.bf16 %v7091, %v7067
      %v7430 = vpack.c.bf16 %v7092, %v7068
      %v7431 = vpack.c.bf16 %v7093, %v7069
      %v7432 = vpack.c.bf16 %v7094, %v7070
      %v7433 = vpack.c.bf16 %v7095, %v7071
      %v7434 = vpack.c.bf16 %v7096, %v7072
      %v7435 = vpack.c.bf16 %v7097, %v7073
      %v7436 = vpack.c.bf16 %v7098, %v7074
      %v7437 = vpack.c.bf16 %v7099, %v7075
      %v7438 = vpack.c.bf16 %v7100, %v7076
      %v7439 = vpack.c.bf16 %v7101, %v7077
      %v7440 = vpack.c.bf16 %v7126, %v7102
      %v7441 = vpack.c.bf16 %v7127, %v7103
      %v7442 = vpack.c.bf16 %v7128, %v7104
      %v7443 = vpack.c.bf16 %v7129, %v7105
      %v7444 = vpack.c.bf16 %v7130, %v7106
      %v7445 = vpack.c.bf16 %v7131, %v7107
      %v7446 = vpack.c.bf16 %v7132, %v7108
      %v7447 = vpack.c.bf16 %v7133, %v7109
      %v7448 = vpack.c.bf16 %v7134, %v7110
      %v7449 = vpack.c.bf16 %v7135, %v7111
      %v7450 = vpack.c.bf16 %v7136, %v7112
      %v7451 = vpack.c.bf16 %v7137, %v7113
      %v7452 = vpack.c.bf16 %v7138, %v7114
      %v7453 = vpack.c.bf16 %v7139, %v7115
      %v7454 = vpack.c.bf16 %v7140, %v7116
      %v7455 = vpack.c.bf16 %v7141, %v7117
      %v7456 = vpack.c.bf16 %v7142, %v7118
      %v7457 = vpack.c.bf16 %v7143, %v7119
      %v7458 = vpack.c.bf16 %v7144, %v7120
      %v7459 = vpack.c.bf16 %v7145, %v7121
      %v7460 = vpack.c.bf16 %v7146, %v7122
      %v7461 = vpack.c.bf16 %v7147, %v7123
      %v7462 = vpack.c.bf16 %v7148, %v7124
      %v7463 = vpack.c.bf16 %v7149, %v7125
      %v7464 = vpack.c.bf16 %v7174, %v7150
      %v7465 = vpack.c.bf16 %v7175, %v7151
      %v7466 = vpack.c.bf16 %v7176, %v7152
      %v7467 = vpack.c.bf16 %v7177, %v7153
      %v7468 = vpack.c.bf16 %v7178, %v7154
      %v7469 = vpack.c.bf16 %v7179, %v7155
      %v7470 = vpack.c.bf16 %v7180, %v7156
      %v7471 = vpack.c.bf16 %v7181, %v7157
      %v7472 = vpack.c.bf16 %v7182, %v7158
      %v7473 = vpack.c.bf16 %v7183, %v7159
      %v7474 = vpack.c.bf16 %v7184, %v7160
      %v7475 = vpack.c.bf16 %v7185, %v7161
      %v7476 = vpack.c.bf16 %v7186, %v7162
      %v7477 = vpack.c.bf16 %v7187, %v7163
      %v7478 = vpack.c.bf16 %v7188, %v7164
      %v7479 = vpack.c.bf16 %v7189, %v7165
      %v7480 = vpack.c.bf16 %v7190, %v7166
      %v7481 = vpack.c.bf16 %v7191, %v7167
      %v7482 = vpack.c.bf16 %v7192, %v7168
      %v7483 = vpack.c.bf16 %v7193, %v7169
      %v7484 = vpack.c.bf16 %v7194, %v7170
      %v7485 = vpack.c.bf16 %v7195, %v7171
      %v7486 = vpack.c.bf16 %v7196, %v7172
      %v7487 = vpack.c.bf16 %v7197, %v7173
      %v7488 = vpack.c.bf16 %v7222, %v7198
      %v7489 = vpack.c.bf16 %v7223, %v7199
      %v7490 = vpack.c.bf16 %v7224, %v7200
      %v7491 = vpack.c.bf16 %v7225, %v7201
      %v7492 = vpack.c.bf16 %v7226, %v7202
      %v7493 = vpack.c.bf16 %v7227, %v7203
      %v7494 = vpack.c.bf16 %v7228, %v7204
      %v7495 = vpack.c.bf16 %v7229, %v7205
      %v7496 = vpack.c.bf16 %v7230, %v7206
      %v7497 = vpack.c.bf16 %v7231, %v7207
      %v7498 = vpack.c.bf16 %v7232, %v7208
      %v7499 = vpack.c.bf16 %v7233, %v7209
      %v7500 = vpack.c.bf16 %v7234, %v7210
      %v7501 = vpack.c.bf16 %v7235, %v7211
      %v7502 = vpack.c.bf16 %v7236, %v7212
      %v7503 = vpack.c.bf16 %v7237, %v7213
      %v7504 = vpack.c.bf16 %v7238, %v7214
      %v7505 = vpack.c.bf16 %v7239, %v7215
      %v7506 = vpack.c.bf16 %v7240, %v7216
      %v7507 = vpack.c.bf16 %v7241, %v7217
      %v7508 = vpack.c.bf16 %v7242, %v7218
      %v7509 = vpack.c.bf16 %v7243, %v7219
      %v7510 = vpack.c.bf16 %v7244, %v7220
      %v7511 = vpack.c.bf16 %v7245, %v7221
      %v7512 = vpack.c.bf16 %v7270, %v7246
      %v7513 = vpack.c.bf16 %v7271, %v7247
      %v7514 = vpack.c.bf16 %v7272, %v7248
      %v7515 = vpack.c.bf16 %v7273, %v7249
      %v7516 = vpack.c.bf16 %v7274, %v7250
      %v7517 = vpack.c.bf16 %v7275, %v7251
      %v7518 = vpack.c.bf16 %v7276, %v7252
      %v7519 = vpack.c.bf16 %v7277, %v7253
      %v7520 = vpack.c.bf16 %v7278, %v7254
      %v7521 = vpack.c.bf16 %v7279, %v7255
      %v7522 = vpack.c.bf16 %v7280, %v7256
      %v7523 = vpack.c.bf16 %v7281, %v7257
      %v7524 = vpack.c.bf16 %v7282, %v7258
      %v7525 = vpack.c.bf16 %v7283, %v7259
      %v7526 = vpack.c.bf16 %v7284, %v7260
      %v7527 = vpack.c.bf16 %v7285, %v7261
      %v7528 = vpack.c.bf16 %v7286, %v7262
      %v7529 = vpack.c.bf16 %v7287, %v7263
      %v7530 = vpack.c.bf16 %v7288, %v7264
      %v7531 = vpack.c.bf16 %v7289, %v7265
      %v7532 = vpack.c.bf16 %v7290, %v7266
      %v7533 = vpack.c.bf16 %v7291, %v7267
      %v7534 = vpack.c.bf16 %v7292, %v7268
      %v7535 = vpack.c.bf16 %v7293, %v7269
      %v7536 = vpack.c.bf16 %v7318, %v7294
      %v7537 = vpack.c.bf16 %v7319, %v7295
      %v7538 = vpack.c.bf16 %v7320, %v7296
      %v7539 = vpack.c.bf16 %v7321, %v7297
      %v7540 = vpack.c.bf16 %v7322, %v7298
      %v7541 = vpack.c.bf16 %v7323, %v7299
      %v7542 = vpack.c.bf16 %v7324, %v7300
      %v7543 = vpack.c.bf16 %v7325, %v7301
      %v7544 = vpack.c.bf16 %v7326, %v7302
      %v7545 = vpack.c.bf16 %v7327, %v7303
      %v7546 = vpack.c.bf16 %v7328, %v7304
      %v7547 = vpack.c.bf16 %v7329, %v7305
      %v7548 = vpack.c.bf16 %v7330, %v7306
      %v7549 = vpack.c.bf16 %v7331, %v7307
      %v7550 = vpack.c.bf16 %v7332, %v7308
      %v7551 = vpack.c.bf16 %v7333, %v7309
      %v7552 = vpack.c.bf16 %v7334, %v7310
      %v7553 = vpack.c.bf16 %v7335, %v7311
      %v7554 = vpack.c.bf16 %v7336, %v7312
      %v7555 = vpack.c.bf16 %v7337, %v7313
      %v7556 = vpack.c.bf16 %v7338, %v7314
      %v7557 = vpack.c.bf16 %v7339, %v7315
      %v7558 = vpack.c.bf16 %v7340, %v7316
      %v7559 = vpack.c.bf16 %v7341, %v7317
      %v7560 = vpack.c.bf16 %v7366, %v7342
      %v7561 = vpack.c.bf16 %v7367, %v7343
      %v7562 = vpack.c.bf16 %v7368, %v7344
      %v7563 = vpack.c.bf16 %v7369, %v7345
      %v7564 = vpack.c.bf16 %v7370, %v7346
      %v7565 = vpack.c.bf16 %v7371, %v7347
      %v7566 = vpack.c.bf16 %v7372, %v7348
      %v7567 = vpack.c.bf16 %v7373, %v7349
      %v7568 = vpack.c.bf16 %v7374, %v7350
      %v7569 = vpack.c.bf16 %v7375, %v7351
      %v7570 = vpack.c.bf16 %v7376, %v7352
      %v7571 = vpack.c.bf16 %v7377, %v7353
      %v7572 = vpack.c.bf16 %v7378, %v7354
      %v7573 = vpack.c.bf16 %v7379, %v7355
      %v7574 = vpack.c.bf16 %v7380, %v7356
      %v7575 = vpack.c.bf16 %v7381, %v7357
      %v7576 = vpack.c.bf16 %v7382, %v7358
      %v7577 = vpack.c.bf16 %v7383, %v7359
      %v7578 = vpack.c.bf16 %v7384, %v7360
      %v7579 = vpack.c.bf16 %v7385, %v7361
      %v7580 = vpack.c.bf16 %v7386, %v7362
      %v7581 = vpack.c.bf16 %v7387, %v7363
      %v7582 = vpack.c.bf16 %v7388, %v7364
      %v7583 = vpack.c.bf16 %v7389, %v7365
      %v7586 = vunpack.c.l.b16 %v7390
      %v7587 = vunpack.c.l.b16 %v7391
      %v7588 = vpack.c.b16 %v7587, %v7586
      %7590 = vmatpush.bf16.msra.mxu0 %v7560
      %7591 = vmatpush.bf16.msra.mxu0 %v7536
      %7592 = vmatpush.bf16.msra.mxu0 %v7512
      %7593 = vmatpush.bf16.msra.mxu0 %v7488
      %7594 = vmatpush.bf16.msra.mxu0 %v7464
      %7595 = vmatpush.bf16.msra.mxu0 %v7440
      %7596 = vmatpush.bf16.msra.mxu0 %v7416
      %7597 = vmatpush.bf16.msra.mxu0 %v7392
      %7598 = vmatmul.bf16.gmra.mxu0 %v7588
      %v7599 = vpop.f32.mrf.mxu0
      %v7600 = vadd.f32 0.0, %v7599
      %v7601 = vpop.f32.mrf.mxu0
      %7602 = vdwg.mxu0
      %7603 = vmatpush.bf16.msra.mxu0 %v7561
      %7604 = vmatpush.bf16.msra.mxu0 %v7537
      %7605 = vmatpush.bf16.msra.mxu0 %v7513
      %7606 = vmatpush.bf16.msra.mxu0 %v7489
      %7607 = vmatpush.bf16.msra.mxu0 %v7465
      %7608 = vmatpush.bf16.msra.mxu0 %v7441
      %7609 = vmatpush.bf16.msra.mxu0 %v7417
      %7610 = vmatpush.bf16.msra.mxu0 %v7393
      %7611 = vmatmul.bf16.gmra.mxu0 %v7588
      %v7612 = vpop.f32.mrf.mxu0
      %v7613 = vadd.f32 0.0, %v7612
      %v7614 = vpop.f32.mrf.mxu0
      %7615 = vdwg.mxu0
      %7616 = vmatpush.bf16.msra.mxu0 %v7562
      %7617 = vmatpush.bf16.msra.mxu0 %v7538
      %7618 = vmatpush.bf16.msra.mxu0 %v7514
      %7619 = vmatpush.bf16.msra.mxu0 %v7490
      %7620 = vmatpush.bf16.msra.mxu0 %v7466
      %7621 = vmatpush.bf16.msra.mxu0 %v7442
      %7622 = vmatpush.bf16.msra.mxu0 %v7418
      %7623 = vmatpush.bf16.msra.mxu0 %v7394
      %7624 = vmatmul.bf16.gmra.mxu0 %v7588
      %v7625 = vpop.f32.mrf.mxu0
      %v7626 = vadd.f32 0.0, %v7625
      %v7627 = vpop.f32.mrf.mxu0
      %7628 = vdwg.mxu0
      %7629 = vmatpush.bf16.msra.mxu0 %v7563
      %7630 = vmatpush.bf16.msra.mxu0 %v7539
      %7631 = vmatpush.bf16.msra.mxu0 %v7515
      %7632 = vmatpush.bf16.msra.mxu0 %v7491
      %7633 = vmatpush.bf16.msra.mxu0 %v7467
      %7634 = vmatpush.bf16.msra.mxu0 %v7443
      %7635 = vmatpush.bf16.msra.mxu0 %v7419
      %7636 = vmatpush.bf16.msra.mxu0 %v7395
      %7637 = vmatmul.bf16.gmra.mxu0 %v7588
      %v7638 = vpop.f32.mrf.mxu0
      %v7639 = vadd.f32 0.0, %v7638
      %v7640 = vpop.f32.mrf.mxu0
      %7641 = vdwg.mxu0
      %7642 = vmatpush.bf16.msra.mxu0 %v7564
      %7643 = vmatpush.bf16.msra.mxu0 %v7540
      %7644 = vmatpush.bf16.msra.mxu0 %v7516
      %7645 = vmatpush.bf16.msra.mxu0 %v7492
      %7646 = vmatpush.bf16.msra.mxu0 %v7468
      %7647 = vmatpush.bf16.msra.mxu0 %v7444
      %7648 = vmatpush.bf16.msra.mxu0 %v7420
      %7649 = vmatpush.bf16.msra.mxu0 %v7396
      %7650 = vmatmul.bf16.gmra.mxu0 %v7588
      %v7651 = vpop.f32.mrf.mxu0
      %v7652 = vadd.f32 0.0, %v7651
      %v7653 = vpop.f32.mrf.mxu0
      %7654 = vdwg.mxu0
      %7655 = vmatpush.bf16.msra.mxu0 %v7565
      %7656 = vmatpush.bf16.msra.mxu0 %v7541
      %7657 = vmatpush.bf16.msra.mxu0 %v7517
      %7658 = vmatpush.bf16.msra.mxu0 %v7493
      %7659 = vmatpush.bf16.msra.mxu0 %v7469
      %7660 = vmatpush.bf16.msra.mxu0 %v7445
      %7661 = vmatpush.bf16.msra.mxu0 %v7421
      %7662 = vmatpush.bf16.msra.mxu0 %v7397
      %7663 = vmatmul.bf16.gmra.mxu0 %v7588
      %v7664 = vpop.f32.mrf.mxu0
      %v7665 = vadd.f32 0.0, %v7664
      %v7666 = vpop.f32.mrf.mxu0
      %7667 = vdwg.mxu0
      %7668 = vmatpush.bf16.msra.mxu0 %v7566
      %7669 = vmatpush.bf16.msra.mxu0 %v7542
      %7670 = vmatpush.bf16.msra.mxu0 %v7518
      %7671 = vmatpush.bf16.msra.mxu0 %v7494
      %7672 = vmatpush.bf16.msra.mxu0 %v7470
      %7673 = vmatpush.bf16.msra.mxu0 %v7446
      %7674 = vmatpush.bf16.msra.mxu0 %v7422
      %7675 = vmatpush.bf16.msra.mxu0 %v7398
      %7676 = vmatmul.bf16.gmra.mxu0 %v7588
      %v7677 = vpop.f32.mrf.mxu0
      %v7678 = vadd.f32 0.0, %v7677
      %v7679 = vpop.f32.mrf.mxu0
      %7680 = vdwg.mxu0
      %7681 = vmatpush.bf16.msra.mxu0 %v7567
      %7682 = vmatpush.bf16.msra.mxu0 %v7543
      %7683 = vmatpush.bf16.msra.mxu0 %v7519
      %7684 = vmatpush.bf16.msra.mxu0 %v7495
      %7685 = vmatpush.bf16.msra.mxu0 %v7471
      %7686 = vmatpush.bf16.msra.mxu0 %v7447
      %7687 = vmatpush.bf16.msra.mxu0 %v7423
      %7688 = vmatpush.bf16.msra.mxu0 %v7399
      %7689 = vmatmul.bf16.gmra.mxu0 %v7588
      %v7690 = vpop.f32.mrf.mxu0
      %v7691 = vadd.f32 0.0, %v7690
      %v7692 = vpop.f32.mrf.mxu0
      %7693 = vdwg.mxu0
      %7694 = vmatpush.bf16.msra.mxu0 %v7568
      %7695 = vmatpush.bf16.msra.mxu0 %v7544
      %7696 = vmatpush.bf16.msra.mxu0 %v7520
      %7697 = vmatpush.bf16.msra.mxu0 %v7496
      %7698 = vmatpush.bf16.msra.mxu0 %v7472
      %7699 = vmatpush.bf16.msra.mxu0 %v7448
      %7700 = vmatpush.bf16.msra.mxu0 %v7424
      %7701 = vmatpush.bf16.msra.mxu0 %v7400
      %7702 = vmatmul.bf16.gmra.mxu0 %v7588
      %v7703 = vpop.f32.mrf.mxu0
      %v7704 = vadd.f32 0.0, %v7703
      %v7705 = vpop.f32.mrf.mxu0
      %7706 = vdwg.mxu0
      %7707 = vmatpush.bf16.msra.mxu0 %v7569
      %7708 = vmatpush.bf16.msra.mxu0 %v7545
      %7709 = vmatpush.bf16.msra.mxu0 %v7521
      %7710 = vmatpush.bf16.msra.mxu0 %v7497
      %7711 = vmatpush.bf16.msra.mxu0 %v7473
      %7712 = vmatpush.bf16.msra.mxu0 %v7449
      %7713 = vmatpush.bf16.msra.mxu0 %v7425
      %7714 = vmatpush.bf16.msra.mxu0 %v7401
      %7715 = vmatmul.bf16.gmra.mxu0 %v7588
      %v7716 = vpop.f32.mrf.mxu0
      %v7717 = vadd.f32 0.0, %v7716
      %v7718 = vpop.f32.mrf.mxu0
      %7719 = vdwg.mxu0
      %7720 = vmatpush.bf16.msra.mxu0 %v7570
      %7721 = vmatpush.bf16.msra.mxu0 %v7546
      %7722 = vmatpush.bf16.msra.mxu0 %v7522
      %7723 = vmatpush.bf16.msra.mxu0 %v7498
      %7724 = vmatpush.bf16.msra.mxu0 %v7474
      %7725 = vmatpush.bf16.msra.mxu0 %v7450
      %7726 = vmatpush.bf16.msra.mxu0 %v7426
      %7727 = vmatpush.bf16.msra.mxu0 %v7402
      %7728 = vmatmul.bf16.gmra.mxu0 %v7588
      %v7729 = vpop.f32.mrf.mxu0
      %v7730 = vadd.f32 0.0, %v7729
      %v7731 = vpop.f32.mrf.mxu0
      %7732 = vdwg.mxu0
      %7733 = vmatpush.bf16.msra.mxu0 %v7571
      %7734 = vmatpush.bf16.msra.mxu0 %v7547
      %7735 = vmatpush.bf16.msra.mxu0 %v7523
      %7736 = vmatpush.bf16.msra.mxu0 %v7499
      %7737 = vmatpush.bf16.msra.mxu0 %v7475
      %7738 = vmatpush.bf16.msra.mxu0 %v7451
      %7739 = vmatpush.bf16.msra.mxu0 %v7427
      %7740 = vmatpush.bf16.msra.mxu0 %v7403
      %7741 = vmatmul.bf16.gmra.mxu0 %v7588
      %v7742 = vpop.f32.mrf.mxu0
      %v7743 = vadd.f32 0.0, %v7742
      %v7744 = vpop.f32.mrf.mxu0
      %7745 = vdwg.mxu0
      %7746 = vmatpush.bf16.msra.mxu0 %v7572
      %7747 = vmatpush.bf16.msra.mxu0 %v7548
      %7748 = vmatpush.bf16.msra.mxu0 %v7524
      %7749 = vmatpush.bf16.msra.mxu0 %v7500
      %7750 = vmatpush.bf16.msra.mxu0 %v7476
      %7751 = vmatpush.bf16.msra.mxu0 %v7452
      %7752 = vmatpush.bf16.msra.mxu0 %v7428
      %7753 = vmatpush.bf16.msra.mxu0 %v7404
      %7754 = vmatmul.bf16.gmra.mxu0 %v7588
      %v7755 = vpop.f32.mrf.mxu0
      %v7756 = vadd.f32 0.0, %v7755
      %v7757 = vpop.f32.mrf.mxu0
      %7758 = vdwg.mxu0
      %7759 = vmatpush.bf16.msra.mxu0 %v7573
      %7760 = vmatpush.bf16.msra.mxu0 %v7549
      %7761 = vmatpush.bf16.msra.mxu0 %v7525
      %7762 = vmatpush.bf16.msra.mxu0 %v7501
      %7763 = vmatpush.bf16.msra.mxu0 %v7477
      %7764 = vmatpush.bf16.msra.mxu0 %v7453
      %7765 = vmatpush.bf16.msra.mxu0 %v7429
      %7766 = vmatpush.bf16.msra.mxu0 %v7405
      %7767 = vmatmul.bf16.gmra.mxu0 %v7588
      %v7768 = vpop.f32.mrf.mxu0
      %v7769 = vadd.f32 0.0, %v7768
      %v7770 = vpop.f32.mrf.mxu0
      %7771 = vdwg.mxu0
      %7772 = vmatpush.bf16.msra.mxu0 %v7574
      %7773 = vmatpush.bf16.msra.mxu0 %v7550
      %7774 = vmatpush.bf16.msra.mxu0 %v7526
      %7775 = vmatpush.bf16.msra.mxu0 %v7502
      %7776 = vmatpush.bf16.msra.mxu0 %v7478
      %7777 = vmatpush.bf16.msra.mxu0 %v7454
      %7778 = vmatpush.bf16.msra.mxu0 %v7430
      %7779 = vmatpush.bf16.msra.mxu0 %v7406
      %7780 = vmatmul.bf16.gmra.mxu0 %v7588
      %v7781 = vpop.f32.mrf.mxu0
      %v7782 = vadd.f32 0.0, %v7781
      %v7783 = vpop.f32.mrf.mxu0
      %7784 = vdwg.mxu0
      %7785 = vmatpush.bf16.msra.mxu0 %v7575
      %7786 = vmatpush.bf16.msra.mxu0 %v7551
      %7787 = vmatpush.bf16.msra.mxu0 %v7527
      %7788 = vmatpush.bf16.msra.mxu0 %v7503
      %7789 = vmatpush.bf16.msra.mxu0 %v7479
      %7790 = vmatpush.bf16.msra.mxu0 %v7455
      %7791 = vmatpush.bf16.msra.mxu0 %v7431
      %7792 = vmatpush.bf16.msra.mxu0 %v7407
      %7793 = vmatmul.bf16.gmra.mxu0 %v7588
      %v7794 = vpop.f32.mrf.mxu0
      %v7795 = vadd.f32 0.0, %v7794
      %v7796 = vpop.f32.mrf.mxu0
      %7797 = vdwg.mxu0
      %7798 = vmatpush.bf16.msra.mxu0 %v7576
      %7799 = vmatpush.bf16.msra.mxu0 %v7552
      %7800 = vmatpush.bf16.msra.mxu0 %v7528
      %7801 = vmatpush.bf16.msra.mxu0 %v7504
      %7802 = vmatpush.bf16.msra.mxu0 %v7480
      %7803 = vmatpush.bf16.msra.mxu0 %v7456
      %7804 = vmatpush.bf16.msra.mxu0 %v7432
      %7805 = vmatpush.bf16.msra.mxu0 %v7408
      %7806 = vmatmul.bf16.gmra.mxu0 %v7588
      %v7807 = vpop.f32.mrf.mxu0
      %v7808 = vadd.f32 0.0, %v7807
      %v7809 = vpop.f32.mrf.mxu0
      %7810 = vdwg.mxu0
      %7811 = vmatpush.bf16.msra.mxu0 %v7577
      %7812 = vmatpush.bf16.msra.mxu0 %v7553
      %7813 = vmatpush.bf16.msra.mxu0 %v7529
      %7814 = vmatpush.bf16.msra.mxu0 %v7505
      %7815 = vmatpush.bf16.msra.mxu0 %v7481
      %7816 = vmatpush.bf16.msra.mxu0 %v7457
      %7817 = vmatpush.bf16.msra.mxu0 %v7433
      %7818 = vmatpush.bf16.msra.mxu0 %v7409
      %7819 = vmatmul.bf16.gmra.mxu0 %v7588
      %v7820 = vpop.f32.mrf.mxu0
      %v7821 = vadd.f32 0.0, %v7820
      %v7822 = vpop.f32.mrf.mxu0
      %7823 = vdwg.mxu0
      %7824 = vmatpush.bf16.msra.mxu0 %v7578
      %7825 = vmatpush.bf16.msra.mxu0 %v7554
      %7826 = vmatpush.bf16.msra.mxu0 %v7530
      %7827 = vmatpush.bf16.msra.mxu0 %v7506
      %7828 = vmatpush.bf16.msra.mxu0 %v7482
      %7829 = vmatpush.bf16.msra.mxu0 %v7458
      %7830 = vmatpush.bf16.msra.mxu0 %v7434
      %7831 = vmatpush.bf16.msra.mxu0 %v7410
      %7832 = vmatmul.bf16.gmra.mxu0 %v7588
      %v7833 = vpop.f32.mrf.mxu0
      %v7834 = vadd.f32 0.0, %v7833
      %v7835 = vpop.f32.mrf.mxu0
      %7836 = vdwg.mxu0
      %7837 = vmatpush.bf16.msra.mxu0 %v7579
      %7838 = vmatpush.bf16.msra.mxu0 %v7555
      %7839 = vmatpush.bf16.msra.mxu0 %v7531
      %7840 = vmatpush.bf16.msra.mxu0 %v7507
      %7841 = vmatpush.bf16.msra.mxu0 %v7483
      %7842 = vmatpush.bf16.msra.mxu0 %v7459
      %7843 = vmatpush.bf16.msra.mxu0 %v7435
      %7844 = vmatpush.bf16.msra.mxu0 %v7411
      %7845 = vmatmul.bf16.gmra.mxu0 %v7588
      %v7846 = vpop.f32.mrf.mxu0
      %v7847 = vadd.f32 0.0, %v7846
      %v7848 = vpop.f32.mrf.mxu0
      %7849 = vdwg.mxu0
      %7850 = vmatpush.bf16.msra.mxu0 %v7580
      %7851 = vmatpush.bf16.msra.mxu0 %v7556
      %7852 = vmatpush.bf16.msra.mxu0 %v7532
      %7853 = vmatpush.bf16.msra.mxu0 %v7508
      %7854 = vmatpush.bf16.msra.mxu0 %v7484
      %7855 = vmatpush.bf16.msra.mxu0 %v7460
      %7856 = vmatpush.bf16.msra.mxu0 %v7436
      %7857 = vmatpush.bf16.msra.mxu0 %v7412
      %7858 = vmatmul.bf16.gmra.mxu0 %v7588
      %v7859 = vpop.f32.mrf.mxu0
      %v7860 = vadd.f32 0.0, %v7859
      %v7861 = vpop.f32.mrf.mxu0
      %7862 = vdwg.mxu0
      %7863 = vmatpush.bf16.msra.mxu0 %v7581
      %7864 = vmatpush.bf16.msra.mxu0 %v7557
      %7865 = vmatpush.bf16.msra.mxu0 %v7533
      %7866 = vmatpush.bf16.msra.mxu0 %v7509
      %7867 = vmatpush.bf16.msra.mxu0 %v7485
      %7868 = vmatpush.bf16.msra.mxu0 %v7461
      %7869 = vmatpush.bf16.msra.mxu0 %v7437
      %7870 = vmatpush.bf16.msra.mxu0 %v7413
      %7871 = vmatmul.bf16.gmra.mxu0 %v7588
      %v7872 = vpop.f32.mrf.mxu0
      %v7873 = vadd.f32 0.0, %v7872
      %v7874 = vpop.f32.mrf.mxu0
      %7875 = vdwg.mxu0
      %7876 = vmatpush.bf16.msra.mxu0 %v7582
      %7877 = vmatpush.bf16.msra.mxu0 %v7558
      %7878 = vmatpush.bf16.msra.mxu0 %v7534
      %7879 = vmatpush.bf16.msra.mxu0 %v7510
      %7880 = vmatpush.bf16.msra.mxu0 %v7486
      %7881 = vmatpush.bf16.msra.mxu0 %v7462
      %7882 = vmatpush.bf16.msra.mxu0 %v7438
      %7883 = vmatpush.bf16.msra.mxu0 %v7414
      %7884 = vmatmul.bf16.gmra.mxu0 %v7588
      %v7885 = vpop.f32.mrf.mxu0
      %v7886 = vadd.f32 0.0, %v7885
      %v7887 = vpop.f32.mrf.mxu0
      %7888 = vdwg.mxu0
      %7889 = vmatpush.bf16.msra.mxu0 %v7583
      %7890 = vmatpush.bf16.msra.mxu0 %v7559
      %7891 = vmatpush.bf16.msra.mxu0 %v7535
      %7892 = vmatpush.bf16.msra.mxu0 %v7511
      %7893 = vmatpush.bf16.msra.mxu0 %v7487
      %7894 = vmatpush.bf16.msra.mxu0 %v7463
      %7895 = vmatpush.bf16.msra.mxu0 %v7439
      %7896 = vmatpush.bf16.msra.mxu0 %v7415
      %7897 = vmatmul.bf16.gmra.mxu0 %v7588
      %v7898 = vpop.f32.mrf.mxu0
      %v7899 = vadd.f32 0.0, %v7898
      %v7900 = vpop.f32.mrf.mxu0
      %7901 = vdwg.mxu0
      %v7926 = vrot.slane %v7613, 7
      %v7927 = vrot.slane %v7626, 6
      %v7928 = vrot.slane %v7639, 5
      %v7929 = vrot.slane %v7652, 4
      %v7930 = vrot.slane %v7665, 3
      %v7931 = vrot.slane %v7678, 2
      %v7932 = vrot.slane %v7691, 1
      %v7933 = vrot.slane %v7717, 7
      %v7934 = vrot.slane %v7730, 6
      %v7935 = vrot.slane %v7743, 5
      %v7936 = vrot.slane %v7756, 4
      %v7937 = vrot.slane %v7769, 3
      %v7938 = vrot.slane %v7782, 2
      %v7939 = vrot.slane %v7795, 1
      %v7940 = vrot.slane %v7821, 7
      %v7941 = vrot.slane %v7834, 6
      %v7942 = vrot.slane %v7847, 5
      %v7943 = vrot.slane %v7860, 4
      %v7944 = vrot.slane %v7873, 3
      %v7945 = vrot.slane %v7886, 2
      %v7946 = vrot.slane %v7899, 1
      %vm7947 = vcmask 1040384
      %v7948 = vsel %vm7947, %v7600, %v7926
      %vm7949 = vcmask 1042434
      %v7950 = vsel %vm7949, %v7927, %v7928
      %vm7951 = vcmask 1041408
      %v7952 = vsel %vm7951, %v7948, %v7950
      %vm7953 = vcmask 1044484
      %v7954 = vsel %vm7953, %v7929, %v7930
      %vm7955 = vcmask 1046534
      %v7956 = vsel %vm7955, %v7931, %v7932
      %vm7957 = vcmask 1045508
      %v7958 = vsel %vm7957, %v7954, %v7956
      %v7959 = vsel %vm2309, %v7952, %v7958
      %v7960 = vsel %vm7947, %v7704, %v7933
      %v7961 = vsel %vm7949, %v7934, %v7935
      %v7962 = vsel %vm7951, %v7960, %v7961
      %v7963 = vsel %vm7953, %v7936, %v7937
      %v7964 = vsel %vm7955, %v7938, %v7939
      %v7965 = vsel %vm7957, %v7963, %v7964
      %v7966 = vsel %vm2309, %v7962, %v7965
      %v7967 = vsel %vm7947, %v7808, %v7940
      %v7968 = vsel %vm7949, %v7941, %v7942
      %v7969 = vsel %vm7951, %v7967, %v7968
      %v7970 = vsel %vm7953, %v7943, %v7944
      %v7971 = vsel %vm7955, %v7945, %v7946
      %v7972 = vsel %vm7957, %v7970, %v7971
      %v7973 = vsel %vm2309, %v7969, %v7972
      %7977 = vst [vmem:[%s520] sm:$0xff] %v7959
      %7978 = vst [vmem:[%s520 + $0x8] sm:$0xff] %v7966
      %7979 = vst [vmem:[%s520 + $0x10] sm:$0xff] %v7973
      %s7980 = smul.u32 24, %s30
      %p7981 = scmp.lt.s32.totalorder %s29, 1
      %s7982 = scalar_select %p7981, %s29, 1
      %p7983 = scmp.lt.s32.totalorder %s7980, 23
      %s7984 = scalar_select %p7983, %s7980, 23
      %s7985 = smul.addr %s7982, 24
      %s7986 = sadd.s32 %s7984, %s7985
      %s7987 = scalar_lea.vmem %s14, %s7986
      // Predicated region
      $region81: #{autoencoder_forward.1} parent=75 // pred_check
        %p7988 = pneg %p363
      $region82: #{autoencoder_forward.1} parent=75 // pred_check_branch
        %7990 = sbr.rel (%p7988) target = $region84
      $region83: #{autoencoder_forward.1} parent=75 // pred_region
        %s7991 = smul.u32 24, %s30
      $region84: #{autoencoder_forward.1} parent=75 // pred_fallthru
        _
    $region76: #{autoencoder_forward.1} parent=5 // pred_fallthru
      _
    %p7992 = scmp.le.s32.totalorder 2, %s20
    // Predicated region
    $region85: #{autoencoder_forward.1} parent=5 // pred_check
      %p7993 = pneg %p7992
    $region86: #{autoencoder_forward.1} parent=5 // pred_check_branch
      %7995 = sbr.rel (%p7993) target = $region88
    $region87: #{autoencoder_forward.1} parent=5 // pred_region
      %s7996 = ssub.s32 %s20, 2
      // Predicated region
      $region89: #{autoencoder_forward.1} parent=87 // pred_check
        %p7997 = pneg %p369
      $region90: #{autoencoder_forward.1} parent=87 // pred_check_branch
        %7999 = sbr.rel (%p7997) target = $region92
      $region91: #{autoencoder_forward.1} parent=87 // pred_region
        %s8000 = smul.u32 24, %s32
        %p8001 = scmp.lt.s32.totalorder %s31, 1
        %s8002 = scalar_select %p8001, %s31, 1
        %p8003 = scmp.lt.s32.totalorder %s8000, 23
        %s8004 = scalar_select %p8003, %s8000, 23
        %s8005 = smul.addr %s8002, 24
        %s8006 = sadd.s32 %s8004, %s8005
        %s8007 = scalar_lea.vmem %s14, %s8006
      $region92: #{autoencoder_forward.1} parent=87 // pred_fallthru
        _
    $region88: #{autoencoder_forward.1} parent=5 // pred_fallthru
      _
  $region6: #{autoencoder_forward.1} parent=0 // loop_footer
    %s24 = sadd.s32 1, %s20
  $region7: #{autoencoder_forward.1} parent=0 // loop_footer_branch
    %19 = sbr.rel target = $region3
  $region8: #{autoencoder_forward.1} parent=0 // loop_exit
    _

</llo_original>
